<compile_context>
chip_gen: v7x
topology: tpu7x:2x2x1
jax: 0.10.0
libtpu: 0.0.40
codegen_flags: <defaults>
</compile_context>

<pallas_src>
import numpy as np
import jax
import jax.numpy as jnp
from jax.experimental import pallas as pl
from jax.experimental.pallas import tpu as pltpu

Z_DIM = 100
K = 4           # all ConvTranspose2d layers use 4x4 kernels
BN_EPS = 1e-5   # torch BatchNorm2d default
PAD = 8         # top/bottom pad rows of every activation scratch buffer

# Static architecture (28x28 output):
#   layer 0: 1x1   -> 4x4    (stride 1, pad 0)  + BN + ReLU
#   layer 1: 4x4   -> 8x8    (stride 2, pad 1)  + BN + ReLU
#   layer 2: 8x8   -> 16x16  (stride 2, pad 1)  + BN + ReLU
#   layer 3: 16x16 -> 28x28  (stride 2, pad 3)  + Tanh
LAYER_CFG = [(1, 0), (2, 1), (2, 1), (2, 3)]


# ------------------------------ fused kernel ------------------------------- #

def _make_kernel(N, chans):
    C0, C1, C2, C3 = chans
    KW = 4 * C0                 # lane width of every matmul input view (=256 @ fg=8)
    M = 4 * N                   # row count (M) of every matmul in the kernel

    def tap_dot(view_f32, w_bf16):
        return jnp.dot(view_f32.astype(jnp.bfloat16), w_bf16,
                       preferred_element_type=jnp.float32)

    def bn_relu(ys, gamma, beta, pool, bcast, count):
        # ys: list of (M, L) f32 pre-activations whose lanes repeat channel
        # blocks of size C.  One-pass batch stats, batched selector matmuls.
        s1 = ys[0].sum(axis=0, keepdims=True)
        s2 = (ys[0] * ys[0]).sum(axis=0, keepdims=True)
        for y in ys[1:]:
            s1 = s1 + y.sum(axis=0, keepdims=True)
            s2 = s2 + (y * y).sum(axis=0, keepdims=True)
        cs = jnp.dot(jnp.concatenate([s1, s2], axis=0), pool,
                     preferred_element_type=jnp.float32) * (1.0 / count)
        mean_c, msq_c = cs[0:1, :], cs[1:2, :]
        var_c = jnp.maximum(msq_c - mean_c * mean_c, 0.0)
        scale_c = gamma * jax.lax.rsqrt(var_c + BN_EPS)
        shift_c = beta - mean_c * scale_c
        sl = jnp.dot(jnp.concatenate([scale_c, shift_c], axis=0), bcast,
                     preferred_element_type=jnp.float32)
        return [jnp.maximum(y * sl[0:1, :] + sl[1:2, :], 0.0) for y in ys]

    def kernel(z_ref, w0_ref, w1_ref, w2_ref, w3_ref,
               p0_ref, q0_ref, p1_ref, q1_ref, p2_ref, q2_ref, gb_ref,
               out_ref, x1_ref, s1_ref, s2a_ref, s2b_ref):
        # zero only the pad rows of the scratch buffers (aligned 8-row stores)
        zeros_x = jnp.zeros((PAD, KW), jnp.float32)
        zeros_s = jnp.zeros((PAD, 2 * KW), jnp.float32)
        x1_ref[0:PAD, :] = zeros_x
        x1_ref[PAD + M:PAD + M + PAD, :] = zeros_x
        for ref in (s1_ref, s2a_ref, s2b_ref):
            ref[0:PAD, :] = zeros_s
            ref[PAD + M:PAD + M + PAD, :] = zeros_s

        # Every view below has 4 rows per image; the within-image row index
        # decides whether a +/-1 row-shifted tap is valid (image boundary).
        t_idx = jax.lax.broadcasted_iota(jnp.int32, (M, KW), 0) & 3
        ok_lo = t_idx != 0      # row-shift -1 valid
        ok_hi = t_idx != 3      # row-shift +1 valid

        def gamma_beta(layer, c):
            return (gb_ref[2 * layer:2 * layer + 1, :c],
                    gb_ref[2 * layer + 1:2 * layer + 2, :c])

        # ---- layer 0: z (1x1) -> 4x4xC0 -------------------------------------
        # z_ref is block-diagonally replicated (wrapper) so rows are (n, oh).
        y0 = jnp.dot(z_ref[...], w0_ref[...], preferred_element_type=jnp.float32)
        g, b = gamma_beta(0, C0)
        a0 = bn_relu([y0], g, b, p0_ref[...], q0_ref[...], 16.0 * N)[0]
        x1_ref[PAD:PAD + M, :] = a0                       # rows (n, ih), lanes (iw, ci)

        # ---- layer 1: 4x4xC0 -> 8x8xC1 (stride 2, pad 1) ---------------------
        v_m = jnp.where(ok_lo, x1_ref[PAD - 1:PAD - 1 + M, :], 0.0)
        v_0 = x1_ref[PAD:PAD + M, :]
        v_p = jnp.where(ok_hi, x1_ref[PAD + 1:PAD + 1 + M, :], 0.0)
        y1 = (tap_dot(v_m, w1_ref[0]) + tap_dot(v_0, w1_ref[1])
              + tap_dot(v_p, w1_ref[2]))                  # (M, 2*8*C1)
        g, b = gamma_beta(1, C1)
        a1 = bn_relu([y1], g, b, p1_ref[...], q1_ref[...], 64.0 * N)[0]
        s1_ref[PAD:PAD + M, :] = a1                       # rows (n, t), lanes (ph, iw, ci)

        # ---- layer 2: 8x8xC1 -> 16x16xC2 (stride 2, pad 1) -------------------
        # group A: output pair rows r' = 2t   (taps ih = 2t-1, 2t, 2t+1)
        # group B: output pair rows r' = 2t+1 (taps ih = 2t, 2t+1, 2t+2)
        a_m1 = jnp.where(ok_lo, s1_ref[PAD - 1:PAD - 1 + M, KW:2 * KW], 0.0)
        a_00 = s1_ref[PAD:PAD + M, 0:KW]
        a_01 = s1_ref[PAD:PAD + M, KW:2 * KW]
        b_p0 = jnp.where(ok_hi, s1_ref[PAD + 1:PAD + 1 + M, 0:KW], 0.0)
        y2a = (tap_dot(a_m1, w2_ref[0]) + tap_dot(a_00, w2_ref[1])
               + tap_dot(a_01, w2_ref[2]))
        y2b = (tap_dot(a_00, w2_ref[0]) + tap_dot(a_01, w2_ref[1])
               + tap_dot(b_p0, w2_ref[2]))
        g, b = gamma_beta(2, C2)
        a2a, a2b = bn_relu([y2a, y2b], g, b, p2_ref[...], q2_ref[...], 256.0 * N)
        s2a_ref[PAD:PAD + M, :] = a2a                     # covers ih = 4u, 4u+1
        s2b_ref[PAD:PAD + M, :] = a2b                     # covers ih = 4u+2, 4u+3

        # ---- layer 3: 16x16xC2 -> 28x28xC3 (stride 2, pad 3) + tanh ----------
        # 4 output groups m = r'' mod 4; the 2 extra pair rows per image
        # (r'' = 14, 15) are computed and discarded by the wrapper.
        c00 = s2a_ref[PAD:PAD + M, 0:KW]                  # ih = 4u
        c01 = s2a_ref[PAD:PAD + M, KW:2 * KW]             # ih = 4u+1
        c10 = s2b_ref[PAD:PAD + M, 0:KW]                  # ih = 4u+2
        c11 = s2b_ref[PAD:PAD + M, KW:2 * KW]             # ih = 4u+3
        d00 = s2a_ref[PAD + 1:PAD + 1 + M, 0:KW]          # ih = 4u+4
        d01 = s2a_ref[PAD + 1:PAD + 1 + M, KW:2 * KW]     # ih = 4u+5
        o0 = tap_dot(c00, w3_ref[0]) + tap_dot(c01, w3_ref[1]) + tap_dot(c10, w3_ref[2])
        o1 = tap_dot(c01, w3_ref[0]) + tap_dot(c10, w3_ref[1]) + tap_dot(c11, w3_ref[2])
        o2 = tap_dot(c10, w3_ref[0]) + tap_dot(c11, w3_ref[1]) + tap_dot(d00, w3_ref[2])
        o3 = tap_dot(c11, w3_ref[0]) + tap_dot(d00, w3_ref[1]) + tap_dot(d01, w3_ref[2])
        out_ref[0 * M:1 * M, :] = jnp.tanh(o0)
        out_ref[1 * M:2 * M, :] = jnp.tanh(o1)
        out_ref[2 * M:3 * M, :] = jnp.tanh(o2)
        out_ref[3 * M:4 * M, :] = jnp.tanh(o3)

    return kernel


# --------------------------- wrapper-side weight prep ----------------------- #

def _layer0_weight(w_t, z_pad):
    """(Cin, Cout, 4, 4) -> (4*z_pad, 4*Cout) bf16, rows (oh, ci), cols (ow, co)."""
    cin, cout = int(w_t.shape[0]), int(w_t.shape[1])
    wt = jnp.transpose(w_t, (2, 0, 3, 1))                    # (kh, ci, kw, co)
    wt = jnp.pad(wt, ((0, 0), (0, z_pad - cin), (0, 0), (0, 0)))
    return wt.reshape(4 * z_pad, 4 * cout).astype(jnp.bfloat16)


def _width_sel(p, w_in, w_out):
    sel = np.zeros((w_in, 4, w_out), np.float32)             # sel[iw, kw, ow]
    for ow in range(w_out):
        for kw in range(4):
            if (ow + p - kw) % 2 == 0:
                iw = (ow + p - kw) // 2
                if 0 <= iw < w_in:
                    sel[iw, kw, ow] = 1.0
    return sel


def _tap_weights(w_t, p, w_in, pad_cols_to=None):
    """Per-row-tap banded weights: (3, w_in*Cin, 2*w_out*Cout) bf16.

    Tap t is the input-row offset d = t - 1 for pad 1 and d = t for pad 3.
    Columns are ordered (output-row phase, ow, co) so even/odd output rows of a
    pair occupy the two lane halves.
    """
    cin, cout = int(w_t.shape[0]), int(w_t.shape[1])
    w_out = 2 * w_in - 2 * p + 2
    sel = jnp.asarray(_width_sel(p, w_in, w_out))
    taps = [[(0, 3)], [(0, 1), (1, 2)], [(1, 0)]]            # (phase, kh) per tap
    cols = 2 * w_out * cout
    mats = []
    for contribs in taps:
        w_d = jnp.zeros((w_in, cin, 2, w_out, cout), jnp.float32)
        for phase, kh in contribs:
            blk = jnp.einsum('iko,cdk->icod', sel, w_t[:, :, kh, :])
            w_d = w_d.at[:, :, phase].add(blk)
        m = w_d.reshape(w_in * cin, cols)
        if pad_cols_to is not None and pad_cols_to > cols:
            m = jnp.pad(m, ((0, 0), (0, pad_cols_to - cols)))
        mats.append(m)
    return jnp.stack(mats, axis=0).astype(jnp.bfloat16)


def dc_generator_forward(z_nchw, params):
    """z: (N, Z_DIM, 1, 1) f32 -> (N, C3, 28, 28); N must be a multiple of 8."""
    N = int(z_nchw.shape[0])
    zdim = int(z_nchw.shape[1])
    assert N % 8 == 0, "batch must be a multiple of 8"
    C0 = int(params["w0"].shape[1])
    C1 = int(params["w1"].shape[1])
    C2 = int(params["w2"].shape[1])
    C3 = int(params["w3"].shape[1])
    assert C1 * 2 == C0 and C2 * 4 == C0 and C0 % 32 == 0, "DC-GAN channel ladder"

    # z, block-diagonally replicated so layer 0 produces one (n, oh) row per dot row
    z_pad = zdim + ((-zdim) % 128)
    z2 = jnp.pad(z_nchw.reshape(N, zdim).astype(jnp.float32),
                 ((0, 0), (0, z_pad - zdim)))
    z_rep = jnp.einsum('ij,nz->nijz', jnp.eye(4, dtype=jnp.float32), z2)
    z_rep = z_rep.reshape(4 * N, 4 * z_pad).astype(jnp.bfloat16)

    w0 = _layer0_weight(params["w0"], z_pad)
    w1 = _tap_weights(params["w1"], 1, 4)
    w2 = _tap_weights(params["w2"], 1, 8)
    P3 = 56 * C3 + ((-56 * C3) % 128)                        # lane-dense layer-3 output
    w3 = _tap_weights(params["w3"], 3, 16, pad_cols_to=P3)

    def pool_bcast(c, l):                                    # BN channel selectors
        e = jnp.eye(c, dtype=jnp.float32)
        return jnp.tile(e, (l // c, 1)), jnp.tile(e, (1, l // c))

    p0, q0 = pool_bcast(C0, 4 * C0)
    p1, q1 = pool_bcast(C1, 16 * C1)
    p2, q2 = pool_bcast(C2, 32 * C2)

    cpad = max(C0, 128)
    cpad = cpad + ((-cpad) % 128)
    gb = jnp.zeros((6, cpad), jnp.float32)                   # packed gamma/beta
    for i, c in enumerate((C0, C1, C2)):
        gb = gb.at[2 * i, :c].set(params[f"gamma{i}"])
        gb = gb.at[2 * i + 1, :c].set(params[f"beta{i}"])

    kernel = _make_kernel(N, (C0, C1, C2, C3))
    vmem = pl.BlockSpec(memory_space=pltpu.MemorySpace.VMEM)
    compiler_params = None
    if N >= 128:
        # large batches want more than the default scoped-VMEM budget
        compiler_params = pltpu.CompilerParams(vmem_limit_bytes=56 * 1024 * 1024)

    out = pl.pallas_call(
        kernel,
        out_shape=jax.ShapeDtypeStruct((16 * N, P3), jnp.float32),
        in_specs=[vmem] * 12,
        out_specs=vmem,
        scratch_shapes=[
            pltpu.VMEM((4 * N + 2 * PAD, 4 * C0), jnp.float32),   # 4x4xC0  rows (n, ih)
            pltpu.VMEM((4 * N + 2 * PAD, 16 * C1), jnp.float32),  # 8x8xC1  phase slab
            pltpu.VMEM((4 * N + 2 * PAD, 32 * C2), jnp.float32),  # 16x16xC2 slab (rows 4u,4u+1)
            pltpu.VMEM((4 * N + 2 * PAD, 32 * C2), jnp.float32),  # 16x16xC2 slab (rows 4u+2,4u+3)
        ],
        compiler_params=compiler_params,
    )(z_rep, w0, w1, w2, w3, p0, q0, p1, q1, p2, q2, gb)

    # de-interleave the 4 output row-groups back to NCHW 28x28 (XLA glue)
    o = out[:, :56 * C3].reshape(4, N, 4, 2, 28, C3)         # (m, n, u, ph, ow, co)
    o = jnp.transpose(o, (1, 5, 2, 0, 3, 4)).reshape(N, C3, 32, 28)
    return o[:, :, :28, :]


# -------------------------- params & reference ----------------------------- #

def init_params(key, z_dim=Z_DIM, img_channels=1, features_g=8):
    chans = [z_dim, features_g * 8, features_g * 4, features_g * 2, img_channels]
    keys = jax.random.split(key, 8)
    params = {}
    for i in range(4):
        params[f"w{i}"] = 0.02 * jax.random.normal(
            keys[i], (chans[i], chans[i + 1], K, K), jnp.float32)
    for i in range(3):
        params[f"gamma{i}"] = 1.0 + 0.02 * jax.random.normal(
            keys[4 + i], (chans[i + 1],), jnp.float32)
        params[f"beta{i}"] = jnp.zeros((chans[i + 1],), jnp.float32)
    return params


def ref_forward(z_nchw, params):
    """Pure-JAX reference (XLA conv) for correctness checking."""
    x = z_nchw.astype(jnp.float32)
    for i, (stride, pad) in enumerate(LAYER_CFG):
        w = params[f"w{i}"]                                         # (Cin, Cout, K, K)
        w_conv = jnp.flip(jnp.transpose(w, (1, 0, 2, 3)), axis=(2, 3))
        pe = K - 1 - pad
        x = jax.lax.conv_general_dilated(
            x, w_conv, window_strides=(1, 1),
            padding=[(pe, pe), (pe, pe)],
            lhs_dilation=(stride, stride),
            dimension_numbers=("NCHW", "OIHW", "NCHW"),
        )
        if i < len(LAYER_CFG) - 1:
            mean = jnp.mean(x, axis=(0, 2, 3), keepdims=True)
            var = jnp.mean(jnp.square(x - mean), axis=(0, 2, 3), keepdims=True)
            x = (x - mean) * jax.lax.rsqrt(var + BN_EPS)
            gm = params[f"gamma{i}"].reshape(1, -1, 1, 1)
            bt = params[f"beta{i}"].reshape(1, -1, 1, 1)
            x = jnp.maximum(x * gm + bt, 0.0)
        else:
            x = jnp.tanh(x)
    return x


if __name__ == "__main__":
    key = jax.random.PRNGKey(0)
    pkey, zkey = jax.random.split(key)
    # small-but-faithful config: z_dim=100 (as in the module), features_g=8,
    # batch=16 (kernel supports any multiple of 8; use 64-512 in production).
    params = init_params(pkey, features_g=8)
    batch = 16
    z = jax.random.normal(zkey, (batch, Z_DIM, 1, 1), jnp.float32)

    out = jax.jit(dc_generator_forward)(z, params)
    out = jax.block_until_ready(out)
    assert out.shape == (batch, 1, 28, 28), out.shape
    assert bool(jnp.all(jnp.isfinite(out)))

    ref = ref_forward(z, params)
    max_err = float(jnp.max(jnp.abs(out - ref)))
    assert max_err < 0.1, f"mismatch vs reference, max abs err = {max_err}"

    print("KERNEL_OK")
</pallas_src>

<mosaic_0001>
module attributes {stable_mosaic.version = 11 : i64} {
  func.func @kernel(%arg0: memref<64x512xbf16, #tpu.memory_space<vmem>>, %arg1: memref<512x256xbf16, #tpu.memory_space<vmem>>, %arg2: memref<3x256x512xbf16, #tpu.memory_space<vmem>>, %arg3: memref<3x256x512xbf16, #tpu.memory_space<vmem>>, %arg4: memref<3x256x128xbf16, #tpu.memory_space<vmem>>, %arg5: memref<256x64xf32, #tpu.memory_space<vmem>>, %arg6: memref<64x256xf32, #tpu.memory_space<vmem>>, %arg7: memref<512x32xf32, #tpu.memory_space<vmem>>, %arg8: memref<32x512xf32, #tpu.memory_space<vmem>>, %arg9: memref<512x16xf32, #tpu.memory_space<vmem>>, %arg10: memref<16x512xf32, #tpu.memory_space<vmem>>, %arg11: memref<6x128xf32, #tpu.memory_space<vmem>>, %arg12: memref<256x128xf32, #tpu.memory_space<vmem>>, %arg13: memref<80x256xf32, #tpu.memory_space<vmem>>, %arg14: memref<80x512xf32, #tpu.memory_space<vmem>>, %arg15: memref<80x512xf32, #tpu.memory_space<vmem>>, %arg16: memref<80x512xf32, #tpu.memory_space<vmem>>) attributes {dimension_semantics = [], scalar_prefetch = 0 : i64, scratch_operands = 4 : i64, tpu.core_type = #tpu.core_type<tc>} {
    %cst = arith.constant 0.000000e+00 : f32
    %0 = vector.broadcast %cst : f32 to vector<8x256xf32>
    %cst_0 = arith.constant 0.000000e+00 : f32
    %1 = vector.broadcast %cst_0 : f32 to vector<8x512xf32>
    %c0 = arith.constant 0 : index
    %c0_1 = arith.constant 0 : index
    %2 = vector.load %arg13[%c0, %c0_1] : memref<80x256xf32, #tpu.memory_space<vmem>>, vector<8x256xf32>
    tpu.vector_store %arg13[%c0, %c0_1], %0 {strides = array<i32>} : memref<80x256xf32, #tpu.memory_space<vmem>>, vector<8x256xf32>,
    %c72 = arith.constant 72 : index
    %c0_2 = arith.constant 0 : index
    %3 = vector.load %arg13[%c72, %c0_2] : memref<80x256xf32, #tpu.memory_space<vmem>>, vector<8x256xf32>
    tpu.vector_store %arg13[%c72, %c0_2], %0 {strides = array<i32>} : memref<80x256xf32, #tpu.memory_space<vmem>>, vector<8x256xf32>,
    %c0_3 = arith.constant 0 : index
    %c0_4 = arith.constant 0 : index
    %4 = vector.load %arg14[%c0_3, %c0_4] : memref<80x512xf32, #tpu.memory_space<vmem>>, vector<8x512xf32>
    tpu.vector_store %arg14[%c0_3, %c0_4], %1 {strides = array<i32>} : memref<80x512xf32, #tpu.memory_space<vmem>>, vector<8x512xf32>,
    %c72_5 = arith.constant 72 : index
    %c0_6 = arith.constant 0 : index
    %5 = vector.load %arg14[%c72_5, %c0_6] : memref<80x512xf32, #tpu.memory_space<vmem>>, vector<8x512xf32>
    tpu.vector_store %arg14[%c72_5, %c0_6], %1 {strides = array<i32>} : memref<80x512xf32, #tpu.memory_space<vmem>>, vector<8x512xf32>,
    %c0_7 = arith.constant 0 : index
    %c0_8 = arith.constant 0 : index
    %6 = vector.load %arg15[%c0_7, %c0_8] : memref<80x512xf32, #tpu.memory_space<vmem>>, vector<8x512xf32>
    tpu.vector_store %arg15[%c0_7, %c0_8], %1 {strides = array<i32>} : memref<80x512xf32, #tpu.memory_space<vmem>>, vector<8x512xf32>,
    %c72_9 = arith.constant 72 : index
    %c0_10 = arith.constant 0 : index
    %7 = vector.load %arg15[%c72_9, %c0_10] : memref<80x512xf32, #tpu.memory_space<vmem>>, vector<8x512xf32>
    tpu.vector_store %arg15[%c72_9, %c0_10], %1 {strides = array<i32>} : memref<80x512xf32, #tpu.memory_space<vmem>>, vector<8x512xf32>,
    %c0_11 = arith.constant 0 : index
    %c0_12 = arith.constant 0 : index
    %8 = vector.load %arg16[%c0_11, %c0_12] : memref<80x512xf32, #tpu.memory_space<vmem>>, vector<8x512xf32>
    tpu.vector_store %arg16[%c0_11, %c0_12], %1 {strides = array<i32>} : memref<80x512xf32, #tpu.memory_space<vmem>>, vector<8x512xf32>,
    %c72_13 = arith.constant 72 : index
    %c0_14 = arith.constant 0 : index
    %9 = vector.load %arg16[%c72_13, %c0_14] : memref<80x512xf32, #tpu.memory_space<vmem>>, vector<8x512xf32>
    tpu.vector_store %arg16[%c72_13, %c0_14], %1 {strides = array<i32>} : memref<80x512xf32, #tpu.memory_space<vmem>>, vector<8x512xf32>,
    %10 = tpu.iota {dimensions = array<i32: 0>} : vector<64x256xi32>
    %c3_i32 = arith.constant 3 : i32
    %11 = vector.broadcast %c3_i32 : i32 to vector<64x256xi32>
    %12 = arith.andi %10, %11 : vector<64x256xi32>
    %c0_i32 = arith.constant 0 : i32
    %13 = vector.broadcast %c0_i32 : i32 to vector<64x256xi32>
    %14 = arith.cmpi ne, %12, %13 : vector<64x256xi32>
    %c3_i32_15 = arith.constant 3 : i32
    %15 = vector.broadcast %c3_i32_15 : i32 to vector<64x256xi32>
    %16 = arith.cmpi ne, %12, %15 : vector<64x256xi32>
    %c0_16 = arith.constant 0 : index
    %c0_17 = arith.constant 0 : index
    %17 = vector.load %arg0[%c0_16, %c0_17] : memref<64x512xbf16, #tpu.memory_space<vmem>>, vector<64x512xbf16>
    %c0_18 = arith.constant 0 : index
    %c0_19 = arith.constant 0 : index
    %18 = vector.load %arg1[%c0_18, %c0_19] : memref<512x256xbf16, #tpu.memory_space<vmem>>, vector<512x256xbf16>
    %cst_20 = arith.constant dense<0.000000e+00> : vector<64x256xf32>
    %19 = tpu.matmul %17, %18, %cst_20 {dimension_numbers = #tpu.dot_dimension_numbers<[1], [0], [0], [1], [0, 0, 1, 1], [], []>} : vector<64x512xbf16>, vector<512x256xbf16>, vector<64x256xf32> -> vector<64x256xf32>
    %c0_21 = arith.constant 0 : index
    %c0_22 = arith.constant 0 : index
    %20 = vector.load %arg11[%c0_21, %c0_22] : memref<6x128xf32, #tpu.memory_space<vmem>>, vector<1x64xf32>
    %c1 = arith.constant 1 : index
    %c0_23 = arith.constant 0 : index
    %21 = vector.load %arg11[%c1, %c0_23] : memref<6x128xf32, #tpu.memory_space<vmem>>, vector<1x64xf32>
    %c0_24 = arith.constant 0 : index
    %c0_25 = arith.constant 0 : index
    %22 = vector.load %arg5[%c0_24, %c0_25] : memref<256x64xf32, #tpu.memory_space<vmem>>, vector<256x64xf32>
    %c0_26 = arith.constant 0 : index
    %c0_27 = arith.constant 0 : index
    %23 = vector.load %arg6[%c0_26, %c0_27] : memref<64x256xf32, #tpu.memory_space<vmem>>, vector<64x256xf32>
    %cst_28 = arith.constant dense<0.000000e+00> : vector<256xf32>
    %24 = vector.multi_reduction <add>, %19, %cst_28 [0] : vector<64x256xf32> to vector<256xf32>
    %25 = vector.shape_cast %24 : vector<256xf32> to vector<1x256xf32>
    %26 = arith.mulf %19, %19 : vector<64x256xf32>
    %cst_29 = arith.constant dense<0.000000e+00> : vector<256xf32>
    %27 = vector.multi_reduction <add>, %26, %cst_29 [0] : vector<64x256xf32> to vector<256xf32>
    %28 = vector.shape_cast %27 : vector<256xf32> to vector<1x256xf32>
    %29 = tpu.concatenate %25, %28 in 0 : vector<1x256xf32>, vector<1x256xf32> -> vector<2x256xf32>
    %cst_30 = arith.constant dense<0.000000e+00> : vector<2x64xf32>
    %30 = tpu.matmul %29, %22, %cst_30 {dimension_numbers = #tpu.dot_dimension_numbers<[1], [0], [0], [1], [0, 0, 1, 1], [], []>} : vector<2x256xf32>, vector<256x64xf32>, vector<2x64xf32> -> vector<2x64xf32>
    %cst_31 = arith.constant 3.906250e-03 : f32
    %31 = vector.broadcast %cst_31 : f32 to vector<2x64xf32>
    %32 = arith.mulf %30, %31 : vector<2x64xf32>
    %33 = vector.extract_strided_slice %32 {offsets = [0, 0], sizes = [1, 64], strides = [1, 1]} : vector<2x64xf32> to vector<1x64xf32>
    %34 = vector.extract_strided_slice %32 {offsets = [1, 0], sizes = [1, 64], strides = [1, 1]} : vector<2x64xf32> to vector<1x64xf32>
    %35 = arith.mulf %33, %33 : vector<1x64xf32>
    %36 = arith.subf %34, %35 : vector<1x64xf32>
    %cst_32 = arith.constant 0.000000e+00 : f32
    %37 = vector.broadcast %cst_32 : f32 to vector<1x64xf32>
    %38 = arith.maximumf %36, %37 : vector<1x64xf32>
    %cst_33 = arith.constant 9.99999974E-6 : f32
    %39 = vector.broadcast %cst_33 : f32 to vector<1x64xf32>
    %40 = arith.addf %38, %39 : vector<1x64xf32>
    %41 = math.rsqrt %40 : vector<1x64xf32>
    %42 = arith.mulf %20, %41 : vector<1x64xf32>
    %43 = arith.mulf %33, %42 : vector<1x64xf32>
    %44 = arith.subf %21, %43 : vector<1x64xf32>
    %45 = tpu.concatenate %42, %44 in 0 : vector<1x64xf32>, vector<1x64xf32> -> vector<2x64xf32>
    %cst_34 = arith.constant dense<0.000000e+00> : vector<2x256xf32>
    %46 = tpu.matmul %45, %23, %cst_34 {dimension_numbers = #tpu.dot_dimension_numbers<[1], [0], [0], [1], [0, 0, 1, 1], [], []>} : vector<2x64xf32>, vector<64x256xf32>, vector<2x256xf32> -> vector<2x256xf32>
    %47 = vector.extract_strided_slice %46 {offsets = [0, 0], sizes = [1, 256], strides = [1, 1]} : vector<2x256xf32> to vector<1x256xf32>
    %48 = vector.broadcast %47 : vector<1x256xf32> to vector<64x256xf32>
    %49 = arith.mulf %19, %48 : vector<64x256xf32>
    %50 = vector.extract_strided_slice %46 {offsets = [1, 0], sizes = [1, 256], strides = [1, 1]} : vector<2x256xf32> to vector<1x256xf32>
    %51 = vector.broadcast %50 : vector<1x256xf32> to vector<64x256xf32>
    %52 = arith.addf %49, %51 : vector<64x256xf32>
    %cst_35 = arith.constant 0.000000e+00 : f32
    %53 = vector.broadcast %cst_35 : f32 to vector<64x256xf32>
    %54 = arith.maximumf %52, %53 : vector<64x256xf32>
    %c8 = arith.constant 8 : index
    %c0_36 = arith.constant 0 : index
    %55 = vector.load %arg13[%c8, %c0_36] : memref<80x256xf32, #tpu.memory_space<vmem>>, vector<64x256xf32>
    tpu.vector_store %arg13[%c8, %c0_36], %54 {strides = array<i32>} : memref<80x256xf32, #tpu.memory_space<vmem>>, vector<64x256xf32>,
    %c7 = arith.constant 7 : index
    %c0_37 = arith.constant 0 : index
    %56 = vector.load %arg13[%c7, %c0_37] : memref<80x256xf32, #tpu.memory_space<vmem>>, vector<64x256xf32>
    %cst_38 = arith.constant 0.000000e+00 : f32
    %57 = vector.broadcast %cst_38 : f32 to vector<64x256xf32>
    %58 = arith.select %14, %56, %57 : vector<64x256xi1>, vector<64x256xf32>
    %c8_39 = arith.constant 8 : index
    %c0_40 = arith.constant 0 : index
    %59 = vector.load %arg13[%c8_39, %c0_40] : memref<80x256xf32, #tpu.memory_space<vmem>>, vector<64x256xf32>
    %c9 = arith.constant 9 : index
    %c0_41 = arith.constant 0 : index
    %60 = vector.load %arg13[%c9, %c0_41] : memref<80x256xf32, #tpu.memory_space<vmem>>, vector<64x256xf32>
    %cst_42 = arith.constant 0.000000e+00 : f32
    %61 = vector.broadcast %cst_42 : f32 to vector<64x256xf32>
    %62 = arith.select %16, %60, %61 : vector<64x256xi1>, vector<64x256xf32>
    %c0_43 = arith.constant 0 : index
    %c0_44 = arith.constant 0 : index
    %c0_45 = arith.constant 0 : index
    %63 = vector.load %arg2[%c0_43, %c0_44, %c0_45] : memref<3x256x512xbf16, #tpu.memory_space<vmem>>, vector<1x256x512xbf16>
    %64 = vector.shape_cast %63 : vector<1x256x512xbf16> to vector<256x512xbf16>
    %65 = arith.truncf %58 : vector<64x256xf32> to vector<64x256xbf16>
    %cst_46 = arith.constant dense<0.000000e+00> : vector<64x512xf32>
    %66 = tpu.matmul %65, %64, %cst_46 {dimension_numbers = #tpu.dot_dimension_numbers<[1], [0], [0], [1], [0, 0, 1, 1], [], []>} : vector<64x256xbf16>, vector<256x512xbf16>, vector<64x512xf32> -> vector<64x512xf32>
    %c1_47 = arith.constant 1 : index
    %c0_48 = arith.constant 0 : index
    %c0_49 = arith.constant 0 : index
    %67 = vector.load %arg2[%c1_47, %c0_48, %c0_49] : memref<3x256x512xbf16, #tpu.memory_space<vmem>>, vector<1x256x512xbf16>
    %68 = vector.shape_cast %67 : vector<1x256x512xbf16> to vector<256x512xbf16>
    %69 = arith.truncf %59 : vector<64x256xf32> to vector<64x256xbf16>
    %cst_50 = arith.constant dense<0.000000e+00> : vector<64x512xf32>
    %70 = tpu.matmul %69, %68, %cst_50 {dimension_numbers = #tpu.dot_dimension_numbers<[1], [0], [0], [1], [0, 0, 1, 1], [], []>} : vector<64x256xbf16>, vector<256x512xbf16>, vector<64x512xf32> -> vector<64x512xf32>
    %71 = arith.addf %66, %70 : vector<64x512xf32>
    %c2 = arith.constant 2 : index
    %c0_51 = arith.constant 0 : index
    %c0_52 = arith.constant 0 : index
    %72 = vector.load %arg2[%c2, %c0_51, %c0_52] : memref<3x256x512xbf16, #tpu.memory_space<vmem>>, vector<1x256x512xbf16>
    %73 = vector.shape_cast %72 : vector<1x256x512xbf16> to vector<256x512xbf16>
    %74 = arith.truncf %62 : vector<64x256xf32> to vector<64x256xbf16>
    %cst_53 = arith.constant dense<0.000000e+00> : vector<64x512xf32>
    %75 = tpu.matmul %74, %73, %cst_53 {dimension_numbers = #tpu.dot_dimension_numbers<[1], [0], [0], [1], [0, 0, 1, 1], [], []>} : vector<64x256xbf16>, vector<256x512xbf16>, vector<64x512xf32> -> vector<64x512xf32>
    %76 = arith.addf %71, %75 : vector<64x512xf32>
    %c2_54 = arith.constant 2 : index
    %c0_55 = arith.constant 0 : index
    %77 = vector.load %arg11[%c2_54, %c0_55] : memref<6x128xf32, #tpu.memory_space<vmem>>, vector<1x32xf32>
    %c3 = arith.constant 3 : index
    %c0_56 = arith.constant 0 : index
    %78 = vector.load %arg11[%c3, %c0_56] : memref<6x128xf32, #tpu.memory_space<vmem>>, vector<1x32xf32>
    %c0_57 = arith.constant 0 : index
    %c0_58 = arith.constant 0 : index
    %79 = vector.load %arg7[%c0_57, %c0_58] : memref<512x32xf32, #tpu.memory_space<vmem>>, vector<512x32xf32>
    %c0_59 = arith.constant 0 : index
    %c0_60 = arith.constant 0 : index
    %80 = vector.load %arg8[%c0_59, %c0_60] : memref<32x512xf32, #tpu.memory_space<vmem>>, vector<32x512xf32>
    %cst_61 = arith.constant dense<0.000000e+00> : vector<512xf32>
    %81 = vector.multi_reduction <add>, %76, %cst_61 [0] : vector<64x512xf32> to vector<512xf32>
    %82 = vector.shape_cast %81 : vector<512xf32> to vector<1x512xf32>
    %83 = arith.mulf %76, %76 : vector<64x512xf32>
    %cst_62 = arith.constant dense<0.000000e+00> : vector<512xf32>
    %84 = vector.multi_reduction <add>, %83, %cst_62 [0] : vector<64x512xf32> to vector<512xf32>
    %85 = vector.shape_cast %84 : vector<512xf32> to vector<1x512xf32>
    %86 = tpu.concatenate %82, %85 in 0 : vector<1x512xf32>, vector<1x512xf32> -> vector<2x512xf32>
    %cst_63 = arith.constant dense<0.000000e+00> : vector<2x32xf32>
    %87 = tpu.matmul %86, %79, %cst_63 {dimension_numbers = #tpu.dot_dimension_numbers<[1], [0], [0], [1], [0, 0, 1, 1], [], []>} : vector<2x512xf32>, vector<512x32xf32>, vector<2x32xf32> -> vector<2x32xf32>
    %cst_64 = arith.constant 9.765625E-4 : f32
    %88 = vector.broadcast %cst_64 : f32 to vector<2x32xf32>
    %89 = arith.mulf %87, %88 : vector<2x32xf32>
    %90 = vector.extract_strided_slice %89 {offsets = [0, 0], sizes = [1, 32], strides = [1, 1]} : vector<2x32xf32> to vector<1x32xf32>
    %91 = vector.extract_strided_slice %89 {offsets = [1, 0], sizes = [1, 32], strides = [1, 1]} : vector<2x32xf32> to vector<1x32xf32>
    %92 = arith.mulf %90, %90 : vector<1x32xf32>
    %93 = arith.subf %91, %92 : vector<1x32xf32>
    %cst_65 = arith.constant 0.000000e+00 : f32
    %94 = vector.broadcast %cst_65 : f32 to vector<1x32xf32>
    %95 = arith.maximumf %93, %94 : vector<1x32xf32>
    %cst_66 = arith.constant 9.99999974E-6 : f32
    %96 = vector.broadcast %cst_66 : f32 to vector<1x32xf32>
    %97 = arith.addf %95, %96 : vector<1x32xf32>
    %98 = math.rsqrt %97 : vector<1x32xf32>
    %99 = arith.mulf %77, %98 : vector<1x32xf32>
    %100 = arith.mulf %90, %99 : vector<1x32xf32>
    %101 = arith.subf %78, %100 : vector<1x32xf32>
    %102 = tpu.concatenate %99, %101 in 0 : vector<1x32xf32>, vector<1x32xf32> -> vector<2x32xf32>
    %cst_67 = arith.constant dense<0.000000e+00> : vector<2x512xf32>
    %103 = tpu.matmul %102, %80, %cst_67 {dimension_numbers = #tpu.dot_dimension_numbers<[1], [0], [0], [1], [0, 0, 1, 1], [], []>} : vector<2x32xf32>, vector<32x512xf32>, vector<2x512xf32> -> vector<2x512xf32>
    %104 = vector.extract_strided_slice %103 {offsets = [0, 0], sizes = [1, 512], strides = [1, 1]} : vector<2x512xf32> to vector<1x512xf32>
    %105 = vector.broadcast %104 : vector<1x512xf32> to vector<64x512xf32>
    %106 = arith.mulf %76, %105 : vector<64x512xf32>
    %107 = vector.extract_strided_slice %103 {offsets = [1, 0], sizes = [1, 512], strides = [1, 1]} : vector<2x512xf32> to vector<1x512xf32>
    %108 = vector.broadcast %107 : vector<1x512xf32> to vector<64x512xf32>
    %109 = arith.addf %106, %108 : vector<64x512xf32>
    %cst_68 = arith.constant 0.000000e+00 : f32
    %110 = vector.broadcast %cst_68 : f32 to vector<64x512xf32>
    %111 = arith.maximumf %109, %110 : vector<64x512xf32>
    %c8_69 = arith.constant 8 : index
    %c0_70 = arith.constant 0 : index
    %112 = vector.load %arg14[%c8_69, %c0_70] : memref<80x512xf32, #tpu.memory_space<vmem>>, vector<64x512xf32>
    tpu.vector_store %arg14[%c8_69, %c0_70], %111 {strides = array<i32>} : memref<80x512xf32, #tpu.memory_space<vmem>>, vector<64x512xf32>,
    %c7_71 = arith.constant 7 : index
    %c256 = arith.constant 256 : index
    %113 = vector.load %arg14[%c7_71, %c256] : memref<80x512xf32, #tpu.memory_space<vmem>>, vector<64x256xf32>
    %cst_72 = arith.constant 0.000000e+00 : f32
    %114 = vector.broadcast %cst_72 : f32 to vector<64x256xf32>
    %115 = arith.select %14, %113, %114 : vector<64x256xi1>, vector<64x256xf32>
    %c8_73 = arith.constant 8 : index
    %c0_74 = arith.constant 0 : index
    %116 = vector.load %arg14[%c8_73, %c0_74] : memref<80x512xf32, #tpu.memory_space<vmem>>, vector<64x256xf32>
    %c8_75 = arith.constant 8 : index
    %c256_76 = arith.constant 256 : index
    %117 = vector.load %arg14[%c8_75, %c256_76] : memref<80x512xf32, #tpu.memory_space<vmem>>, vector<64x256xf32>
    %c9_77 = arith.constant 9 : index
    %c0_78 = arith.constant 0 : index
    %118 = vector.load %arg14[%c9_77, %c0_78] : memref<80x512xf32, #tpu.memory_space<vmem>>, vector<64x256xf32>
    %cst_79 = arith.constant 0.000000e+00 : f32
    %119 = vector.broadcast %cst_79 : f32 to vector<64x256xf32>
    %120 = arith.select %16, %118, %119 : vector<64x256xi1>, vector<64x256xf32>
    %c0_80 = arith.constant 0 : index
    %c0_81 = arith.constant 0 : index
    %c0_82 = arith.constant 0 : index
    %121 = vector.load %arg3[%c0_80, %c0_81, %c0_82] : memref<3x256x512xbf16, #tpu.memory_space<vmem>>, vector<1x256x512xbf16>
    %122 = vector.shape_cast %121 : vector<1x256x512xbf16> to vector<256x512xbf16>
    %123 = arith.truncf %115 : vector<64x256xf32> to vector<64x256xbf16>
    %cst_83 = arith.constant dense<0.000000e+00> : vector<64x512xf32>
    %124 = tpu.matmul %123, %122, %cst_83 {dimension_numbers = #tpu.dot_dimension_numbers<[1], [0], [0], [1], [0, 0, 1, 1], [], []>} : vector<64x256xbf16>, vector<256x512xbf16>, vector<64x512xf32> -> vector<64x512xf32>
    %c1_84 = arith.constant 1 : index
    %c0_85 = arith.constant 0 : index
    %c0_86 = arith.constant 0 : index
    %125 = vector.load %arg3[%c1_84, %c0_85, %c0_86] : memref<3x256x512xbf16, #tpu.memory_space<vmem>>, vector<1x256x512xbf16>
    %126 = vector.shape_cast %125 : vector<1x256x512xbf16> to vector<256x512xbf16>
    %127 = arith.truncf %116 : vector<64x256xf32> to vector<64x256xbf16>
    %cst_87 = arith.constant dense<0.000000e+00> : vector<64x512xf32>
    %128 = tpu.matmul %127, %126, %cst_87 {dimension_numbers = #tpu.dot_dimension_numbers<[1], [0], [0], [1], [0, 0, 1, 1], [], []>} : vector<64x256xbf16>, vector<256x512xbf16>, vector<64x512xf32> -> vector<64x512xf32>
    %129 = arith.addf %124, %128 : vector<64x512xf32>
    %c2_88 = arith.constant 2 : index
    %c0_89 = arith.constant 0 : index
    %c0_90 = arith.constant 0 : index
    %130 = vector.load %arg3[%c2_88, %c0_89, %c0_90] : memref<3x256x512xbf16, #tpu.memory_space<vmem>>, vector<1x256x512xbf16>
    %131 = vector.shape_cast %130 : vector<1x256x512xbf16> to vector<256x512xbf16>
    %132 = arith.truncf %117 : vector<64x256xf32> to vector<64x256xbf16>
    %cst_91 = arith.constant dense<0.000000e+00> : vector<64x512xf32>
    %133 = tpu.matmul %132, %131, %cst_91 {dimension_numbers = #tpu.dot_dimension_numbers<[1], [0], [0], [1], [0, 0, 1, 1], [], []>} : vector<64x256xbf16>, vector<256x512xbf16>, vector<64x512xf32> -> vector<64x512xf32>
    %134 = arith.addf %129, %133 : vector<64x512xf32>
    %c0_92 = arith.constant 0 : index
    %c0_93 = arith.constant 0 : index
    %c0_94 = arith.constant 0 : index
    %135 = vector.load %arg3[%c0_92, %c0_93, %c0_94] : memref<3x256x512xbf16, #tpu.memory_space<vmem>>, vector<1x256x512xbf16>
    %136 = vector.shape_cast %135 : vector<1x256x512xbf16> to vector<256x512xbf16>
    %137 = arith.truncf %116 : vector<64x256xf32> to vector<64x256xbf16>
    %cst_95 = arith.constant dense<0.000000e+00> : vector<64x512xf32>
    %138 = tpu.matmul %137, %136, %cst_95 {dimension_numbers = #tpu.dot_dimension_numbers<[1], [0], [0], [1], [0, 0, 1, 1], [], []>} : vector<64x256xbf16>, vector<256x512xbf16>, vector<64x512xf32> -> vector<64x512xf32>
    %c1_96 = arith.constant 1 : index
    %c0_97 = arith.constant 0 : index
    %c0_98 = arith.constant 0 : index
    %139 = vector.load %arg3[%c1_96, %c0_97, %c0_98] : memref<3x256x512xbf16, #tpu.memory_space<vmem>>, vector<1x256x512xbf16>
    %140 = vector.shape_cast %139 : vector<1x256x512xbf16> to vector<256x512xbf16>
    %141 = arith.truncf %117 : vector<64x256xf32> to vector<64x256xbf16>
    %cst_99 = arith.constant dense<0.000000e+00> : vector<64x512xf32>
    %142 = tpu.matmul %141, %140, %cst_99 {dimension_numbers = #tpu.dot_dimension_numbers<[1], [0], [0], [1], [0, 0, 1, 1], [], []>} : vector<64x256xbf16>, vector<256x512xbf16>, vector<64x512xf32> -> vector<64x512xf32>
    %143 = arith.addf %138, %142 : vector<64x512xf32>
    %c2_100 = arith.constant 2 : index
    %c0_101 = arith.constant 0 : index
    %c0_102 = arith.constant 0 : index
    %144 = vector.load %arg3[%c2_100, %c0_101, %c0_102] : memref<3x256x512xbf16, #tpu.memory_space<vmem>>, vector<1x256x512xbf16>
    %145 = vector.shape_cast %144 : vector<1x256x512xbf16> to vector<256x512xbf16>
    %146 = arith.truncf %120 : vector<64x256xf32> to vector<64x256xbf16>
    %cst_103 = arith.constant dense<0.000000e+00> : vector<64x512xf32>
    %147 = tpu.matmul %146, %145, %cst_103 {dimension_numbers = #tpu.dot_dimension_numbers<[1], [0], [0], [1], [0, 0, 1, 1], [], []>} : vector<64x256xbf16>, vector<256x512xbf16>, vector<64x512xf32> -> vector<64x512xf32>
    %148 = arith.addf %143, %147 : vector<64x512xf32>
    %c4 = arith.constant 4 : index
    %c0_104 = arith.constant 0 : index
    %149 = vector.load %arg11[%c4, %c0_104] : memref<6x128xf32, #tpu.memory_space<vmem>>, vector<1x16xf32>
    %c5 = arith.constant 5 : index
    %c0_105 = arith.constant 0 : index
    %150 = vector.load %arg11[%c5, %c0_105] : memref<6x128xf32, #tpu.memory_space<vmem>>, vector<1x16xf32>
    %c0_106 = arith.constant 0 : index
    %c0_107 = arith.constant 0 : index
    %151 = vector.load %arg9[%c0_106, %c0_107] : memref<512x16xf32, #tpu.memory_space<vmem>>, vector<512x16xf32>
    %c0_108 = arith.constant 0 : index
    %c0_109 = arith.constant 0 : index
    %152 = vector.load %arg10[%c0_108, %c0_109] : memref<16x512xf32, #tpu.memory_space<vmem>>, vector<16x512xf32>
    %cst_110 = arith.constant dense<0.000000e+00> : vector<512xf32>
    %153 = vector.multi_reduction <add>, %134, %cst_110 [0] : vector<64x512xf32> to vector<512xf32>
    %154 = vector.shape_cast %153 : vector<512xf32> to vector<1x512xf32>
    %155 = arith.mulf %134, %134 : vector<64x512xf32>
    %cst_111 = arith.constant dense<0.000000e+00> : vector<512xf32>
    %156 = vector.multi_reduction <add>, %155, %cst_111 [0] : vector<64x512xf32> to vector<512xf32>
    %157 = vector.shape_cast %156 : vector<512xf32> to vector<1x512xf32>
    %cst_112 = arith.constant dense<0.000000e+00> : vector<512xf32>
    %158 = vector.multi_reduction <add>, %148, %cst_112 [0] : vector<64x512xf32> to vector<512xf32>
    %159 = vector.shape_cast %158 : vector<512xf32> to vector<1x512xf32>
    %160 = arith.addf %154, %159 : vector<1x512xf32>
    %161 = arith.mulf %148, %148 : vector<64x512xf32>
    %cst_113 = arith.constant dense<0.000000e+00> : vector<512xf32>
    %162 = vector.multi_reduction <add>, %161, %cst_113 [0] : vector<64x512xf32> to vector<512xf32>
    %163 = vector.shape_cast %162 : vector<512xf32> to vector<1x512xf32>
    %164 = arith.addf %157, %163 : vector<1x512xf32>
    %165 = tpu.concatenate %160, %164 in 0 : vector<1x512xf32>, vector<1x512xf32> -> vector<2x512xf32>
    %cst_114 = arith.constant dense<0.000000e+00> : vector<2x16xf32>
    %166 = tpu.matmul %165, %151, %cst_114 {dimension_numbers = #tpu.dot_dimension_numbers<[1], [0], [0], [1], [0, 0, 1, 1], [], []>} : vector<2x512xf32>, vector<512x16xf32>, vector<2x16xf32> -> vector<2x16xf32>
    %cst_115 = arith.constant 2.44140625E-4 : f32
    %167 = vector.broadcast %cst_115 : f32 to vector<2x16xf32>
    %168 = arith.mulf %166, %167 : vector<2x16xf32>
    %169 = vector.extract_strided_slice %168 {offsets = [0, 0], sizes = [1, 16], strides = [1, 1]} : vector<2x16xf32> to vector<1x16xf32>
    %170 = vector.extract_strided_slice %168 {offsets = [1, 0], sizes = [1, 16], strides = [1, 1]} : vector<2x16xf32> to vector<1x16xf32>
    %171 = arith.mulf %169, %169 : vector<1x16xf32>
    %172 = arith.subf %170, %171 : vector<1x16xf32>
    %cst_116 = arith.constant 0.000000e+00 : f32
    %173 = vector.broadcast %cst_116 : f32 to vector<1x16xf32>
    %174 = arith.maximumf %172, %173 : vector<1x16xf32>
    %cst_117 = arith.constant 9.99999974E-6 : f32
    %175 = vector.broadcast %cst_117 : f32 to vector<1x16xf32>
    %176 = arith.addf %174, %175 : vector<1x16xf32>
    %177 = math.rsqrt %176 : vector<1x16xf32>
    %178 = arith.mulf %149, %177 : vector<1x16xf32>
    %179 = arith.mulf %169, %178 : vector<1x16xf32>
    %180 = arith.subf %150, %179 : vector<1x16xf32>
    %181 = tpu.concatenate %178, %180 in 0 : vector<1x16xf32>, vector<1x16xf32> -> vector<2x16xf32>
    %cst_118 = arith.constant dense<0.000000e+00> : vector<2x512xf32>
    %182 = tpu.matmul %181, %152, %cst_118 {dimension_numbers = #tpu.dot_dimension_numbers<[1], [0], [0], [1], [0, 0, 1, 1], [], []>} : vector<2x16xf32>, vector<16x512xf32>, vector<2x512xf32> -> vector<2x512xf32>
    %183 = vector.extract_strided_slice %182 {offsets = [0, 0], sizes = [1, 512], strides = [1, 1]} : vector<2x512xf32> to vector<1x512xf32>
    %184 = vector.broadcast %183 : vector<1x512xf32> to vector<64x512xf32>
    %185 = arith.mulf %134, %184 : vector<64x512xf32>
    %186 = vector.extract_strided_slice %182 {offsets = [1, 0], sizes = [1, 512], strides = [1, 1]} : vector<2x512xf32> to vector<1x512xf32>
    %187 = vector.broadcast %186 : vector<1x512xf32> to vector<64x512xf32>
    %188 = arith.addf %185, %187 : vector<64x512xf32>
    %cst_119 = arith.constant 0.000000e+00 : f32
    %189 = vector.broadcast %cst_119 : f32 to vector<64x512xf32>
    %190 = arith.maximumf %188, %189 : vector<64x512xf32>
    %191 = vector.extract_strided_slice %182 {offsets = [0, 0], sizes = [1, 512], strides = [1, 1]} : vector<2x512xf32> to vector<1x512xf32>
    %192 = vector.broadcast %191 : vector<1x512xf32> to vector<64x512xf32>
    %193 = arith.mulf %148, %192 : vector<64x512xf32>
    %194 = vector.extract_strided_slice %182 {offsets = [1, 0], sizes = [1, 512], strides = [1, 1]} : vector<2x512xf32> to vector<1x512xf32>
    %195 = vector.broadcast %194 : vector<1x512xf32> to vector<64x512xf32>
    %196 = arith.addf %193, %195 : vector<64x512xf32>
    %cst_120 = arith.constant 0.000000e+00 : f32
    %197 = vector.broadcast %cst_120 : f32 to vector<64x512xf32>
    %198 = arith.maximumf %196, %197 : vector<64x512xf32>
    %c8_121 = arith.constant 8 : index
    %c0_122 = arith.constant 0 : index
    %199 = vector.load %arg15[%c8_121, %c0_122] : memref<80x512xf32, #tpu.memory_space<vmem>>, vector<64x512xf32>
    tpu.vector_store %arg15[%c8_121, %c0_122], %190 {strides = array<i32>} : memref<80x512xf32, #tpu.memory_space<vmem>>, vector<64x512xf32>,
    %c8_123 = arith.constant 8 : index
    %c0_124 = arith.constant 0 : index
    %200 = vector.load %arg16[%c8_123, %c0_124] : memref<80x512xf32, #tpu.memory_space<vmem>>, vector<64x512xf32>
    tpu.vector_store %arg16[%c8_123, %c0_124], %198 {strides = array<i32>} : memref<80x512xf32, #tpu.memory_space<vmem>>, vector<64x512xf32>,
    %c8_125 = arith.constant 8 : index
    %c0_126 = arith.constant 0 : index
    %201 = vector.load %arg15[%c8_125, %c0_126] : memref<80x512xf32, #tpu.memory_space<vmem>>, vector<64x256xf32>
    %c8_127 = arith.constant 8 : index
    %c256_128 = arith.constant 256 : index
    %202 = vector.load %arg15[%c8_127, %c256_128] : memref<80x512xf32, #tpu.memory_space<vmem>>, vector<64x256xf32>
    %c8_129 = arith.constant 8 : index
    %c0_130 = arith.constant 0 : index
    %203 = vector.load %arg16[%c8_129, %c0_130] : memref<80x512xf32, #tpu.memory_space<vmem>>, vector<64x256xf32>
    %c8_131 = arith.constant 8 : index
    %c256_132 = arith.constant 256 : index
    %204 = vector.load %arg16[%c8_131, %c256_132] : memref<80x512xf32, #tpu.memory_space<vmem>>, vector<64x256xf32>
    %c9_133 = arith.constant 9 : index
    %c0_134 = arith.constant 0 : index
    %205 = vector.load %arg15[%c9_133, %c0_134] : memref<80x512xf32, #tpu.memory_space<vmem>>, vector<64x256xf32>
    %c9_135 = arith.constant 9 : index
    %c256_136 = arith.constant 256 : index
    %206 = vector.load %arg15[%c9_135, %c256_136] : memref<80x512xf32, #tpu.memory_space<vmem>>, vector<64x256xf32>
    %c0_137 = arith.constant 0 : index
    %c0_138 = arith.constant 0 : index
    %c0_139 = arith.constant 0 : index
    %207 = vector.load %arg4[%c0_137, %c0_138, %c0_139] : memref<3x256x128xbf16, #tpu.memory_space<vmem>>, vector<1x256x128xbf16>
    %208 = vector.shape_cast %207 : vector<1x256x128xbf16> to vector<256x128xbf16>
    %209 = arith.truncf %201 : vector<64x256xf32> to vector<64x256xbf16>
    %cst_140 = arith.constant dense<0.000000e+00> : vector<64x128xf32>
    %210 = tpu.matmul %209, %208, %cst_140 {dimension_numbers = #tpu.dot_dimension_numbers<[1], [0], [0], [1], [0, 0, 1, 1], [], []>} : vector<64x256xbf16>, vector<256x128xbf16>, vector<64x128xf32> -> vector<64x128xf32>
    %c1_141 = arith.constant 1 : index
    %c0_142 = arith.constant 0 : index
    %c0_143 = arith.constant 0 : index
    %211 = vector.load %arg4[%c1_141, %c0_142, %c0_143] : memref<3x256x128xbf16, #tpu.memory_space<vmem>>, vector<1x256x128xbf16>
    %212 = vector.shape_cast %211 : vector<1x256x128xbf16> to vector<256x128xbf16>
    %213 = arith.truncf %202 : vector<64x256xf32> to vector<64x256xbf16>
    %cst_144 = arith.constant dense<0.000000e+00> : vector<64x128xf32>
    %214 = tpu.matmul %213, %212, %cst_144 {dimension_numbers = #tpu.dot_dimension_numbers<[1], [0], [0], [1], [0, 0, 1, 1], [], []>} : vector<64x256xbf16>, vector<256x128xbf16>, vector<64x128xf32> -> vector<64x128xf32>
    %215 = arith.addf %210, %214 : vector<64x128xf32>
    %c2_145 = arith.constant 2 : index
    %c0_146 = arith.constant 0 : index
    %c0_147 = arith.constant 0 : index
    %216 = vector.load %arg4[%c2_145, %c0_146, %c0_147] : memref<3x256x128xbf16, #tpu.memory_space<vmem>>, vector<1x256x128xbf16>
    %217 = vector.shape_cast %216 : vector<1x256x128xbf16> to vector<256x128xbf16>
    %218 = arith.truncf %203 : vector<64x256xf32> to vector<64x256xbf16>
    %cst_148 = arith.constant dense<0.000000e+00> : vector<64x128xf32>
    %219 = tpu.matmul %218, %217, %cst_148 {dimension_numbers = #tpu.dot_dimension_numbers<[1], [0], [0], [1], [0, 0, 1, 1], [], []>} : vector<64x256xbf16>, vector<256x128xbf16>, vector<64x128xf32> -> vector<64x128xf32>
    %220 = arith.addf %215, %219 : vector<64x128xf32>
    %c0_149 = arith.constant 0 : index
    %c0_150 = arith.constant 0 : index
    %c0_151 = arith.constant 0 : index
    %221 = vector.load %arg4[%c0_149, %c0_150, %c0_151] : memref<3x256x128xbf16, #tpu.memory_space<vmem>>, vector<1x256x128xbf16>
    %222 = vector.shape_cast %221 : vector<1x256x128xbf16> to vector<256x128xbf16>
    %223 = arith.truncf %202 : vector<64x256xf32> to vector<64x256xbf16>
    %cst_152 = arith.constant dense<0.000000e+00> : vector<64x128xf32>
    %224 = tpu.matmul %223, %222, %cst_152 {dimension_numbers = #tpu.dot_dimension_numbers<[1], [0], [0], [1], [0, 0, 1, 1], [], []>} : vector<64x256xbf16>, vector<256x128xbf16>, vector<64x128xf32> -> vector<64x128xf32>
    %c1_153 = arith.constant 1 : index
    %c0_154 = arith.constant 0 : index
    %c0_155 = arith.constant 0 : index
    %225 = vector.load %arg4[%c1_153, %c0_154, %c0_155] : memref<3x256x128xbf16, #tpu.memory_space<vmem>>, vector<1x256x128xbf16>
    %226 = vector.shape_cast %225 : vector<1x256x128xbf16> to vector<256x128xbf16>
    %227 = arith.truncf %203 : vector<64x256xf32> to vector<64x256xbf16>
    %cst_156 = arith.constant dense<0.000000e+00> : vector<64x128xf32>
    %228 = tpu.matmul %227, %226, %cst_156 {dimension_numbers = #tpu.dot_dimension_numbers<[1], [0], [0], [1], [0, 0, 1, 1], [], []>} : vector<64x256xbf16>, vector<256x128xbf16>, vector<64x128xf32> -> vector<64x128xf32>
    %229 = arith.addf %224, %228 : vector<64x128xf32>
    %c2_157 = arith.constant 2 : index
    %c0_158 = arith.constant 0 : index
    %c0_159 = arith.constant 0 : index
    %230 = vector.load %arg4[%c2_157, %c0_158, %c0_159] : memref<3x256x128xbf16, #tpu.memory_space<vmem>>, vector<1x256x128xbf16>
    %231 = vector.shape_cast %230 : vector<1x256x128xbf16> to vector<256x128xbf16>
    %232 = arith.truncf %204 : vector<64x256xf32> to vector<64x256xbf16>
    %cst_160 = arith.constant dense<0.000000e+00> : vector<64x128xf32>
    %233 = tpu.matmul %232, %231, %cst_160 {dimension_numbers = #tpu.dot_dimension_numbers<[1], [0], [0], [1], [0, 0, 1, 1], [], []>} : vector<64x256xbf16>, vector<256x128xbf16>, vector<64x128xf32> -> vector<64x128xf32>
    %234 = arith.addf %229, %233 : vector<64x128xf32>
    %c0_161 = arith.constant 0 : index
    %c0_162 = arith.constant 0 : index
    %c0_163 = arith.constant 0 : index
    %235 = vector.load %arg4[%c0_161, %c0_162, %c0_163] : memref<3x256x128xbf16, #tpu.memory_space<vmem>>, vector<1x256x128xbf16>
    %236 = vector.shape_cast %235 : vector<1x256x128xbf16> to vector<256x128xbf16>
    %237 = arith.truncf %203 : vector<64x256xf32> to vector<64x256xbf16>
    %cst_164 = arith.constant dense<0.000000e+00> : vector<64x128xf32>
    %238 = tpu.matmul %237, %236, %cst_164 {dimension_numbers = #tpu.dot_dimension_numbers<[1], [0], [0], [1], [0, 0, 1, 1], [], []>} : vector<64x256xbf16>, vector<256x128xbf16>, vector<64x128xf32> -> vector<64x128xf32>
    %c1_165 = arith.constant 1 : index
    %c0_166 = arith.constant 0 : index
    %c0_167 = arith.constant 0 : index
    %239 = vector.load %arg4[%c1_165, %c0_166, %c0_167] : memref<3x256x128xbf16, #tpu.memory_space<vmem>>, vector<1x256x128xbf16>
    %240 = vector.shape_cast %239 : vector<1x256x128xbf16> to vector<256x128xbf16>
    %241 = arith.truncf %204 : vector<64x256xf32> to vector<64x256xbf16>
    %cst_168 = arith.constant dense<0.000000e+00> : vector<64x128xf32>
    %242 = tpu.matmul %241, %240, %cst_168 {dimension_numbers = #tpu.dot_dimension_numbers<[1], [0], [0], [1], [0, 0, 1, 1], [], []>} : vector<64x256xbf16>, vector<256x128xbf16>, vector<64x128xf32> -> vector<64x128xf32>
    %243 = arith.addf %238, %242 : vector<64x128xf32>
    %c2_169 = arith.constant 2 : index
    %c0_170 = arith.constant 0 : index
    %c0_171 = arith.constant 0 : index
    %244 = vector.load %arg4[%c2_169, %c0_170, %c0_171] : memref<3x256x128xbf16, #tpu.memory_space<vmem>>, vector<1x256x128xbf16>
    %245 = vector.shape_cast %244 : vector<1x256x128xbf16> to vector<256x128xbf16>
    %246 = arith.truncf %205 : vector<64x256xf32> to vector<64x256xbf16>
    %cst_172 = arith.constant dense<0.000000e+00> : vector<64x128xf32>
    %247 = tpu.matmul %246, %245, %cst_172 {dimension_numbers = #tpu.dot_dimension_numbers<[1], [0], [0], [1], [0, 0, 1, 1], [], []>} : vector<64x256xbf16>, vector<256x128xbf16>, vector<64x128xf32> -> vector<64x128xf32>
    %248 = arith.addf %243, %247 : vector<64x128xf32>
    %c0_173 = arith.constant 0 : index
    %c0_174 = arith.constant 0 : index
    %c0_175 = arith.constant 0 : index
    %249 = vector.load %arg4[%c0_173, %c0_174, %c0_175] : memref<3x256x128xbf16, #tpu.memory_space<vmem>>, vector<1x256x128xbf16>
    %250 = vector.shape_cast %249 : vector<1x256x128xbf16> to vector<256x128xbf16>
    %251 = arith.truncf %204 : vector<64x256xf32> to vector<64x256xbf16>
    %cst_176 = arith.constant dense<0.000000e+00> : vector<64x128xf32>
    %252 = tpu.matmul %251, %250, %cst_176 {dimension_numbers = #tpu.dot_dimension_numbers<[1], [0], [0], [1], [0, 0, 1, 1], [], []>} : vector<64x256xbf16>, vector<256x128xbf16>, vector<64x128xf32> -> vector<64x128xf32>
    %c1_177 = arith.constant 1 : index
    %c0_178 = arith.constant 0 : index
    %c0_179 = arith.constant 0 : index
    %253 = vector.load %arg4[%c1_177, %c0_178, %c0_179] : memref<3x256x128xbf16, #tpu.memory_space<vmem>>, vector<1x256x128xbf16>
    %254 = vector.shape_cast %253 : vector<1x256x128xbf16> to vector<256x128xbf16>
    %255 = arith.truncf %205 : vector<64x256xf32> to vector<64x256xbf16>
    %cst_180 = arith.constant dense<0.000000e+00> : vector<64x128xf32>
    %256 = tpu.matmul %255, %254, %cst_180 {dimension_numbers = #tpu.dot_dimension_numbers<[1], [0], [0], [1], [0, 0, 1, 1], [], []>} : vector<64x256xbf16>, vector<256x128xbf16>, vector<64x128xf32> -> vector<64x128xf32>
    %257 = arith.addf %252, %256 : vector<64x128xf32>
    %c2_181 = arith.constant 2 : index
    %c0_182 = arith.constant 0 : index
    %c0_183 = arith.constant 0 : index
    %258 = vector.load %arg4[%c2_181, %c0_182, %c0_183] : memref<3x256x128xbf16, #tpu.memory_space<vmem>>, vector<1x256x128xbf16>
    %259 = vector.shape_cast %258 : vector<1x256x128xbf16> to vector<256x128xbf16>
    %260 = arith.truncf %206 : vector<64x256xf32> to vector<64x256xbf16>
    %cst_184 = arith.constant dense<0.000000e+00> : vector<64x128xf32>
    %261 = tpu.matmul %260, %259, %cst_184 {dimension_numbers = #tpu.dot_dimension_numbers<[1], [0], [0], [1], [0, 0, 1, 1], [], []>} : vector<64x256xbf16>, vector<256x128xbf16>, vector<64x128xf32> -> vector<64x128xf32>
    %262 = arith.addf %257, %261 : vector<64x128xf32>
    %263 = math.tanh %220 : vector<64x128xf32>
    %c0_185 = arith.constant 0 : index
    %c0_186 = arith.constant 0 : index
    %264 = vector.load %arg12[%c0_185, %c0_186] : memref<256x128xf32, #tpu.memory_space<vmem>>, vector<64x128xf32>
    tpu.vector_store %arg12[%c0_185, %c0_186], %263 {strides = array<i32>} : memref<256x128xf32, #tpu.memory_space<vmem>>, vector<64x128xf32>,
    %265 = math.tanh %234 : vector<64x128xf32>
    %c64 = arith.constant 64 : index
    %c0_187 = arith.constant 0 : index
    %266 = vector.load %arg12[%c64, %c0_187] : memref<256x128xf32, #tpu.memory_space<vmem>>, vector<64x128xf32>
    tpu.vector_store %arg12[%c64, %c0_187], %265 {strides = array<i32>} : memref<256x128xf32, #tpu.memory_space<vmem>>, vector<64x128xf32>,
    %267 = math.tanh %248 : vector<64x128xf32>
    %c128 = arith.constant 128 : index
    %c0_188 = arith.constant 0 : index
    %268 = vector.load %arg12[%c128, %c0_188] : memref<256x128xf32, #tpu.memory_space<vmem>>, vector<64x128xf32>
    tpu.vector_store %arg12[%c128, %c0_188], %267 {strides = array<i32>} : memref<256x128xf32, #tpu.memory_space<vmem>>, vector<64x128xf32>,
    %269 = math.tanh %262 : vector<64x128xf32>
    %c192 = arith.constant 192 : index
    %c0_189 = arith.constant 0 : index
    %270 = vector.load %arg12[%c192, %c0_189] : memref<256x128xf32, #tpu.memory_space<vmem>>, vector<64x128xf32>
    tpu.vector_store %arg12[%c192, %c0_189], %269 {strides = array<i32>} : memref<256x128xf32, #tpu.memory_space<vmem>>, vector<64x128xf32>,
    return
  }
}

</mosaic_0001>

<llo_original>
// kernel: tile.39
$region0: #{tile.39}
  %s0 = inlined_call_operand.vmem [shape: f32[64,4,64], index: 0, kind: input, shape index: {}]
  %s1 = inlined_call_operand.vmem [shape: f32[64,256], index: 1, kind: output, shape index: {}]
  $region1: #{tile.39} parent=0
    #allocation0 [shape = 'u8[262144]{0}', space=vmem, size = 0x40000, scoped, tag = 'scoped mem for input reshape']
    %s3 = sshllo.u32 0, 4
    %s4 = smul.addr 4, 63
    %s5 = scalar_lea.vmem %s0, %s4
    %v6 = vld [vmem:[%s5] sm:%s3]
    %s7 = scalar_lea.vmem [#allocation0], 504
    %8 = vst [vmem:[%s7] sm:%s3] %v6
    %s9 = smul.addr 4, 62
    %s10 = scalar_lea.vmem %s0, %s9
    %v11 = vld [vmem:[%s10] sm:%s3]
    %s12 = scalar_lea.vmem [#allocation0], 496
    %13 = vst [vmem:[%s12] sm:%s3] %v11
    %s14 = smul.addr 4, 61
    %s15 = scalar_lea.vmem %s0, %s14
    %v16 = vld [vmem:[%s15] sm:%s3]
    %s17 = scalar_lea.vmem [#allocation0], 488
    %18 = vst [vmem:[%s17] sm:%s3] %v16
    %s19 = smul.addr 4, 60
    %s20 = scalar_lea.vmem %s0, %s19
    %v21 = vld [vmem:[%s20] sm:%s3]
    %s22 = scalar_lea.vmem [#allocation0], 480
    %23 = vst [vmem:[%s22] sm:%s3] %v21
    %s24 = smul.addr 4, 59
    %s25 = scalar_lea.vmem %s0, %s24
    %v26 = vld [vmem:[%s25] sm:%s3]
    %s27 = scalar_lea.vmem [#allocation0], 472
    %28 = vst [vmem:[%s27] sm:%s3] %v26
    %s29 = smul.addr 4, 58
    %s30 = scalar_lea.vmem %s0, %s29
    %v31 = vld [vmem:[%s30] sm:%s3]
    %s32 = scalar_lea.vmem [#allocation0], 464
    %33 = vst [vmem:[%s32] sm:%s3] %v31
    %s34 = smul.addr 4, 57
    %s35 = scalar_lea.vmem %s0, %s34
    %v36 = vld [vmem:[%s35] sm:%s3]
    %s37 = scalar_lea.vmem [#allocation0], 456
    %38 = vst [vmem:[%s37] sm:%s3] %v36
    %s39 = smul.addr 4, 56
    %s40 = scalar_lea.vmem %s0, %s39
    %v41 = vld [vmem:[%s40] sm:%s3]
    %s42 = scalar_lea.vmem [#allocation0], 448
    %43 = vst [vmem:[%s42] sm:%s3] %v41
    %s44 = smul.addr 4, 55
    %s45 = scalar_lea.vmem %s0, %s44
    %v46 = vld [vmem:[%s45] sm:%s3]
    %s47 = scalar_lea.vmem [#allocation0], 440
    %48 = vst [vmem:[%s47] sm:%s3] %v46
    %s49 = smul.addr 4, 54
    %s50 = scalar_lea.vmem %s0, %s49
    %v51 = vld [vmem:[%s50] sm:%s3]
    %s52 = scalar_lea.vmem [#allocation0], 432
    %53 = vst [vmem:[%s52] sm:%s3] %v51
    %s54 = smul.addr 4, 53
    %s55 = scalar_lea.vmem %s0, %s54
    %v56 = vld [vmem:[%s55] sm:%s3]
    %s57 = scalar_lea.vmem [#allocation0], 424
    %58 = vst [vmem:[%s57] sm:%s3] %v56
    %s59 = smul.addr 4, 52
    %s60 = scalar_lea.vmem %s0, %s59
    %v61 = vld [vmem:[%s60] sm:%s3]
    %s62 = scalar_lea.vmem [#allocation0], 416
    %63 = vst [vmem:[%s62] sm:%s3] %v61
    %s64 = smul.addr 4, 51
    %s65 = scalar_lea.vmem %s0, %s64
    %v66 = vld [vmem:[%s65] sm:%s3]
    %s67 = scalar_lea.vmem [#allocation0], 408
    %68 = vst [vmem:[%s67] sm:%s3] %v66
    %s69 = smul.addr 4, 50
    %s70 = scalar_lea.vmem %s0, %s69
    %v71 = vld [vmem:[%s70] sm:%s3]
    %s72 = scalar_lea.vmem [#allocation0], 400
    %73 = vst [vmem:[%s72] sm:%s3] %v71
    %s74 = smul.addr 4, 49
    %s75 = scalar_lea.vmem %s0, %s74
    %v76 = vld [vmem:[%s75] sm:%s3]
    %s77 = scalar_lea.vmem [#allocation0], 392
    %78 = vst [vmem:[%s77] sm:%s3] %v76
    %s79 = smul.addr 4, 48
    %s80 = scalar_lea.vmem %s0, %s79
    %v81 = vld [vmem:[%s80] sm:%s3]
    %s82 = scalar_lea.vmem [#allocation0], 384
    %83 = vst [vmem:[%s82] sm:%s3] %v81
    %s84 = smul.addr 4, 47
    %s85 = scalar_lea.vmem %s0, %s84
    %v86 = vld [vmem:[%s85] sm:%s3]
    %s87 = scalar_lea.vmem [#allocation0], 376
    %88 = vst [vmem:[%s87] sm:%s3] %v86
    %s89 = smul.addr 4, 46
    %s90 = scalar_lea.vmem %s0, %s89
    %v91 = vld [vmem:[%s90] sm:%s3]
    %s92 = scalar_lea.vmem [#allocation0], 368
    %93 = vst [vmem:[%s92] sm:%s3] %v91
    %s94 = smul.addr 4, 45
    %s95 = scalar_lea.vmem %s0, %s94
    %v96 = vld [vmem:[%s95] sm:%s3]
    %s97 = scalar_lea.vmem [#allocation0], 360
    %98 = vst [vmem:[%s97] sm:%s3] %v96
    %s99 = smul.addr 4, 44
    %s100 = scalar_lea.vmem %s0, %s99
    %v101 = vld [vmem:[%s100] sm:%s3]
    %s102 = scalar_lea.vmem [#allocation0], 352
    %103 = vst [vmem:[%s102] sm:%s3] %v101
    %s104 = smul.addr 4, 43
    %s105 = scalar_lea.vmem %s0, %s104
    %v106 = vld [vmem:[%s105] sm:%s3]
    %s107 = scalar_lea.vmem [#allocation0], 344
    %108 = vst [vmem:[%s107] sm:%s3] %v106
    %s109 = smul.addr 4, 42
    %s110 = scalar_lea.vmem %s0, %s109
    %v111 = vld [vmem:[%s110] sm:%s3]
    %s112 = scalar_lea.vmem [#allocation0], 336
    %113 = vst [vmem:[%s112] sm:%s3] %v111
    %s114 = smul.addr 4, 41
    %s115 = scalar_lea.vmem %s0, %s114
    %v116 = vld [vmem:[%s115] sm:%s3]
    %s117 = scalar_lea.vmem [#allocation0], 328
    %118 = vst [vmem:[%s117] sm:%s3] %v116
    %s119 = smul.addr 4, 40
    %s120 = scalar_lea.vmem %s0, %s119
    %v121 = vld [vmem:[%s120] sm:%s3]
    %s122 = scalar_lea.vmem [#allocation0], 320
    %123 = vst [vmem:[%s122] sm:%s3] %v121
    %s124 = smul.addr 4, 39
    %s125 = scalar_lea.vmem %s0, %s124
    %v126 = vld [vmem:[%s125] sm:%s3]
    %s127 = scalar_lea.vmem [#allocation0], 312
    %128 = vst [vmem:[%s127] sm:%s3] %v126
    %s129 = smul.addr 4, 38
    %s130 = scalar_lea.vmem %s0, %s129
    %v131 = vld [vmem:[%s130] sm:%s3]
    %s132 = scalar_lea.vmem [#allocation0], 304
    %133 = vst [vmem:[%s132] sm:%s3] %v131
    %s134 = smul.addr 4, 37
    %s135 = scalar_lea.vmem %s0, %s134
    %v136 = vld [vmem:[%s135] sm:%s3]
    %s137 = scalar_lea.vmem [#allocation0], 296
    %138 = vst [vmem:[%s137] sm:%s3] %v136
    %s139 = smul.addr 4, 36
    %s140 = scalar_lea.vmem %s0, %s139
    %v141 = vld [vmem:[%s140] sm:%s3]
    %s142 = scalar_lea.vmem [#allocation0], 288
    %143 = vst [vmem:[%s142] sm:%s3] %v141
    %s144 = smul.addr 4, 35
    %s145 = scalar_lea.vmem %s0, %s144
    %v146 = vld [vmem:[%s145] sm:%s3]
    %s147 = scalar_lea.vmem [#allocation0], 280
    %148 = vst [vmem:[%s147] sm:%s3] %v146
    %s149 = smul.addr 4, 34
    %s150 = scalar_lea.vmem %s0, %s149
    %v151 = vld [vmem:[%s150] sm:%s3]
    %s152 = scalar_lea.vmem [#allocation0], 272
    %153 = vst [vmem:[%s152] sm:%s3] %v151
    %s154 = smul.addr 4, 33
    %s155 = scalar_lea.vmem %s0, %s154
    %v156 = vld [vmem:[%s155] sm:%s3]
    %s157 = scalar_lea.vmem [#allocation0], 264
    %158 = vst [vmem:[%s157] sm:%s3] %v156
    %s159 = smul.addr 4, 32
    %s160 = scalar_lea.vmem %s0, %s159
    %v161 = vld [vmem:[%s160] sm:%s3]
    %s162 = scalar_lea.vmem [#allocation0], 256
    %163 = vst [vmem:[%s162] sm:%s3] %v161
    %s164 = smul.addr 4, 31
    %s165 = scalar_lea.vmem %s0, %s164
    %v166 = vld [vmem:[%s165] sm:%s3]
    %s167 = scalar_lea.vmem [#allocation0], 248
    %168 = vst [vmem:[%s167] sm:%s3] %v166
    %s169 = smul.addr 4, 30
    %s170 = scalar_lea.vmem %s0, %s169
    %v171 = vld [vmem:[%s170] sm:%s3]
    %s172 = scalar_lea.vmem [#allocation0], 240
    %173 = vst [vmem:[%s172] sm:%s3] %v171
    %s174 = smul.addr 4, 29
    %s175 = scalar_lea.vmem %s0, %s174
    %v176 = vld [vmem:[%s175] sm:%s3]
    %s177 = scalar_lea.vmem [#allocation0], 232
    %178 = vst [vmem:[%s177] sm:%s3] %v176
    %s179 = smul.addr 4, 28
    %s180 = scalar_lea.vmem %s0, %s179
    %v181 = vld [vmem:[%s180] sm:%s3]
    %s182 = scalar_lea.vmem [#allocation0], 224
    %183 = vst [vmem:[%s182] sm:%s3] %v181
    %s184 = smul.addr 4, 27
    %s185 = scalar_lea.vmem %s0, %s184
    %v186 = vld [vmem:[%s185] sm:%s3]
    %s187 = scalar_lea.vmem [#allocation0], 216
    %188 = vst [vmem:[%s187] sm:%s3] %v186
    %s189 = smul.addr 4, 26
    %s190 = scalar_lea.vmem %s0, %s189
    %v191 = vld [vmem:[%s190] sm:%s3]
    %s192 = scalar_lea.vmem [#allocation0], 208
    %193 = vst [vmem:[%s192] sm:%s3] %v191
    %s194 = smul.addr 4, 25
    %s195 = scalar_lea.vmem %s0, %s194
    %v196 = vld [vmem:[%s195] sm:%s3]
    %s197 = scalar_lea.vmem [#allocation0], 200
    %198 = vst [vmem:[%s197] sm:%s3] %v196
    %s199 = smul.addr 4, 24
    %s200 = scalar_lea.vmem %s0, %s199
    %v201 = vld [vmem:[%s200] sm:%s3]
    %s202 = scalar_lea.vmem [#allocation0], 192
    %203 = vst [vmem:[%s202] sm:%s3] %v201
    %s204 = smul.addr 4, 23
    %s205 = scalar_lea.vmem %s0, %s204
    %v206 = vld [vmem:[%s205] sm:%s3]
    %s207 = scalar_lea.vmem [#allocation0], 184
    %208 = vst [vmem:[%s207] sm:%s3] %v206
    %s209 = smul.addr 4, 22
    %s210 = scalar_lea.vmem %s0, %s209
    %v211 = vld [vmem:[%s210] sm:%s3]
    %s212 = scalar_lea.vmem [#allocation0], 176
    %213 = vst [vmem:[%s212] sm:%s3] %v211
    %s214 = smul.addr 4, 21
    %s215 = scalar_lea.vmem %s0, %s214
    %v216 = vld [vmem:[%s215] sm:%s3]
    %s217 = scalar_lea.vmem [#allocation0], 168
    %218 = vst [vmem:[%s217] sm:%s3] %v216
    %s219 = smul.addr 4, 20
    %s220 = scalar_lea.vmem %s0, %s219
    %v221 = vld [vmem:[%s220] sm:%s3]
    %s222 = scalar_lea.vmem [#allocation0], 160
    %223 = vst [vmem:[%s222] sm:%s3] %v221
    %s224 = smul.addr 4, 19
    %s225 = scalar_lea.vmem %s0, %s224
    %v226 = vld [vmem:[%s225] sm:%s3]
    %s227 = scalar_lea.vmem [#allocation0], 152
    %228 = vst [vmem:[%s227] sm:%s3] %v226
    %s229 = smul.addr 4, 18
    %s230 = scalar_lea.vmem %s0, %s229
    %v231 = vld [vmem:[%s230] sm:%s3]
    %s232 = scalar_lea.vmem [#allocation0], 144
    %233 = vst [vmem:[%s232] sm:%s3] %v231
    %s234 = smul.addr 4, 17
    %s235 = scalar_lea.vmem %s0, %s234
    %v236 = vld [vmem:[%s235] sm:%s3]
    %s237 = scalar_lea.vmem [#allocation0], 136
    %238 = vst [vmem:[%s237] sm:%s3] %v236
    %s239 = smul.addr 4, 16
    %s240 = scalar_lea.vmem %s0, %s239
    %v241 = vld [vmem:[%s240] sm:%s3]
    %s242 = scalar_lea.vmem [#allocation0], 128
    %243 = vst [vmem:[%s242] sm:%s3] %v241
    %s244 = smul.addr 4, 15
    %s245 = scalar_lea.vmem %s0, %s244
    %v246 = vld [vmem:[%s245] sm:%s3]
    %s247 = scalar_lea.vmem [#allocation0], 120
    %248 = vst [vmem:[%s247] sm:%s3] %v246
    %s249 = smul.addr 4, 14
    %s250 = scalar_lea.vmem %s0, %s249
    %v251 = vld [vmem:[%s250] sm:%s3]
    %s252 = scalar_lea.vmem [#allocation0], 112
    %253 = vst [vmem:[%s252] sm:%s3] %v251
    %s254 = smul.addr 4, 13
    %s255 = scalar_lea.vmem %s0, %s254
    %v256 = vld [vmem:[%s255] sm:%s3]
    %s257 = scalar_lea.vmem [#allocation0], 104
    %258 = vst [vmem:[%s257] sm:%s3] %v256
    %s259 = smul.addr 4, 12
    %s260 = scalar_lea.vmem %s0, %s259
    %v261 = vld [vmem:[%s260] sm:%s3]
    %s262 = scalar_lea.vmem [#allocation0], 96
    %263 = vst [vmem:[%s262] sm:%s3] %v261
    %s264 = smul.addr 4, 11
    %s265 = scalar_lea.vmem %s0, %s264
    %v266 = vld [vmem:[%s265] sm:%s3]
    %s267 = scalar_lea.vmem [#allocation0], 88
    %268 = vst [vmem:[%s267] sm:%s3] %v266
    %s269 = smul.addr 4, 10
    %s270 = scalar_lea.vmem %s0, %s269
    %v271 = vld [vmem:[%s270] sm:%s3]
    %s272 = scalar_lea.vmem [#allocation0], 80
    %273 = vst [vmem:[%s272] sm:%s3] %v271
    %s274 = smul.addr 4, 9
    %s275 = scalar_lea.vmem %s0, %s274
    %v276 = vld [vmem:[%s275] sm:%s3]
    %s277 = scalar_lea.vmem [#allocation0], 72
    %278 = vst [vmem:[%s277] sm:%s3] %v276
    %s279 = smul.addr 4, 8
    %s280 = scalar_lea.vmem %s0, %s279
    %v281 = vld [vmem:[%s280] sm:%s3]
    %s282 = scalar_lea.vmem [#allocation0], 64
    %283 = vst [vmem:[%s282] sm:%s3] %v281
    %s284 = smul.addr 4, 7
    %s285 = scalar_lea.vmem %s0, %s284
    %v286 = vld [vmem:[%s285] sm:%s3]
    %s287 = scalar_lea.vmem [#allocation0], 56
    %288 = vst [vmem:[%s287] sm:%s3] %v286
    %s289 = smul.addr 4, 6
    %s290 = scalar_lea.vmem %s0, %s289
    %v291 = vld [vmem:[%s290] sm:%s3]
    %s292 = scalar_lea.vmem [#allocation0], 48
    %293 = vst [vmem:[%s292] sm:%s3] %v291
    %s294 = smul.addr 4, 5
    %s295 = scalar_lea.vmem %s0, %s294
    %v296 = vld [vmem:[%s295] sm:%s3]
    %s297 = scalar_lea.vmem [#allocation0], 40
    %298 = vst [vmem:[%s297] sm:%s3] %v296
    %s299 = smul.addr 4, 4
    %s300 = scalar_lea.vmem %s0, %s299
    %v301 = vld [vmem:[%s300] sm:%s3]
    %s302 = scalar_lea.vmem [#allocation0], 32
    %303 = vst [vmem:[%s302] sm:%s3] %v301
    %s304 = smul.addr 4, 3
    %s305 = scalar_lea.vmem %s0, %s304
    %v306 = vld [vmem:[%s305] sm:%s3]
    %s307 = scalar_lea.vmem [#allocation0], 24
    %308 = vst [vmem:[%s307] sm:%s3] %v306
    %s309 = smul.addr 4, 2
    %s310 = scalar_lea.vmem %s0, %s309
    %v311 = vld [vmem:[%s310] sm:%s3]
    %s312 = scalar_lea.vmem [#allocation0], 16
    %313 = vst [vmem:[%s312] sm:%s3] %v311
    %s314 = scalar_lea.vmem %s0, 4
    %v315 = vld [vmem:[%s314] sm:%s3]
    %s316 = scalar_lea.vmem [#allocation0], 8
    %317 = vst [vmem:[%s316] sm:%s3] %v315
    %v318 = vld [vmem:[%s0] sm:%s3]
    %319 = vst [vmem:[#allocation0] sm:%s3] %v318
    %s320 = smov 3
    %v321 = vld [vmem:[#allocation0] ss:$2 sm:%s320]
    %vm322 = vcmask 523264
    %323 = vst.msk [vmem:[%s1] ss:$8 sm:$0x3] %vm322, %v321
    %s324 = scalar_lea.vmem [#allocation0], 8
    %s325 = smov 3
    %v326 = vld [vmem:[%s324] ss:$2 sm:%s325]
    %vm327 = vcmask 523264
    %s328 = scalar_lea.vmem %s1, 1
    %329 = vst.msk [vmem:[%s328] ss:$8 sm:$0x3] %vm327, %v326
    %s330 = scalar_lea.vmem [#allocation0], 16
    %s331 = smov 3
    %v332 = vld [vmem:[%s330] ss:$2 sm:%s331]
    %vm333 = vcmask 523264
    %s334 = scalar_lea.vmem %s1, 2
    %335 = vst.msk [vmem:[%s334] ss:$8 sm:$0x3] %vm333, %v332
    %s336 = scalar_lea.vmem [#allocation0], 24
    %s337 = smov 3
    %v338 = vld [vmem:[%s336] ss:$2 sm:%s337]
    %vm339 = vcmask 523264
    %s340 = scalar_lea.vmem %s1, 3
    %341 = vst.msk [vmem:[%s340] ss:$8 sm:$0x3] %vm339, %v338
    %s342 = scalar_lea.vmem [#allocation0], 32
    %s343 = smov 3
    %v344 = vld [vmem:[%s342] ss:$2 sm:%s343]
    %vm345 = vcmask 523264
    %s346 = scalar_lea.vmem %s1, 4
    %347 = vst.msk [vmem:[%s346] ss:$8 sm:$0x3] %vm345, %v344
    %s348 = scalar_lea.vmem [#allocation0], 40
    %s349 = smov 3
    %v350 = vld [vmem:[%s348] ss:$2 sm:%s349]
    %vm351 = vcmask 523264
    %s352 = scalar_lea.vmem %s1, 5
    %353 = vst.msk [vmem:[%s352] ss:$8 sm:$0x3] %vm351, %v350
    %s354 = scalar_lea.vmem [#allocation0], 48
    %s355 = smov 3
    %v356 = vld [vmem:[%s354] ss:$2 sm:%s355]
    %vm357 = vcmask 523264
    %s358 = scalar_lea.vmem %s1, 6
    %359 = vst.msk [vmem:[%s358] ss:$8 sm:$0x3] %vm357, %v356
    %s360 = scalar_lea.vmem [#allocation0], 56
    %s361 = smov 3
    %v362 = vld [vmem:[%s360] ss:$2 sm:%s361]
    %vm363 = vcmask 523264
    %s364 = scalar_lea.vmem %s1, 7
    %365 = vst.msk [vmem:[%s364] ss:$8 sm:$0x3] %vm363, %v362
    %s366 = scalar_lea.vmem [#allocation0], 64
    %s367 = smov 3
    %v368 = vld [vmem:[%s366] ss:$2 sm:%s367]
    %vm369 = vcmask 523264
    %s370 = scalar_lea.vmem %s1, 16
    %371 = vst.msk [vmem:[%s370] ss:$8 sm:$0x3] %vm369, %v368
    %s372 = scalar_lea.vmem [#allocation0], 72
    %s373 = smov 3
    %v374 = vld [vmem:[%s372] ss:$2 sm:%s373]
    %vm375 = vcmask 523264
    %s376 = scalar_lea.vmem %s1, 17
    %377 = vst.msk [vmem:[%s376] ss:$8 sm:$0x3] %vm375, %v374
    %s378 = scalar_lea.vmem [#allocation0], 80
    %s379 = smov 3
    %v380 = vld [vmem:[%s378] ss:$2 sm:%s379]
    %vm381 = vcmask 523264
    %s382 = scalar_lea.vmem %s1, 18
    %383 = vst.msk [vmem:[%s382] ss:$8 sm:$0x3] %vm381, %v380
    %s384 = scalar_lea.vmem [#allocation0], 88
    %s385 = smov 3
    %v386 = vld [vmem:[%s384] ss:$2 sm:%s385]
    %vm387 = vcmask 523264
    %s388 = scalar_lea.vmem %s1, 19
    %389 = vst.msk [vmem:[%s388] ss:$8 sm:$0x3] %vm387, %v386
    %s390 = scalar_lea.vmem [#allocation0], 96
    %s391 = smov 3
    %v392 = vld [vmem:[%s390] ss:$2 sm:%s391]
    %vm393 = vcmask 523264
    %s394 = scalar_lea.vmem %s1, 20
    %395 = vst.msk [vmem:[%s394] ss:$8 sm:$0x3] %vm393, %v392
    %s396 = scalar_lea.vmem [#allocation0], 104
    %s397 = smov 3
    %v398 = vld [vmem:[%s396] ss:$2 sm:%s397]
    %vm399 = vcmask 523264
    %s400 = scalar_lea.vmem %s1, 21
    %401 = vst.msk [vmem:[%s400] ss:$8 sm:$0x3] %vm399, %v398
    %s402 = scalar_lea.vmem [#allocation0], 112
    %s403 = smov 3
    %v404 = vld [vmem:[%s402] ss:$2 sm:%s403]
    %vm405 = vcmask 523264
    %s406 = scalar_lea.vmem %s1, 22
    %407 = vst.msk [vmem:[%s406] ss:$8 sm:$0x3] %vm405, %v404
    %s408 = scalar_lea.vmem [#allocation0], 120
    %s409 = smov 3
    %v410 = vld [vmem:[%s408] ss:$2 sm:%s409]
    %vm411 = vcmask 523264
    %s412 = scalar_lea.vmem %s1, 23
    %413 = vst.msk [vmem:[%s412] ss:$8 sm:$0x3] %vm411, %v410
    %s414 = scalar_lea.vmem [#allocation0], 128
    %s415 = smov 3
    %v416 = vld [vmem:[%s414] ss:$2 sm:%s415]
    %vm417 = vcmask 523264
    %s418 = scalar_lea.vmem %s1, 32
    %419 = vst.msk [vmem:[%s418] ss:$8 sm:$0x3] %vm417, %v416
    %s420 = scalar_lea.vmem [#allocation0], 136
    %s421 = smov 3
    %v422 = vld [vmem:[%s420] ss:$2 sm:%s421]
    %vm423 = vcmask 523264
    %s424 = scalar_lea.vmem %s1, 33
    %425 = vst.msk [vmem:[%s424] ss:$8 sm:$0x3] %vm423, %v422
    %s426 = scalar_lea.vmem [#allocation0], 144
    %s427 = smov 3
    %v428 = vld [vmem:[%s426] ss:$2 sm:%s427]
    %vm429 = vcmask 523264
    %s430 = scalar_lea.vmem %s1, 34
    %431 = vst.msk [vmem:[%s430] ss:$8 sm:$0x3] %vm429, %v428
    %s432 = scalar_lea.vmem [#allocation0], 152
    %s433 = smov 3
    %v434 = vld [vmem:[%s432] ss:$2 sm:%s433]
    %vm435 = vcmask 523264
    %s436 = scalar_lea.vmem %s1, 35
    %437 = vst.msk [vmem:[%s436] ss:$8 sm:$0x3] %vm435, %v434
    %s438 = scalar_lea.vmem [#allocation0], 160
    %s439 = smov 3
    %v440 = vld [vmem:[%s438] ss:$2 sm:%s439]
    %vm441 = vcmask 523264
    %s442 = scalar_lea.vmem %s1, 36
    %443 = vst.msk [vmem:[%s442] ss:$8 sm:$0x3] %vm441, %v440
    %s444 = scalar_lea.vmem [#allocation0], 168
    %s445 = smov 3
    %v446 = vld [vmem:[%s444] ss:$2 sm:%s445]
    %vm447 = vcmask 523264
    %s448 = scalar_lea.vmem %s1, 37
    %449 = vst.msk [vmem:[%s448] ss:$8 sm:$0x3] %vm447, %v446
    %s450 = scalar_lea.vmem [#allocation0], 176
    %s451 = smov 3
    %v452 = vld [vmem:[%s450] ss:$2 sm:%s451]
    %vm453 = vcmask 523264
    %s454 = scalar_lea.vmem %s1, 38
    %455 = vst.msk [vmem:[%s454] ss:$8 sm:$0x3] %vm453, %v452
    %s456 = scalar_lea.vmem [#allocation0], 184
    %s457 = smov 3
    %v458 = vld [vmem:[%s456] ss:$2 sm:%s457]
    %vm459 = vcmask 523264
    %s460 = scalar_lea.vmem %s1, 39
    %461 = vst.msk [vmem:[%s460] ss:$8 sm:$0x3] %vm459, %v458
    %s462 = scalar_lea.vmem [#allocation0], 192
    %s463 = smov 3
    %v464 = vld [vmem:[%s462] ss:$2 sm:%s463]
    %vm465 = vcmask 523264
    %s466 = scalar_lea.vmem %s1, 48
    %467 = vst.msk [vmem:[%s466] ss:$8 sm:$0x3] %vm465, %v464
    %s468 = scalar_lea.vmem [#allocation0], 200
    %s469 = smov 3
    %v470 = vld [vmem:[%s468] ss:$2 sm:%s469]
    %vm471 = vcmask 523264
    %s472 = scalar_lea.vmem %s1, 49
    %473 = vst.msk [vmem:[%s472] ss:$8 sm:$0x3] %vm471, %v470
    %s474 = scalar_lea.vmem [#allocation0], 208
    %s475 = smov 3
    %v476 = vld [vmem:[%s474] ss:$2 sm:%s475]
    %vm477 = vcmask 523264
    %s478 = scalar_lea.vmem %s1, 50
    %479 = vst.msk [vmem:[%s478] ss:$8 sm:$0x3] %vm477, %v476
    %s480 = scalar_lea.vmem [#allocation0], 216
    %s481 = smov 3
    %v482 = vld [vmem:[%s480] ss:$2 sm:%s481]
    %vm483 = vcmask 523264
    %s484 = scalar_lea.vmem %s1, 51
    %485 = vst.msk [vmem:[%s484] ss:$8 sm:$0x3] %vm483, %v482
    %s486 = scalar_lea.vmem [#allocation0], 224
    %s487 = smov 3
    %v488 = vld [vmem:[%s486] ss:$2 sm:%s487]
    %vm489 = vcmask 523264
    %s490 = scalar_lea.vmem %s1, 52
    %491 = vst.msk [vmem:[%s490] ss:$8 sm:$0x3] %vm489, %v488
    %s492 = scalar_lea.vmem [#allocation0], 232
    %s493 = smov 3
    %v494 = vld [vmem:[%s492] ss:$2 sm:%s493]
    %vm495 = vcmask 523264
    %s496 = scalar_lea.vmem %s1, 53
    %497 = vst.msk [vmem:[%s496] ss:$8 sm:$0x3] %vm495, %v494
    %s498 = scalar_lea.vmem [#allocation0], 240
    %s499 = smov 3
    %v500 = vld [vmem:[%s498] ss:$2 sm:%s499]
    %vm501 = vcmask 523264
    %s502 = scalar_lea.vmem %s1, 54
    %503 = vst.msk [vmem:[%s502] ss:$8 sm:$0x3] %vm501, %v500
    %s504 = scalar_lea.vmem [#allocation0], 248
    %s505 = smov 3
    %v506 = vld [vmem:[%s504] ss:$2 sm:%s505]
    %vm507 = vcmask 523264
    %s508 = scalar_lea.vmem %s1, 55
    %509 = vst.msk [vmem:[%s508] ss:$8 sm:$0x3] %vm507, %v506
    %s510 = scalar_lea.vmem [#allocation0], 256
    %s511 = smov 3
    %v512 = vld [vmem:[%s510] ss:$2 sm:%s511]
    %vm513 = vcmask 523264
    %s514 = scalar_lea.vmem %s1, 64
    %515 = vst.msk [vmem:[%s514] ss:$8 sm:$0x3] %vm513, %v512
    %s516 = scalar_lea.vmem [#allocation0], 264
    %s517 = smov 3
    %v518 = vld [vmem:[%s516] ss:$2 sm:%s517]
    %vm519 = vcmask 523264
    %s520 = scalar_lea.vmem %s1, 65
    %521 = vst.msk [vmem:[%s520] ss:$8 sm:$0x3] %vm519, %v518
    %s522 = scalar_lea.vmem [#allocation0], 272
    %s523 = smov 3
    %v524 = vld [vmem:[%s522] ss:$2 sm:%s523]
    %vm525 = vcmask 523264
    %s526 = scalar_lea.vmem %s1, 66
    %527 = vst.msk [vmem:[%s526] ss:$8 sm:$0x3] %vm525, %v524
    %s528 = scalar_lea.vmem [#allocation0], 280
    %s529 = smov 3
    %v530 = vld [vmem:[%s528] ss:$2 sm:%s529]
    %vm531 = vcmask 523264
    %s532 = scalar_lea.vmem %s1, 67
    %533 = vst.msk [vmem:[%s532] ss:$8 sm:$0x3] %vm531, %v530
    %s534 = scalar_lea.vmem [#allocation0], 288
    %s535 = smov 3
    %v536 = vld [vmem:[%s534] ss:$2 sm:%s535]
    %vm537 = vcmask 523264
    %s538 = scalar_lea.vmem %s1, 68
    %539 = vst.msk [vmem:[%s538] ss:$8 sm:$0x3] %vm537, %v536
    %s540 = scalar_lea.vmem [#allocation0], 296
    %s541 = smov 3
    %v542 = vld [vmem:[%s540] ss:$2 sm:%s541]
    %vm543 = vcmask 523264
    %s544 = scalar_lea.vmem %s1, 69
    %545 = vst.msk [vmem:[%s544] ss:$8 sm:$0x3] %vm543, %v542
    %s546 = scalar_lea.vmem [#allocation0], 304
    %s547 = smov 3
    %v548 = vld [vmem:[%s546] ss:$2 sm:%s547]
    %vm549 = vcmask 523264
    %s550 = scalar_lea.vmem %s1, 70
    %551 = vst.msk [vmem:[%s550] ss:$8 sm:$0x3] %vm549, %v548
    %s552 = scalar_lea.vmem [#allocation0], 312
    %s553 = smov 3
    %v554 = vld [vmem:[%s552] ss:$2 sm:%s553]
    %vm555 = vcmask 523264
    %s556 = scalar_lea.vmem %s1, 71
    %557 = vst.msk [vmem:[%s556] ss:$8 sm:$0x3] %vm555, %v554
    %s558 = scalar_lea.vmem [#allocation0], 320
    %s559 = smov 3
    %v560 = vld [vmem:[%s558] ss:$2 sm:%s559]
    %vm561 = vcmask 523264
    %s562 = scalar_lea.vmem %s1, 80
    %563 = vst.msk [vmem:[%s562] ss:$8 sm:$0x3] %vm561, %v560
    %s564 = scalar_lea.vmem [#allocation0], 328
    %s565 = smov 3
    %v566 = vld [vmem:[%s564] ss:$2 sm:%s565]
    %vm567 = vcmask 523264
    %s568 = scalar_lea.vmem %s1, 81
    %569 = vst.msk [vmem:[%s568] ss:$8 sm:$0x3] %vm567, %v566
    %s570 = scalar_lea.vmem [#allocation0], 336
    %s571 = smov 3
    %v572 = vld [vmem:[%s570] ss:$2 sm:%s571]
    %vm573 = vcmask 523264
    %s574 = scalar_lea.vmem %s1, 82
    %575 = vst.msk [vmem:[%s574] ss:$8 sm:$0x3] %vm573, %v572
    %s576 = scalar_lea.vmem [#allocation0], 344
    %s577 = smov 3
    %v578 = vld [vmem:[%s576] ss:$2 sm:%s577]
    %vm579 = vcmask 523264
    %s580 = scalar_lea.vmem %s1, 83
    %581 = vst.msk [vmem:[%s580] ss:$8 sm:$0x3] %vm579, %v578
    %s582 = scalar_lea.vmem [#allocation0], 352
    %s583 = smov 3
    %v584 = vld [vmem:[%s582] ss:$2 sm:%s583]
    %vm585 = vcmask 523264
    %s586 = scalar_lea.vmem %s1, 84
    %587 = vst.msk [vmem:[%s586] ss:$8 sm:$0x3] %vm585, %v584
    %s588 = scalar_lea.vmem [#allocation0], 360
    %s589 = smov 3
    %v590 = vld [vmem:[%s588] ss:$2 sm:%s589]
    %vm591 = vcmask 523264
    %s592 = scalar_lea.vmem %s1, 85
    %593 = vst.msk [vmem:[%s592] ss:$8 sm:$0x3] %vm591, %v590
    %s594 = scalar_lea.vmem [#allocation0], 368
    %s595 = smov 3
    %v596 = vld [vmem:[%s594] ss:$2 sm:%s595]
    %vm597 = vcmask 523264
    %s598 = scalar_lea.vmem %s1, 86
    %599 = vst.msk [vmem:[%s598] ss:$8 sm:$0x3] %vm597, %v596
    %s600 = scalar_lea.vmem [#allocation0], 376
    %s601 = smov 3
    %v602 = vld [vmem:[%s600] ss:$2 sm:%s601]
    %vm603 = vcmask 523264
    %s604 = scalar_lea.vmem %s1, 87
    %605 = vst.msk [vmem:[%s604] ss:$8 sm:$0x3] %vm603, %v602
    %s606 = scalar_lea.vmem [#allocation0], 384
    %s607 = smov 3
    %v608 = vld [vmem:[%s606] ss:$2 sm:%s607]
    %vm609 = vcmask 523264
    %s610 = scalar_lea.vmem %s1, 96
    %611 = vst.msk [vmem:[%s610] ss:$8 sm:$0x3] %vm609, %v608
    %s612 = scalar_lea.vmem [#allocation0], 392
    %s613 = smov 3
    %v614 = vld [vmem:[%s612] ss:$2 sm:%s613]
    %vm615 = vcmask 523264
    %s616 = scalar_lea.vmem %s1, 97
    %617 = vst.msk [vmem:[%s616] ss:$8 sm:$0x3] %vm615, %v614
    %s618 = scalar_lea.vmem [#allocation0], 400
    %s619 = smov 3
    %v620 = vld [vmem:[%s618] ss:$2 sm:%s619]
    %vm621 = vcmask 523264
    %s622 = scalar_lea.vmem %s1, 98
    %623 = vst.msk [vmem:[%s622] ss:$8 sm:$0x3] %vm621, %v620
    %s624 = scalar_lea.vmem [#allocation0], 408
    %s625 = smov 3
    %v626 = vld [vmem:[%s624] ss:$2 sm:%s625]
    %vm627 = vcmask 523264
    %s628 = scalar_lea.vmem %s1, 99
    %629 = vst.msk [vmem:[%s628] ss:$8 sm:$0x3] %vm627, %v626
    %s630 = scalar_lea.vmem [#allocation0], 416
    %s631 = smov 3
    %v632 = vld [vmem:[%s630] ss:$2 sm:%s631]
    %vm633 = vcmask 523264
    %s634 = scalar_lea.vmem %s1, 100
    %635 = vst.msk [vmem:[%s634] ss:$8 sm:$0x3] %vm633, %v632
    %s636 = scalar_lea.vmem [#allocation0], 424
    %s637 = smov 3
    %v638 = vld [vmem:[%s636] ss:$2 sm:%s637]
    %vm639 = vcmask 523264
    %s640 = scalar_lea.vmem %s1, 101
    %641 = vst.msk [vmem:[%s640] ss:$8 sm:$0x3] %vm639, %v638
    %s642 = scalar_lea.vmem [#allocation0], 432
    %s643 = smov 3
    %v644 = vld [vmem:[%s642] ss:$2 sm:%s643]
    %vm645 = vcmask 523264
    %s646 = scalar_lea.vmem %s1, 102
    %647 = vst.msk [vmem:[%s646] ss:$8 sm:$0x3] %vm645, %v644
    %s648 = scalar_lea.vmem [#allocation0], 440
    %s649 = smov 3
    %v650 = vld [vmem:[%s648] ss:$2 sm:%s649]
    %vm651 = vcmask 523264
    %s652 = scalar_lea.vmem %s1, 103
    %653 = vst.msk [vmem:[%s652] ss:$8 sm:$0x3] %vm651, %v650
    %s654 = scalar_lea.vmem [#allocation0], 448
    %s655 = smov 3
    %v656 = vld [vmem:[%s654] ss:$2 sm:%s655]
    %vm657 = vcmask 523264
    %s658 = scalar_lea.vmem %s1, 112
    %659 = vst.msk [vmem:[%s658] ss:$8 sm:$0x3] %vm657, %v656
    %s660 = scalar_lea.vmem [#allocation0], 456
    %s661 = smov 3
    %v662 = vld [vmem:[%s660] ss:$2 sm:%s661]
    %vm663 = vcmask 523264
    %s664 = scalar_lea.vmem %s1, 113
    %665 = vst.msk [vmem:[%s664] ss:$8 sm:$0x3] %vm663, %v662
    %s666 = scalar_lea.vmem [#allocation0], 464
    %s667 = smov 3
    %v668 = vld [vmem:[%s666] ss:$2 sm:%s667]
    %vm669 = vcmask 523264
    %s670 = scalar_lea.vmem %s1, 114
    %671 = vst.msk [vmem:[%s670] ss:$8 sm:$0x3] %vm669, %v668
    %s672 = scalar_lea.vmem [#allocation0], 472
    %s673 = smov 3
    %v674 = vld [vmem:[%s672] ss:$2 sm:%s673]
    %vm675 = vcmask 523264
    %s676 = scalar_lea.vmem %s1, 115
    %677 = vst.msk [vmem:[%s676] ss:$8 sm:$0x3] %vm675, %v674
    %s678 = scalar_lea.vmem [#allocation0], 480
    %s679 = smov 3
    %v680 = vld [vmem:[%s678] ss:$2 sm:%s679]
    %vm681 = vcmask 523264
    %s682 = scalar_lea.vmem %s1, 116
    %683 = vst.msk [vmem:[%s682] ss:$8 sm:$0x3] %vm681, %v680
    %s684 = scalar_lea.vmem [#allocation0], 488
    %s685 = smov 3
    %v686 = vld [vmem:[%s684] ss:$2 sm:%s685]
    %vm687 = vcmask 523264
    %s688 = scalar_lea.vmem %s1, 117
    %689 = vst.msk [vmem:[%s688] ss:$8 sm:$0x3] %vm687, %v686
    %s690 = scalar_lea.vmem [#allocation0], 496
    %s691 = smov 3
    %v692 = vld [vmem:[%s690] ss:$2 sm:%s691]
    %vm693 = vcmask 523264
    %s694 = scalar_lea.vmem %s1, 118
    %695 = vst.msk [vmem:[%s694] ss:$8 sm:$0x3] %vm693, %v692
    %s696 = scalar_lea.vmem [#allocation0], 504
    %s697 = smov 3
    %v698 = vld [vmem:[%s696] ss:$2 sm:%s697]
    %vm699 = vcmask 523264
    %s700 = scalar_lea.vmem %s1, 119
    %701 = vst.msk [vmem:[%s700] ss:$8 sm:$0x3] %vm699, %v698
    %s702 = scalar_lea.vmem [#allocation0], 1
    %v703 = vld [vmem:[%s702] ss:$8 sm:$0xf]
    %s704 = scalar_lea.vmem [#allocation0], 1
    %v705 = vld [vmem:[%s704] ss:$8 sm:$0xf0]
    %vm706 = vcmask 1047556
    %v707 = vsel %vm706, %v705, %v703
    %708 = vrot.lane.b32.xlu0 %v707, 64
    %v709 = vpop.permute.xlu0 %708
    %vm710 = vcmask 1048064
    %711 = vst.msk [vmem:[%s1] sm:$0xff] %vm710, %v709
    %s712 = scalar_lea.vmem [#allocation0], 129
    %v713 = vld [vmem:[%s712] ss:$8 sm:$0xf]
    %s714 = scalar_lea.vmem [#allocation0], 129
    %v715 = vld [vmem:[%s714] ss:$8 sm:$0xf0]
    %vm716 = vcmask 1047556
    %v717 = vsel %vm716, %v715, %v713
    %718 = vrot.lane.b32.xlu0 %v717, 64
    %v719 = vpop.permute.xlu0 %718
    %vm720 = vcmask 1048064
    %s721 = scalar_lea.vmem %s1, 32
    %722 = vst.msk [vmem:[%s721] sm:$0xff] %vm720, %v719
    %s723 = scalar_lea.vmem [#allocation0], 257
    %v724 = vld [vmem:[%s723] ss:$8 sm:$0xf]
    %s725 = scalar_lea.vmem [#allocation0], 257
    %v726 = vld [vmem:[%s725] ss:$8 sm:$0xf0]
    %vm727 = vcmask 1047556
    %v728 = vsel %vm727, %v726, %v724
    %729 = vrot.lane.b32.xlu0 %v728, 64
    %v730 = vpop.permute.xlu0 %729
    %vm731 = vcmask 1048064
    %s732 = scalar_lea.vmem %s1, 64
    %733 = vst.msk [vmem:[%s732] sm:$0xff] %vm731, %v730
    %s734 = scalar_lea.vmem [#allocation0], 385
    %v735 = vld [vmem:[%s734] ss:$8 sm:$0xf]
    %s736 = scalar_lea.vmem [#allocation0], 385
    %v737 = vld [vmem:[%s736] ss:$8 sm:$0xf0]
    %vm738 = vcmask 1047556
    %v739 = vsel %vm738, %v737, %v735
    %740 = vrot.lane.b32.xlu0 %v739, 64
    %v741 = vpop.permute.xlu0 %740
    %vm742 = vcmask 1048064
    %s743 = scalar_lea.vmem %s1, 96
    %744 = vst.msk [vmem:[%s743] sm:$0xff] %vm742, %v741
    %s745 = scalar_lea.vmem [#allocation0], 3
    %v746 = vld [vmem:[%s745] ss:$8 sm:$0xf]
    %s747 = scalar_lea.vmem [#allocation0], 3
    %v748 = vld [vmem:[%s747] ss:$8 sm:$0xf0]
    %vm749 = vcmask 1047556
    %v750 = vsel %vm749, %v748, %v746
    %751 = vrot.lane.b32.xlu0 %v750, 64
    %v752 = vpop.permute.xlu0 %751
    %vm753 = vcmask 1048064
    %s754 = scalar_lea.vmem %s1, 8
    %755 = vst.msk [vmem:[%s754] sm:$0xff] %vm753, %v752
    %s756 = scalar_lea.vmem [#allocation0], 131
    %v757 = vld [vmem:[%s756] ss:$8 sm:$0xf]
    %s758 = scalar_lea.vmem [#allocation0], 131
    %v759 = vld [vmem:[%s758] ss:$8 sm:$0xf0]
    %vm760 = vcmask 1047556
    %v761 = vsel %vm760, %v759, %v757
    %762 = vrot.lane.b32.xlu0 %v761, 64
    %v763 = vpop.permute.xlu0 %762
    %vm764 = vcmask 1048064
    %s765 = scalar_lea.vmem %s1, 40
    %766 = vst.msk [vmem:[%s765] sm:$0xff] %vm764, %v763
    %s767 = scalar_lea.vmem [#allocation0], 259
    %v768 = vld [vmem:[%s767] ss:$8 sm:$0xf]
    %s769 = scalar_lea.vmem [#allocation0], 259
    %v770 = vld [vmem:[%s769] ss:$8 sm:$0xf0]
    %vm771 = vcmask 1047556
    %v772 = vsel %vm771, %v770, %v768
    %773 = vrot.lane.b32.xlu0 %v772, 64
    %v774 = vpop.permute.xlu0 %773
    %vm775 = vcmask 1048064
    %s776 = scalar_lea.vmem %s1, 72
    %777 = vst.msk [vmem:[%s776] sm:$0xff] %vm775, %v774
    %s778 = scalar_lea.vmem [#allocation0], 387
    %v779 = vld [vmem:[%s778] ss:$8 sm:$0xf]
    %s780 = scalar_lea.vmem [#allocation0], 387
    %v781 = vld [vmem:[%s780] ss:$8 sm:$0xf0]
    %vm782 = vcmask 1047556
    %v783 = vsel %vm782, %v781, %v779
    %784 = vrot.lane.b32.xlu0 %v783, 64
    %v785 = vpop.permute.xlu0 %784
    %vm786 = vcmask 1048064
    %s787 = scalar_lea.vmem %s1, 104
    %788 = vst.msk [vmem:[%s787] sm:$0xff] %vm786, %v785
    %s789 = scalar_lea.vmem [#allocation0], 65
    %v790 = vld [vmem:[%s789] ss:$8 sm:$0xf]
    %s791 = scalar_lea.vmem [#allocation0], 65
    %v792 = vld [vmem:[%s791] ss:$8 sm:$0xf0]
    %vm793 = vcmask 1047556
    %v794 = vsel %vm793, %v792, %v790
    %795 = vrot.lane.b32.xlu0 %v794, 64
    %v796 = vpop.permute.xlu0 %795
    %vm797 = vcmask 1048064
    %s798 = scalar_lea.vmem %s1, 16
    %799 = vst.msk [vmem:[%s798] sm:$0xff] %vm797, %v796
    %s800 = scalar_lea.vmem [#allocation0], 193
    %v801 = vld [vmem:[%s800] ss:$8 sm:$0xf]
    %s802 = scalar_lea.vmem [#allocation0], 193
    %v803 = vld [vmem:[%s802] ss:$8 sm:$0xf0]
    %vm804 = vcmask 1047556
    %v805 = vsel %vm804, %v803, %v801
    %806 = vrot.lane.b32.xlu0 %v805, 64
    %v807 = vpop.permute.xlu0 %806
    %vm808 = vcmask 1048064
    %s809 = scalar_lea.vmem %s1, 48
    %810 = vst.msk [vmem:[%s809] sm:$0xff] %vm808, %v807
    %s811 = scalar_lea.vmem [#allocation0], 321
    %v812 = vld [vmem:[%s811] ss:$8 sm:$0xf]
    %s813 = scalar_lea.vmem [#allocation0], 321
    %v814 = vld [vmem:[%s813] ss:$8 sm:$0xf0]
    %vm815 = vcmask 1047556
    %v816 = vsel %vm815, %v814, %v812
    %817 = vrot.lane.b32.xlu0 %v816, 64
    %v818 = vpop.permute.xlu0 %817
    %vm819 = vcmask 1048064
    %s820 = scalar_lea.vmem %s1, 80
    %821 = vst.msk [vmem:[%s820] sm:$0xff] %vm819, %v818
    %s822 = scalar_lea.vmem [#allocation0], 449
    %v823 = vld [vmem:[%s822] ss:$8 sm:$0xf]
    %s824 = scalar_lea.vmem [#allocation0], 449
    %v825 = vld [vmem:[%s824] ss:$8 sm:$0xf0]
    %vm826 = vcmask 1047556
    %v827 = vsel %vm826, %v825, %v823
    %828 = vrot.lane.b32.xlu0 %v827, 64
    %v829 = vpop.permute.xlu0 %828
    %vm830 = vcmask 1048064
    %s831 = scalar_lea.vmem %s1, 112
    %832 = vst.msk [vmem:[%s831] sm:$0xff] %vm830, %v829
    %s833 = scalar_lea.vmem [#allocation0], 67
    %v834 = vld [vmem:[%s833] ss:$8 sm:$0xf]
    %s835 = scalar_lea.vmem [#allocation0], 67
    %v836 = vld [vmem:[%s835] ss:$8 sm:$0xf0]
    %vm837 = vcmask 1047556
    %v838 = vsel %vm837, %v836, %v834
    %839 = vrot.lane.b32.xlu0 %v838, 64
    %v840 = vpop.permute.xlu0 %839
    %vm841 = vcmask 1048064
    %s842 = scalar_lea.vmem %s1, 24
    %843 = vst.msk [vmem:[%s842] sm:$0xff] %vm841, %v840
    %s844 = scalar_lea.vmem [#allocation0], 195
    %v845 = vld [vmem:[%s844] ss:$8 sm:$0xf]
    %s846 = scalar_lea.vmem [#allocation0], 195
    %v847 = vld [vmem:[%s846] ss:$8 sm:$0xf0]
    %vm848 = vcmask 1047556
    %v849 = vsel %vm848, %v847, %v845
    %850 = vrot.lane.b32.xlu0 %v849, 64
    %v851 = vpop.permute.xlu0 %850
    %vm852 = vcmask 1048064
    %s853 = scalar_lea.vmem %s1, 56
    %854 = vst.msk [vmem:[%s853] sm:$0xff] %vm852, %v851
    %s855 = scalar_lea.vmem [#allocation0], 323
    %v856 = vld [vmem:[%s855] ss:$8 sm:$0xf]
    %s857 = scalar_lea.vmem [#allocation0], 323
    %v858 = vld [vmem:[%s857] ss:$8 sm:$0xf0]
    %vm859 = vcmask 1047556
    %v860 = vsel %vm859, %v858, %v856
    %861 = vrot.lane.b32.xlu0 %v860, 64
    %v862 = vpop.permute.xlu0 %861
    %vm863 = vcmask 1048064
    %s864 = scalar_lea.vmem %s1, 88
    %865 = vst.msk [vmem:[%s864] sm:$0xff] %vm863, %v862
    %s866 = scalar_lea.vmem [#allocation0], 451
    %v867 = vld [vmem:[%s866] ss:$8 sm:$0xf]
    %s868 = scalar_lea.vmem [#allocation0], 451
    %v869 = vld [vmem:[%s868] ss:$8 sm:$0xf0]
    %vm870 = vcmask 1047556
    %v871 = vsel %vm870, %v869, %v867
    %872 = vrot.lane.b32.xlu0 %v871, 64
    %v873 = vpop.permute.xlu0 %872
    %vm874 = vcmask 1048064
    %s875 = scalar_lea.vmem %s1, 120
    %876 = vst.msk [vmem:[%s875] sm:$0xff] %vm874, %v873

// kernel: tile.49
$region0: #{tile.49}
  %s0 = inlined_call_operand.vmem [shape: f32[32,16,32], index: 0, kind: input, shape index: {}]
  %s1 = inlined_call_operand.vmem [shape: f32[32,512], index: 1, kind: output, shape index: {}]
  %v2 = vld [vmem:[%s0] ss:$4 sm:$0xff]
  %vm3 = vcmask 261120
  %4 = vst.msk [vmem:[%s1] ss:$8 sm:$0xf] %vm3, %v2
  %s5 = scalar_lea.vmem %s1, 4294967265
  %6 = vst.msk [vmem:[%s5] ss:$8 sm:$0xf0] %vm3, %v2
  %s7 = scalar_lea.vmem %s0, 32
  %v8 = vld [vmem:[%s7] ss:$4 sm:$0xff]
  %vm9 = vcmask 261120
  %s10 = scalar_lea.vmem %s1, 2
  %11 = vst.msk [vmem:[%s10] ss:$8 sm:$0xf] %vm9, %v8
  %s12 = scalar_lea.vmem %s1, 4294967267
  %13 = vst.msk [vmem:[%s12] ss:$8 sm:$0xf0] %vm9, %v8
  %s14 = scalar_lea.vmem %s0, 64
  %v15 = vld [vmem:[%s14] ss:$4 sm:$0xff]
  %vm16 = vcmask 261120
  %s17 = scalar_lea.vmem %s1, 4
  %18 = vst.msk [vmem:[%s17] ss:$8 sm:$0xf] %vm16, %v15
  %s19 = scalar_lea.vmem %s1, 4294967269
  %20 = vst.msk [vmem:[%s19] ss:$8 sm:$0xf0] %vm16, %v15
  %s21 = scalar_lea.vmem %s0, 96
  %v22 = vld [vmem:[%s21] ss:$4 sm:$0xff]
  %vm23 = vcmask 261120
  %s24 = scalar_lea.vmem %s1, 6
  %25 = vst.msk [vmem:[%s24] ss:$8 sm:$0xf] %vm23, %v22
  %s26 = scalar_lea.vmem %s1, 4294967271
  %27 = vst.msk [vmem:[%s26] ss:$8 sm:$0xf0] %vm23, %v22
  %s28 = scalar_lea.vmem %s0, 128
  %v29 = vld [vmem:[%s28] ss:$4 sm:$0xff]
  %vm30 = vcmask 261120
  %s31 = scalar_lea.vmem %s1, 32
  %32 = vst.msk [vmem:[%s31] ss:$8 sm:$0xf] %vm30, %v29
  %s33 = scalar_lea.vmem %s1, 1
  %34 = vst.msk [vmem:[%s33] ss:$8 sm:$0xf0] %vm30, %v29
  %s35 = scalar_lea.vmem %s0, 160
  %v36 = vld [vmem:[%s35] ss:$4 sm:$0xff]
  %vm37 = vcmask 261120
  %s38 = scalar_lea.vmem %s1, 34
  %39 = vst.msk [vmem:[%s38] ss:$8 sm:$0xf] %vm37, %v36
  %s40 = scalar_lea.vmem %s1, 3
  %41 = vst.msk [vmem:[%s40] ss:$8 sm:$0xf0] %vm37, %v36
  %s42 = scalar_lea.vmem %s0, 192
  %v43 = vld [vmem:[%s42] ss:$4 sm:$0xff]
  %vm44 = vcmask 261120
  %s45 = scalar_lea.vmem %s1, 36
  %46 = vst.msk [vmem:[%s45] ss:$8 sm:$0xf] %vm44, %v43
  %s47 = scalar_lea.vmem %s1, 5
  %48 = vst.msk [vmem:[%s47] ss:$8 sm:$0xf0] %vm44, %v43
  %s49 = scalar_lea.vmem %s0, 224
  %v50 = vld [vmem:[%s49] ss:$4 sm:$0xff]
  %vm51 = vcmask 261120
  %s52 = scalar_lea.vmem %s1, 38
  %53 = vst.msk [vmem:[%s52] ss:$8 sm:$0xf] %vm51, %v50
  %s54 = scalar_lea.vmem %s1, 7
  %55 = vst.msk [vmem:[%s54] ss:$8 sm:$0xf0] %vm51, %v50
  %s56 = scalar_lea.vmem %s0, 256
  %v57 = vld [vmem:[%s56] ss:$4 sm:$0xff]
  %vm58 = vcmask 261120
  %s59 = scalar_lea.vmem %s1, 64
  %60 = vst.msk [vmem:[%s59] ss:$8 sm:$0xf] %vm58, %v57
  %s61 = scalar_lea.vmem %s1, 33
  %62 = vst.msk [vmem:[%s61] ss:$8 sm:$0xf0] %vm58, %v57
  %s63 = scalar_lea.vmem %s0, 288
  %v64 = vld [vmem:[%s63] ss:$4 sm:$0xff]
  %vm65 = vcmask 261120
  %s66 = scalar_lea.vmem %s1, 66
  %67 = vst.msk [vmem:[%s66] ss:$8 sm:$0xf] %vm65, %v64
  %s68 = scalar_lea.vmem %s1, 35
  %69 = vst.msk [vmem:[%s68] ss:$8 sm:$0xf0] %vm65, %v64
  %s70 = scalar_lea.vmem %s0, 320
  %v71 = vld [vmem:[%s70] ss:$4 sm:$0xff]
  %vm72 = vcmask 261120
  %s73 = scalar_lea.vmem %s1, 68
  %74 = vst.msk [vmem:[%s73] ss:$8 sm:$0xf] %vm72, %v71
  %s75 = scalar_lea.vmem %s1, 37
  %76 = vst.msk [vmem:[%s75] ss:$8 sm:$0xf0] %vm72, %v71
  %s77 = scalar_lea.vmem %s0, 352
  %v78 = vld [vmem:[%s77] ss:$4 sm:$0xff]
  %vm79 = vcmask 261120
  %s80 = scalar_lea.vmem %s1, 70
  %81 = vst.msk [vmem:[%s80] ss:$8 sm:$0xf] %vm79, %v78
  %s82 = scalar_lea.vmem %s1, 39
  %83 = vst.msk [vmem:[%s82] ss:$8 sm:$0xf0] %vm79, %v78
  %s84 = scalar_lea.vmem %s0, 384
  %v85 = vld [vmem:[%s84] ss:$4 sm:$0xff]
  %vm86 = vcmask 261120
  %s87 = scalar_lea.vmem %s1, 96
  %88 = vst.msk [vmem:[%s87] ss:$8 sm:$0xf] %vm86, %v85
  %s89 = scalar_lea.vmem %s1, 65
  %90 = vst.msk [vmem:[%s89] ss:$8 sm:$0xf0] %vm86, %v85
  %s91 = scalar_lea.vmem %s0, 416
  %v92 = vld [vmem:[%s91] ss:$4 sm:$0xff]
  %vm93 = vcmask 261120
  %s94 = scalar_lea.vmem %s1, 98
  %95 = vst.msk [vmem:[%s94] ss:$8 sm:$0xf] %vm93, %v92
  %s96 = scalar_lea.vmem %s1, 67
  %97 = vst.msk [vmem:[%s96] ss:$8 sm:$0xf0] %vm93, %v92
  %s98 = scalar_lea.vmem %s0, 448
  %v99 = vld [vmem:[%s98] ss:$4 sm:$0xff]
  %vm100 = vcmask 261120
  %s101 = scalar_lea.vmem %s1, 100
  %102 = vst.msk [vmem:[%s101] ss:$8 sm:$0xf] %vm100, %v99
  %s103 = scalar_lea.vmem %s1, 69
  %104 = vst.msk [vmem:[%s103] ss:$8 sm:$0xf0] %vm100, %v99
  %s105 = scalar_lea.vmem %s0, 480
  %v106 = vld [vmem:[%s105] ss:$4 sm:$0xff]
  %vm107 = vcmask 261120
  %s108 = scalar_lea.vmem %s1, 102
  %109 = vst.msk [vmem:[%s108] ss:$8 sm:$0xf] %vm107, %v106
  %s110 = scalar_lea.vmem %s1, 71
  %111 = vst.msk [vmem:[%s110] ss:$8 sm:$0xf0] %vm107, %v106
  %s112 = scalar_lea.vmem %s0, 3
  %s113 = smov 3
  %v114 = vld [vmem:[%s112] ss:$16 sm:%s113]
  %s115 = scalar_lea.vmem %s0, 3
  %s116 = smov 12
  %v117 = vld [vmem:[%s115] ss:$16 sm:%s116]
  %vm118 = vcmask 1043458
  %v119 = vsel %vm118, %v117, %v114
  %s120 = scalar_lea.vmem %s0, 3
  %s121 = smov 48
  %v122 = vld [vmem:[%s120] ss:$16 sm:%s121]
  %vm123 = vcmask 1045508
  %v124 = vsel %vm123, %v122, %v119
  %s125 = scalar_lea.vmem %s0, 3
  %s126 = smov 192
  %v127 = vld [vmem:[%s125] ss:$16 sm:%s126]
  %vm128 = vcmask 1047558
  %v129 = vsel %vm128, %v127, %v124
  %130 = vrot.lane.b32.xlu0 %v129, 96
  %v131 = vpop.permute.xlu0 %130
  %vm132 = vcmask 1048320
  %133 = vst.msk [vmem:[%s1] sm:$0xff] %vm132, %v131
  %s134 = scalar_lea.vmem %s0, 131
  %s135 = smov 3
  %v136 = vld [vmem:[%s134] ss:$16 sm:%s135]
  %s137 = scalar_lea.vmem %s0, 131
  %s138 = smov 12
  %v139 = vld [vmem:[%s137] ss:$16 sm:%s138]
  %vm140 = vcmask 1043458
  %v141 = vsel %vm140, %v139, %v136
  %s142 = scalar_lea.vmem %s0, 131
  %s143 = smov 48
  %v144 = vld [vmem:[%s142] ss:$16 sm:%s143]
  %vm145 = vcmask 1045508
  %v146 = vsel %vm145, %v144, %v141
  %s147 = scalar_lea.vmem %s0, 131
  %s148 = smov 192
  %v149 = vld [vmem:[%s147] ss:$16 sm:%s148]
  %vm150 = vcmask 1047558
  %v151 = vsel %vm150, %v149, %v146
  %152 = vrot.lane.b32.xlu0 %v151, 96
  %v153 = vpop.permute.xlu0 %152
  %vm154 = vcmask 1048320
  %s155 = scalar_lea.vmem %s1, 32
  %156 = vst.msk [vmem:[%s155] sm:$0xff] %vm154, %v153
  %s157 = scalar_lea.vmem %s0, 259
  %s158 = smov 3
  %v159 = vld [vmem:[%s157] ss:$16 sm:%s158]
  %s160 = scalar_lea.vmem %s0, 259
  %s161 = smov 12
  %v162 = vld [vmem:[%s160] ss:$16 sm:%s161]
  %vm163 = vcmask 1043458
  %v164 = vsel %vm163, %v162, %v159
  %s165 = scalar_lea.vmem %s0, 259
  %s166 = smov 48
  %v167 = vld [vmem:[%s165] ss:$16 sm:%s166]
  %vm168 = vcmask 1045508
  %v169 = vsel %vm168, %v167, %v164
  %s170 = scalar_lea.vmem %s0, 259
  %s171 = smov 192
  %v172 = vld [vmem:[%s170] ss:$16 sm:%s171]
  %vm173 = vcmask 1047558
  %v174 = vsel %vm173, %v172, %v169
  %175 = vrot.lane.b32.xlu0 %v174, 96
  %v176 = vpop.permute.xlu0 %175
  %vm177 = vcmask 1048320
  %s178 = scalar_lea.vmem %s1, 64
  %179 = vst.msk [vmem:[%s178] sm:$0xff] %vm177, %v176
  %s180 = scalar_lea.vmem %s0, 387
  %s181 = smov 3
  %v182 = vld [vmem:[%s180] ss:$16 sm:%s181]
  %s183 = scalar_lea.vmem %s0, 387
  %s184 = smov 12
  %v185 = vld [vmem:[%s183] ss:$16 sm:%s184]
  %vm186 = vcmask 1043458
  %v187 = vsel %vm186, %v185, %v182
  %s188 = scalar_lea.vmem %s0, 387
  %s189 = smov 48
  %v190 = vld [vmem:[%s188] ss:$16 sm:%s189]
  %vm191 = vcmask 1045508
  %v192 = vsel %vm191, %v190, %v187
  %s193 = scalar_lea.vmem %s0, 387
  %s194 = smov 192
  %v195 = vld [vmem:[%s193] ss:$16 sm:%s194]
  %vm196 = vcmask 1047558
  %v197 = vsel %vm196, %v195, %v192
  %198 = vrot.lane.b32.xlu0 %v197, 96
  %v199 = vpop.permute.xlu0 %198
  %vm200 = vcmask 1048320
  %s201 = scalar_lea.vmem %s1, 96
  %202 = vst.msk [vmem:[%s201] sm:$0xff] %vm200, %v199
  %s203 = scalar_lea.vmem %s0, 7
  %s204 = smov 3
  %v205 = vld [vmem:[%s203] ss:$16 sm:%s204]
  %s206 = scalar_lea.vmem %s0, 7
  %s207 = smov 12
  %v208 = vld [vmem:[%s206] ss:$16 sm:%s207]
  %vm209 = vcmask 1043458
  %v210 = vsel %vm209, %v208, %v205
  %s211 = scalar_lea.vmem %s0, 7
  %s212 = smov 48
  %v213 = vld [vmem:[%s211] ss:$16 sm:%s212]
  %vm214 = vcmask 1045508
  %v215 = vsel %vm214, %v213, %v210
  %s216 = scalar_lea.vmem %s0, 7
  %s217 = smov 192
  %v218 = vld [vmem:[%s216] ss:$16 sm:%s217]
  %vm219 = vcmask 1047558
  %v220 = vsel %vm219, %v218, %v215
  %221 = vrot.lane.b32.xlu0 %v220, 96
  %v222 = vpop.permute.xlu0 %221
  %vm223 = vcmask 1048320
  %s224 = scalar_lea.vmem %s1, 8
  %225 = vst.msk [vmem:[%s224] sm:$0xff] %vm223, %v222
  %s226 = scalar_lea.vmem %s0, 135
  %s227 = smov 3
  %v228 = vld [vmem:[%s226] ss:$16 sm:%s227]
  %s229 = scalar_lea.vmem %s0, 135
  %s230 = smov 12
  %v231 = vld [vmem:[%s229] ss:$16 sm:%s230]
  %vm232 = vcmask 1043458
  %v233 = vsel %vm232, %v231, %v228
  %s234 = scalar_lea.vmem %s0, 135
  %s235 = smov 48
  %v236 = vld [vmem:[%s234] ss:$16 sm:%s235]
  %vm237 = vcmask 1045508
  %v238 = vsel %vm237, %v236, %v233
  %s239 = scalar_lea.vmem %s0, 135
  %s240 = smov 192
  %v241 = vld [vmem:[%s239] ss:$16 sm:%s240]
  %vm242 = vcmask 1047558
  %v243 = vsel %vm242, %v241, %v238
  %244 = vrot.lane.b32.xlu0 %v243, 96
  %v245 = vpop.permute.xlu0 %244
  %vm246 = vcmask 1048320
  %s247 = scalar_lea.vmem %s1, 40
  %248 = vst.msk [vmem:[%s247] sm:$0xff] %vm246, %v245
  %s249 = scalar_lea.vmem %s0, 263
  %s250 = smov 3
  %v251 = vld [vmem:[%s249] ss:$16 sm:%s250]
  %s252 = scalar_lea.vmem %s0, 263
  %s253 = smov 12
  %v254 = vld [vmem:[%s252] ss:$16 sm:%s253]
  %vm255 = vcmask 1043458
  %v256 = vsel %vm255, %v254, %v251
  %s257 = scalar_lea.vmem %s0, 263
  %s258 = smov 48
  %v259 = vld [vmem:[%s257] ss:$16 sm:%s258]
  %vm260 = vcmask 1045508
  %v261 = vsel %vm260, %v259, %v256
  %s262 = scalar_lea.vmem %s0, 263
  %s263 = smov 192
  %v264 = vld [vmem:[%s262] ss:$16 sm:%s263]
  %vm265 = vcmask 1047558
  %v266 = vsel %vm265, %v264, %v261
  %267 = vrot.lane.b32.xlu0 %v266, 96
  %v268 = vpop.permute.xlu0 %267
  %vm269 = vcmask 1048320
  %s270 = scalar_lea.vmem %s1, 72
  %271 = vst.msk [vmem:[%s270] sm:$0xff] %vm269, %v268
  %s272 = scalar_lea.vmem %s0, 391
  %s273 = smov 3
  %v274 = vld [vmem:[%s272] ss:$16 sm:%s273]
  %s275 = scalar_lea.vmem %s0, 391
  %s276 = smov 12
  %v277 = vld [vmem:[%s275] ss:$16 sm:%s276]
  %vm278 = vcmask 1043458
  %v279 = vsel %vm278, %v277, %v274
  %s280 = scalar_lea.vmem %s0, 391
  %s281 = smov 48
  %v282 = vld [vmem:[%s280] ss:$16 sm:%s281]
  %vm283 = vcmask 1045508
  %v284 = vsel %vm283, %v282, %v279
  %s285 = scalar_lea.vmem %s0, 391
  %s286 = smov 192
  %v287 = vld [vmem:[%s285] ss:$16 sm:%s286]
  %vm288 = vcmask 1047558
  %v289 = vsel %vm288, %v287, %v284
  %290 = vrot.lane.b32.xlu0 %v289, 96
  %v291 = vpop.permute.xlu0 %290
  %vm292 = vcmask 1048320
  %s293 = scalar_lea.vmem %s1, 104
  %294 = vst.msk [vmem:[%s293] sm:$0xff] %vm292, %v291
  %s295 = scalar_lea.vmem %s0, 11
  %s296 = smov 3
  %v297 = vld [vmem:[%s295] ss:$16 sm:%s296]
  %s298 = scalar_lea.vmem %s0, 11
  %s299 = smov 12
  %v300 = vld [vmem:[%s298] ss:$16 sm:%s299]
  %vm301 = vcmask 1043458
  %v302 = vsel %vm301, %v300, %v297
  %s303 = scalar_lea.vmem %s0, 11
  %s304 = smov 48
  %v305 = vld [vmem:[%s303] ss:$16 sm:%s304]
  %vm306 = vcmask 1045508
  %v307 = vsel %vm306, %v305, %v302
  %s308 = scalar_lea.vmem %s0, 11
  %s309 = smov 192
  %v310 = vld [vmem:[%s308] ss:$16 sm:%s309]
  %vm311 = vcmask 1047558
  %v312 = vsel %vm311, %v310, %v307
  %313 = vrot.lane.b32.xlu0 %v312, 96
  %v314 = vpop.permute.xlu0 %313
  %vm315 = vcmask 1048320
  %s316 = scalar_lea.vmem %s1, 16
  %317 = vst.msk [vmem:[%s316] sm:$0xff] %vm315, %v314
  %s318 = scalar_lea.vmem %s0, 139
  %s319 = smov 3
  %v320 = vld [vmem:[%s318] ss:$16 sm:%s319]
  %s321 = scalar_lea.vmem %s0, 139
  %s322 = smov 12
  %v323 = vld [vmem:[%s321] ss:$16 sm:%s322]
  %vm324 = vcmask 1043458
  %v325 = vsel %vm324, %v323, %v320
  %s326 = scalar_lea.vmem %s0, 139
  %s327 = smov 48
  %v328 = vld [vmem:[%s326] ss:$16 sm:%s327]
  %vm329 = vcmask 1045508
  %v330 = vsel %vm329, %v328, %v325
  %s331 = scalar_lea.vmem %s0, 139
  %s332 = smov 192
  %v333 = vld [vmem:[%s331] ss:$16 sm:%s332]
  %vm334 = vcmask 1047558
  %v335 = vsel %vm334, %v333, %v330
  %336 = vrot.lane.b32.xlu0 %v335, 96
  %v337 = vpop.permute.xlu0 %336
  %vm338 = vcmask 1048320
  %s339 = scalar_lea.vmem %s1, 48
  %340 = vst.msk [vmem:[%s339] sm:$0xff] %vm338, %v337
  %s341 = scalar_lea.vmem %s0, 267
  %s342 = smov 3
  %v343 = vld [vmem:[%s341] ss:$16 sm:%s342]
  %s344 = scalar_lea.vmem %s0, 267
  %s345 = smov 12
  %v346 = vld [vmem:[%s344] ss:$16 sm:%s345]
  %vm347 = vcmask 1043458
  %v348 = vsel %vm347, %v346, %v343
  %s349 = scalar_lea.vmem %s0, 267
  %s350 = smov 48
  %v351 = vld [vmem:[%s349] ss:$16 sm:%s350]
  %vm352 = vcmask 1045508
  %v353 = vsel %vm352, %v351, %v348
  %s354 = scalar_lea.vmem %s0, 267
  %s355 = smov 192
  %v356 = vld [vmem:[%s354] ss:$16 sm:%s355]
  %vm357 = vcmask 1047558
  %v358 = vsel %vm357, %v356, %v353
  %359 = vrot.lane.b32.xlu0 %v358, 96
  %v360 = vpop.permute.xlu0 %359
  %vm361 = vcmask 1048320
  %s362 = scalar_lea.vmem %s1, 80
  %363 = vst.msk [vmem:[%s362] sm:$0xff] %vm361, %v360
  %s364 = scalar_lea.vmem %s0, 395
  %s365 = smov 3
  %v366 = vld [vmem:[%s364] ss:$16 sm:%s365]
  %s367 = scalar_lea.vmem %s0, 395
  %s368 = smov 12
  %v369 = vld [vmem:[%s367] ss:$16 sm:%s368]
  %vm370 = vcmask 1043458
  %v371 = vsel %vm370, %v369, %v366
  %s372 = scalar_lea.vmem %s0, 395
  %s373 = smov 48
  %v374 = vld [vmem:[%s372] ss:$16 sm:%s373]
  %vm375 = vcmask 1045508
  %v376 = vsel %vm375, %v374, %v371
  %s377 = scalar_lea.vmem %s0, 395
  %s378 = smov 192
  %v379 = vld [vmem:[%s377] ss:$16 sm:%s378]
  %vm380 = vcmask 1047558
  %v381 = vsel %vm380, %v379, %v376
  %382 = vrot.lane.b32.xlu0 %v381, 96
  %v383 = vpop.permute.xlu0 %382
  %vm384 = vcmask 1048320
  %s385 = scalar_lea.vmem %s1, 112
  %386 = vst.msk [vmem:[%s385] sm:$0xff] %vm384, %v383
  %s387 = scalar_lea.vmem %s0, 15
  %s388 = smov 3
  %v389 = vld [vmem:[%s387] ss:$16 sm:%s388]
  %s390 = scalar_lea.vmem %s0, 15
  %s391 = smov 12
  %v392 = vld [vmem:[%s390] ss:$16 sm:%s391]
  %vm393 = vcmask 1043458
  %v394 = vsel %vm393, %v392, %v389
  %s395 = scalar_lea.vmem %s0, 15
  %s396 = smov 48
  %v397 = vld [vmem:[%s395] ss:$16 sm:%s396]
  %vm398 = vcmask 1045508
  %v399 = vsel %vm398, %v397, %v394
  %s400 = scalar_lea.vmem %s0, 15
  %s401 = smov 192
  %v402 = vld [vmem:[%s400] ss:$16 sm:%s401]
  %vm403 = vcmask 1047558
  %v404 = vsel %vm403, %v402, %v399
  %405 = vrot.lane.b32.xlu0 %v404, 96
  %v406 = vpop.permute.xlu0 %405
  %vm407 = vcmask 1048320
  %s408 = scalar_lea.vmem %s1, 24
  %409 = vst.msk [vmem:[%s408] sm:$0xff] %vm407, %v406
  %s410 = scalar_lea.vmem %s0, 143
  %s411 = smov 3
  %v412 = vld [vmem:[%s410] ss:$16 sm:%s411]
  %s413 = scalar_lea.vmem %s0, 143
  %s414 = smov 12
  %v415 = vld [vmem:[%s413] ss:$16 sm:%s414]
  %vm416 = vcmask 1043458
  %v417 = vsel %vm416, %v415, %v412
  %s418 = scalar_lea.vmem %s0, 143
  %s419 = smov 48
  %v420 = vld [vmem:[%s418] ss:$16 sm:%s419]
  %vm421 = vcmask 1045508
  %v422 = vsel %vm421, %v420, %v417
  %s423 = scalar_lea.vmem %s0, 143
  %s424 = smov 192
  %v425 = vld [vmem:[%s423] ss:$16 sm:%s424]
  %vm426 = vcmask 1047558
  %v427 = vsel %vm426, %v425, %v422
  %428 = vrot.lane.b32.xlu0 %v427, 96
  %v429 = vpop.permute.xlu0 %428
  %vm430 = vcmask 1048320
  %s431 = scalar_lea.vmem %s1, 56
  %432 = vst.msk [vmem:[%s431] sm:$0xff] %vm430, %v429
  %s433 = scalar_lea.vmem %s0, 271
  %s434 = smov 3
  %v435 = vld [vmem:[%s433] ss:$16 sm:%s434]
  %s436 = scalar_lea.vmem %s0, 271
  %s437 = smov 12
  %v438 = vld [vmem:[%s436] ss:$16 sm:%s437]
  %vm439 = vcmask 1043458
  %v440 = vsel %vm439, %v438, %v435
  %s441 = scalar_lea.vmem %s0, 271
  %s442 = smov 48
  %v443 = vld [vmem:[%s441] ss:$16 sm:%s442]
  %vm444 = vcmask 1045508
  %v445 = vsel %vm444, %v443, %v440
  %s446 = scalar_lea.vmem %s0, 271
  %s447 = smov 192
  %v448 = vld [vmem:[%s446] ss:$16 sm:%s447]
  %vm449 = vcmask 1047558
  %v450 = vsel %vm449, %v448, %v445
  %451 = vrot.lane.b32.xlu0 %v450, 96
  %v452 = vpop.permute.xlu0 %451
  %vm453 = vcmask 1048320
  %s454 = scalar_lea.vmem %s1, 88
  %455 = vst.msk [vmem:[%s454] sm:$0xff] %vm453, %v452
  %s456 = scalar_lea.vmem %s0, 399
  %s457 = smov 3
  %v458 = vld [vmem:[%s456] ss:$16 sm:%s457]
  %s459 = scalar_lea.vmem %s0, 399
  %s460 = smov 12
  %v461 = vld [vmem:[%s459] ss:$16 sm:%s460]
  %vm462 = vcmask 1043458
  %v463 = vsel %vm462, %v461, %v458
  %s464 = scalar_lea.vmem %s0, 399
  %s465 = smov 48
  %v466 = vld [vmem:[%s464] ss:$16 sm:%s465]
  %vm467 = vcmask 1045508
  %v468 = vsel %vm467, %v466, %v463
  %s469 = scalar_lea.vmem %s0, 399
  %s470 = smov 192
  %v471 = vld [vmem:[%s469] ss:$16 sm:%s470]
  %vm472 = vcmask 1047558
  %v473 = vsel %vm472, %v471, %v468
  %474 = vrot.lane.b32.xlu0 %v473, 96
  %v475 = vpop.permute.xlu0 %474
  %vm476 = vcmask 1048320
  %s477 = scalar_lea.vmem %s1, 120
  %478 = vst.msk [vmem:[%s477] sm:$0xff] %vm476, %v475
  %s479 = scalar_lea.vmem %s0, 2
  %s480 = smov 3
  %v481 = vld [vmem:[%s479] ss:$16 sm:%s480]
  %s482 = scalar_lea.vmem %s0, 2
  %s483 = smov 12
  %v484 = vld [vmem:[%s482] ss:$16 sm:%s483]
  %vm485 = vcmask 1043458
  %v486 = vsel %vm485, %v484, %v481
  %s487 = scalar_lea.vmem %s0, 2
  %s488 = smov 48
  %v489 = vld [vmem:[%s487] ss:$16 sm:%s488]
  %vm490 = vcmask 1045508
  %v491 = vsel %vm490, %v489, %v486
  %s492 = scalar_lea.vmem %s0, 2
  %s493 = smov 192
  %v494 = vld [vmem:[%s492] ss:$16 sm:%s493]
  %vm495 = vcmask 1047558
  %v496 = vsel %vm495, %v494, %v491
  %497 = vrot.lane.b32.xlu0 %v496, 64
  %v498 = vpop.permute.xlu0 %497
  %vm499 = vcmask 785920
  %500 = vst.msk [vmem:[%s1] sm:$0xff] %vm499, %v498
  %s501 = scalar_lea.vmem %s0, 130
  %s502 = smov 3
  %v503 = vld [vmem:[%s501] ss:$16 sm:%s502]
  %s504 = scalar_lea.vmem %s0, 130
  %s505 = smov 12
  %v506 = vld [vmem:[%s504] ss:$16 sm:%s505]
  %vm507 = vcmask 1043458
  %v508 = vsel %vm507, %v506, %v503
  %s509 = scalar_lea.vmem %s0, 130
  %s510 = smov 48
  %v511 = vld [vmem:[%s509] ss:$16 sm:%s510]
  %vm512 = vcmask 1045508
  %v513 = vsel %vm512, %v511, %v508
  %s514 = scalar_lea.vmem %s0, 130
  %s515 = smov 192
  %v516 = vld [vmem:[%s514] ss:$16 sm:%s515]
  %vm517 = vcmask 1047558
  %v518 = vsel %vm517, %v516, %v513
  %519 = vrot.lane.b32.xlu0 %v518, 64
  %v520 = vpop.permute.xlu0 %519
  %vm521 = vcmask 785920
  %s522 = scalar_lea.vmem %s1, 32
  %523 = vst.msk [vmem:[%s522] sm:$0xff] %vm521, %v520
  %s524 = scalar_lea.vmem %s0, 258
  %s525 = smov 3
  %v526 = vld [vmem:[%s524] ss:$16 sm:%s525]
  %s527 = scalar_lea.vmem %s0, 258
  %s528 = smov 12
  %v529 = vld [vmem:[%s527] ss:$16 sm:%s528]
  %vm530 = vcmask 1043458
  %v531 = vsel %vm530, %v529, %v526
  %s532 = scalar_lea.vmem %s0, 258
  %s533 = smov 48
  %v534 = vld [vmem:[%s532] ss:$16 sm:%s533]
  %vm535 = vcmask 1045508
  %v536 = vsel %vm535, %v534, %v531
  %s537 = scalar_lea.vmem %s0, 258
  %s538 = smov 192
  %v539 = vld [vmem:[%s537] ss:$16 sm:%s538]
  %vm540 = vcmask 1047558
  %v541 = vsel %vm540, %v539, %v536
  %542 = vrot.lane.b32.xlu0 %v541, 64
  %v543 = vpop.permute.xlu0 %542
  %vm544 = vcmask 785920
  %s545 = scalar_lea.vmem %s1, 64
  %546 = vst.msk [vmem:[%s545] sm:$0xff] %vm544, %v543
  %s547 = scalar_lea.vmem %s0, 386
  %s548 = smov 3
  %v549 = vld [vmem:[%s547] ss:$16 sm:%s548]
  %s550 = scalar_lea.vmem %s0, 386
  %s551 = smov 12
  %v552 = vld [vmem:[%s550] ss:$16 sm:%s551]
  %vm553 = vcmask 1043458
  %v554 = vsel %vm553, %v552, %v549
  %s555 = scalar_lea.vmem %s0, 386
  %s556 = smov 48
  %v557 = vld [vmem:[%s555] ss:$16 sm:%s556]
  %vm558 = vcmask 1045508
  %v559 = vsel %vm558, %v557, %v554
  %s560 = scalar_lea.vmem %s0, 386
  %s561 = smov 192
  %v562 = vld [vmem:[%s560] ss:$16 sm:%s561]
  %vm563 = vcmask 1047558
  %v564 = vsel %vm563, %v562, %v559
  %565 = vrot.lane.b32.xlu0 %v564, 64
  %v566 = vpop.permute.xlu0 %565
  %vm567 = vcmask 785920
  %s568 = scalar_lea.vmem %s1, 96
  %569 = vst.msk [vmem:[%s568] sm:$0xff] %vm567, %v566
  %s570 = scalar_lea.vmem %s0, 6
  %s571 = smov 3
  %v572 = vld [vmem:[%s570] ss:$16 sm:%s571]
  %s573 = scalar_lea.vmem %s0, 6
  %s574 = smov 12
  %v575 = vld [vmem:[%s573] ss:$16 sm:%s574]
  %vm576 = vcmask 1043458
  %v577 = vsel %vm576, %v575, %v572
  %s578 = scalar_lea.vmem %s0, 6
  %s579 = smov 48
  %v580 = vld [vmem:[%s578] ss:$16 sm:%s579]
  %vm581 = vcmask 1045508
  %v582 = vsel %vm581, %v580, %v577
  %s583 = scalar_lea.vmem %s0, 6
  %s584 = smov 192
  %v585 = vld [vmem:[%s583] ss:$16 sm:%s584]
  %vm586 = vcmask 1047558
  %v587 = vsel %vm586, %v585, %v582
  %588 = vrot.lane.b32.xlu0 %v587, 64
  %v589 = vpop.permute.xlu0 %588
  %vm590 = vcmask 785920
  %s591 = scalar_lea.vmem %s1, 8
  %592 = vst.msk [vmem:[%s591] sm:$0xff] %vm590, %v589
  %s593 = scalar_lea.vmem %s0, 134
  %s594 = smov 3
  %v595 = vld [vmem:[%s593] ss:$16 sm:%s594]
  %s596 = scalar_lea.vmem %s0, 134
  %s597 = smov 12
  %v598 = vld [vmem:[%s596] ss:$16 sm:%s597]
  %vm599 = vcmask 1043458
  %v600 = vsel %vm599, %v598, %v595
  %s601 = scalar_lea.vmem %s0, 134
  %s602 = smov 48
  %v603 = vld [vmem:[%s601] ss:$16 sm:%s602]
  %vm604 = vcmask 1045508
  %v605 = vsel %vm604, %v603, %v600
  %s606 = scalar_lea.vmem %s0, 134
  %s607 = smov 192
  %v608 = vld [vmem:[%s606] ss:$16 sm:%s607]
  %vm609 = vcmask 1047558
  %v610 = vsel %vm609, %v608, %v605
  %611 = vrot.lane.b32.xlu0 %v610, 64
  %v612 = vpop.permute.xlu0 %611
  %vm613 = vcmask 785920
  %s614 = scalar_lea.vmem %s1, 40
  %615 = vst.msk [vmem:[%s614] sm:$0xff] %vm613, %v612
  %s616 = scalar_lea.vmem %s0, 262
  %s617 = smov 3
  %v618 = vld [vmem:[%s616] ss:$16 sm:%s617]
  %s619 = scalar_lea.vmem %s0, 262
  %s620 = smov 12
  %v621 = vld [vmem:[%s619] ss:$16 sm:%s620]
  %vm622 = vcmask 1043458
  %v623 = vsel %vm622, %v621, %v618
  %s624 = scalar_lea.vmem %s0, 262
  %s625 = smov 48
  %v626 = vld [vmem:[%s624] ss:$16 sm:%s625]
  %vm627 = vcmask 1045508
  %v628 = vsel %vm627, %v626, %v623
  %s629 = scalar_lea.vmem %s0, 262
  %s630 = smov 192
  %v631 = vld [vmem:[%s629] ss:$16 sm:%s630]
  %vm632 = vcmask 1047558
  %v633 = vsel %vm632, %v631, %v628
  %634 = vrot.lane.b32.xlu0 %v633, 64
  %v635 = vpop.permute.xlu0 %634
  %vm636 = vcmask 785920
  %s637 = scalar_lea.vmem %s1, 72
  %638 = vst.msk [vmem:[%s637] sm:$0xff] %vm636, %v635
  %s639 = scalar_lea.vmem %s0, 390
  %s640 = smov 3
  %v641 = vld [vmem:[%s639] ss:$16 sm:%s640]
  %s642 = scalar_lea.vmem %s0, 390
  %s643 = smov 12
  %v644 = vld [vmem:[%s642] ss:$16 sm:%s643]
  %vm645 = vcmask 1043458
  %v646 = vsel %vm645, %v644, %v641
  %s647 = scalar_lea.vmem %s0, 390
  %s648 = smov 48
  %v649 = vld [vmem:[%s647] ss:$16 sm:%s648]
  %vm650 = vcmask 1045508
  %v651 = vsel %vm650, %v649, %v646
  %s652 = scalar_lea.vmem %s0, 390
  %s653 = smov 192
  %v654 = vld [vmem:[%s652] ss:$16 sm:%s653]
  %vm655 = vcmask 1047558
  %v656 = vsel %vm655, %v654, %v651
  %657 = vrot.lane.b32.xlu0 %v656, 64
  %v658 = vpop.permute.xlu0 %657
  %vm659 = vcmask 785920
  %s660 = scalar_lea.vmem %s1, 104
  %661 = vst.msk [vmem:[%s660] sm:$0xff] %vm659, %v658
  %s662 = scalar_lea.vmem %s0, 10
  %s663 = smov 3
  %v664 = vld [vmem:[%s662] ss:$16 sm:%s663]
  %s665 = scalar_lea.vmem %s0, 10
  %s666 = smov 12
  %v667 = vld [vmem:[%s665] ss:$16 sm:%s666]
  %vm668 = vcmask 1043458
  %v669 = vsel %vm668, %v667, %v664
  %s670 = scalar_lea.vmem %s0, 10
  %s671 = smov 48
  %v672 = vld [vmem:[%s670] ss:$16 sm:%s671]
  %vm673 = vcmask 1045508
  %v674 = vsel %vm673, %v672, %v669
  %s675 = scalar_lea.vmem %s0, 10
  %s676 = smov 192
  %v677 = vld [vmem:[%s675] ss:$16 sm:%s676]
  %vm678 = vcmask 1047558
  %v679 = vsel %vm678, %v677, %v674
  %680 = vrot.lane.b32.xlu0 %v679, 64
  %v681 = vpop.permute.xlu0 %680
  %vm682 = vcmask 785920
  %s683 = scalar_lea.vmem %s1, 16
  %684 = vst.msk [vmem:[%s683] sm:$0xff] %vm682, %v681
  %s685 = scalar_lea.vmem %s0, 138
  %s686 = smov 3
  %v687 = vld [vmem:[%s685] ss:$16 sm:%s686]
  %s688 = scalar_lea.vmem %s0, 138
  %s689 = smov 12
  %v690 = vld [vmem:[%s688] ss:$16 sm:%s689]
  %vm691 = vcmask 1043458
  %v692 = vsel %vm691, %v690, %v687
  %s693 = scalar_lea.vmem %s0, 138
  %s694 = smov 48
  %v695 = vld [vmem:[%s693] ss:$16 sm:%s694]
  %vm696 = vcmask 1045508
  %v697 = vsel %vm696, %v695, %v692
  %s698 = scalar_lea.vmem %s0, 138
  %s699 = smov 192
  %v700 = vld [vmem:[%s698] ss:$16 sm:%s699]
  %vm701 = vcmask 1047558
  %v702 = vsel %vm701, %v700, %v697
  %703 = vrot.lane.b32.xlu0 %v702, 64
  %v704 = vpop.permute.xlu0 %703
  %vm705 = vcmask 785920
  %s706 = scalar_lea.vmem %s1, 48
  %707 = vst.msk [vmem:[%s706] sm:$0xff] %vm705, %v704
  %s708 = scalar_lea.vmem %s0, 266
  %s709 = smov 3
  %v710 = vld [vmem:[%s708] ss:$16 sm:%s709]
  %s711 = scalar_lea.vmem %s0, 266
  %s712 = smov 12
  %v713 = vld [vmem:[%s711] ss:$16 sm:%s712]
  %vm714 = vcmask 1043458
  %v715 = vsel %vm714, %v713, %v710
  %s716 = scalar_lea.vmem %s0, 266
  %s717 = smov 48
  %v718 = vld [vmem:[%s716] ss:$16 sm:%s717]
  %vm719 = vcmask 1045508
  %v720 = vsel %vm719, %v718, %v715
  %s721 = scalar_lea.vmem %s0, 266
  %s722 = smov 192
  %v723 = vld [vmem:[%s721] ss:$16 sm:%s722]
  %vm724 = vcmask 1047558
  %v725 = vsel %vm724, %v723, %v720
  %726 = vrot.lane.b32.xlu0 %v725, 64
  %v727 = vpop.permute.xlu0 %726
  %vm728 = vcmask 785920
  %s729 = scalar_lea.vmem %s1, 80
  %730 = vst.msk [vmem:[%s729] sm:$0xff] %vm728, %v727
  %s731 = scalar_lea.vmem %s0, 394
  %s732 = smov 3
  %v733 = vld [vmem:[%s731] ss:$16 sm:%s732]
  %s734 = scalar_lea.vmem %s0, 394
  %s735 = smov 12
  %v736 = vld [vmem:[%s734] ss:$16 sm:%s735]
  %vm737 = vcmask 1043458
  %v738 = vsel %vm737, %v736, %v733
  %s739 = scalar_lea.vmem %s0, 394
  %s740 = smov 48
  %v741 = vld [vmem:[%s739] ss:$16 sm:%s740]
  %vm742 = vcmask 1045508
  %v743 = vsel %vm742, %v741, %v738
  %s744 = scalar_lea.vmem %s0, 394
  %s745 = smov 192
  %v746 = vld [vmem:[%s744] ss:$16 sm:%s745]
  %vm747 = vcmask 1047558
  %v748 = vsel %vm747, %v746, %v743
  %749 = vrot.lane.b32.xlu0 %v748, 64
  %v750 = vpop.permute.xlu0 %749
  %vm751 = vcmask 785920
  %s752 = scalar_lea.vmem %s1, 112
  %753 = vst.msk [vmem:[%s752] sm:$0xff] %vm751, %v750
  %s754 = scalar_lea.vmem %s0, 14
  %s755 = smov 3
  %v756 = vld [vmem:[%s754] ss:$16 sm:%s755]
  %s757 = scalar_lea.vmem %s0, 14
  %s758 = smov 12
  %v759 = vld [vmem:[%s757] ss:$16 sm:%s758]
  %vm760 = vcmask 1043458
  %v761 = vsel %vm760, %v759, %v756
  %s762 = scalar_lea.vmem %s0, 14
  %s763 = smov 48
  %v764 = vld [vmem:[%s762] ss:$16 sm:%s763]
  %vm765 = vcmask 1045508
  %v766 = vsel %vm765, %v764, %v761
  %s767 = scalar_lea.vmem %s0, 14
  %s768 = smov 192
  %v769 = vld [vmem:[%s767] ss:$16 sm:%s768]
  %vm770 = vcmask 1047558
  %v771 = vsel %vm770, %v769, %v766
  %772 = vrot.lane.b32.xlu0 %v771, 64
  %v773 = vpop.permute.xlu0 %772
  %vm774 = vcmask 785920
  %s775 = scalar_lea.vmem %s1, 24
  %776 = vst.msk [vmem:[%s775] sm:$0xff] %vm774, %v773
  %s777 = scalar_lea.vmem %s0, 142
  %s778 = smov 3
  %v779 = vld [vmem:[%s777] ss:$16 sm:%s778]
  %s780 = scalar_lea.vmem %s0, 142
  %s781 = smov 12
  %v782 = vld [vmem:[%s780] ss:$16 sm:%s781]
  %vm783 = vcmask 1043458
  %v784 = vsel %vm783, %v782, %v779
  %s785 = scalar_lea.vmem %s0, 142
  %s786 = smov 48
  %v787 = vld [vmem:[%s785] ss:$16 sm:%s786]
  %vm788 = vcmask 1045508
  %v789 = vsel %vm788, %v787, %v784
  %s790 = scalar_lea.vmem %s0, 142
  %s791 = smov 192
  %v792 = vld [vmem:[%s790] ss:$16 sm:%s791]
  %vm793 = vcmask 1047558
  %v794 = vsel %vm793, %v792, %v789
  %795 = vrot.lane.b32.xlu0 %v794, 64
  %v796 = vpop.permute.xlu0 %795
  %vm797 = vcmask 785920
  %s798 = scalar_lea.vmem %s1, 56
  %799 = vst.msk [vmem:[%s798] sm:$0xff] %vm797, %v796
  %s800 = scalar_lea.vmem %s0, 270
  %s801 = smov 3
  %v802 = vld [vmem:[%s800] ss:$16 sm:%s801]
  %s803 = scalar_lea.vmem %s0, 270
  %s804 = smov 12
  %v805 = vld [vmem:[%s803] ss:$16 sm:%s804]
  %vm806 = vcmask 1043458
  %v807 = vsel %vm806, %v805, %v802
  %s808 = scalar_lea.vmem %s0, 270
  %s809 = smov 48
  %v810 = vld [vmem:[%s808] ss:$16 sm:%s809]
  %vm811 = vcmask 1045508
  %v812 = vsel %vm811, %v810, %v807
  %s813 = scalar_lea.vmem %s0, 270
  %s814 = smov 192
  %v815 = vld [vmem:[%s813] ss:$16 sm:%s814]
  %vm816 = vcmask 1047558
  %v817 = vsel %vm816, %v815, %v812
  %818 = vrot.lane.b32.xlu0 %v817, 64
  %v819 = vpop.permute.xlu0 %818
  %vm820 = vcmask 785920
  %s821 = scalar_lea.vmem %s1, 88
  %822 = vst.msk [vmem:[%s821] sm:$0xff] %vm820, %v819
  %s823 = scalar_lea.vmem %s0, 398
  %s824 = smov 3
  %v825 = vld [vmem:[%s823] ss:$16 sm:%s824]
  %s826 = scalar_lea.vmem %s0, 398
  %s827 = smov 12
  %v828 = vld [vmem:[%s826] ss:$16 sm:%s827]
  %vm829 = vcmask 1043458
  %v830 = vsel %vm829, %v828, %v825
  %s831 = scalar_lea.vmem %s0, 398
  %s832 = smov 48
  %v833 = vld [vmem:[%s831] ss:$16 sm:%s832]
  %vm834 = vcmask 1045508
  %v835 = vsel %vm834, %v833, %v830
  %s836 = scalar_lea.vmem %s0, 398
  %s837 = smov 192
  %v838 = vld [vmem:[%s836] ss:$16 sm:%s837]
  %vm839 = vcmask 1047558
  %v840 = vsel %vm839, %v838, %v835
  %841 = vrot.lane.b32.xlu0 %v840, 64
  %v842 = vpop.permute.xlu0 %841
  %vm843 = vcmask 785920
  %s844 = scalar_lea.vmem %s1, 120
  %845 = vst.msk [vmem:[%s844] sm:$0xff] %vm843, %v842
  %s846 = scalar_lea.vmem %s0, 1
  %s847 = smov 3
  %v848 = vld [vmem:[%s846] ss:$16 sm:%s847]
  %s849 = scalar_lea.vmem %s0, 1
  %s850 = smov 12
  %v851 = vld [vmem:[%s849] ss:$16 sm:%s850]
  %vm852 = vcmask 1043458
  %v853 = vsel %vm852, %v851, %v848
  %s854 = scalar_lea.vmem %s0, 1
  %s855 = smov 48
  %v856 = vld [vmem:[%s854] ss:$16 sm:%s855]
  %vm857 = vcmask 1045508
  %v858 = vsel %vm857, %v856, %v853
  %s859 = scalar_lea.vmem %s0, 1
  %s860 = smov 192
  %v861 = vld [vmem:[%s859] ss:$16 sm:%s860]
  %vm862 = vcmask 1047558
  %v863 = vsel %vm862, %v861, %v858
  %864 = vrot.lane.b32.xlu0 %v863, 32
  %v865 = vpop.permute.xlu0 %864
  %vm866 = vcmask 523520
  %867 = vst.msk [vmem:[%s1] sm:$0xff] %vm866, %v865
  %s868 = scalar_lea.vmem %s0, 129
  %s869 = smov 3
  %v870 = vld [vmem:[%s868] ss:$16 sm:%s869]
  %s871 = scalar_lea.vmem %s0, 129
  %s872 = smov 12
  %v873 = vld [vmem:[%s871] ss:$16 sm:%s872]
  %vm874 = vcmask 1043458
  %v875 = vsel %vm874, %v873, %v870
  %s876 = scalar_lea.vmem %s0, 129
  %s877 = smov 48
  %v878 = vld [vmem:[%s876] ss:$16 sm:%s877]
  %vm879 = vcmask 1045508
  %v880 = vsel %vm879, %v878, %v875
  %s881 = scalar_lea.vmem %s0, 129
  %s882 = smov 192
  %v883 = vld [vmem:[%s881] ss:$16 sm:%s882]
  %vm884 = vcmask 1047558
  %v885 = vsel %vm884, %v883, %v880
  %886 = vrot.lane.b32.xlu0 %v885, 32
  %v887 = vpop.permute.xlu0 %886
  %vm888 = vcmask 523520
  %s889 = scalar_lea.vmem %s1, 32
  %890 = vst.msk [vmem:[%s889] sm:$0xff] %vm888, %v887
  %s891 = scalar_lea.vmem %s0, 257
  %s892 = smov 3
  %v893 = vld [vmem:[%s891] ss:$16 sm:%s892]
  %s894 = scalar_lea.vmem %s0, 257
  %s895 = smov 12
  %v896 = vld [vmem:[%s894] ss:$16 sm:%s895]
  %vm897 = vcmask 1043458
  %v898 = vsel %vm897, %v896, %v893
  %s899 = scalar_lea.vmem %s0, 257
  %s900 = smov 48
  %v901 = vld [vmem:[%s899] ss:$16 sm:%s900]
  %vm902 = vcmask 1045508
  %v903 = vsel %vm902, %v901, %v898
  %s904 = scalar_lea.vmem %s0, 257
  %s905 = smov 192
  %v906 = vld [vmem:[%s904] ss:$16 sm:%s905]
  %vm907 = vcmask 1047558
  %v908 = vsel %vm907, %v906, %v903
  %909 = vrot.lane.b32.xlu0 %v908, 32
  %v910 = vpop.permute.xlu0 %909
  %vm911 = vcmask 523520
  %s912 = scalar_lea.vmem %s1, 64
  %913 = vst.msk [vmem:[%s912] sm:$0xff] %vm911, %v910
  %s914 = scalar_lea.vmem %s0, 385
  %s915 = smov 3
  %v916 = vld [vmem:[%s914] ss:$16 sm:%s915]
  %s917 = scalar_lea.vmem %s0, 385
  %s918 = smov 12
  %v919 = vld [vmem:[%s917] ss:$16 sm:%s918]
  %vm920 = vcmask 1043458
  %v921 = vsel %vm920, %v919, %v916
  %s922 = scalar_lea.vmem %s0, 385
  %s923 = smov 48
  %v924 = vld [vmem:[%s922] ss:$16 sm:%s923]
  %vm925 = vcmask 1045508
  %v926 = vsel %vm925, %v924, %v921
  %s927 = scalar_lea.vmem %s0, 385
  %s928 = smov 192
  %v929 = vld [vmem:[%s927] ss:$16 sm:%s928]
  %vm930 = vcmask 1047558
  %v931 = vsel %vm930, %v929, %v926
  %932 = vrot.lane.b32.xlu0 %v931, 32
  %v933 = vpop.permute.xlu0 %932
  %vm934 = vcmask 523520
  %s935 = scalar_lea.vmem %s1, 96
  %936 = vst.msk [vmem:[%s935] sm:$0xff] %vm934, %v933
  %s937 = scalar_lea.vmem %s0, 5
  %s938 = smov 3
  %v939 = vld [vmem:[%s937] ss:$16 sm:%s938]
  %s940 = scalar_lea.vmem %s0, 5
  %s941 = smov 12
  %v942 = vld [vmem:[%s940] ss:$16 sm:%s941]
  %vm943 = vcmask 1043458
  %v944 = vsel %vm943, %v942, %v939
  %s945 = scalar_lea.vmem %s0, 5
  %s946 = smov 48
  %v947 = vld [vmem:[%s945] ss:$16 sm:%s946]
  %vm948 = vcmask 1045508
  %v949 = vsel %vm948, %v947, %v944
  %s950 = scalar_lea.vmem %s0, 5
  %s951 = smov 192
  %v952 = vld [vmem:[%s950] ss:$16 sm:%s951]
  %vm953 = vcmask 1047558
  %v954 = vsel %vm953, %v952, %v949
  %955 = vrot.lane.b32.xlu0 %v954, 32
  %v956 = vpop.permute.xlu0 %955
  %vm957 = vcmask 523520
  %s958 = scalar_lea.vmem %s1, 8
  %959 = vst.msk [vmem:[%s958] sm:$0xff] %vm957, %v956
  %s960 = scalar_lea.vmem %s0, 133
  %s961 = smov 3
  %v962 = vld [vmem:[%s960] ss:$16 sm:%s961]
  %s963 = scalar_lea.vmem %s0, 133
  %s964 = smov 12
  %v965 = vld [vmem:[%s963] ss:$16 sm:%s964]
  %vm966 = vcmask 1043458
  %v967 = vsel %vm966, %v965, %v962
  %s968 = scalar_lea.vmem %s0, 133
  %s969 = smov 48
  %v970 = vld [vmem:[%s968] ss:$16 sm:%s969]
  %vm971 = vcmask 1045508
  %v972 = vsel %vm971, %v970, %v967
  %s973 = scalar_lea.vmem %s0, 133
  %s974 = smov 192
  %v975 = vld [vmem:[%s973] ss:$16 sm:%s974]
  %vm976 = vcmask 1047558
  %v977 = vsel %vm976, %v975, %v972
  %978 = vrot.lane.b32.xlu0 %v977, 32
  %v979 = vpop.permute.xlu0 %978
  %vm980 = vcmask 523520
  %s981 = scalar_lea.vmem %s1, 40
  %982 = vst.msk [vmem:[%s981] sm:$0xff] %vm980, %v979
  %s983 = scalar_lea.vmem %s0, 261
  %s984 = smov 3
  %v985 = vld [vmem:[%s983] ss:$16 sm:%s984]
  %s986 = scalar_lea.vmem %s0, 261
  %s987 = smov 12
  %v988 = vld [vmem:[%s986] ss:$16 sm:%s987]
  %vm989 = vcmask 1043458
  %v990 = vsel %vm989, %v988, %v985
  %s991 = scalar_lea.vmem %s0, 261
  %s992 = smov 48
  %v993 = vld [vmem:[%s991] ss:$16 sm:%s992]
  %vm994 = vcmask 1045508
  %v995 = vsel %vm994, %v993, %v990
  %s996 = scalar_lea.vmem %s0, 261
  %s997 = smov 192
  %v998 = vld [vmem:[%s996] ss:$16 sm:%s997]
  %vm999 = vcmask 1047558
  %v1000 = vsel %vm999, %v998, %v995
  %1001 = vrot.lane.b32.xlu0 %v1000, 32
  %v1002 = vpop.permute.xlu0 %1001
  %vm1003 = vcmask 523520
  %s1004 = scalar_lea.vmem %s1, 72
  %1005 = vst.msk [vmem:[%s1004] sm:$0xff] %vm1003, %v1002
  %s1006 = scalar_lea.vmem %s0, 389
  %s1007 = smov 3
  %v1008 = vld [vmem:[%s1006] ss:$16 sm:%s1007]
  %s1009 = scalar_lea.vmem %s0, 389
  %s1010 = smov 12
  %v1011 = vld [vmem:[%s1009] ss:$16 sm:%s1010]
  %vm1012 = vcmask 1043458
  %v1013 = vsel %vm1012, %v1011, %v1008
  %s1014 = scalar_lea.vmem %s0, 389
  %s1015 = smov 48
  %v1016 = vld [vmem:[%s1014] ss:$16 sm:%s1015]
  %vm1017 = vcmask 1045508
  %v1018 = vsel %vm1017, %v1016, %v1013
  %s1019 = scalar_lea.vmem %s0, 389
  %s1020 = smov 192
  %v1021 = vld [vmem:[%s1019] ss:$16 sm:%s1020]
  %vm1022 = vcmask 1047558
  %v1023 = vsel %vm1022, %v1021, %v1018
  %1024 = vrot.lane.b32.xlu0 %v1023, 32
  %v1025 = vpop.permute.xlu0 %1024
  %vm1026 = vcmask 523520
  %s1027 = scalar_lea.vmem %s1, 104
  %1028 = vst.msk [vmem:[%s1027] sm:$0xff] %vm1026, %v1025
  %s1029 = scalar_lea.vmem %s0, 9
  %s1030 = smov 3
  %v1031 = vld [vmem:[%s1029] ss:$16 sm:%s1030]
  %s1032 = scalar_lea.vmem %s0, 9
  %s1033 = smov 12
  %v1034 = vld [vmem:[%s1032] ss:$16 sm:%s1033]
  %vm1035 = vcmask 1043458
  %v1036 = vsel %vm1035, %v1034, %v1031
  %s1037 = scalar_lea.vmem %s0, 9
  %s1038 = smov 48
  %v1039 = vld [vmem:[%s1037] ss:$16 sm:%s1038]
  %vm1040 = vcmask 1045508
  %v1041 = vsel %vm1040, %v1039, %v1036
  %s1042 = scalar_lea.vmem %s0, 9
  %s1043 = smov 192
  %v1044 = vld [vmem:[%s1042] ss:$16 sm:%s1043]
  %vm1045 = vcmask 1047558
  %v1046 = vsel %vm1045, %v1044, %v1041
  %1047 = vrot.lane.b32.xlu0 %v1046, 32
  %v1048 = vpop.permute.xlu0 %1047
  %vm1049 = vcmask 523520
  %s1050 = scalar_lea.vmem %s1, 16
  %1051 = vst.msk [vmem:[%s1050] sm:$0xff] %vm1049, %v1048
  %s1052 = scalar_lea.vmem %s0, 137
  %s1053 = smov 3
  %v1054 = vld [vmem:[%s1052] ss:$16 sm:%s1053]
  %s1055 = scalar_lea.vmem %s0, 137
  %s1056 = smov 12
  %v1057 = vld [vmem:[%s1055] ss:$16 sm:%s1056]
  %vm1058 = vcmask 1043458
  %v1059 = vsel %vm1058, %v1057, %v1054
  %s1060 = scalar_lea.vmem %s0, 137
  %s1061 = smov 48
  %v1062 = vld [vmem:[%s1060] ss:$16 sm:%s1061]
  %vm1063 = vcmask 1045508
  %v1064 = vsel %vm1063, %v1062, %v1059
  %s1065 = scalar_lea.vmem %s0, 137
  %s1066 = smov 192
  %v1067 = vld [vmem:[%s1065] ss:$16 sm:%s1066]
  %vm1068 = vcmask 1047558
  %v1069 = vsel %vm1068, %v1067, %v1064
  %1070 = vrot.lane.b32.xlu0 %v1069, 32
  %v1071 = vpop.permute.xlu0 %1070
  %vm1072 = vcmask 523520
  %s1073 = scalar_lea.vmem %s1, 48
  %1074 = vst.msk [vmem:[%s1073] sm:$0xff] %vm1072, %v1071
  %s1075 = scalar_lea.vmem %s0, 265
  %s1076 = smov 3
  %v1077 = vld [vmem:[%s1075] ss:$16 sm:%s1076]
  %s1078 = scalar_lea.vmem %s0, 265
  %s1079 = smov 12
  %v1080 = vld [vmem:[%s1078] ss:$16 sm:%s1079]
  %vm1081 = vcmask 1043458
  %v1082 = vsel %vm1081, %v1080, %v1077
  %s1083 = scalar_lea.vmem %s0, 265
  %s1084 = smov 48
  %v1085 = vld [vmem:[%s1083] ss:$16 sm:%s1084]
  %vm1086 = vcmask 1045508
  %v1087 = vsel %vm1086, %v1085, %v1082
  %s1088 = scalar_lea.vmem %s0, 265
  %s1089 = smov 192
  %v1090 = vld [vmem:[%s1088] ss:$16 sm:%s1089]
  %vm1091 = vcmask 1047558
  %v1092 = vsel %vm1091, %v1090, %v1087
  %1093 = vrot.lane.b32.xlu0 %v1092, 32
  %v1094 = vpop.permute.xlu0 %1093
  %vm1095 = vcmask 523520
  %s1096 = scalar_lea.vmem %s1, 80
  %1097 = vst.msk [vmem:[%s1096] sm:$0xff] %vm1095, %v1094
  %s1098 = scalar_lea.vmem %s0, 393
  %s1099 = smov 3
  %v1100 = vld [vmem:[%s1098] ss:$16 sm:%s1099]
  %s1101 = scalar_lea.vmem %s0, 393
  %s1102 = smov 12
  %v1103 = vld [vmem:[%s1101] ss:$16 sm:%s1102]
  %vm1104 = vcmask 1043458
  %v1105 = vsel %vm1104, %v1103, %v1100
  %s1106 = scalar_lea.vmem %s0, 393
  %s1107 = smov 48
  %v1108 = vld [vmem:[%s1106] ss:$16 sm:%s1107]
  %vm1109 = vcmask 1045508
  %v1110 = vsel %vm1109, %v1108, %v1105
  %s1111 = scalar_lea.vmem %s0, 393
  %s1112 = smov 192
  %v1113 = vld [vmem:[%s1111] ss:$16 sm:%s1112]
  %vm1114 = vcmask 1047558
  %v1115 = vsel %vm1114, %v1113, %v1110
  %1116 = vrot.lane.b32.xlu0 %v1115, 32
  %v1117 = vpop.permute.xlu0 %1116
  %vm1118 = vcmask 523520
  %s1119 = scalar_lea.vmem %s1, 112
  %1120 = vst.msk [vmem:[%s1119] sm:$0xff] %vm1118, %v1117
  %s1121 = scalar_lea.vmem %s0, 13
  %s1122 = smov 3
  %v1123 = vld [vmem:[%s1121] ss:$16 sm:%s1122]
  %s1124 = scalar_lea.vmem %s0, 13
  %s1125 = smov 12
  %v1126 = vld [vmem:[%s1124] ss:$16 sm:%s1125]
  %vm1127 = vcmask 1043458
  %v1128 = vsel %vm1127, %v1126, %v1123
  %s1129 = scalar_lea.vmem %s0, 13
  %s1130 = smov 48
  %v1131 = vld [vmem:[%s1129] ss:$16 sm:%s1130]
  %vm1132 = vcmask 1045508
  %v1133 = vsel %vm1132, %v1131, %v1128
  %s1134 = scalar_lea.vmem %s0, 13
  %s1135 = smov 192
  %v1136 = vld [vmem:[%s1134] ss:$16 sm:%s1135]
  %vm1137 = vcmask 1047558
  %v1138 = vsel %vm1137, %v1136, %v1133
  %1139 = vrot.lane.b32.xlu0 %v1138, 32
  %v1140 = vpop.permute.xlu0 %1139
  %vm1141 = vcmask 523520
  %s1142 = scalar_lea.vmem %s1, 24
  %1143 = vst.msk [vmem:[%s1142] sm:$0xff] %vm1141, %v1140
  %s1144 = scalar_lea.vmem %s0, 141
  %s1145 = smov 3
  %v1146 = vld [vmem:[%s1144] ss:$16 sm:%s1145]
  %s1147 = scalar_lea.vmem %s0, 141
  %s1148 = smov 12
  %v1149 = vld [vmem:[%s1147] ss:$16 sm:%s1148]
  %vm1150 = vcmask 1043458
  %v1151 = vsel %vm1150, %v1149, %v1146
  %s1152 = scalar_lea.vmem %s0, 141
  %s1153 = smov 48
  %v1154 = vld [vmem:[%s1152] ss:$16 sm:%s1153]
  %vm1155 = vcmask 1045508
  %v1156 = vsel %vm1155, %v1154, %v1151
  %s1157 = scalar_lea.vmem %s0, 141
  %s1158 = smov 192
  %v1159 = vld [vmem:[%s1157] ss:$16 sm:%s1158]
  %vm1160 = vcmask 1047558
  %v1161 = vsel %vm1160, %v1159, %v1156
  %1162 = vrot.lane.b32.xlu0 %v1161, 32
  %v1163 = vpop.permute.xlu0 %1162
  %vm1164 = vcmask 523520
  %s1165 = scalar_lea.vmem %s1, 56
  %1166 = vst.msk [vmem:[%s1165] sm:$0xff] %vm1164, %v1163
  %s1167 = scalar_lea.vmem %s0, 269
  %s1168 = smov 3
  %v1169 = vld [vmem:[%s1167] ss:$16 sm:%s1168]
  %s1170 = scalar_lea.vmem %s0, 269
  %s1171 = smov 12
  %v1172 = vld [vmem:[%s1170] ss:$16 sm:%s1171]
  %vm1173 = vcmask 1043458
  %v1174 = vsel %vm1173, %v1172, %v1169
  %s1175 = scalar_lea.vmem %s0, 269
  %s1176 = smov 48
  %v1177 = vld [vmem:[%s1175] ss:$16 sm:%s1176]
  %vm1178 = vcmask 1045508
  %v1179 = vsel %vm1178, %v1177, %v1174
  %s1180 = scalar_lea.vmem %s0, 269
  %s1181 = smov 192
  %v1182 = vld [vmem:[%s1180] ss:$16 sm:%s1181]
  %vm1183 = vcmask 1047558
  %v1184 = vsel %vm1183, %v1182, %v1179
  %1185 = vrot.lane.b32.xlu0 %v1184, 32
  %v1186 = vpop.permute.xlu0 %1185
  %vm1187 = vcmask 523520
  %s1188 = scalar_lea.vmem %s1, 88
  %1189 = vst.msk [vmem:[%s1188] sm:$0xff] %vm1187, %v1186
  %s1190 = scalar_lea.vmem %s0, 397
  %s1191 = smov 3
  %v1192 = vld [vmem:[%s1190] ss:$16 sm:%s1191]
  %s1193 = scalar_lea.vmem %s0, 397
  %s1194 = smov 12
  %v1195 = vld [vmem:[%s1193] ss:$16 sm:%s1194]
  %vm1196 = vcmask 1043458
  %v1197 = vsel %vm1196, %v1195, %v1192
  %s1198 = scalar_lea.vmem %s0, 397
  %s1199 = smov 48
  %v1200 = vld [vmem:[%s1198] ss:$16 sm:%s1199]
  %vm1201 = vcmask 1045508
  %v1202 = vsel %vm1201, %v1200, %v1197
  %s1203 = scalar_lea.vmem %s0, 397
  %s1204 = smov 192
  %v1205 = vld [vmem:[%s1203] ss:$16 sm:%s1204]
  %vm1206 = vcmask 1047558
  %v1207 = vsel %vm1206, %v1205, %v1202
  %1208 = vrot.lane.b32.xlu0 %v1207, 32
  %v1209 = vpop.permute.xlu0 %1208
  %vm1210 = vcmask 523520
  %s1211 = scalar_lea.vmem %s1, 120
  %1212 = vst.msk [vmem:[%s1211] sm:$0xff] %vm1210, %v1209

// kernel: tile.59
$region0: #{tile.59}
  %s0 = inlined_call_operand.vmem [shape: f32[16,32,16], index: 0, kind: input, shape index: {}]
  %s1 = inlined_call_operand.vmem [shape: f32[16,512], index: 1, kind: output, shape index: {}]
  %v2 = vld [vmem:[%s0] ss:$8 sm:$0xf]
  %v3 = vld [vmem:[%s0] ss:$8 sm:$0xf0]
  %vm4 = vcmask 1047556
  %v5 = vsel %vm4, %v3, %v2
  %vm6 = vcmask 130048
  %7 = vst.msk [vmem:[%s1] ss:$8 sm:$0xf] %vm6, %v5
  %s8 = scalar_lea.vmem %s1, 4294967265
  %9 = vst.msk [vmem:[%s8] ss:$8 sm:$0xf0] %vm6, %v5
  %s10 = scalar_lea.vmem %s0, 64
  %v11 = vld [vmem:[%s10] ss:$8 sm:$0xf]
  %s12 = scalar_lea.vmem %s0, 64
  %v13 = vld [vmem:[%s12] ss:$8 sm:$0xf0]
  %vm14 = vcmask 1047556
  %v15 = vsel %vm14, %v13, %v11
  %vm16 = vcmask 130048
  %s17 = scalar_lea.vmem %s1, 2
  %18 = vst.msk [vmem:[%s17] ss:$8 sm:$0xf] %vm16, %v15
  %s19 = scalar_lea.vmem %s1, 4294967267
  %20 = vst.msk [vmem:[%s19] ss:$8 sm:$0xf0] %vm16, %v15
  %s21 = scalar_lea.vmem %s0, 128
  %v22 = vld [vmem:[%s21] ss:$8 sm:$0xf]
  %s23 = scalar_lea.vmem %s0, 128
  %v24 = vld [vmem:[%s23] ss:$8 sm:$0xf0]
  %vm25 = vcmask 1047556
  %v26 = vsel %vm25, %v24, %v22
  %vm27 = vcmask 130048
  %s28 = scalar_lea.vmem %s1, 4
  %29 = vst.msk [vmem:[%s28] ss:$8 sm:$0xf] %vm27, %v26
  %s30 = scalar_lea.vmem %s1, 4294967269
  %31 = vst.msk [vmem:[%s30] ss:$8 sm:$0xf0] %vm27, %v26
  %s32 = scalar_lea.vmem %s0, 192
  %v33 = vld [vmem:[%s32] ss:$8 sm:$0xf]
  %s34 = scalar_lea.vmem %s0, 192
  %v35 = vld [vmem:[%s34] ss:$8 sm:$0xf0]
  %vm36 = vcmask 1047556
  %v37 = vsel %vm36, %v35, %v33
  %vm38 = vcmask 130048
  %s39 = scalar_lea.vmem %s1, 6
  %40 = vst.msk [vmem:[%s39] ss:$8 sm:$0xf] %vm38, %v37
  %s41 = scalar_lea.vmem %s1, 4294967271
  %42 = vst.msk [vmem:[%s41] ss:$8 sm:$0xf0] %vm38, %v37
  %s43 = scalar_lea.vmem %s0, 256
  %v44 = vld [vmem:[%s43] ss:$8 sm:$0xf]
  %s45 = scalar_lea.vmem %s0, 256
  %v46 = vld [vmem:[%s45] ss:$8 sm:$0xf0]
  %vm47 = vcmask 1047556
  %v48 = vsel %vm47, %v46, %v44
  %vm49 = vcmask 130048
  %s50 = scalar_lea.vmem %s1, 32
  %51 = vst.msk [vmem:[%s50] ss:$8 sm:$0xf] %vm49, %v48
  %s52 = scalar_lea.vmem %s1, 1
  %53 = vst.msk [vmem:[%s52] ss:$8 sm:$0xf0] %vm49, %v48
  %s54 = scalar_lea.vmem %s0, 320
  %v55 = vld [vmem:[%s54] ss:$8 sm:$0xf]
  %s56 = scalar_lea.vmem %s0, 320
  %v57 = vld [vmem:[%s56] ss:$8 sm:$0xf0]
  %vm58 = vcmask 1047556
  %v59 = vsel %vm58, %v57, %v55
  %vm60 = vcmask 130048
  %s61 = scalar_lea.vmem %s1, 34
  %62 = vst.msk [vmem:[%s61] ss:$8 sm:$0xf] %vm60, %v59
  %s63 = scalar_lea.vmem %s1, 3
  %64 = vst.msk [vmem:[%s63] ss:$8 sm:$0xf0] %vm60, %v59
  %s65 = scalar_lea.vmem %s0, 384
  %v66 = vld [vmem:[%s65] ss:$8 sm:$0xf]
  %s67 = scalar_lea.vmem %s0, 384
  %v68 = vld [vmem:[%s67] ss:$8 sm:$0xf0]
  %vm69 = vcmask 1047556
  %v70 = vsel %vm69, %v68, %v66
  %vm71 = vcmask 130048
  %s72 = scalar_lea.vmem %s1, 36
  %73 = vst.msk [vmem:[%s72] ss:$8 sm:$0xf] %vm71, %v70
  %s74 = scalar_lea.vmem %s1, 5
  %75 = vst.msk [vmem:[%s74] ss:$8 sm:$0xf0] %vm71, %v70
  %s76 = scalar_lea.vmem %s0, 448
  %v77 = vld [vmem:[%s76] ss:$8 sm:$0xf]
  %s78 = scalar_lea.vmem %s0, 448
  %v79 = vld [vmem:[%s78] ss:$8 sm:$0xf0]
  %vm80 = vcmask 1047556
  %v81 = vsel %vm80, %v79, %v77
  %vm82 = vcmask 130048
  %s83 = scalar_lea.vmem %s1, 38
  %84 = vst.msk [vmem:[%s83] ss:$8 sm:$0xf] %vm82, %v81
  %s85 = scalar_lea.vmem %s1, 7
  %86 = vst.msk [vmem:[%s85] ss:$8 sm:$0xf0] %vm82, %v81
  %s87 = scalar_lea.vmem %s0, 7
  %v88 = vld [vmem:[%s87] sm:$0x1]
  %s89 = scalar_lea.vmem %s0, 38
  %v90 = vld [vmem:[%s89] sm:$0x2]
  %vm91 = vcmask 1041409
  %v92 = vsel %vm91, %v90, %v88
  %s93 = scalar_lea.vmem %s0, 69
  %v94 = vld [vmem:[%s93] sm:$0x4]
  %vm95 = vcmask 1042434
  %v96 = vsel %vm95, %v94, %v92
  %s97 = scalar_lea.vmem %s0, 100
  %v98 = vld [vmem:[%s97] sm:$0x8]
  %vm99 = vcmask 1043459
  %v100 = vsel %vm99, %v98, %v96
  %s101 = scalar_lea.vmem %s0, 131
  %v102 = vld [vmem:[%s101] sm:$0x10]
  %vm103 = vcmask 1044484
  %v104 = vsel %vm103, %v102, %v100
  %s105 = scalar_lea.vmem %s0, 162
  %v106 = vld [vmem:[%s105] sm:$0x20]
  %vm107 = vcmask 1045509
  %v108 = vsel %vm107, %v106, %v104
  %s109 = scalar_lea.vmem %s0, 193
  %v110 = vld [vmem:[%s109] sm:$0x40]
  %vm111 = vcmask 1046534
  %v112 = vsel %vm111, %v110, %v108
  %s113 = scalar_lea.vmem %s0, 224
  %v114 = vld [vmem:[%s113] sm:$0x80]
  %vm115 = vcmask 1047559
  %v116 = vsel %vm115, %v114, %v112
  %117 = vrot.lane.b32.xlu0 %v116, 112
  %v118 = vpop.permute.xlu0 %117
  %vm119 = vcmask 1048448
  %120 = vst.msk [vmem:[%s1] sm:$0xff] %vm119, %v118
  %s121 = scalar_lea.vmem %s0, 263
  %v122 = vld [vmem:[%s121] sm:$0x1]
  %s123 = scalar_lea.vmem %s0, 294
  %v124 = vld [vmem:[%s123] sm:$0x2]
  %vm125 = vcmask 1041409
  %v126 = vsel %vm125, %v124, %v122
  %s127 = scalar_lea.vmem %s0, 325
  %v128 = vld [vmem:[%s127] sm:$0x4]
  %vm129 = vcmask 1042434
  %v130 = vsel %vm129, %v128, %v126
  %s131 = scalar_lea.vmem %s0, 356
  %v132 = vld [vmem:[%s131] sm:$0x8]
  %vm133 = vcmask 1043459
  %v134 = vsel %vm133, %v132, %v130
  %s135 = scalar_lea.vmem %s0, 387
  %v136 = vld [vmem:[%s135] sm:$0x10]
  %vm137 = vcmask 1044484
  %v138 = vsel %vm137, %v136, %v134
  %s139 = scalar_lea.vmem %s0, 418
  %v140 = vld [vmem:[%s139] sm:$0x20]
  %vm141 = vcmask 1045509
  %v142 = vsel %vm141, %v140, %v138
  %s143 = scalar_lea.vmem %s0, 449
  %v144 = vld [vmem:[%s143] sm:$0x40]
  %vm145 = vcmask 1046534
  %v146 = vsel %vm145, %v144, %v142
  %s147 = scalar_lea.vmem %s0, 480
  %v148 = vld [vmem:[%s147] sm:$0x80]
  %vm149 = vcmask 1047559
  %v150 = vsel %vm149, %v148, %v146
  %151 = vrot.lane.b32.xlu0 %v150, 112
  %v152 = vpop.permute.xlu0 %151
  %vm153 = vcmask 1048448
  %s154 = scalar_lea.vmem %s1, 32
  %155 = vst.msk [vmem:[%s154] sm:$0xff] %vm153, %v152
  %s156 = scalar_lea.vmem %s0, 15
  %v157 = vld [vmem:[%s156] sm:$0x1]
  %s158 = scalar_lea.vmem %s0, 46
  %v159 = vld [vmem:[%s158] sm:$0x2]
  %vm160 = vcmask 1041409
  %v161 = vsel %vm160, %v159, %v157
  %s162 = scalar_lea.vmem %s0, 77
  %v163 = vld [vmem:[%s162] sm:$0x4]
  %vm164 = vcmask 1042434
  %v165 = vsel %vm164, %v163, %v161
  %s166 = scalar_lea.vmem %s0, 108
  %v167 = vld [vmem:[%s166] sm:$0x8]
  %vm168 = vcmask 1043459
  %v169 = vsel %vm168, %v167, %v165
  %s170 = scalar_lea.vmem %s0, 139
  %v171 = vld [vmem:[%s170] sm:$0x10]
  %vm172 = vcmask 1044484
  %v173 = vsel %vm172, %v171, %v169
  %s174 = scalar_lea.vmem %s0, 170
  %v175 = vld [vmem:[%s174] sm:$0x20]
  %vm176 = vcmask 1045509
  %v177 = vsel %vm176, %v175, %v173
  %s178 = scalar_lea.vmem %s0, 201
  %v179 = vld [vmem:[%s178] sm:$0x40]
  %vm180 = vcmask 1046534
  %v181 = vsel %vm180, %v179, %v177
  %s182 = scalar_lea.vmem %s0, 232
  %v183 = vld [vmem:[%s182] sm:$0x80]
  %vm184 = vcmask 1047559
  %v185 = vsel %vm184, %v183, %v181
  %186 = vrot.lane.b32.xlu0 %v185, 112
  %v187 = vpop.permute.xlu0 %186
  %vm188 = vcmask 1048448
  %s189 = scalar_lea.vmem %s1, 8
  %190 = vst.msk [vmem:[%s189] sm:$0xff] %vm188, %v187
  %s191 = scalar_lea.vmem %s0, 271
  %v192 = vld [vmem:[%s191] sm:$0x1]
  %s193 = scalar_lea.vmem %s0, 302
  %v194 = vld [vmem:[%s193] sm:$0x2]
  %vm195 = vcmask 1041409
  %v196 = vsel %vm195, %v194, %v192
  %s197 = scalar_lea.vmem %s0, 333
  %v198 = vld [vmem:[%s197] sm:$0x4]
  %vm199 = vcmask 1042434
  %v200 = vsel %vm199, %v198, %v196
  %s201 = scalar_lea.vmem %s0, 364
  %v202 = vld [vmem:[%s201] sm:$0x8]
  %vm203 = vcmask 1043459
  %v204 = vsel %vm203, %v202, %v200
  %s205 = scalar_lea.vmem %s0, 395
  %v206 = vld [vmem:[%s205] sm:$0x10]
  %vm207 = vcmask 1044484
  %v208 = vsel %vm207, %v206, %v204
  %s209 = scalar_lea.vmem %s0, 426
  %v210 = vld [vmem:[%s209] sm:$0x20]
  %vm211 = vcmask 1045509
  %v212 = vsel %vm211, %v210, %v208
  %s213 = scalar_lea.vmem %s0, 457
  %v214 = vld [vmem:[%s213] sm:$0x40]
  %vm215 = vcmask 1046534
  %v216 = vsel %vm215, %v214, %v212
  %s217 = scalar_lea.vmem %s0, 488
  %v218 = vld [vmem:[%s217] sm:$0x80]
  %vm219 = vcmask 1047559
  %v220 = vsel %vm219, %v218, %v216
  %221 = vrot.lane.b32.xlu0 %v220, 112
  %v222 = vpop.permute.xlu0 %221
  %vm223 = vcmask 1048448
  %s224 = scalar_lea.vmem %s1, 40
  %225 = vst.msk [vmem:[%s224] sm:$0xff] %vm223, %v222
  %s226 = scalar_lea.vmem %s0, 23
  %v227 = vld [vmem:[%s226] sm:$0x1]
  %s228 = scalar_lea.vmem %s0, 54
  %v229 = vld [vmem:[%s228] sm:$0x2]
  %vm230 = vcmask 1041409
  %v231 = vsel %vm230, %v229, %v227
  %s232 = scalar_lea.vmem %s0, 85
  %v233 = vld [vmem:[%s232] sm:$0x4]
  %vm234 = vcmask 1042434
  %v235 = vsel %vm234, %v233, %v231
  %s236 = scalar_lea.vmem %s0, 116
  %v237 = vld [vmem:[%s236] sm:$0x8]
  %vm238 = vcmask 1043459
  %v239 = vsel %vm238, %v237, %v235
  %s240 = scalar_lea.vmem %s0, 147
  %v241 = vld [vmem:[%s240] sm:$0x10]
  %vm242 = vcmask 1044484
  %v243 = vsel %vm242, %v241, %v239
  %s244 = scalar_lea.vmem %s0, 178
  %v245 = vld [vmem:[%s244] sm:$0x20]
  %vm246 = vcmask 1045509
  %v247 = vsel %vm246, %v245, %v243
  %s248 = scalar_lea.vmem %s0, 209
  %v249 = vld [vmem:[%s248] sm:$0x40]
  %vm250 = vcmask 1046534
  %v251 = vsel %vm250, %v249, %v247
  %s252 = scalar_lea.vmem %s0, 240
  %v253 = vld [vmem:[%s252] sm:$0x80]
  %vm254 = vcmask 1047559
  %v255 = vsel %vm254, %v253, %v251
  %256 = vrot.lane.b32.xlu0 %v255, 112
  %v257 = vpop.permute.xlu0 %256
  %vm258 = vcmask 1048448
  %s259 = scalar_lea.vmem %s1, 16
  %260 = vst.msk [vmem:[%s259] sm:$0xff] %vm258, %v257
  %s261 = scalar_lea.vmem %s0, 279
  %v262 = vld [vmem:[%s261] sm:$0x1]
  %s263 = scalar_lea.vmem %s0, 310
  %v264 = vld [vmem:[%s263] sm:$0x2]
  %vm265 = vcmask 1041409
  %v266 = vsel %vm265, %v264, %v262
  %s267 = scalar_lea.vmem %s0, 341
  %v268 = vld [vmem:[%s267] sm:$0x4]
  %vm269 = vcmask 1042434
  %v270 = vsel %vm269, %v268, %v266
  %s271 = scalar_lea.vmem %s0, 372
  %v272 = vld [vmem:[%s271] sm:$0x8]
  %vm273 = vcmask 1043459
  %v274 = vsel %vm273, %v272, %v270
  %s275 = scalar_lea.vmem %s0, 403
  %v276 = vld [vmem:[%s275] sm:$0x10]
  %vm277 = vcmask 1044484
  %v278 = vsel %vm277, %v276, %v274
  %s279 = scalar_lea.vmem %s0, 434
  %v280 = vld [vmem:[%s279] sm:$0x20]
  %vm281 = vcmask 1045509
  %v282 = vsel %vm281, %v280, %v278
  %s283 = scalar_lea.vmem %s0, 465
  %v284 = vld [vmem:[%s283] sm:$0x40]
  %vm285 = vcmask 1046534
  %v286 = vsel %vm285, %v284, %v282
  %s287 = scalar_lea.vmem %s0, 496
  %v288 = vld [vmem:[%s287] sm:$0x80]
  %vm289 = vcmask 1047559
  %v290 = vsel %vm289, %v288, %v286
  %291 = vrot.lane.b32.xlu0 %v290, 112
  %v292 = vpop.permute.xlu0 %291
  %vm293 = vcmask 1048448
  %s294 = scalar_lea.vmem %s1, 48
  %295 = vst.msk [vmem:[%s294] sm:$0xff] %vm293, %v292
  %s296 = scalar_lea.vmem %s0, 31
  %v297 = vld [vmem:[%s296] sm:$0x1]
  %s298 = scalar_lea.vmem %s0, 62
  %v299 = vld [vmem:[%s298] sm:$0x2]
  %vm300 = vcmask 1041409
  %v301 = vsel %vm300, %v299, %v297
  %s302 = scalar_lea.vmem %s0, 93
  %v303 = vld [vmem:[%s302] sm:$0x4]
  %vm304 = vcmask 1042434
  %v305 = vsel %vm304, %v303, %v301
  %s306 = scalar_lea.vmem %s0, 124
  %v307 = vld [vmem:[%s306] sm:$0x8]
  %vm308 = vcmask 1043459
  %v309 = vsel %vm308, %v307, %v305
  %s310 = scalar_lea.vmem %s0, 155
  %v311 = vld [vmem:[%s310] sm:$0x10]
  %vm312 = vcmask 1044484
  %v313 = vsel %vm312, %v311, %v309
  %s314 = scalar_lea.vmem %s0, 186
  %v315 = vld [vmem:[%s314] sm:$0x20]
  %vm316 = vcmask 1045509
  %v317 = vsel %vm316, %v315, %v313
  %s318 = scalar_lea.vmem %s0, 217
  %v319 = vld [vmem:[%s318] sm:$0x40]
  %vm320 = vcmask 1046534
  %v321 = vsel %vm320, %v319, %v317
  %s322 = scalar_lea.vmem %s0, 248
  %v323 = vld [vmem:[%s322] sm:$0x80]
  %vm324 = vcmask 1047559
  %v325 = vsel %vm324, %v323, %v321
  %326 = vrot.lane.b32.xlu0 %v325, 112
  %v327 = vpop.permute.xlu0 %326
  %vm328 = vcmask 1048448
  %s329 = scalar_lea.vmem %s1, 24
  %330 = vst.msk [vmem:[%s329] sm:$0xff] %vm328, %v327
  %s331 = scalar_lea.vmem %s0, 287
  %v332 = vld [vmem:[%s331] sm:$0x1]
  %s333 = scalar_lea.vmem %s0, 318
  %v334 = vld [vmem:[%s333] sm:$0x2]
  %vm335 = vcmask 1041409
  %v336 = vsel %vm335, %v334, %v332
  %s337 = scalar_lea.vmem %s0, 349
  %v338 = vld [vmem:[%s337] sm:$0x4]
  %vm339 = vcmask 1042434
  %v340 = vsel %vm339, %v338, %v336
  %s341 = scalar_lea.vmem %s0, 380
  %v342 = vld [vmem:[%s341] sm:$0x8]
  %vm343 = vcmask 1043459
  %v344 = vsel %vm343, %v342, %v340
  %s345 = scalar_lea.vmem %s0, 411
  %v346 = vld [vmem:[%s345] sm:$0x10]
  %vm347 = vcmask 1044484
  %v348 = vsel %vm347, %v346, %v344
  %s349 = scalar_lea.vmem %s0, 442
  %v350 = vld [vmem:[%s349] sm:$0x20]
  %vm351 = vcmask 1045509
  %v352 = vsel %vm351, %v350, %v348
  %s353 = scalar_lea.vmem %s0, 473
  %v354 = vld [vmem:[%s353] sm:$0x40]
  %vm355 = vcmask 1046534
  %v356 = vsel %vm355, %v354, %v352
  %s357 = scalar_lea.vmem %s0, 504
  %v358 = vld [vmem:[%s357] sm:$0x80]
  %vm359 = vcmask 1047559
  %v360 = vsel %vm359, %v358, %v356
  %361 = vrot.lane.b32.xlu0 %v360, 112
  %v362 = vpop.permute.xlu0 %361
  %vm363 = vcmask 1048448
  %s364 = scalar_lea.vmem %s1, 56
  %365 = vst.msk [vmem:[%s364] sm:$0xff] %vm363, %v362
  %s366 = scalar_lea.vmem %s0, 6
  %v367 = vld [vmem:[%s366] sm:$0x1]
  %s368 = scalar_lea.vmem %s0, 37
  %v369 = vld [vmem:[%s368] sm:$0x2]
  %vm370 = vcmask 1041409
  %v371 = vsel %vm370, %v369, %v367
  %s372 = scalar_lea.vmem %s0, 68
  %v373 = vld [vmem:[%s372] sm:$0x4]
  %vm374 = vcmask 1042434
  %v375 = vsel %vm374, %v373, %v371
  %s376 = scalar_lea.vmem %s0, 99
  %v377 = vld [vmem:[%s376] sm:$0x8]
  %vm378 = vcmask 1043459
  %v379 = vsel %vm378, %v377, %v375
  %s380 = scalar_lea.vmem %s0, 130
  %v381 = vld [vmem:[%s380] sm:$0x10]
  %vm382 = vcmask 1044484
  %v383 = vsel %vm382, %v381, %v379
  %s384 = scalar_lea.vmem %s0, 161
  %v385 = vld [vmem:[%s384] sm:$0x20]
  %vm386 = vcmask 1045509
  %v387 = vsel %vm386, %v385, %v383
  %s388 = scalar_lea.vmem %s0, 192
  %v389 = vld [vmem:[%s388] sm:$0x40]
  %vm390 = vcmask 1046534
  %v391 = vsel %vm390, %v389, %v387
  %s392 = scalar_lea.vmem %s0, 223
  %v393 = vld [vmem:[%s392] sm:$0x80]
  %vm394 = vcmask 1047559
  %v395 = vsel %vm394, %v393, %v391
  %396 = vrot.lane.b32.xlu0 %v395, 96
  %v397 = vpop.permute.xlu0 %396
  %vm398 = vcmask 917248
  %399 = vst.msk [vmem:[%s1] sm:$0xff] %vm398, %v397
  %s400 = scalar_lea.vmem %s0, 262
  %v401 = vld [vmem:[%s400] sm:$0x1]
  %s402 = scalar_lea.vmem %s0, 293
  %v403 = vld [vmem:[%s402] sm:$0x2]
  %vm404 = vcmask 1041409
  %v405 = vsel %vm404, %v403, %v401
  %s406 = scalar_lea.vmem %s0, 324
  %v407 = vld [vmem:[%s406] sm:$0x4]
  %vm408 = vcmask 1042434
  %v409 = vsel %vm408, %v407, %v405
  %s410 = scalar_lea.vmem %s0, 355
  %v411 = vld [vmem:[%s410] sm:$0x8]
  %vm412 = vcmask 1043459
  %v413 = vsel %vm412, %v411, %v409
  %s414 = scalar_lea.vmem %s0, 386
  %v415 = vld [vmem:[%s414] sm:$0x10]
  %vm416 = vcmask 1044484
  %v417 = vsel %vm416, %v415, %v413
  %s418 = scalar_lea.vmem %s0, 417
  %v419 = vld [vmem:[%s418] sm:$0x20]
  %vm420 = vcmask 1045509
  %v421 = vsel %vm420, %v419, %v417
  %s422 = scalar_lea.vmem %s0, 448
  %v423 = vld [vmem:[%s422] sm:$0x40]
  %vm424 = vcmask 1046534
  %v425 = vsel %vm424, %v423, %v421
  %s426 = scalar_lea.vmem %s0, 479
  %v427 = vld [vmem:[%s426] sm:$0x80]
  %vm428 = vcmask 1047559
  %v429 = vsel %vm428, %v427, %v425
  %430 = vrot.lane.b32.xlu0 %v429, 96
  %v431 = vpop.permute.xlu0 %430
  %vm432 = vcmask 917248
  %s433 = scalar_lea.vmem %s1, 32
  %434 = vst.msk [vmem:[%s433] sm:$0xff] %vm432, %v431
  %s435 = scalar_lea.vmem %s0, 14
  %v436 = vld [vmem:[%s435] sm:$0x1]
  %s437 = scalar_lea.vmem %s0, 45
  %v438 = vld [vmem:[%s437] sm:$0x2]
  %vm439 = vcmask 1041409
  %v440 = vsel %vm439, %v438, %v436
  %s441 = scalar_lea.vmem %s0, 76
  %v442 = vld [vmem:[%s441] sm:$0x4]
  %vm443 = vcmask 1042434
  %v444 = vsel %vm443, %v442, %v440
  %s445 = scalar_lea.vmem %s0, 107
  %v446 = vld [vmem:[%s445] sm:$0x8]
  %vm447 = vcmask 1043459
  %v448 = vsel %vm447, %v446, %v444
  %s449 = scalar_lea.vmem %s0, 138
  %v450 = vld [vmem:[%s449] sm:$0x10]
  %vm451 = vcmask 1044484
  %v452 = vsel %vm451, %v450, %v448
  %s453 = scalar_lea.vmem %s0, 169
  %v454 = vld [vmem:[%s453] sm:$0x20]
  %vm455 = vcmask 1045509
  %v456 = vsel %vm455, %v454, %v452
  %s457 = scalar_lea.vmem %s0, 200
  %v458 = vld [vmem:[%s457] sm:$0x40]
  %vm459 = vcmask 1046534
  %v460 = vsel %vm459, %v458, %v456
  %s461 = scalar_lea.vmem %s0, 231
  %v462 = vld [vmem:[%s461] sm:$0x80]
  %vm463 = vcmask 1047559
  %v464 = vsel %vm463, %v462, %v460
  %465 = vrot.lane.b32.xlu0 %v464, 96
  %v466 = vpop.permute.xlu0 %465
  %vm467 = vcmask 917248
  %s468 = scalar_lea.vmem %s1, 8
  %469 = vst.msk [vmem:[%s468] sm:$0xff] %vm467, %v466
  %s470 = scalar_lea.vmem %s0, 270
  %v471 = vld [vmem:[%s470] sm:$0x1]
  %s472 = scalar_lea.vmem %s0, 301
  %v473 = vld [vmem:[%s472] sm:$0x2]
  %vm474 = vcmask 1041409
  %v475 = vsel %vm474, %v473, %v471
  %s476 = scalar_lea.vmem %s0, 332
  %v477 = vld [vmem:[%s476] sm:$0x4]
  %vm478 = vcmask 1042434
  %v479 = vsel %vm478, %v477, %v475
  %s480 = scalar_lea.vmem %s0, 363
  %v481 = vld [vmem:[%s480] sm:$0x8]
  %vm482 = vcmask 1043459
  %v483 = vsel %vm482, %v481, %v479
  %s484 = scalar_lea.vmem %s0, 394
  %v485 = vld [vmem:[%s484] sm:$0x10]
  %vm486 = vcmask 1044484
  %v487 = vsel %vm486, %v485, %v483
  %s488 = scalar_lea.vmem %s0, 425
  %v489 = vld [vmem:[%s488] sm:$0x20]
  %vm490 = vcmask 1045509
  %v491 = vsel %vm490, %v489, %v487
  %s492 = scalar_lea.vmem %s0, 456
  %v493 = vld [vmem:[%s492] sm:$0x40]
  %vm494 = vcmask 1046534
  %v495 = vsel %vm494, %v493, %v491
  %s496 = scalar_lea.vmem %s0, 487
  %v497 = vld [vmem:[%s496] sm:$0x80]
  %vm498 = vcmask 1047559
  %v499 = vsel %vm498, %v497, %v495
  %500 = vrot.lane.b32.xlu0 %v499, 96
  %v501 = vpop.permute.xlu0 %500
  %vm502 = vcmask 917248
  %s503 = scalar_lea.vmem %s1, 40
  %504 = vst.msk [vmem:[%s503] sm:$0xff] %vm502, %v501
  %s505 = scalar_lea.vmem %s0, 22
  %v506 = vld [vmem:[%s505] sm:$0x1]
  %s507 = scalar_lea.vmem %s0, 53
  %v508 = vld [vmem:[%s507] sm:$0x2]
  %vm509 = vcmask 1041409
  %v510 = vsel %vm509, %v508, %v506
  %s511 = scalar_lea.vmem %s0, 84
  %v512 = vld [vmem:[%s511] sm:$0x4]
  %vm513 = vcmask 1042434
  %v514 = vsel %vm513, %v512, %v510
  %s515 = scalar_lea.vmem %s0, 115
  %v516 = vld [vmem:[%s515] sm:$0x8]
  %vm517 = vcmask 1043459
  %v518 = vsel %vm517, %v516, %v514
  %s519 = scalar_lea.vmem %s0, 146
  %v520 = vld [vmem:[%s519] sm:$0x10]
  %vm521 = vcmask 1044484
  %v522 = vsel %vm521, %v520, %v518
  %s523 = scalar_lea.vmem %s0, 177
  %v524 = vld [vmem:[%s523] sm:$0x20]
  %vm525 = vcmask 1045509
  %v526 = vsel %vm525, %v524, %v522
  %s527 = scalar_lea.vmem %s0, 208
  %v528 = vld [vmem:[%s527] sm:$0x40]
  %vm529 = vcmask 1046534
  %v530 = vsel %vm529, %v528, %v526
  %s531 = scalar_lea.vmem %s0, 239
  %v532 = vld [vmem:[%s531] sm:$0x80]
  %vm533 = vcmask 1047559
  %v534 = vsel %vm533, %v532, %v530
  %535 = vrot.lane.b32.xlu0 %v534, 96
  %v536 = vpop.permute.xlu0 %535
  %vm537 = vcmask 917248
  %s538 = scalar_lea.vmem %s1, 16
  %539 = vst.msk [vmem:[%s538] sm:$0xff] %vm537, %v536
  %s540 = scalar_lea.vmem %s0, 278
  %v541 = vld [vmem:[%s540] sm:$0x1]
  %s542 = scalar_lea.vmem %s0, 309
  %v543 = vld [vmem:[%s542] sm:$0x2]
  %vm544 = vcmask 1041409
  %v545 = vsel %vm544, %v543, %v541
  %s546 = scalar_lea.vmem %s0, 340
  %v547 = vld [vmem:[%s546] sm:$0x4]
  %vm548 = vcmask 1042434
  %v549 = vsel %vm548, %v547, %v545
  %s550 = scalar_lea.vmem %s0, 371
  %v551 = vld [vmem:[%s550] sm:$0x8]
  %vm552 = vcmask 1043459
  %v553 = vsel %vm552, %v551, %v549
  %s554 = scalar_lea.vmem %s0, 402
  %v555 = vld [vmem:[%s554] sm:$0x10]
  %vm556 = vcmask 1044484
  %v557 = vsel %vm556, %v555, %v553
  %s558 = scalar_lea.vmem %s0, 433
  %v559 = vld [vmem:[%s558] sm:$0x20]
  %vm560 = vcmask 1045509
  %v561 = vsel %vm560, %v559, %v557
  %s562 = scalar_lea.vmem %s0, 464
  %v563 = vld [vmem:[%s562] sm:$0x40]
  %vm564 = vcmask 1046534
  %v565 = vsel %vm564, %v563, %v561
  %s566 = scalar_lea.vmem %s0, 495
  %v567 = vld [vmem:[%s566] sm:$0x80]
  %vm568 = vcmask 1047559
  %v569 = vsel %vm568, %v567, %v565
  %570 = vrot.lane.b32.xlu0 %v569, 96
  %v571 = vpop.permute.xlu0 %570
  %vm572 = vcmask 917248
  %s573 = scalar_lea.vmem %s1, 48
  %574 = vst.msk [vmem:[%s573] sm:$0xff] %vm572, %v571
  %s575 = scalar_lea.vmem %s0, 30
  %v576 = vld [vmem:[%s575] sm:$0x1]
  %s577 = scalar_lea.vmem %s0, 61
  %v578 = vld [vmem:[%s577] sm:$0x2]
  %vm579 = vcmask 1041409
  %v580 = vsel %vm579, %v578, %v576
  %s581 = scalar_lea.vmem %s0, 92
  %v582 = vld [vmem:[%s581] sm:$0x4]
  %vm583 = vcmask 1042434
  %v584 = vsel %vm583, %v582, %v580
  %s585 = scalar_lea.vmem %s0, 123
  %v586 = vld [vmem:[%s585] sm:$0x8]
  %vm587 = vcmask 1043459
  %v588 = vsel %vm587, %v586, %v584
  %s589 = scalar_lea.vmem %s0, 154
  %v590 = vld [vmem:[%s589] sm:$0x10]
  %vm591 = vcmask 1044484
  %v592 = vsel %vm591, %v590, %v588
  %s593 = scalar_lea.vmem %s0, 185
  %v594 = vld [vmem:[%s593] sm:$0x20]
  %vm595 = vcmask 1045509
  %v596 = vsel %vm595, %v594, %v592
  %s597 = scalar_lea.vmem %s0, 216
  %v598 = vld [vmem:[%s597] sm:$0x40]
  %vm599 = vcmask 1046534
  %v600 = vsel %vm599, %v598, %v596
  %s601 = scalar_lea.vmem %s0, 247
  %v602 = vld [vmem:[%s601] sm:$0x80]
  %vm603 = vcmask 1047559
  %v604 = vsel %vm603, %v602, %v600
  %605 = vrot.lane.b32.xlu0 %v604, 96
  %v606 = vpop.permute.xlu0 %605
  %vm607 = vcmask 917248
  %s608 = scalar_lea.vmem %s1, 24
  %609 = vst.msk [vmem:[%s608] sm:$0xff] %vm607, %v606
  %s610 = scalar_lea.vmem %s0, 286
  %v611 = vld [vmem:[%s610] sm:$0x1]
  %s612 = scalar_lea.vmem %s0, 317
  %v613 = vld [vmem:[%s612] sm:$0x2]
  %vm614 = vcmask 1041409
  %v615 = vsel %vm614, %v613, %v611
  %s616 = scalar_lea.vmem %s0, 348
  %v617 = vld [vmem:[%s616] sm:$0x4]
  %vm618 = vcmask 1042434
  %v619 = vsel %vm618, %v617, %v615
  %s620 = scalar_lea.vmem %s0, 379
  %v621 = vld [vmem:[%s620] sm:$0x8]
  %vm622 = vcmask 1043459
  %v623 = vsel %vm622, %v621, %v619
  %s624 = scalar_lea.vmem %s0, 410
  %v625 = vld [vmem:[%s624] sm:$0x10]
  %vm626 = vcmask 1044484
  %v627 = vsel %vm626, %v625, %v623
  %s628 = scalar_lea.vmem %s0, 441
  %v629 = vld [vmem:[%s628] sm:$0x20]
  %vm630 = vcmask 1045509
  %v631 = vsel %vm630, %v629, %v627
  %s632 = scalar_lea.vmem %s0, 472
  %v633 = vld [vmem:[%s632] sm:$0x40]
  %vm634 = vcmask 1046534
  %v635 = vsel %vm634, %v633, %v631
  %s636 = scalar_lea.vmem %s0, 503
  %v637 = vld [vmem:[%s636] sm:$0x80]
  %vm638 = vcmask 1047559
  %v639 = vsel %vm638, %v637, %v635
  %640 = vrot.lane.b32.xlu0 %v639, 96
  %v641 = vpop.permute.xlu0 %640
  %vm642 = vcmask 917248
  %s643 = scalar_lea.vmem %s1, 56
  %644 = vst.msk [vmem:[%s643] sm:$0xff] %vm642, %v641
  %s645 = scalar_lea.vmem %s0, 5
  %v646 = vld [vmem:[%s645] sm:$0x1]
  %s647 = scalar_lea.vmem %s0, 36
  %v648 = vld [vmem:[%s647] sm:$0x2]
  %vm649 = vcmask 1041409
  %v650 = vsel %vm649, %v648, %v646
  %s651 = scalar_lea.vmem %s0, 67
  %v652 = vld [vmem:[%s651] sm:$0x4]
  %vm653 = vcmask 1042434
  %v654 = vsel %vm653, %v652, %v650
  %s655 = scalar_lea.vmem %s0, 98
  %v656 = vld [vmem:[%s655] sm:$0x8]
  %vm657 = vcmask 1043459
  %v658 = vsel %vm657, %v656, %v654
  %s659 = scalar_lea.vmem %s0, 129
  %v660 = vld [vmem:[%s659] sm:$0x10]
  %vm661 = vcmask 1044484
  %v662 = vsel %vm661, %v660, %v658
  %s663 = scalar_lea.vmem %s0, 160
  %v664 = vld [vmem:[%s663] sm:$0x20]
  %vm665 = vcmask 1045509
  %v666 = vsel %vm665, %v664, %v662
  %s667 = scalar_lea.vmem %s0, 191
  %v668 = vld [vmem:[%s667] sm:$0x40]
  %vm669 = vcmask 1046534
  %v670 = vsel %vm669, %v668, %v666
  %s671 = scalar_lea.vmem %s0, 222
  %v672 = vld [vmem:[%s671] sm:$0x80]
  %vm673 = vcmask 1047559
  %v674 = vsel %vm673, %v672, %v670
  %675 = vrot.lane.b32.xlu0 %v674, 80
  %v676 = vpop.permute.xlu0 %675
  %vm677 = vcmask 786048
  %678 = vst.msk [vmem:[%s1] sm:$0xff] %vm677, %v676
  %s679 = scalar_lea.vmem %s0, 261
  %v680 = vld [vmem:[%s679] sm:$0x1]
  %s681 = scalar_lea.vmem %s0, 292
  %v682 = vld [vmem:[%s681] sm:$0x2]
  %vm683 = vcmask 1041409
  %v684 = vsel %vm683, %v682, %v680
  %s685 = scalar_lea.vmem %s0, 323
  %v686 = vld [vmem:[%s685] sm:$0x4]
  %vm687 = vcmask 1042434
  %v688 = vsel %vm687, %v686, %v684
  %s689 = scalar_lea.vmem %s0, 354
  %v690 = vld [vmem:[%s689] sm:$0x8]
  %vm691 = vcmask 1043459
  %v692 = vsel %vm691, %v690, %v688
  %s693 = scalar_lea.vmem %s0, 385
  %v694 = vld [vmem:[%s693] sm:$0x10]
  %vm695 = vcmask 1044484
  %v696 = vsel %vm695, %v694, %v692
  %s697 = scalar_lea.vmem %s0, 416
  %v698 = vld [vmem:[%s697] sm:$0x20]
  %vm699 = vcmask 1045509
  %v700 = vsel %vm699, %v698, %v696
  %s701 = scalar_lea.vmem %s0, 447
  %v702 = vld [vmem:[%s701] sm:$0x40]
  %vm703 = vcmask 1046534
  %v704 = vsel %vm703, %v702, %v700
  %s705 = scalar_lea.vmem %s0, 478
  %v706 = vld [vmem:[%s705] sm:$0x80]
  %vm707 = vcmask 1047559
  %v708 = vsel %vm707, %v706, %v704
  %709 = vrot.lane.b32.xlu0 %v708, 80
  %v710 = vpop.permute.xlu0 %709
  %vm711 = vcmask 786048
  %s712 = scalar_lea.vmem %s1, 32
  %713 = vst.msk [vmem:[%s712] sm:$0xff] %vm711, %v710
  %s714 = scalar_lea.vmem %s0, 13
  %v715 = vld [vmem:[%s714] sm:$0x1]
  %s716 = scalar_lea.vmem %s0, 44
  %v717 = vld [vmem:[%s716] sm:$0x2]
  %vm718 = vcmask 1041409
  %v719 = vsel %vm718, %v717, %v715
  %s720 = scalar_lea.vmem %s0, 75
  %v721 = vld [vmem:[%s720] sm:$0x4]
  %vm722 = vcmask 1042434
  %v723 = vsel %vm722, %v721, %v719
  %s724 = scalar_lea.vmem %s0, 106
  %v725 = vld [vmem:[%s724] sm:$0x8]
  %vm726 = vcmask 1043459
  %v727 = vsel %vm726, %v725, %v723
  %s728 = scalar_lea.vmem %s0, 137
  %v729 = vld [vmem:[%s728] sm:$0x10]
  %vm730 = vcmask 1044484
  %v731 = vsel %vm730, %v729, %v727
  %s732 = scalar_lea.vmem %s0, 168
  %v733 = vld [vmem:[%s732] sm:$0x20]
  %vm734 = vcmask 1045509
  %v735 = vsel %vm734, %v733, %v731
  %s736 = scalar_lea.vmem %s0, 199
  %v737 = vld [vmem:[%s736] sm:$0x40]
  %vm738 = vcmask 1046534
  %v739 = vsel %vm738, %v737, %v735
  %s740 = scalar_lea.vmem %s0, 230
  %v741 = vld [vmem:[%s740] sm:$0x80]
  %vm742 = vcmask 1047559
  %v743 = vsel %vm742, %v741, %v739
  %744 = vrot.lane.b32.xlu0 %v743, 80
  %v745 = vpop.permute.xlu0 %744
  %vm746 = vcmask 786048
  %s747 = scalar_lea.vmem %s1, 8
  %748 = vst.msk [vmem:[%s747] sm:$0xff] %vm746, %v745
  %s749 = scalar_lea.vmem %s0, 269
  %v750 = vld [vmem:[%s749] sm:$0x1]
  %s751 = scalar_lea.vmem %s0, 300
  %v752 = vld [vmem:[%s751] sm:$0x2]
  %vm753 = vcmask 1041409
  %v754 = vsel %vm753, %v752, %v750
  %s755 = scalar_lea.vmem %s0, 331
  %v756 = vld [vmem:[%s755] sm:$0x4]
  %vm757 = vcmask 1042434
  %v758 = vsel %vm757, %v756, %v754
  %s759 = scalar_lea.vmem %s0, 362
  %v760 = vld [vmem:[%s759] sm:$0x8]
  %vm761 = vcmask 1043459
  %v762 = vsel %vm761, %v760, %v758
  %s763 = scalar_lea.vmem %s0, 393
  %v764 = vld [vmem:[%s763] sm:$0x10]
  %vm765 = vcmask 1044484
  %v766 = vsel %vm765, %v764, %v762
  %s767 = scalar_lea.vmem %s0, 424
  %v768 = vld [vmem:[%s767] sm:$0x20]
  %vm769 = vcmask 1045509
  %v770 = vsel %vm769, %v768, %v766
  %s771 = scalar_lea.vmem %s0, 455
  %v772 = vld [vmem:[%s771] sm:$0x40]
  %vm773 = vcmask 1046534
  %v774 = vsel %vm773, %v772, %v770
  %s775 = scalar_lea.vmem %s0, 486
  %v776 = vld [vmem:[%s775] sm:$0x80]
  %vm777 = vcmask 1047559
  %v778 = vsel %vm777, %v776, %v774
  %779 = vrot.lane.b32.xlu0 %v778, 80
  %v780 = vpop.permute.xlu0 %779
  %vm781 = vcmask 786048
  %s782 = scalar_lea.vmem %s1, 40
  %783 = vst.msk [vmem:[%s782] sm:$0xff] %vm781, %v780
  %s784 = scalar_lea.vmem %s0, 21
  %v785 = vld [vmem:[%s784] sm:$0x1]
  %s786 = scalar_lea.vmem %s0, 52
  %v787 = vld [vmem:[%s786] sm:$0x2]
  %vm788 = vcmask 1041409
  %v789 = vsel %vm788, %v787, %v785
  %s790 = scalar_lea.vmem %s0, 83
  %v791 = vld [vmem:[%s790] sm:$0x4]
  %vm792 = vcmask 1042434
  %v793 = vsel %vm792, %v791, %v789
  %s794 = scalar_lea.vmem %s0, 114
  %v795 = vld [vmem:[%s794] sm:$0x8]
  %vm796 = vcmask 1043459
  %v797 = vsel %vm796, %v795, %v793
  %s798 = scalar_lea.vmem %s0, 145
  %v799 = vld [vmem:[%s798] sm:$0x10]
  %vm800 = vcmask 1044484
  %v801 = vsel %vm800, %v799, %v797
  %s802 = scalar_lea.vmem %s0, 176
  %v803 = vld [vmem:[%s802] sm:$0x20]
  %vm804 = vcmask 1045509
  %v805 = vsel %vm804, %v803, %v801
  %s806 = scalar_lea.vmem %s0, 207
  %v807 = vld [vmem:[%s806] sm:$0x40]
  %vm808 = vcmask 1046534
  %v809 = vsel %vm808, %v807, %v805
  %s810 = scalar_lea.vmem %s0, 238
  %v811 = vld [vmem:[%s810] sm:$0x80]
  %vm812 = vcmask 1047559
  %v813 = vsel %vm812, %v811, %v809
  %814 = vrot.lane.b32.xlu0 %v813, 80
  %v815 = vpop.permute.xlu0 %814
  %vm816 = vcmask 786048
  %s817 = scalar_lea.vmem %s1, 16
  %818 = vst.msk [vmem:[%s817] sm:$0xff] %vm816, %v815
  %s819 = scalar_lea.vmem %s0, 277
  %v820 = vld [vmem:[%s819] sm:$0x1]
  %s821 = scalar_lea.vmem %s0, 308
  %v822 = vld [vmem:[%s821] sm:$0x2]
  %vm823 = vcmask 1041409
  %v824 = vsel %vm823, %v822, %v820
  %s825 = scalar_lea.vmem %s0, 339
  %v826 = vld [vmem:[%s825] sm:$0x4]
  %vm827 = vcmask 1042434
  %v828 = vsel %vm827, %v826, %v824
  %s829 = scalar_lea.vmem %s0, 370
  %v830 = vld [vmem:[%s829] sm:$0x8]
  %vm831 = vcmask 1043459
  %v832 = vsel %vm831, %v830, %v828
  %s833 = scalar_lea.vmem %s0, 401
  %v834 = vld [vmem:[%s833] sm:$0x10]
  %vm835 = vcmask 1044484
  %v836 = vsel %vm835, %v834, %v832
  %s837 = scalar_lea.vmem %s0, 432
  %v838 = vld [vmem:[%s837] sm:$0x20]
  %vm839 = vcmask 1045509
  %v840 = vsel %vm839, %v838, %v836
  %s841 = scalar_lea.vmem %s0, 463
  %v842 = vld [vmem:[%s841] sm:$0x40]
  %vm843 = vcmask 1046534
  %v844 = vsel %vm843, %v842, %v840
  %s845 = scalar_lea.vmem %s0, 494
  %v846 = vld [vmem:[%s845] sm:$0x80]
  %vm847 = vcmask 1047559
  %v848 = vsel %vm847, %v846, %v844
  %849 = vrot.lane.b32.xlu0 %v848, 80
  %v850 = vpop.permute.xlu0 %849
  %vm851 = vcmask 786048
  %s852 = scalar_lea.vmem %s1, 48
  %853 = vst.msk [vmem:[%s852] sm:$0xff] %vm851, %v850
  %s854 = scalar_lea.vmem %s0, 29
  %v855 = vld [vmem:[%s854] sm:$0x1]
  %s856 = scalar_lea.vmem %s0, 60
  %v857 = vld [vmem:[%s856] sm:$0x2]
  %vm858 = vcmask 1041409
  %v859 = vsel %vm858, %v857, %v855
  %s860 = scalar_lea.vmem %s0, 91
  %v861 = vld [vmem:[%s860] sm:$0x4]
  %vm862 = vcmask 1042434
  %v863 = vsel %vm862, %v861, %v859
  %s864 = scalar_lea.vmem %s0, 122
  %v865 = vld [vmem:[%s864] sm:$0x8]
  %vm866 = vcmask 1043459
  %v867 = vsel %vm866, %v865, %v863
  %s868 = scalar_lea.vmem %s0, 153
  %v869 = vld [vmem:[%s868] sm:$0x10]
  %vm870 = vcmask 1044484
  %v871 = vsel %vm870, %v869, %v867
  %s872 = scalar_lea.vmem %s0, 184
  %v873 = vld [vmem:[%s872] sm:$0x20]
  %vm874 = vcmask 1045509
  %v875 = vsel %vm874, %v873, %v871
  %s876 = scalar_lea.vmem %s0, 215
  %v877 = vld [vmem:[%s876] sm:$0x40]
  %vm878 = vcmask 1046534
  %v879 = vsel %vm878, %v877, %v875
  %s880 = scalar_lea.vmem %s0, 246
  %v881 = vld [vmem:[%s880] sm:$0x80]
  %vm882 = vcmask 1047559
  %v883 = vsel %vm882, %v881, %v879
  %884 = vrot.lane.b32.xlu0 %v883, 80
  %v885 = vpop.permute.xlu0 %884
  %vm886 = vcmask 786048
  %s887 = scalar_lea.vmem %s1, 24
  %888 = vst.msk [vmem:[%s887] sm:$0xff] %vm886, %v885
  %s889 = scalar_lea.vmem %s0, 285
  %v890 = vld [vmem:[%s889] sm:$0x1]
  %s891 = scalar_lea.vmem %s0, 316
  %v892 = vld [vmem:[%s891] sm:$0x2]
  %vm893 = vcmask 1041409
  %v894 = vsel %vm893, %v892, %v890
  %s895 = scalar_lea.vmem %s0, 347
  %v896 = vld [vmem:[%s895] sm:$0x4]
  %vm897 = vcmask 1042434
  %v898 = vsel %vm897, %v896, %v894
  %s899 = scalar_lea.vmem %s0, 378
  %v900 = vld [vmem:[%s899] sm:$0x8]
  %vm901 = vcmask 1043459
  %v902 = vsel %vm901, %v900, %v898
  %s903 = scalar_lea.vmem %s0, 409
  %v904 = vld [vmem:[%s903] sm:$0x10]
  %vm905 = vcmask 1044484
  %v906 = vsel %vm905, %v904, %v902
  %s907 = scalar_lea.vmem %s0, 440
  %v908 = vld [vmem:[%s907] sm:$0x20]
  %vm909 = vcmask 1045509
  %v910 = vsel %vm909, %v908, %v906
  %s911 = scalar_lea.vmem %s0, 471
  %v912 = vld [vmem:[%s911] sm:$0x40]
  %vm913 = vcmask 1046534
  %v914 = vsel %vm913, %v912, %v910
  %s915 = scalar_lea.vmem %s0, 502
  %v916 = vld [vmem:[%s915] sm:$0x80]
  %vm917 = vcmask 1047559
  %v918 = vsel %vm917, %v916, %v914
  %919 = vrot.lane.b32.xlu0 %v918, 80
  %v920 = vpop.permute.xlu0 %919
  %vm921 = vcmask 786048
  %s922 = scalar_lea.vmem %s1, 56
  %923 = vst.msk [vmem:[%s922] sm:$0xff] %vm921, %v920
  %s924 = scalar_lea.vmem %s0, 4
  %v925 = vld [vmem:[%s924] sm:$0x1]
  %s926 = scalar_lea.vmem %s0, 35
  %v927 = vld [vmem:[%s926] sm:$0x2]
  %vm928 = vcmask 1041409
  %v929 = vsel %vm928, %v927, %v925
  %s930 = scalar_lea.vmem %s0, 66
  %v931 = vld [vmem:[%s930] sm:$0x4]
  %vm932 = vcmask 1042434
  %v933 = vsel %vm932, %v931, %v929
  %s934 = scalar_lea.vmem %s0, 97
  %v935 = vld [vmem:[%s934] sm:$0x8]
  %vm936 = vcmask 1043459
  %v937 = vsel %vm936, %v935, %v933
  %s938 = scalar_lea.vmem %s0, 128
  %v939 = vld [vmem:[%s938] sm:$0x10]
  %vm940 = vcmask 1044484
  %v941 = vsel %vm940, %v939, %v937
  %s942 = scalar_lea.vmem %s0, 159
  %v943 = vld [vmem:[%s942] sm:$0x20]
  %vm944 = vcmask 1045509
  %v945 = vsel %vm944, %v943, %v941
  %s946 = scalar_lea.vmem %s0, 190
  %v947 = vld [vmem:[%s946] sm:$0x40]
  %vm948 = vcmask 1046534
  %v949 = vsel %vm948, %v947, %v945
  %s950 = scalar_lea.vmem %s0, 221
  %v951 = vld [vmem:[%s950] sm:$0x80]
  %vm952 = vcmask 1047559
  %v953 = vsel %vm952, %v951, %v949
  %954 = vrot.lane.b32.xlu0 %v953, 64
  %v955 = vpop.permute.xlu0 %954
  %vm956 = vcmask 654848
  %957 = vst.msk [vmem:[%s1] sm:$0xff] %vm956, %v955
  %s958 = scalar_lea.vmem %s0, 260
  %v959 = vld [vmem:[%s958] sm:$0x1]
  %s960 = scalar_lea.vmem %s0, 291
  %v961 = vld [vmem:[%s960] sm:$0x2]
  %vm962 = vcmask 1041409
  %v963 = vsel %vm962, %v961, %v959
  %s964 = scalar_lea.vmem %s0, 322
  %v965 = vld [vmem:[%s964] sm:$0x4]
  %vm966 = vcmask 1042434
  %v967 = vsel %vm966, %v965, %v963
  %s968 = scalar_lea.vmem %s0, 353
  %v969 = vld [vmem:[%s968] sm:$0x8]
  %vm970 = vcmask 1043459
  %v971 = vsel %vm970, %v969, %v967
  %s972 = scalar_lea.vmem %s0, 384
  %v973 = vld [vmem:[%s972] sm:$0x10]
  %vm974 = vcmask 1044484
  %v975 = vsel %vm974, %v973, %v971
  %s976 = scalar_lea.vmem %s0, 415
  %v977 = vld [vmem:[%s976] sm:$0x20]
  %vm978 = vcmask 1045509
  %v979 = vsel %vm978, %v977, %v975
  %s980 = scalar_lea.vmem %s0, 446
  %v981 = vld [vmem:[%s980] sm:$0x40]
  %vm982 = vcmask 1046534
  %v983 = vsel %vm982, %v981, %v979
  %s984 = scalar_lea.vmem %s0, 477
  %v985 = vld [vmem:[%s984] sm:$0x80]
  %vm986 = vcmask 1047559
  %v987 = vsel %vm986, %v985, %v983
  %988 = vrot.lane.b32.xlu0 %v987, 64
  %v989 = vpop.permute.xlu0 %988
  %vm990 = vcmask 654848
  %s991 = scalar_lea.vmem %s1, 32
  %992 = vst.msk [vmem:[%s991] sm:$0xff] %vm990, %v989
  %s993 = scalar_lea.vmem %s0, 12
  %v994 = vld [vmem:[%s993] sm:$0x1]
  %s995 = scalar_lea.vmem %s0, 43
  %v996 = vld [vmem:[%s995] sm:$0x2]
  %vm997 = vcmask 1041409
  %v998 = vsel %vm997, %v996, %v994
  %s999 = scalar_lea.vmem %s0, 74
  %v1000 = vld [vmem:[%s999] sm:$0x4]
  %vm1001 = vcmask 1042434
  %v1002 = vsel %vm1001, %v1000, %v998
  %s1003 = scalar_lea.vmem %s0, 105
  %v1004 = vld [vmem:[%s1003] sm:$0x8]
  %vm1005 = vcmask 1043459
  %v1006 = vsel %vm1005, %v1004, %v1002
  %s1007 = scalar_lea.vmem %s0, 136
  %v1008 = vld [vmem:[%s1007] sm:$0x10]
  %vm1009 = vcmask 1044484
  %v1010 = vsel %vm1009, %v1008, %v1006
  %s1011 = scalar_lea.vmem %s0, 167
  %v1012 = vld [vmem:[%s1011] sm:$0x20]
  %vm1013 = vcmask 1045509
  %v1014 = vsel %vm1013, %v1012, %v1010
  %s1015 = scalar_lea.vmem %s0, 198
  %v1016 = vld [vmem:[%s1015] sm:$0x40]
  %vm1017 = vcmask 1046534
  %v1018 = vsel %vm1017, %v1016, %v1014
  %s1019 = scalar_lea.vmem %s0, 229
  %v1020 = vld [vmem:[%s1019] sm:$0x80]
  %vm1021 = vcmask 1047559
  %v1022 = vsel %vm1021, %v1020, %v1018
  %1023 = vrot.lane.b32.xlu0 %v1022, 64
  %v1024 = vpop.permute.xlu0 %1023
  %vm1025 = vcmask 654848
  %s1026 = scalar_lea.vmem %s1, 8
  %1027 = vst.msk [vmem:[%s1026] sm:$0xff] %vm1025, %v1024
  %s1028 = scalar_lea.vmem %s0, 268
  %v1029 = vld [vmem:[%s1028] sm:$0x1]
  %s1030 = scalar_lea.vmem %s0, 299
  %v1031 = vld [vmem:[%s1030] sm:$0x2]
  %vm1032 = vcmask 1041409
  %v1033 = vsel %vm1032, %v1031, %v1029
  %s1034 = scalar_lea.vmem %s0, 330
  %v1035 = vld [vmem:[%s1034] sm:$0x4]
  %vm1036 = vcmask 1042434
  %v1037 = vsel %vm1036, %v1035, %v1033
  %s1038 = scalar_lea.vmem %s0, 361
  %v1039 = vld [vmem:[%s1038] sm:$0x8]
  %vm1040 = vcmask 1043459
  %v1041 = vsel %vm1040, %v1039, %v1037
  %s1042 = scalar_lea.vmem %s0, 392
  %v1043 = vld [vmem:[%s1042] sm:$0x10]
  %vm1044 = vcmask 1044484
  %v1045 = vsel %vm1044, %v1043, %v1041
  %s1046 = scalar_lea.vmem %s0, 423
  %v1047 = vld [vmem:[%s1046] sm:$0x20]
  %vm1048 = vcmask 1045509
  %v1049 = vsel %vm1048, %v1047, %v1045
  %s1050 = scalar_lea.vmem %s0, 454
  %v1051 = vld [vmem:[%s1050] sm:$0x40]
  %vm1052 = vcmask 1046534
  %v1053 = vsel %vm1052, %v1051, %v1049
  %s1054 = scalar_lea.vmem %s0, 485
  %v1055 = vld [vmem:[%s1054] sm:$0x80]
  %vm1056 = vcmask 1047559
  %v1057 = vsel %vm1056, %v1055, %v1053
  %1058 = vrot.lane.b32.xlu0 %v1057, 64
  %v1059 = vpop.permute.xlu0 %1058
  %vm1060 = vcmask 654848
  %s1061 = scalar_lea.vmem %s1, 40
  %1062 = vst.msk [vmem:[%s1061] sm:$0xff] %vm1060, %v1059
  %s1063 = scalar_lea.vmem %s0, 20
  %v1064 = vld [vmem:[%s1063] sm:$0x1]
  %s1065 = scalar_lea.vmem %s0, 51
  %v1066 = vld [vmem:[%s1065] sm:$0x2]
  %vm1067 = vcmask 1041409
  %v1068 = vsel %vm1067, %v1066, %v1064
  %s1069 = scalar_lea.vmem %s0, 82
  %v1070 = vld [vmem:[%s1069] sm:$0x4]
  %vm1071 = vcmask 1042434
  %v1072 = vsel %vm1071, %v1070, %v1068
  %s1073 = scalar_lea.vmem %s0, 113
  %v1074 = vld [vmem:[%s1073] sm:$0x8]
  %vm1075 = vcmask 1043459
  %v1076 = vsel %vm1075, %v1074, %v1072
  %s1077 = scalar_lea.vmem %s0, 144
  %v1078 = vld [vmem:[%s1077] sm:$0x10]
  %vm1079 = vcmask 1044484
  %v1080 = vsel %vm1079, %v1078, %v1076
  %s1081 = scalar_lea.vmem %s0, 175
  %v1082 = vld [vmem:[%s1081] sm:$0x20]
  %vm1083 = vcmask 1045509
  %v1084 = vsel %vm1083, %v1082, %v1080
  %s1085 = scalar_lea.vmem %s0, 206
  %v1086 = vld [vmem:[%s1085] sm:$0x40]
  %vm1087 = vcmask 1046534
  %v1088 = vsel %vm1087, %v1086, %v1084
  %s1089 = scalar_lea.vmem %s0, 237
  %v1090 = vld [vmem:[%s1089] sm:$0x80]
  %vm1091 = vcmask 1047559
  %v1092 = vsel %vm1091, %v1090, %v1088
  %1093 = vrot.lane.b32.xlu0 %v1092, 64
  %v1094 = vpop.permute.xlu0 %1093
  %vm1095 = vcmask 654848
  %s1096 = scalar_lea.vmem %s1, 16
  %1097 = vst.msk [vmem:[%s1096] sm:$0xff] %vm1095, %v1094
  %s1098 = scalar_lea.vmem %s0, 276
  %v1099 = vld [vmem:[%s1098] sm:$0x1]
  %s1100 = scalar_lea.vmem %s0, 307
  %v1101 = vld [vmem:[%s1100] sm:$0x2]
  %vm1102 = vcmask 1041409
  %v1103 = vsel %vm1102, %v1101, %v1099
  %s1104 = scalar_lea.vmem %s0, 338
  %v1105 = vld [vmem:[%s1104] sm:$0x4]
  %vm1106 = vcmask 1042434
  %v1107 = vsel %vm1106, %v1105, %v1103
  %s1108 = scalar_lea.vmem %s0, 369
  %v1109 = vld [vmem:[%s1108] sm:$0x8]
  %vm1110 = vcmask 1043459
  %v1111 = vsel %vm1110, %v1109, %v1107
  %s1112 = scalar_lea.vmem %s0, 400
  %v1113 = vld [vmem:[%s1112] sm:$0x10]
  %vm1114 = vcmask 1044484
  %v1115 = vsel %vm1114, %v1113, %v1111
  %s1116 = scalar_lea.vmem %s0, 431
  %v1117 = vld [vmem:[%s1116] sm:$0x20]
  %vm1118 = vcmask 1045509
  %v1119 = vsel %vm1118, %v1117, %v1115
  %s1120 = scalar_lea.vmem %s0, 462
  %v1121 = vld [vmem:[%s1120] sm:$0x40]
  %vm1122 = vcmask 1046534
  %v1123 = vsel %vm1122, %v1121, %v1119
  %s1124 = scalar_lea.vmem %s0, 493
  %v1125 = vld [vmem:[%s1124] sm:$0x80]
  %vm1126 = vcmask 1047559
  %v1127 = vsel %vm1126, %v1125, %v1123
  %1128 = vrot.lane.b32.xlu0 %v1127, 64
  %v1129 = vpop.permute.xlu0 %1128
  %vm1130 = vcmask 654848
  %s1131 = scalar_lea.vmem %s1, 48
  %1132 = vst.msk [vmem:[%s1131] sm:$0xff] %vm1130, %v1129
  %s1133 = scalar_lea.vmem %s0, 28
  %v1134 = vld [vmem:[%s1133] sm:$0x1]
  %s1135 = scalar_lea.vmem %s0, 59
  %v1136 = vld [vmem:[%s1135] sm:$0x2]
  %vm1137 = vcmask 1041409
  %v1138 = vsel %vm1137, %v1136, %v1134
  %s1139 = scalar_lea.vmem %s0, 90
  %v1140 = vld [vmem:[%s1139] sm:$0x4]
  %vm1141 = vcmask 1042434
  %v1142 = vsel %vm1141, %v1140, %v1138
  %s1143 = scalar_lea.vmem %s0, 121
  %v1144 = vld [vmem:[%s1143] sm:$0x8]
  %vm1145 = vcmask 1043459
  %v1146 = vsel %vm1145, %v1144, %v1142
  %s1147 = scalar_lea.vmem %s0, 152
  %v1148 = vld [vmem:[%s1147] sm:$0x10]
  %vm1149 = vcmask 1044484
  %v1150 = vsel %vm1149, %v1148, %v1146
  %s1151 = scalar_lea.vmem %s0, 183
  %v1152 = vld [vmem:[%s1151] sm:$0x20]
  %vm1153 = vcmask 1045509
  %v1154 = vsel %vm1153, %v1152, %v1150
  %s1155 = scalar_lea.vmem %s0, 214
  %v1156 = vld [vmem:[%s1155] sm:$0x40]
  %vm1157 = vcmask 1046534
  %v1158 = vsel %vm1157, %v1156, %v1154
  %s1159 = scalar_lea.vmem %s0, 245
  %v1160 = vld [vmem:[%s1159] sm:$0x80]
  %vm1161 = vcmask 1047559
  %v1162 = vsel %vm1161, %v1160, %v1158
  %1163 = vrot.lane.b32.xlu0 %v1162, 64
  %v1164 = vpop.permute.xlu0 %1163
  %vm1165 = vcmask 654848
  %s1166 = scalar_lea.vmem %s1, 24
  %1167 = vst.msk [vmem:[%s1166] sm:$0xff] %vm1165, %v1164
  %s1168 = scalar_lea.vmem %s0, 284
  %v1169 = vld [vmem:[%s1168] sm:$0x1]
  %s1170 = scalar_lea.vmem %s0, 315
  %v1171 = vld [vmem:[%s1170] sm:$0x2]
  %vm1172 = vcmask 1041409
  %v1173 = vsel %vm1172, %v1171, %v1169
  %s1174 = scalar_lea.vmem %s0, 346
  %v1175 = vld [vmem:[%s1174] sm:$0x4]
  %vm1176 = vcmask 1042434
  %v1177 = vsel %vm1176, %v1175, %v1173
  %s1178 = scalar_lea.vmem %s0, 377
  %v1179 = vld [vmem:[%s1178] sm:$0x8]
  %vm1180 = vcmask 1043459
  %v1181 = vsel %vm1180, %v1179, %v1177
  %s1182 = scalar_lea.vmem %s0, 408
  %v1183 = vld [vmem:[%s1182] sm:$0x10]
  %vm1184 = vcmask 1044484
  %v1185 = vsel %vm1184, %v1183, %v1181
  %s1186 = scalar_lea.vmem %s0, 439
  %v1187 = vld [vmem:[%s1186] sm:$0x20]
  %vm1188 = vcmask 1045509
  %v1189 = vsel %vm1188, %v1187, %v1185
  %s1190 = scalar_lea.vmem %s0, 470
  %v1191 = vld [vmem:[%s1190] sm:$0x40]
  %vm1192 = vcmask 1046534
  %v1193 = vsel %vm1192, %v1191, %v1189
  %s1194 = scalar_lea.vmem %s0, 501
  %v1195 = vld [vmem:[%s1194] sm:$0x80]
  %vm1196 = vcmask 1047559
  %v1197 = vsel %vm1196, %v1195, %v1193
  %1198 = vrot.lane.b32.xlu0 %v1197, 64
  %v1199 = vpop.permute.xlu0 %1198
  %vm1200 = vcmask 654848
  %s1201 = scalar_lea.vmem %s1, 56
  %1202 = vst.msk [vmem:[%s1201] sm:$0xff] %vm1200, %v1199
  %s1203 = scalar_lea.vmem %s0, 3
  %v1204 = vld [vmem:[%s1203] sm:$0x1]
  %s1205 = scalar_lea.vmem %s0, 34
  %v1206 = vld [vmem:[%s1205] sm:$0x2]
  %vm1207 = vcmask 1041409
  %v1208 = vsel %vm1207, %v1206, %v1204
  %s1209 = scalar_lea.vmem %s0, 65
  %v1210 = vld [vmem:[%s1209] sm:$0x4]
  %vm1211 = vcmask 1042434
  %v1212 = vsel %vm1211, %v1210, %v1208
  %s1213 = scalar_lea.vmem %s0, 96
  %v1214 = vld [vmem:[%s1213] sm:$0x8]
  %vm1215 = vcmask 1043459
  %v1216 = vsel %vm1215, %v1214, %v1212
  %s1217 = scalar_lea.vmem %s0, 127
  %v1218 = vld [vmem:[%s1217] sm:$0x10]
  %vm1219 = vcmask 1044484
  %v1220 = vsel %vm1219, %v1218, %v1216
  %s1221 = scalar_lea.vmem %s0, 158
  %v1222 = vld [vmem:[%s1221] sm:$0x20]
  %vm1223 = vcmask 1045509
  %v1224 = vsel %vm1223, %v1222, %v1220
  %s1225 = scalar_lea.vmem %s0, 189
  %v1226 = vld [vmem:[%s1225] sm:$0x40]
  %vm1227 = vcmask 1046534
  %v1228 = vsel %vm1227, %v1226, %v1224
  %s1229 = scalar_lea.vmem %s0, 220
  %v1230 = vld [vmem:[%s1229] sm:$0x80]
  %vm1231 = vcmask 1047559
  %v1232 = vsel %vm1231, %v1230, %v1228
  %1233 = vrot.lane.b32.xlu0 %v1232, 48
  %v1234 = vpop.permute.xlu0 %1233
  %vm1235 = vcmask 523648
  %1236 = vst.msk [vmem:[%s1] sm:$0xff] %vm1235, %v1234
  %s1237 = scalar_lea.vmem %s0, 259
  %v1238 = vld [vmem:[%s1237] sm:$0x1]
  %s1239 = scalar_lea.vmem %s0, 290
  %v1240 = vld [vmem:[%s1239] sm:$0x2]
  %vm1241 = vcmask 1041409
  %v1242 = vsel %vm1241, %v1240, %v1238
  %s1243 = scalar_lea.vmem %s0, 321
  %v1244 = vld [vmem:[%s1243] sm:$0x4]
  %vm1245 = vcmask 1042434
  %v1246 = vsel %vm1245, %v1244, %v1242
  %s1247 = scalar_lea.vmem %s0, 352
  %v1248 = vld [vmem:[%s1247] sm:$0x8]
  %vm1249 = vcmask 1043459
  %v1250 = vsel %vm1249, %v1248, %v1246
  %s1251 = scalar_lea.vmem %s0, 383
  %v1252 = vld [vmem:[%s1251] sm:$0x10]
  %vm1253 = vcmask 1044484
  %v1254 = vsel %vm1253, %v1252, %v1250
  %s1255 = scalar_lea.vmem %s0, 414
  %v1256 = vld [vmem:[%s1255] sm:$0x20]
  %vm1257 = vcmask 1045509
  %v1258 = vsel %vm1257, %v1256, %v1254
  %s1259 = scalar_lea.vmem %s0, 445
  %v1260 = vld [vmem:[%s1259] sm:$0x40]
  %vm1261 = vcmask 1046534
  %v1262 = vsel %vm1261, %v1260, %v1258
  %s1263 = scalar_lea.vmem %s0, 476
  %v1264 = vld [vmem:[%s1263] sm:$0x80]
  %vm1265 = vcmask 1047559
  %v1266 = vsel %vm1265, %v1264, %v1262
  %1267 = vrot.lane.b32.xlu0 %v1266, 48
  %v1268 = vpop.permute.xlu0 %1267
  %vm1269 = vcmask 523648
  %s1270 = scalar_lea.vmem %s1, 32
  %1271 = vst.msk [vmem:[%s1270] sm:$0xff] %vm1269, %v1268
  %s1272 = scalar_lea.vmem %s0, 11
  %v1273 = vld [vmem:[%s1272] sm:$0x1]
  %s1274 = scalar_lea.vmem %s0, 42
  %v1275 = vld [vmem:[%s1274] sm:$0x2]
  %vm1276 = vcmask 1041409
  %v1277 = vsel %vm1276, %v1275, %v1273
  %s1278 = scalar_lea.vmem %s0, 73
  %v1279 = vld [vmem:[%s1278] sm:$0x4]
  %vm1280 = vcmask 1042434
  %v1281 = vsel %vm1280, %v1279, %v1277
  %s1282 = scalar_lea.vmem %s0, 104
  %v1283 = vld [vmem:[%s1282] sm:$0x8]
  %vm1284 = vcmask 1043459
  %v1285 = vsel %vm1284, %v1283, %v1281
  %s1286 = scalar_lea.vmem %s0, 135
  %v1287 = vld [vmem:[%s1286] sm:$0x10]
  %vm1288 = vcmask 1044484
  %v1289 = vsel %vm1288, %v1287, %v1285
  %s1290 = scalar_lea.vmem %s0, 166
  %v1291 = vld [vmem:[%s1290] sm:$0x20]
  %vm1292 = vcmask 1045509
  %v1293 = vsel %vm1292, %v1291, %v1289
  %s1294 = scalar_lea.vmem %s0, 197
  %v1295 = vld [vmem:[%s1294] sm:$0x40]
  %vm1296 = vcmask 1046534
  %v1297 = vsel %vm1296, %v1295, %v1293
  %s1298 = scalar_lea.vmem %s0, 228
  %v1299 = vld [vmem:[%s1298] sm:$0x80]
  %vm1300 = vcmask 1047559
  %v1301 = vsel %vm1300, %v1299, %v1297
  %1302 = vrot.lane.b32.xlu0 %v1301, 48
  %v1303 = vpop.permute.xlu0 %1302
  %vm1304 = vcmask 523648
  %s1305 = scalar_lea.vmem %s1, 8
  %1306 = vst.msk [vmem:[%s1305] sm:$0xff] %vm1304, %v1303
  %s1307 = scalar_lea.vmem %s0, 267
  %v1308 = vld [vmem:[%s1307] sm:$0x1]
  %s1309 = scalar_lea.vmem %s0, 298
  %v1310 = vld [vmem:[%s1309] sm:$0x2]
  %vm1311 = vcmask 1041409
  %v1312 = vsel %vm1311, %v1310, %v1308
  %s1313 = scalar_lea.vmem %s0, 329
  %v1314 = vld [vmem:[%s1313] sm:$0x4]
  %vm1315 = vcmask 1042434
  %v1316 = vsel %vm1315, %v1314, %v1312
  %s1317 = scalar_lea.vmem %s0, 360
  %v1318 = vld [vmem:[%s1317] sm:$0x8]
  %vm1319 = vcmask 1043459
  %v1320 = vsel %vm1319, %v1318, %v1316
  %s1321 = scalar_lea.vmem %s0, 391
  %v1322 = vld [vmem:[%s1321] sm:$0x10]
  %vm1323 = vcmask 1044484
  %v1324 = vsel %vm1323, %v1322, %v1320
  %s1325 = scalar_lea.vmem %s0, 422
  %v1326 = vld [vmem:[%s1325] sm:$0x20]
  %vm1327 = vcmask 1045509
  %v1328 = vsel %vm1327, %v1326, %v1324
  %s1329 = scalar_lea.vmem %s0, 453
  %v1330 = vld [vmem:[%s1329] sm:$0x40]
  %vm1331 = vcmask 1046534
  %v1332 = vsel %vm1331, %v1330, %v1328
  %s1333 = scalar_lea.vmem %s0, 484
  %v1334 = vld [vmem:[%s1333] sm:$0x80]
  %vm1335 = vcmask 1047559
  %v1336 = vsel %vm1335, %v1334, %v1332
  %1337 = vrot.lane.b32.xlu0 %v1336, 48
  %v1338 = vpop.permute.xlu0 %1337
  %vm1339 = vcmask 523648
  %s1340 = scalar_lea.vmem %s1, 40
  %1341 = vst.msk [vmem:[%s1340] sm:$0xff] %vm1339, %v1338
  %s1342 = scalar_lea.vmem %s0, 19
  %v1343 = vld [vmem:[%s1342] sm:$0x1]
  %s1344 = scalar_lea.vmem %s0, 50
  %v1345 = vld [vmem:[%s1344] sm:$0x2]
  %vm1346 = vcmask 1041409
  %v1347 = vsel %vm1346, %v1345, %v1343
  %s1348 = scalar_lea.vmem %s0, 81
  %v1349 = vld [vmem:[%s1348] sm:$0x4]
  %vm1350 = vcmask 1042434
  %v1351 = vsel %vm1350, %v1349, %v1347
  %s1352 = scalar_lea.vmem %s0, 112
  %v1353 = vld [vmem:[%s1352] sm:$0x8]
  %vm1354 = vcmask 1043459
  %v1355 = vsel %vm1354, %v1353, %v1351
  %s1356 = scalar_lea.vmem %s0, 143
  %v1357 = vld [vmem:[%s1356] sm:$0x10]
  %vm1358 = vcmask 1044484
  %v1359 = vsel %vm1358, %v1357, %v1355
  %s1360 = scalar_lea.vmem %s0, 174
  %v1361 = vld [vmem:[%s1360] sm:$0x20]
  %vm1362 = vcmask 1045509
  %v1363 = vsel %vm1362, %v1361, %v1359
  %s1364 = scalar_lea.vmem %s0, 205
  %v1365 = vld [vmem:[%s1364] sm:$0x40]
  %vm1366 = vcmask 1046534
  %v1367 = vsel %vm1366, %v1365, %v1363
  %s1368 = scalar_lea.vmem %s0, 236
  %v1369 = vld [vmem:[%s1368] sm:$0x80]
  %vm1370 = vcmask 1047559
  %v1371 = vsel %vm1370, %v1369, %v1367
  %1372 = vrot.lane.b32.xlu0 %v1371, 48
  %v1373 = vpop.permute.xlu0 %1372
  %vm1374 = vcmask 523648
  %s1375 = scalar_lea.vmem %s1, 16
  %1376 = vst.msk [vmem:[%s1375] sm:$0xff] %vm1374, %v1373
  %s1377 = scalar_lea.vmem %s0, 275
  %v1378 = vld [vmem:[%s1377] sm:$0x1]
  %s1379 = scalar_lea.vmem %s0, 306
  %v1380 = vld [vmem:[%s1379] sm:$0x2]
  %vm1381 = vcmask 1041409
  %v1382 = vsel %vm1381, %v1380, %v1378
  %s1383 = scalar_lea.vmem %s0, 337
  %v1384 = vld [vmem:[%s1383] sm:$0x4]
  %vm1385 = vcmask 1042434
  %v1386 = vsel %vm1385, %v1384, %v1382
  %s1387 = scalar_lea.vmem %s0, 368
  %v1388 = vld [vmem:[%s1387] sm:$0x8]
  %vm1389 = vcmask 1043459
  %v1390 = vsel %vm1389, %v1388, %v1386
  %s1391 = scalar_lea.vmem %s0, 399
  %v1392 = vld [vmem:[%s1391] sm:$0x10]
  %vm1393 = vcmask 1044484
  %v1394 = vsel %vm1393, %v1392, %v1390
  %s1395 = scalar_lea.vmem %s0, 430
  %v1396 = vld [vmem:[%s1395] sm:$0x20]
  %vm1397 = vcmask 1045509
  %v1398 = vsel %vm1397, %v1396, %v1394
  %s1399 = scalar_lea.vmem %s0, 461
  %v1400 = vld [vmem:[%s1399] sm:$0x40]
  %vm1401 = vcmask 1046534
  %v1402 = vsel %vm1401, %v1400, %v1398
  %s1403 = scalar_lea.vmem %s0, 492
  %v1404 = vld [vmem:[%s1403] sm:$0x80]
  %vm1405 = vcmask 1047559
  %v1406 = vsel %vm1405, %v1404, %v1402
  %1407 = vrot.lane.b32.xlu0 %v1406, 48
  %v1408 = vpop.permute.xlu0 %1407
  %vm1409 = vcmask 523648
  %s1410 = scalar_lea.vmem %s1, 48
  %1411 = vst.msk [vmem:[%s1410] sm:$0xff] %vm1409, %v1408
  %s1412 = scalar_lea.vmem %s0, 27
  %v1413 = vld [vmem:[%s1412] sm:$0x1]
  %s1414 = scalar_lea.vmem %s0, 58
  %v1415 = vld [vmem:[%s1414] sm:$0x2]
  %vm1416 = vcmask 1041409
  %v1417 = vsel %vm1416, %v1415, %v1413
  %s1418 = scalar_lea.vmem %s0, 89
  %v1419 = vld [vmem:[%s1418] sm:$0x4]
  %vm1420 = vcmask 1042434
  %v1421 = vsel %vm1420, %v1419, %v1417
  %s1422 = scalar_lea.vmem %s0, 120
  %v1423 = vld [vmem:[%s1422] sm:$0x8]
  %vm1424 = vcmask 1043459
  %v1425 = vsel %vm1424, %v1423, %v1421
  %s1426 = scalar_lea.vmem %s0, 151
  %v1427 = vld [vmem:[%s1426] sm:$0x10]
  %vm1428 = vcmask 1044484
  %v1429 = vsel %vm1428, %v1427, %v1425
  %s1430 = scalar_lea.vmem %s0, 182
  %v1431 = vld [vmem:[%s1430] sm:$0x20]
  %vm1432 = vcmask 1045509
  %v1433 = vsel %vm1432, %v1431, %v1429
  %s1434 = scalar_lea.vmem %s0, 213
  %v1435 = vld [vmem:[%s1434] sm:$0x40]
  %vm1436 = vcmask 1046534
  %v1437 = vsel %vm1436, %v1435, %v1433
  %s1438 = scalar_lea.vmem %s0, 244
  %v1439 = vld [vmem:[%s1438] sm:$0x80]
  %vm1440 = vcmask 1047559
  %v1441 = vsel %vm1440, %v1439, %v1437
  %1442 = vrot.lane.b32.xlu0 %v1441, 48
  %v1443 = vpop.permute.xlu0 %1442
  %vm1444 = vcmask 523648
  %s1445 = scalar_lea.vmem %s1, 24
  %1446 = vst.msk [vmem:[%s1445] sm:$0xff] %vm1444, %v1443
  %s1447 = scalar_lea.vmem %s0, 283
  %v1448 = vld [vmem:[%s1447] sm:$0x1]
  %s1449 = scalar_lea.vmem %s0, 314
  %v1450 = vld [vmem:[%s1449] sm:$0x2]
  %vm1451 = vcmask 1041409
  %v1452 = vsel %vm1451, %v1450, %v1448
  %s1453 = scalar_lea.vmem %s0, 345
  %v1454 = vld [vmem:[%s1453] sm:$0x4]
  %vm1455 = vcmask 1042434
  %v1456 = vsel %vm1455, %v1454, %v1452
  %s1457 = scalar_lea.vmem %s0, 376
  %v1458 = vld [vmem:[%s1457] sm:$0x8]
  %vm1459 = vcmask 1043459
  %v1460 = vsel %vm1459, %v1458, %v1456
  %s1461 = scalar_lea.vmem %s0, 407
  %v1462 = vld [vmem:[%s1461] sm:$0x10]
  %vm1463 = vcmask 1044484
  %v1464 = vsel %vm1463, %v1462, %v1460
  %s1465 = scalar_lea.vmem %s0, 438
  %v1466 = vld [vmem:[%s1465] sm:$0x20]
  %vm1467 = vcmask 1045509
  %v1468 = vsel %vm1467, %v1466, %v1464
  %s1469 = scalar_lea.vmem %s0, 469
  %v1470 = vld [vmem:[%s1469] sm:$0x40]
  %vm1471 = vcmask 1046534
  %v1472 = vsel %vm1471, %v1470, %v1468
  %s1473 = scalar_lea.vmem %s0, 500
  %v1474 = vld [vmem:[%s1473] sm:$0x80]
  %vm1475 = vcmask 1047559
  %v1476 = vsel %vm1475, %v1474, %v1472
  %1477 = vrot.lane.b32.xlu0 %v1476, 48
  %v1478 = vpop.permute.xlu0 %1477
  %vm1479 = vcmask 523648
  %s1480 = scalar_lea.vmem %s1, 56
  %1481 = vst.msk [vmem:[%s1480] sm:$0xff] %vm1479, %v1478
  %s1482 = scalar_lea.vmem %s0, 2
  %v1483 = vld [vmem:[%s1482] sm:$0x1]
  %s1484 = scalar_lea.vmem %s0, 33
  %v1485 = vld [vmem:[%s1484] sm:$0x2]
  %vm1486 = vcmask 1041409
  %v1487 = vsel %vm1486, %v1485, %v1483
  %s1488 = scalar_lea.vmem %s0, 64
  %v1489 = vld [vmem:[%s1488] sm:$0x4]
  %vm1490 = vcmask 1042434
  %v1491 = vsel %vm1490, %v1489, %v1487
  %s1492 = scalar_lea.vmem %s0, 95
  %v1493 = vld [vmem:[%s1492] sm:$0x8]
  %vm1494 = vcmask 1043459
  %v1495 = vsel %vm1494, %v1493, %v1491
  %s1496 = scalar_lea.vmem %s0, 126
  %v1497 = vld [vmem:[%s1496] sm:$0x10]
  %vm1498 = vcmask 1044484
  %v1499 = vsel %vm1498, %v1497, %v1495
  %s1500 = scalar_lea.vmem %s0, 157
  %v1501 = vld [vmem:[%s1500] sm:$0x20]
  %vm1502 = vcmask 1045509
  %v1503 = vsel %vm1502, %v1501, %v1499
  %s1504 = scalar_lea.vmem %s0, 188
  %v1505 = vld [vmem:[%s1504] sm:$0x40]
  %vm1506 = vcmask 1046534
  %v1507 = vsel %vm1506, %v1505, %v1503
  %s1508 = scalar_lea.vmem %s0, 219
  %v1509 = vld [vmem:[%s1508] sm:$0x80]
  %vm1510 = vcmask 1047559
  %v1511 = vsel %vm1510, %v1509, %v1507
  %1512 = vrot.lane.b32.xlu0 %v1511, 32
  %v1513 = vpop.permute.xlu0 %1512
  %vm1514 = vcmask 392448
  %1515 = vst.msk [vmem:[%s1] sm:$0xff] %vm1514, %v1513
  %s1516 = scalar_lea.vmem %s0, 258
  %v1517 = vld [vmem:[%s1516] sm:$0x1]
  %s1518 = scalar_lea.vmem %s0, 289
  %v1519 = vld [vmem:[%s1518] sm:$0x2]
  %vm1520 = vcmask 1041409
  %v1521 = vsel %vm1520, %v1519, %v1517
  %s1522 = scalar_lea.vmem %s0, 320
  %v1523 = vld [vmem:[%s1522] sm:$0x4]
  %vm1524 = vcmask 1042434
  %v1525 = vsel %vm1524, %v1523, %v1521
  %s1526 = scalar_lea.vmem %s0, 351
  %v1527 = vld [vmem:[%s1526] sm:$0x8]
  %vm1528 = vcmask 1043459
  %v1529 = vsel %vm1528, %v1527, %v1525
  %s1530 = scalar_lea.vmem %s0, 382
  %v1531 = vld [vmem:[%s1530] sm:$0x10]
  %vm1532 = vcmask 1044484
  %v1533 = vsel %vm1532, %v1531, %v1529
  %s1534 = scalar_lea.vmem %s0, 413
  %v1535 = vld [vmem:[%s1534] sm:$0x20]
  %vm1536 = vcmask 1045509
  %v1537 = vsel %vm1536, %v1535, %v1533
  %s1538 = scalar_lea.vmem %s0, 444
  %v1539 = vld [vmem:[%s1538] sm:$0x40]
  %vm1540 = vcmask 1046534
  %v1541 = vsel %vm1540, %v1539, %v1537
  %s1542 = scalar_lea.vmem %s0, 475
  %v1543 = vld [vmem:[%s1542] sm:$0x80]
  %vm1544 = vcmask 1047559
  %v1545 = vsel %vm1544, %v1543, %v1541
  %1546 = vrot.lane.b32.xlu0 %v1545, 32
  %v1547 = vpop.permute.xlu0 %1546
  %vm1548 = vcmask 392448
  %s1549 = scalar_lea.vmem %s1, 32
  %1550 = vst.msk [vmem:[%s1549] sm:$0xff] %vm1548, %v1547
  %s1551 = scalar_lea.vmem %s0, 10
  %v1552 = vld [vmem:[%s1551] sm:$0x1]
  %s1553 = scalar_lea.vmem %s0, 41
  %v1554 = vld [vmem:[%s1553] sm:$0x2]
  %vm1555 = vcmask 1041409
  %v1556 = vsel %vm1555, %v1554, %v1552
  %s1557 = scalar_lea.vmem %s0, 72
  %v1558 = vld [vmem:[%s1557] sm:$0x4]
  %vm1559 = vcmask 1042434
  %v1560 = vsel %vm1559, %v1558, %v1556
  %s1561 = scalar_lea.vmem %s0, 103
  %v1562 = vld [vmem:[%s1561] sm:$0x8]
  %vm1563 = vcmask 1043459
  %v1564 = vsel %vm1563, %v1562, %v1560
  %s1565 = scalar_lea.vmem %s0, 134
  %v1566 = vld [vmem:[%s1565] sm:$0x10]
  %vm1567 = vcmask 1044484
  %v1568 = vsel %vm1567, %v1566, %v1564
  %s1569 = scalar_lea.vmem %s0, 165
  %v1570 = vld [vmem:[%s1569] sm:$0x20]
  %vm1571 = vcmask 1045509
  %v1572 = vsel %vm1571, %v1570, %v1568
  %s1573 = scalar_lea.vmem %s0, 196
  %v1574 = vld [vmem:[%s1573] sm:$0x40]
  %vm1575 = vcmask 1046534
  %v1576 = vsel %vm1575, %v1574, %v1572
  %s1577 = scalar_lea.vmem %s0, 227
  %v1578 = vld [vmem:[%s1577] sm:$0x80]
  %vm1579 = vcmask 1047559
  %v1580 = vsel %vm1579, %v1578, %v1576
  %1581 = vrot.lane.b32.xlu0 %v1580, 32
  %v1582 = vpop.permute.xlu0 %1581
  %vm1583 = vcmask 392448
  %s1584 = scalar_lea.vmem %s1, 8
  %1585 = vst.msk [vmem:[%s1584] sm:$0xff] %vm1583, %v1582
  %s1586 = scalar_lea.vmem %s0, 266
  %v1587 = vld [vmem:[%s1586] sm:$0x1]
  %s1588 = scalar_lea.vmem %s0, 297
  %v1589 = vld [vmem:[%s1588] sm:$0x2]
  %vm1590 = vcmask 1041409
  %v1591 = vsel %vm1590, %v1589, %v1587
  %s1592 = scalar_lea.vmem %s0, 328
  %v1593 = vld [vmem:[%s1592] sm:$0x4]
  %vm1594 = vcmask 1042434
  %v1595 = vsel %vm1594, %v1593, %v1591
  %s1596 = scalar_lea.vmem %s0, 359
  %v1597 = vld [vmem:[%s1596] sm:$0x8]
  %vm1598 = vcmask 1043459
  %v1599 = vsel %vm1598, %v1597, %v1595
  %s1600 = scalar_lea.vmem %s0, 390
  %v1601 = vld [vmem:[%s1600] sm:$0x10]
  %vm1602 = vcmask 1044484
  %v1603 = vsel %vm1602, %v1601, %v1599
  %s1604 = scalar_lea.vmem %s0, 421
  %v1605 = vld [vmem:[%s1604] sm:$0x20]
  %vm1606 = vcmask 1045509
  %v1607 = vsel %vm1606, %v1605, %v1603
  %s1608 = scalar_lea.vmem %s0, 452
  %v1609 = vld [vmem:[%s1608] sm:$0x40]
  %vm1610 = vcmask 1046534
  %v1611 = vsel %vm1610, %v1609, %v1607
  %s1612 = scalar_lea.vmem %s0, 483
  %v1613 = vld [vmem:[%s1612] sm:$0x80]
  %vm1614 = vcmask 1047559
  %v1615 = vsel %vm1614, %v1613, %v1611
  %1616 = vrot.lane.b32.xlu0 %v1615, 32
  %v1617 = vpop.permute.xlu0 %1616
  %vm1618 = vcmask 392448
  %s1619 = scalar_lea.vmem %s1, 40
  %1620 = vst.msk [vmem:[%s1619] sm:$0xff] %vm1618, %v1617
  %s1621 = scalar_lea.vmem %s0, 18
  %v1622 = vld [vmem:[%s1621] sm:$0x1]
  %s1623 = scalar_lea.vmem %s0, 49
  %v1624 = vld [vmem:[%s1623] sm:$0x2]
  %vm1625 = vcmask 1041409
  %v1626 = vsel %vm1625, %v1624, %v1622
  %s1627 = scalar_lea.vmem %s0, 80
  %v1628 = vld [vmem:[%s1627] sm:$0x4]
  %vm1629 = vcmask 1042434
  %v1630 = vsel %vm1629, %v1628, %v1626
  %s1631 = scalar_lea.vmem %s0, 111
  %v1632 = vld [vmem:[%s1631] sm:$0x8]
  %vm1633 = vcmask 1043459
  %v1634 = vsel %vm1633, %v1632, %v1630
  %s1635 = scalar_lea.vmem %s0, 142
  %v1636 = vld [vmem:[%s1635] sm:$0x10]
  %vm1637 = vcmask 1044484
  %v1638 = vsel %vm1637, %v1636, %v1634
  %s1639 = scalar_lea.vmem %s0, 173
  %v1640 = vld [vmem:[%s1639] sm:$0x20]
  %vm1641 = vcmask 1045509
  %v1642 = vsel %vm1641, %v1640, %v1638
  %s1643 = scalar_lea.vmem %s0, 204
  %v1644 = vld [vmem:[%s1643] sm:$0x40]
  %vm1645 = vcmask 1046534
  %v1646 = vsel %vm1645, %v1644, %v1642
  %s1647 = scalar_lea.vmem %s0, 235
  %v1648 = vld [vmem:[%s1647] sm:$0x80]
  %vm1649 = vcmask 1047559
  %v1650 = vsel %vm1649, %v1648, %v1646
  %1651 = vrot.lane.b32.xlu0 %v1650, 32
  %v1652 = vpop.permute.xlu0 %1651
  %vm1653 = vcmask 392448
  %s1654 = scalar_lea.vmem %s1, 16
  %1655 = vst.msk [vmem:[%s1654] sm:$0xff] %vm1653, %v1652
  %s1656 = scalar_lea.vmem %s0, 274
  %v1657 = vld [vmem:[%s1656] sm:$0x1]
  %s1658 = scalar_lea.vmem %s0, 305
  %v1659 = vld [vmem:[%s1658] sm:$0x2]
  %vm1660 = vcmask 1041409
  %v1661 = vsel %vm1660, %v1659, %v1657
  %s1662 = scalar_lea.vmem %s0, 336
  %v1663 = vld [vmem:[%s1662] sm:$0x4]
  %vm1664 = vcmask 1042434
  %v1665 = vsel %vm1664, %v1663, %v1661
  %s1666 = scalar_lea.vmem %s0, 367
  %v1667 = vld [vmem:[%s1666] sm:$0x8]
  %vm1668 = vcmask 1043459
  %v1669 = vsel %vm1668, %v1667, %v1665
  %s1670 = scalar_lea.vmem %s0, 398
  %v1671 = vld [vmem:[%s1670] sm:$0x10]
  %vm1672 = vcmask 1044484
  %v1673 = vsel %vm1672, %v1671, %v1669
  %s1674 = scalar_lea.vmem %s0, 429
  %v1675 = vld [vmem:[%s1674] sm:$0x20]
  %vm1676 = vcmask 1045509
  %v1677 = vsel %vm1676, %v1675, %v1673
  %s1678 = scalar_lea.vmem %s0, 460
  %v1679 = vld [vmem:[%s1678] sm:$0x40]
  %vm1680 = vcmask 1046534
  %v1681 = vsel %vm1680, %v1679, %v1677
  %s1682 = scalar_lea.vmem %s0, 491
  %v1683 = vld [vmem:[%s1682] sm:$0x80]
  %vm1684 = vcmask 1047559
  %v1685 = vsel %vm1684, %v1683, %v1681
  %1686 = vrot.lane.b32.xlu0 %v1685, 32
  %v1687 = vpop.permute.xlu0 %1686
  %vm1688 = vcmask 392448
  %s1689 = scalar_lea.vmem %s1, 48
  %1690 = vst.msk [vmem:[%s1689] sm:$0xff] %vm1688, %v1687
  %s1691 = scalar_lea.vmem %s0, 26
  %v1692 = vld [vmem:[%s1691] sm:$0x1]
  %s1693 = scalar_lea.vmem %s0, 57
  %v1694 = vld [vmem:[%s1693] sm:$0x2]
  %vm1695 = vcmask 1041409
  %v1696 = vsel %vm1695, %v1694, %v1692
  %s1697 = scalar_lea.vmem %s0, 88
  %v1698 = vld [vmem:[%s1697] sm:$0x4]
  %vm1699 = vcmask 1042434
  %v1700 = vsel %vm1699, %v1698, %v1696
  %s1701 = scalar_lea.vmem %s0, 119
  %v1702 = vld [vmem:[%s1701] sm:$0x8]
  %vm1703 = vcmask 1043459
  %v1704 = vsel %vm1703, %v1702, %v1700
  %s1705 = scalar_lea.vmem %s0, 150
  %v1706 = vld [vmem:[%s1705] sm:$0x10]
  %vm1707 = vcmask 1044484
  %v1708 = vsel %vm1707, %v1706, %v1704
  %s1709 = scalar_lea.vmem %s0, 181
  %v1710 = vld [vmem:[%s1709] sm:$0x20]
  %vm1711 = vcmask 1045509
  %v1712 = vsel %vm1711, %v1710, %v1708
  %s1713 = scalar_lea.vmem %s0, 212
  %v1714 = vld [vmem:[%s1713] sm:$0x40]
  %vm1715 = vcmask 1046534
  %v1716 = vsel %vm1715, %v1714, %v1712
  %s1717 = scalar_lea.vmem %s0, 243
  %v1718 = vld [vmem:[%s1717] sm:$0x80]
  %vm1719 = vcmask 1047559
  %v1720 = vsel %vm1719, %v1718, %v1716
  %1721 = vrot.lane.b32.xlu0 %v1720, 32
  %v1722 = vpop.permute.xlu0 %1721
  %vm1723 = vcmask 392448
  %s1724 = scalar_lea.vmem %s1, 24
  %1725 = vst.msk [vmem:[%s1724] sm:$0xff] %vm1723, %v1722
  %s1726 = scalar_lea.vmem %s0, 282
  %v1727 = vld [vmem:[%s1726] sm:$0x1]
  %s1728 = scalar_lea.vmem %s0, 313
  %v1729 = vld [vmem:[%s1728] sm:$0x2]
  %vm1730 = vcmask 1041409
  %v1731 = vsel %vm1730, %v1729, %v1727
  %s1732 = scalar_lea.vmem %s0, 344
  %v1733 = vld [vmem:[%s1732] sm:$0x4]
  %vm1734 = vcmask 1042434
  %v1735 = vsel %vm1734, %v1733, %v1731
  %s1736 = scalar_lea.vmem %s0, 375
  %v1737 = vld [vmem:[%s1736] sm:$0x8]
  %vm1738 = vcmask 1043459
  %v1739 = vsel %vm1738, %v1737, %v1735
  %s1740 = scalar_lea.vmem %s0, 406
  %v1741 = vld [vmem:[%s1740] sm:$0x10]
  %vm1742 = vcmask 1044484
  %v1743 = vsel %vm1742, %v1741, %v1739
  %s1744 = scalar_lea.vmem %s0, 437
  %v1745 = vld [vmem:[%s1744] sm:$0x20]
  %vm1746 = vcmask 1045509
  %v1747 = vsel %vm1746, %v1745, %v1743
  %s1748 = scalar_lea.vmem %s0, 468
  %v1749 = vld [vmem:[%s1748] sm:$0x40]
  %vm1750 = vcmask 1046534
  %v1751 = vsel %vm1750, %v1749, %v1747
  %s1752 = scalar_lea.vmem %s0, 499
  %v1753 = vld [vmem:[%s1752] sm:$0x80]
  %vm1754 = vcmask 1047559
  %v1755 = vsel %vm1754, %v1753, %v1751
  %1756 = vrot.lane.b32.xlu0 %v1755, 32
  %v1757 = vpop.permute.xlu0 %1756
  %vm1758 = vcmask 392448
  %s1759 = scalar_lea.vmem %s1, 56
  %1760 = vst.msk [vmem:[%s1759] sm:$0xff] %vm1758, %v1757
  %s1761 = scalar_lea.vmem %s0, 1
  %v1762 = vld [vmem:[%s1761] sm:$0x1]
  %s1763 = scalar_lea.vmem %s0, 32
  %v1764 = vld [vmem:[%s1763] sm:$0x2]
  %vm1765 = vcmask 1041409
  %v1766 = vsel %vm1765, %v1764, %v1762
  %s1767 = scalar_lea.vmem %s0, 63
  %v1768 = vld [vmem:[%s1767] sm:$0x4]
  %vm1769 = vcmask 1042434
  %v1770 = vsel %vm1769, %v1768, %v1766
  %s1771 = scalar_lea.vmem %s0, 94
  %v1772 = vld [vmem:[%s1771] sm:$0x8]
  %vm1773 = vcmask 1043459
  %v1774 = vsel %vm1773, %v1772, %v1770
  %s1775 = scalar_lea.vmem %s0, 125
  %v1776 = vld [vmem:[%s1775] sm:$0x10]
  %vm1777 = vcmask 1044484
  %v1778 = vsel %vm1777, %v1776, %v1774
  %s1779 = scalar_lea.vmem %s0, 156
  %v1780 = vld [vmem:[%s1779] sm:$0x20]
  %vm1781 = vcmask 1045509
  %v1782 = vsel %vm1781, %v1780, %v1778
  %s1783 = scalar_lea.vmem %s0, 187
  %v1784 = vld [vmem:[%s1783] sm:$0x40]
  %vm1785 = vcmask 1046534
  %v1786 = vsel %vm1785, %v1784, %v1782
  %s1787 = scalar_lea.vmem %s0, 218
  %v1788 = vld [vmem:[%s1787] sm:$0x80]
  %vm1789 = vcmask 1047559
  %v1790 = vsel %vm1789, %v1788, %v1786
  %1791 = vrot.lane.b32.xlu0 %v1790, 16
  %v1792 = vpop.permute.xlu0 %1791
  %vm1793 = vcmask 261248
  %1794 = vst.msk [vmem:[%s1] sm:$0xff] %vm1793, %v1792
  %s1795 = scalar_lea.vmem %s0, 257
  %v1796 = vld [vmem:[%s1795] sm:$0x1]
  %s1797 = scalar_lea.vmem %s0, 288
  %v1798 = vld [vmem:[%s1797] sm:$0x2]
  %vm1799 = vcmask 1041409
  %v1800 = vsel %vm1799, %v1798, %v1796
  %s1801 = scalar_lea.vmem %s0, 319
  %v1802 = vld [vmem:[%s1801] sm:$0x4]
  %vm1803 = vcmask 1042434
  %v1804 = vsel %vm1803, %v1802, %v1800
  %s1805 = scalar_lea.vmem %s0, 350
  %v1806 = vld [vmem:[%s1805] sm:$0x8]
  %vm1807 = vcmask 1043459
  %v1808 = vsel %vm1807, %v1806, %v1804
  %s1809 = scalar_lea.vmem %s0, 381
  %v1810 = vld [vmem:[%s1809] sm:$0x10]
  %vm1811 = vcmask 1044484
  %v1812 = vsel %vm1811, %v1810, %v1808
  %s1813 = scalar_lea.vmem %s0, 412
  %v1814 = vld [vmem:[%s1813] sm:$0x20]
  %vm1815 = vcmask 1045509
  %v1816 = vsel %vm1815, %v1814, %v1812
  %s1817 = scalar_lea.vmem %s0, 443
  %v1818 = vld [vmem:[%s1817] sm:$0x40]
  %vm1819 = vcmask 1046534
  %v1820 = vsel %vm1819, %v1818, %v1816
  %s1821 = scalar_lea.vmem %s0, 474
  %v1822 = vld [vmem:[%s1821] sm:$0x80]
  %vm1823 = vcmask 1047559
  %v1824 = vsel %vm1823, %v1822, %v1820
  %1825 = vrot.lane.b32.xlu0 %v1824, 16
  %v1826 = vpop.permute.xlu0 %1825
  %vm1827 = vcmask 261248
  %s1828 = scalar_lea.vmem %s1, 32
  %1829 = vst.msk [vmem:[%s1828] sm:$0xff] %vm1827, %v1826
  %s1830 = scalar_lea.vmem %s0, 9
  %v1831 = vld [vmem:[%s1830] sm:$0x1]
  %s1832 = scalar_lea.vmem %s0, 40
  %v1833 = vld [vmem:[%s1832] sm:$0x2]
  %vm1834 = vcmask 1041409
  %v1835 = vsel %vm1834, %v1833, %v1831
  %s1836 = scalar_lea.vmem %s0, 71
  %v1837 = vld [vmem:[%s1836] sm:$0x4]
  %vm1838 = vcmask 1042434
  %v1839 = vsel %vm1838, %v1837, %v1835
  %s1840 = scalar_lea.vmem %s0, 102
  %v1841 = vld [vmem:[%s1840] sm:$0x8]
  %vm1842 = vcmask 1043459
  %v1843 = vsel %vm1842, %v1841, %v1839
  %s1844 = scalar_lea.vmem %s0, 133
  %v1845 = vld [vmem:[%s1844] sm:$0x10]
  %vm1846 = vcmask 1044484
  %v1847 = vsel %vm1846, %v1845, %v1843
  %s1848 = scalar_lea.vmem %s0, 164
  %v1849 = vld [vmem:[%s1848] sm:$0x20]
  %vm1850 = vcmask 1045509
  %v1851 = vsel %vm1850, %v1849, %v1847
  %s1852 = scalar_lea.vmem %s0, 195
  %v1853 = vld [vmem:[%s1852] sm:$0x40]
  %vm1854 = vcmask 1046534
  %v1855 = vsel %vm1854, %v1853, %v1851
  %s1856 = scalar_lea.vmem %s0, 226
  %v1857 = vld [vmem:[%s1856] sm:$0x80]
  %vm1858 = vcmask 1047559
  %v1859 = vsel %vm1858, %v1857, %v1855
  %1860 = vrot.lane.b32.xlu0 %v1859, 16
  %v1861 = vpop.permute.xlu0 %1860
  %vm1862 = vcmask 261248
  %s1863 = scalar_lea.vmem %s1, 8
  %1864 = vst.msk [vmem:[%s1863] sm:$0xff] %vm1862, %v1861
  %s1865 = scalar_lea.vmem %s0, 265
  %v1866 = vld [vmem:[%s1865] sm:$0x1]
  %s1867 = scalar_lea.vmem %s0, 296
  %v1868 = vld [vmem:[%s1867] sm:$0x2]
  %vm1869 = vcmask 1041409
  %v1870 = vsel %vm1869, %v1868, %v1866
  %s1871 = scalar_lea.vmem %s0, 327
  %v1872 = vld [vmem:[%s1871] sm:$0x4]
  %vm1873 = vcmask 1042434
  %v1874 = vsel %vm1873, %v1872, %v1870
  %s1875 = scalar_lea.vmem %s0, 358
  %v1876 = vld [vmem:[%s1875] sm:$0x8]
  %vm1877 = vcmask 1043459
  %v1878 = vsel %vm1877, %v1876, %v1874
  %s1879 = scalar_lea.vmem %s0, 389
  %v1880 = vld [vmem:[%s1879] sm:$0x10]
  %vm1881 = vcmask 1044484
  %v1882 = vsel %vm1881, %v1880, %v1878
  %s1883 = scalar_lea.vmem %s0, 420
  %v1884 = vld [vmem:[%s1883] sm:$0x20]
  %vm1885 = vcmask 1045509
  %v1886 = vsel %vm1885, %v1884, %v1882
  %s1887 = scalar_lea.vmem %s0, 451
  %v1888 = vld [vmem:[%s1887] sm:$0x40]
  %vm1889 = vcmask 1046534
  %v1890 = vsel %vm1889, %v1888, %v1886
  %s1891 = scalar_lea.vmem %s0, 482
  %v1892 = vld [vmem:[%s1891] sm:$0x80]
  %vm1893 = vcmask 1047559
  %v1894 = vsel %vm1893, %v1892, %v1890
  %1895 = vrot.lane.b32.xlu0 %v1894, 16
  %v1896 = vpop.permute.xlu0 %1895
  %vm1897 = vcmask 261248
  %s1898 = scalar_lea.vmem %s1, 40
  %1899 = vst.msk [vmem:[%s1898] sm:$0xff] %vm1897, %v1896
  %s1900 = scalar_lea.vmem %s0, 17
  %v1901 = vld [vmem:[%s1900] sm:$0x1]
  %s1902 = scalar_lea.vmem %s0, 48
  %v1903 = vld [vmem:[%s1902] sm:$0x2]
  %vm1904 = vcmask 1041409
  %v1905 = vsel %vm1904, %v1903, %v1901
  %s1906 = scalar_lea.vmem %s0, 79
  %v1907 = vld [vmem:[%s1906] sm:$0x4]
  %vm1908 = vcmask 1042434
  %v1909 = vsel %vm1908, %v1907, %v1905
  %s1910 = scalar_lea.vmem %s0, 110
  %v1911 = vld [vmem:[%s1910] sm:$0x8]
  %vm1912 = vcmask 1043459
  %v1913 = vsel %vm1912, %v1911, %v1909
  %s1914 = scalar_lea.vmem %s0, 141
  %v1915 = vld [vmem:[%s1914] sm:$0x10]
  %vm1916 = vcmask 1044484
  %v1917 = vsel %vm1916, %v1915, %v1913
  %s1918 = scalar_lea.vmem %s0, 172
  %v1919 = vld [vmem:[%s1918] sm:$0x20]
  %vm1920 = vcmask 1045509
  %v1921 = vsel %vm1920, %v1919, %v1917
  %s1922 = scalar_lea.vmem %s0, 203
  %v1923 = vld [vmem:[%s1922] sm:$0x40]
  %vm1924 = vcmask 1046534
  %v1925 = vsel %vm1924, %v1923, %v1921
  %s1926 = scalar_lea.vmem %s0, 234
  %v1927 = vld [vmem:[%s1926] sm:$0x80]
  %vm1928 = vcmask 1047559
  %v1929 = vsel %vm1928, %v1927, %v1925
  %1930 = vrot.lane.b32.xlu0 %v1929, 16
  %v1931 = vpop.permute.xlu0 %1930
  %vm1932 = vcmask 261248
  %s1933 = scalar_lea.vmem %s1, 16
  %1934 = vst.msk [vmem:[%s1933] sm:$0xff] %vm1932, %v1931
  %s1935 = scalar_lea.vmem %s0, 273
  %v1936 = vld [vmem:[%s1935] sm:$0x1]
  %s1937 = scalar_lea.vmem %s0, 304
  %v1938 = vld [vmem:[%s1937] sm:$0x2]
  %vm1939 = vcmask 1041409
  %v1940 = vsel %vm1939, %v1938, %v1936
  %s1941 = scalar_lea.vmem %s0, 335
  %v1942 = vld [vmem:[%s1941] sm:$0x4]
  %vm1943 = vcmask 1042434
  %v1944 = vsel %vm1943, %v1942, %v1940
  %s1945 = scalar_lea.vmem %s0, 366
  %v1946 = vld [vmem:[%s1945] sm:$0x8]
  %vm1947 = vcmask 1043459
  %v1948 = vsel %vm1947, %v1946, %v1944
  %s1949 = scalar_lea.vmem %s0, 397
  %v1950 = vld [vmem:[%s1949] sm:$0x10]
  %vm1951 = vcmask 1044484
  %v1952 = vsel %vm1951, %v1950, %v1948
  %s1953 = scalar_lea.vmem %s0, 428
  %v1954 = vld [vmem:[%s1953] sm:$0x20]
  %vm1955 = vcmask 1045509
  %v1956 = vsel %vm1955, %v1954, %v1952
  %s1957 = scalar_lea.vmem %s0, 459
  %v1958 = vld [vmem:[%s1957] sm:$0x40]
  %vm1959 = vcmask 1046534
  %v1960 = vsel %vm1959, %v1958, %v1956
  %s1961 = scalar_lea.vmem %s0, 490
  %v1962 = vld [vmem:[%s1961] sm:$0x80]
  %vm1963 = vcmask 1047559
  %v1964 = vsel %vm1963, %v1962, %v1960
  %1965 = vrot.lane.b32.xlu0 %v1964, 16
  %v1966 = vpop.permute.xlu0 %1965
  %vm1967 = vcmask 261248
  %s1968 = scalar_lea.vmem %s1, 48
  %1969 = vst.msk [vmem:[%s1968] sm:$0xff] %vm1967, %v1966
  %s1970 = scalar_lea.vmem %s0, 25
  %v1971 = vld [vmem:[%s1970] sm:$0x1]
  %s1972 = scalar_lea.vmem %s0, 56
  %v1973 = vld [vmem:[%s1972] sm:$0x2]
  %vm1974 = vcmask 1041409
  %v1975 = vsel %vm1974, %v1973, %v1971
  %s1976 = scalar_lea.vmem %s0, 87
  %v1977 = vld [vmem:[%s1976] sm:$0x4]
  %vm1978 = vcmask 1042434
  %v1979 = vsel %vm1978, %v1977, %v1975
  %s1980 = scalar_lea.vmem %s0, 118
  %v1981 = vld [vmem:[%s1980] sm:$0x8]
  %vm1982 = vcmask 1043459
  %v1983 = vsel %vm1982, %v1981, %v1979
  %s1984 = scalar_lea.vmem %s0, 149
  %v1985 = vld [vmem:[%s1984] sm:$0x10]
  %vm1986 = vcmask 1044484
  %v1987 = vsel %vm1986, %v1985, %v1983
  %s1988 = scalar_lea.vmem %s0, 180
  %v1989 = vld [vmem:[%s1988] sm:$0x20]
  %vm1990 = vcmask 1045509
  %v1991 = vsel %vm1990, %v1989, %v1987
  %s1992 = scalar_lea.vmem %s0, 211
  %v1993 = vld [vmem:[%s1992] sm:$0x40]
  %vm1994 = vcmask 1046534
  %v1995 = vsel %vm1994, %v1993, %v1991
  %s1996 = scalar_lea.vmem %s0, 242
  %v1997 = vld [vmem:[%s1996] sm:$0x80]
  %vm1998 = vcmask 1047559
  %v1999 = vsel %vm1998, %v1997, %v1995
  %2000 = vrot.lane.b32.xlu0 %v1999, 16
  %v2001 = vpop.permute.xlu0 %2000
  %vm2002 = vcmask 261248
  %s2003 = scalar_lea.vmem %s1, 24
  %2004 = vst.msk [vmem:[%s2003] sm:$0xff] %vm2002, %v2001
  %s2005 = scalar_lea.vmem %s0, 281
  %v2006 = vld [vmem:[%s2005] sm:$0x1]
  %s2007 = scalar_lea.vmem %s0, 312
  %v2008 = vld [vmem:[%s2007] sm:$0x2]
  %vm2009 = vcmask 1041409
  %v2010 = vsel %vm2009, %v2008, %v2006
  %s2011 = scalar_lea.vmem %s0, 343
  %v2012 = vld [vmem:[%s2011] sm:$0x4]
  %vm2013 = vcmask 1042434
  %v2014 = vsel %vm2013, %v2012, %v2010
  %s2015 = scalar_lea.vmem %s0, 374
  %v2016 = vld [vmem:[%s2015] sm:$0x8]
  %vm2017 = vcmask 1043459
  %v2018 = vsel %vm2017, %v2016, %v2014
  %s2019 = scalar_lea.vmem %s0, 405
  %v2020 = vld [vmem:[%s2019] sm:$0x10]
  %vm2021 = vcmask 1044484
  %v2022 = vsel %vm2021, %v2020, %v2018
  %s2023 = scalar_lea.vmem %s0, 436
  %v2024 = vld [vmem:[%s2023] sm:$0x20]
  %vm2025 = vcmask 1045509
  %v2026 = vsel %vm2025, %v2024, %v2022
  %s2027 = scalar_lea.vmem %s0, 467
  %v2028 = vld [vmem:[%s2027] sm:$0x40]
  %vm2029 = vcmask 1046534
  %v2030 = vsel %vm2029, %v2028, %v2026
  %s2031 = scalar_lea.vmem %s0, 498
  %v2032 = vld [vmem:[%s2031] sm:$0x80]
  %vm2033 = vcmask 1047559
  %v2034 = vsel %vm2033, %v2032, %v2030
  %2035 = vrot.lane.b32.xlu0 %v2034, 16
  %v2036 = vpop.permute.xlu0 %2035
  %vm2037 = vcmask 261248
  %s2038 = scalar_lea.vmem %s1, 56
  %2039 = vst.msk [vmem:[%s2038] sm:$0xff] %vm2037, %v2036

// kernel: dc_generator_forward.1
$region0: #{dc_generator_forward.1}
  #allocation0 [shape = 'u32[]', space=smem, size = 0x4, offset = 0x4, fixed_abs, tag = 'smem constant byte address 0x4 - core index']
  #allocation1 [shape = 'u32[144,128]{1,0:T(1,128)}', space=vmem, size = 0x12000, scoped, tag = 'internal scratch']
  #allocation2 [shape = 'f32[80,256]{1,0:T(8,128)}', space=vmem, size = 0x14000, scoped, tag = 'scratch operand']
  #allocation3 [shape = 'f32[80,512]{1,0:T(8,128)}', space=vmem, size = 0x28000, scoped, tag = 'scratch operand']
  #allocation4 [shape = 'f32[80,512]{1,0:T(8,128)}', space=vmem, size = 0x28000, scoped, tag = 'scratch operand']
  #allocation5 [shape = 'f32[80,512]{1,0:T(8,128)}', space=vmem, size = 0x28000, scoped, tag = 'scratch operand']
  %s0 = inlined_call_operand.vmem [shape: bf16[64,512], index: 0, kind: input, shape index: {}]
  %s1 = inlined_call_operand.vmem [shape: bf16[512,256], index: 1, kind: input, shape index: {}]
  %s2 = inlined_call_operand.vmem [shape: bf16[3,256,512], index: 2, kind: input, shape index: {}]
  %s3 = inlined_call_operand.vmem [shape: bf16[3,256,512], index: 3, kind: input, shape index: {}]
  %s4 = inlined_call_operand.vmem [shape: bf16[3,256,128], index: 4, kind: input, shape index: {}]
  %s5 = inlined_call_operand.vmem [shape: f32[256,64], index: 5, kind: input, shape index: {}]
  %s6 = inlined_call_operand.vmem [shape: f32[64,256], index: 6, kind: input, shape index: {}]
  %s7 = inlined_call_operand.vmem [shape: f32[512,32], index: 7, kind: input, shape index: {}]
  %s8 = inlined_call_operand.vmem [shape: f32[32,512], index: 8, kind: input, shape index: {}]
  %s9 = inlined_call_operand.vmem [shape: f32[512,16], index: 9, kind: input, shape index: {}]
  %s10 = inlined_call_operand.vmem [shape: f32[16,512], index: 10, kind: input, shape index: {}]
  %s11 = inlined_call_operand.vmem [shape: f32[6,128], index: 11, kind: input, shape index: {}]
  %s12 = inlined_call_operand.vmem [shape: f32[256,128], index: 12, kind: output, shape index: {}]
  %s13 = sld [smem:[#allocation0]]
  $region58: #{dc_generator_forward.1} parent=0
    _
  %s15 = ssub.s32 1, %s13
  %s16 = scalar_select 0, %s15, %s13
  // Predicated region
  $region2: #{dc_generator_forward.1} parent=0 // pred_check
    _
  $region3: #{dc_generator_forward.1} parent=0 // pred_check_branch
    %18 = sbr.rel (0) target = $region5
  $region4: #{dc_generator_forward.1} parent=0 // pred_region
    _
  $region5: #{dc_generator_forward.1} parent=0 // pred_fallthru
    _
  // Predicated region
  $region6: #{dc_generator_forward.1} parent=0 // pred_check
    _
  $region7: #{dc_generator_forward.1} parent=0 // pred_check_branch
    %20 = sbr.rel (0) target = $region9
  $region8: #{dc_generator_forward.1} parent=0 // pred_region
    _
  $region9: #{dc_generator_forward.1} parent=0 // pred_fallthru
    _
  // Predicated region
  $region10: #{dc_generator_forward.1} parent=0 // pred_check
    _
  $region11: #{dc_generator_forward.1} parent=0 // pred_check_branch
    %22 = sbr.rel (0) target = $region13
  $region12: #{dc_generator_forward.1} parent=0 // pred_region
    _
  $region13: #{dc_generator_forward.1} parent=0 // pred_fallthru
    _
  // Predicated region
  $region14: #{dc_generator_forward.1} parent=0 // pred_check
    _
  $region15: #{dc_generator_forward.1} parent=0 // pred_check_branch
    %24 = sbr.rel (0) target = $region17
  $region16: #{dc_generator_forward.1} parent=0 // pred_region
    _
  $region17: #{dc_generator_forward.1} parent=0 // pred_fallthru
    _
  // Predicated region
  $region18: #{dc_generator_forward.1} parent=0 // pred_check
    _
  $region19: #{dc_generator_forward.1} parent=0 // pred_check_branch
    %26 = sbr.rel (0) target = $region21
  $region20: #{dc_generator_forward.1} parent=0 // pred_region
    _
  $region21: #{dc_generator_forward.1} parent=0 // pred_fallthru
    _
  // Predicated region
  $region22: #{dc_generator_forward.1} parent=0 // pred_check
    _
  $region23: #{dc_generator_forward.1} parent=0 // pred_check_branch
    %28 = sbr.rel (0) target = $region25
  $region24: #{dc_generator_forward.1} parent=0 // pred_region
    _
  $region25: #{dc_generator_forward.1} parent=0 // pred_fallthru
    _
  // Predicated region
  $region26: #{dc_generator_forward.1} parent=0 // pred_check
    _
  $region27: #{dc_generator_forward.1} parent=0 // pred_check_branch
    %30 = sbr.rel (0) target = $region29
  $region28: #{dc_generator_forward.1} parent=0 // pred_region
    _
  $region29: #{dc_generator_forward.1} parent=0 // pred_fallthru
    _
  // Predicated region
  $region30: #{dc_generator_forward.1} parent=0 // pred_check
    _
  $region31: #{dc_generator_forward.1} parent=0 // pred_check_branch
    %32 = sbr.rel (0) target = $region33
  $region32: #{dc_generator_forward.1} parent=0 // pred_region
    _
  $region33: #{dc_generator_forward.1} parent=0 // pred_fallthru
    _
  // Predicated region
  $region34: #{dc_generator_forward.1} parent=0 // pred_check
    _
  $region35: #{dc_generator_forward.1} parent=0 // pred_check_branch
    %34 = sbr.rel (0) target = $region37
  $region36: #{dc_generator_forward.1} parent=0 // pred_region
    _
  $region37: #{dc_generator_forward.1} parent=0 // pred_fallthru
    _
  // Predicated region
  $region38: #{dc_generator_forward.1} parent=0 // pred_check
    _
  $region39: #{dc_generator_forward.1} parent=0 // pred_check_branch
    %36 = sbr.rel (0) target = $region41
  $region40: #{dc_generator_forward.1} parent=0 // pred_region
    _
  $region41: #{dc_generator_forward.1} parent=0 // pred_fallthru
    _
  // Predicated region
  $region42: #{dc_generator_forward.1} parent=0 // pred_check
    _
  $region43: #{dc_generator_forward.1} parent=0 // pred_check_branch
    %38 = sbr.rel (0) target = $region45
  $region44: #{dc_generator_forward.1} parent=0 // pred_region
    _
  $region45: #{dc_generator_forward.1} parent=0 // pred_fallthru
    _
  // Predicated region
  $region46: #{dc_generator_forward.1} parent=0 // pred_check
    _
  $region47: #{dc_generator_forward.1} parent=0 // pred_check_branch
    %40 = sbr.rel (0) target = $region49
  $region48: #{dc_generator_forward.1} parent=0 // pred_region
    _
  $region49: #{dc_generator_forward.1} parent=0 // pred_fallthru
    _
  %42 = vst [vmem:[#allocation2] sm:$0xff] 0.0
  %43 = vst [vmem:[#allocation2 + $0x8] sm:$0xff] 0.0
  %44 = vst [vmem:[#allocation2 + $0x90] sm:$0xff] 0.0
  %45 = vst [vmem:[#allocation2 + $0x98] sm:$0xff] 0.0
  %46 = vst [vmem:[#allocation3] sm:$0xff] 0.0
  %47 = vst [vmem:[#allocation3 + $0x8] sm:$0xff] 0.0
  %48 = vst [vmem:[#allocation3 + $0x10] sm:$0xff] 0.0
  %49 = vst [vmem:[#allocation3 + $0x18] sm:$0xff] 0.0
  %50 = vst [vmem:[#allocation3 + $0x120] sm:$0xff] 0.0
  %51 = vst [vmem:[#allocation3 + $0x128] sm:$0xff] 0.0
  %52 = vst [vmem:[#allocation3 + $0x130] sm:$0xff] 0.0
  %53 = vst [vmem:[#allocation3 + $0x138] sm:$0xff] 0.0
  %54 = vst [vmem:[#allocation4] sm:$0xff] 0.0
  %55 = vst [vmem:[#allocation4 + $0x8] sm:$0xff] 0.0
  %56 = vst [vmem:[#allocation4 + $0x10] sm:$0xff] 0.0
  %57 = vst [vmem:[#allocation4 + $0x18] sm:$0xff] 0.0
  %58 = vst [vmem:[#allocation4 + $0x120] sm:$0xff] 0.0
  %59 = vst [vmem:[#allocation4 + $0x128] sm:$0xff] 0.0
  %60 = vst [vmem:[#allocation4 + $0x130] sm:$0xff] 0.0
  %61 = vst [vmem:[#allocation4 + $0x138] sm:$0xff] 0.0
  %62 = vst [vmem:[#allocation5] sm:$0xff] 0.0
  %63 = vst [vmem:[#allocation5 + $0x8] sm:$0xff] 0.0
  %64 = vst [vmem:[#allocation5 + $0x10] sm:$0xff] 0.0
  %65 = vst [vmem:[#allocation5 + $0x18] sm:$0xff] 0.0
  %66 = vst [vmem:[#allocation5 + $0x120] sm:$0xff] 0.0
  %67 = vst [vmem:[#allocation5 + $0x128] sm:$0xff] 0.0
  %68 = vst [vmem:[#allocation5 + $0x130] sm:$0xff] 0.0
  %69 = vst [vmem:[#allocation5 + $0x138] sm:$0xff] 0.0
  %v70 = vlaneseq
  %v71 = vshrl.u32 %v70, 7
  %v72 = vadd.s32 %v71, 8
  %v73 = vadd.s32 %v71, 16
  %v74 = vadd.s32 %v71, 24
  %v75 = vadd.s32 %v71, 32
  %v76 = vadd.s32 %v71, 40
  %v77 = vadd.s32 %v71, 48
  %v78 = vadd.s32 %v71, 56
  %v79 = vand.u32 %v71, 3
  %v80 = vand.u32 %v72, 3
  %v81 = vand.u32 %v73, 3
  %v82 = vand.u32 %v74, 3
  %v83 = vand.u32 %v75, 3
  %v84 = vand.u32 %v76, 3
  %v85 = vand.u32 %v77, 3
  %v86 = vand.u32 %v78, 3
  %vm87 = vcmp.ne.s32.totalorder %v79, 0
  %vm88 = vcmp.ne.s32.totalorder %v80, 0
  %vm89 = vcmp.ne.s32.totalorder %v81, 0
  %vm90 = vcmp.ne.s32.totalorder %v82, 0
  %vm91 = vcmp.ne.s32.totalorder %v83, 0
  %vm92 = vcmp.ne.s32.totalorder %v84, 0
  %vm93 = vcmp.ne.s32.totalorder %v85, 0
  %vm94 = vcmp.ne.s32.totalorder %v86, 0
  %vm95 = vcmp.ne.s32.totalorder %v79, 3
  %vm96 = vcmp.ne.s32.totalorder %v80, 3
  %vm97 = vcmp.ne.s32.totalorder %v81, 3
  %vm98 = vcmp.ne.s32.totalorder %v82, 3
  %vm99 = vcmp.ne.s32.totalorder %v83, 3
  %vm100 = vcmp.ne.s32.totalorder %v84, 3
  %vm101 = vcmp.ne.s32.totalorder %v85, 3
  %vm102 = vcmp.ne.s32.totalorder %v86, 3
  %v103 = vld [vmem:[%s0] sm:$0xff]
  %v104 = vld [vmem:[%s0 + $0x8] sm:$0xff]
  %v105 = vld [vmem:[%s0 + $0x10] sm:$0xff]
  %v106 = vld [vmem:[%s0 + $0x18] sm:$0xff]
  %v107 = vld [vmem:[%s0 + $0x20] sm:$0xff]
  %v108 = vld [vmem:[%s0 + $0x28] sm:$0xff]
  %v109 = vld [vmem:[%s0 + $0x30] sm:$0xff]
  %v110 = vld [vmem:[%s0 + $0x38] sm:$0xff]
  %v111 = vld [vmem:[%s0 + $0x40] sm:$0xff]
  %v112 = vld [vmem:[%s0 + $0x48] sm:$0xff]
  %v113 = vld [vmem:[%s0 + $0x50] sm:$0xff]
  %v114 = vld [vmem:[%s0 + $0x58] sm:$0xff]
  %v115 = vld [vmem:[%s0 + $0x60] sm:$0xff]
  %v116 = vld [vmem:[%s0 + $0x68] sm:$0xff]
  %v117 = vld [vmem:[%s0 + $0x70] sm:$0xff]
  %v118 = vld [vmem:[%s0 + $0x78] sm:$0xff]
  %v119 = vld [vmem:[%s1] sm:$0xff]
  %v120 = vld [vmem:[%s1 + $0x8] sm:$0xff]
  %v121 = vld [vmem:[%s1 + $0x10] sm:$0xff]
  %v122 = vld [vmem:[%s1 + $0x18] sm:$0xff]
  %v123 = vld [vmem:[%s1 + $0x20] sm:$0xff]
  %v124 = vld [vmem:[%s1 + $0x28] sm:$0xff]
  %v125 = vld [vmem:[%s1 + $0x30] sm:$0xff]
  %v126 = vld [vmem:[%s1 + $0x38] sm:$0xff]
  %v127 = vld [vmem:[%s1 + $0x40] sm:$0xff]
  %v128 = vld [vmem:[%s1 + $0x48] sm:$0xff]
  %v129 = vld [vmem:[%s1 + $0x50] sm:$0xff]
  %v130 = vld [vmem:[%s1 + $0x58] sm:$0xff]
  %v131 = vld [vmem:[%s1 + $0x60] sm:$0xff]
  %v132 = vld [vmem:[%s1 + $0x68] sm:$0xff]
  %v133 = vld [vmem:[%s1 + $0x70] sm:$0xff]
  %v134 = vld [vmem:[%s1 + $0x78] sm:$0xff]
  %v135 = vld [vmem:[%s1 + $0x80] sm:$0xff]
  %v136 = vld [vmem:[%s1 + $0x88] sm:$0xff]
  %v137 = vld [vmem:[%s1 + $0x90] sm:$0xff]
  %v138 = vld [vmem:[%s1 + $0x98] sm:$0xff]
  %v139 = vld [vmem:[%s1 + $0xa0] sm:$0xff]
  %v140 = vld [vmem:[%s1 + $0xa8] sm:$0xff]
  %v141 = vld [vmem:[%s1 + $0xb0] sm:$0xff]
  %v142 = vld [vmem:[%s1 + $0xb8] sm:$0xff]
  %v143 = vld [vmem:[%s1 + $0xc0] sm:$0xff]
  %v144 = vld [vmem:[%s1 + $0xc8] sm:$0xff]
  %v145 = vld [vmem:[%s1 + $0xd0] sm:$0xff]
  %v146 = vld [vmem:[%s1 + $0xd8] sm:$0xff]
  %v147 = vld [vmem:[%s1 + $0xe0] sm:$0xff]
  %v148 = vld [vmem:[%s1 + $0xe8] sm:$0xff]
  %v149 = vld [vmem:[%s1 + $0xf0] sm:$0xff]
  %v150 = vld [vmem:[%s1 + $0xf8] sm:$0xff]
  %v151 = vld [vmem:[%s1 + $0x100] sm:$0xff]
  %v152 = vld [vmem:[%s1 + $0x108] sm:$0xff]
  %v153 = vld [vmem:[%s1 + $0x110] sm:$0xff]
  %v154 = vld [vmem:[%s1 + $0x118] sm:$0xff]
  %v155 = vld [vmem:[%s1 + $0x120] sm:$0xff]
  %v156 = vld [vmem:[%s1 + $0x128] sm:$0xff]
  %v157 = vld [vmem:[%s1 + $0x130] sm:$0xff]
  %v158 = vld [vmem:[%s1 + $0x138] sm:$0xff]
  %v159 = vld [vmem:[%s1 + $0x140] sm:$0xff]
  %v160 = vld [vmem:[%s1 + $0x148] sm:$0xff]
  %v161 = vld [vmem:[%s1 + $0x150] sm:$0xff]
  %v162 = vld [vmem:[%s1 + $0x158] sm:$0xff]
  %v163 = vld [vmem:[%s1 + $0x160] sm:$0xff]
  %v164 = vld [vmem:[%s1 + $0x168] sm:$0xff]
  %v165 = vld [vmem:[%s1 + $0x170] sm:$0xff]
  %v166 = vld [vmem:[%s1 + $0x178] sm:$0xff]
  %v167 = vld [vmem:[%s1 + $0x180] sm:$0xff]
  %v168 = vld [vmem:[%s1 + $0x188] sm:$0xff]
  %v169 = vld [vmem:[%s1 + $0x190] sm:$0xff]
  %v170 = vld [vmem:[%s1 + $0x198] sm:$0xff]
  %v171 = vld [vmem:[%s1 + $0x1a0] sm:$0xff]
  %v172 = vld [vmem:[%s1 + $0x1a8] sm:$0xff]
  %v173 = vld [vmem:[%s1 + $0x1b0] sm:$0xff]
  %v174 = vld [vmem:[%s1 + $0x1b8] sm:$0xff]
  %v175 = vld [vmem:[%s1 + $0x1c0] sm:$0xff]
  %v176 = vld [vmem:[%s1 + $0x1c8] sm:$0xff]
  %v177 = vld [vmem:[%s1 + $0x1d0] sm:$0xff]
  %v178 = vld [vmem:[%s1 + $0x1d8] sm:$0xff]
  %v179 = vld [vmem:[%s1 + $0x1e0] sm:$0xff]
  %v180 = vld [vmem:[%s1 + $0x1e8] sm:$0xff]
  %v181 = vld [vmem:[%s1 + $0x1f0] sm:$0xff]
  %v182 = vld [vmem:[%s1 + $0x1f8] sm:$0xff]
  %v199 = vunpack.c.l.b16 %v103
  %v200 = vunpack.c.h.b16 %v103
  %v201 = vunpack.c.l.b16 %v104
  %v202 = vunpack.c.h.b16 %v104
  %v203 = vunpack.c.l.b16 %v105
  %v204 = vunpack.c.h.b16 %v105
  %v205 = vunpack.c.l.b16 %v106
  %v206 = vunpack.c.h.b16 %v106
  %v207 = vunpack.c.l.b16 %v107
  %v208 = vunpack.c.h.b16 %v107
  %v209 = vunpack.c.l.b16 %v108
  %v210 = vunpack.c.h.b16 %v108
  %v211 = vunpack.c.l.b16 %v109
  %v212 = vunpack.c.h.b16 %v109
  %v213 = vunpack.c.l.b16 %v110
  %v214 = vunpack.c.h.b16 %v110
  %v215 = vunpack.c.l.b16 %v111
  %v216 = vunpack.c.h.b16 %v111
  %v217 = vunpack.c.l.b16 %v112
  %v218 = vunpack.c.h.b16 %v112
  %v219 = vunpack.c.l.b16 %v113
  %v220 = vunpack.c.h.b16 %v113
  %v221 = vunpack.c.l.b16 %v114
  %v222 = vunpack.c.h.b16 %v114
  %v223 = vunpack.c.l.b16 %v115
  %v224 = vunpack.c.h.b16 %v115
  %v225 = vunpack.c.l.b16 %v116
  %v226 = vunpack.c.h.b16 %v116
  %v227 = vunpack.c.l.b16 %v117
  %v228 = vunpack.c.h.b16 %v117
  %v229 = vunpack.c.l.b16 %v118
  %v230 = vunpack.c.h.b16 %v118
  %v231 = vpack.c.b16 %v203, %v199
  %v232 = vpack.c.b16 %v204, %v200
  %v233 = vpack.c.b16 %v205, %v201
  %v234 = vpack.c.b16 %v206, %v202
  %v235 = vpack.c.b16 %v211, %v207
  %v236 = vpack.c.b16 %v212, %v208
  %v237 = vpack.c.b16 %v213, %v209
  %v238 = vpack.c.b16 %v214, %v210
  %v239 = vpack.c.b16 %v219, %v215
  %v240 = vpack.c.b16 %v220, %v216
  %v241 = vpack.c.b16 %v221, %v217
  %v242 = vpack.c.b16 %v222, %v218
  %v243 = vpack.c.b16 %v227, %v223
  %v244 = vpack.c.b16 %v228, %v224
  %v245 = vpack.c.b16 %v229, %v225
  %v246 = vpack.c.b16 %v230, %v226
  %v327 = vunpack.c.l.b16 %v119
  %v328 = vunpack.c.h.b16 %v119
  %v329 = vunpack.c.l.b16 %v120
  %v330 = vunpack.c.h.b16 %v120
  %v331 = vunpack.c.l.b16 %v121
  %v332 = vunpack.c.h.b16 %v121
  %v333 = vunpack.c.l.b16 %v122
  %v334 = vunpack.c.h.b16 %v122
  %v335 = vunpack.c.l.b16 %v123
  %v336 = vunpack.c.h.b16 %v123
  %v337 = vunpack.c.l.b16 %v124
  %v338 = vunpack.c.h.b16 %v124
  %v339 = vunpack.c.l.b16 %v125
  %v340 = vunpack.c.h.b16 %v125
  %v341 = vunpack.c.l.b16 %v126
  %v342 = vunpack.c.h.b16 %v126
  %v343 = vunpack.c.l.b16 %v127
  %v344 = vunpack.c.h.b16 %v127
  %v345 = vunpack.c.l.b16 %v128
  %v346 = vunpack.c.h.b16 %v128
  %v347 = vunpack.c.l.b16 %v129
  %v348 = vunpack.c.h.b16 %v129
  %v349 = vunpack.c.l.b16 %v130
  %v350 = vunpack.c.h.b16 %v130
  %v351 = vunpack.c.l.b16 %v131
  %v352 = vunpack.c.h.b16 %v131
  %v353 = vunpack.c.l.b16 %v132
  %v354 = vunpack.c.h.b16 %v132
  %v355 = vunpack.c.l.b16 %v133
  %v356 = vunpack.c.h.b16 %v133
  %v357 = vunpack.c.l.b16 %v134
  %v358 = vunpack.c.h.b16 %v134
  %v359 = vunpack.c.l.b16 %v135
  %v360 = vunpack.c.h.b16 %v135
  %v361 = vunpack.c.l.b16 %v136
  %v362 = vunpack.c.h.b16 %v136
  %v363 = vunpack.c.l.b16 %v137
  %v364 = vunpack.c.h.b16 %v137
  %v365 = vunpack.c.l.b16 %v138
  %v366 = vunpack.c.h.b16 %v138
  %v367 = vunpack.c.l.b16 %v139
  %v368 = vunpack.c.h.b16 %v139
  %v369 = vunpack.c.l.b16 %v140
  %v370 = vunpack.c.h.b16 %v140
  %v371 = vunpack.c.l.b16 %v141
  %v372 = vunpack.c.h.b16 %v141
  %v373 = vunpack.c.l.b16 %v142
  %v374 = vunpack.c.h.b16 %v142
  %v375 = vunpack.c.l.b16 %v143
  %v376 = vunpack.c.h.b16 %v143
  %v377 = vunpack.c.l.b16 %v144
  %v378 = vunpack.c.h.b16 %v144
  %v379 = vunpack.c.l.b16 %v145
  %v380 = vunpack.c.h.b16 %v145
  %v381 = vunpack.c.l.b16 %v146
  %v382 = vunpack.c.h.b16 %v146
  %v383 = vunpack.c.l.b16 %v147
  %v384 = vunpack.c.h.b16 %v147
  %v385 = vunpack.c.l.b16 %v148
  %v386 = vunpack.c.h.b16 %v148
  %v387 = vunpack.c.l.b16 %v149
  %v388 = vunpack.c.h.b16 %v149
  %v389 = vunpack.c.l.b16 %v150
  %v390 = vunpack.c.h.b16 %v150
  %v391 = vunpack.c.l.b16 %v151
  %v392 = vunpack.c.h.b16 %v151
  %v393 = vunpack.c.l.b16 %v152
  %v394 = vunpack.c.h.b16 %v152
  %v395 = vunpack.c.l.b16 %v153
  %v396 = vunpack.c.h.b16 %v153
  %v397 = vunpack.c.l.b16 %v154
  %v398 = vunpack.c.h.b16 %v154
  %v399 = vunpack.c.l.b16 %v155
  %v400 = vunpack.c.h.b16 %v155
  %v401 = vunpack.c.l.b16 %v156
  %v402 = vunpack.c.h.b16 %v156
  %v403 = vunpack.c.l.b16 %v157
  %v404 = vunpack.c.h.b16 %v157
  %v405 = vunpack.c.l.b16 %v158
  %v406 = vunpack.c.h.b16 %v158
  %v407 = vunpack.c.l.b16 %v159
  %v408 = vunpack.c.h.b16 %v159
  %v409 = vunpack.c.l.b16 %v160
  %v410 = vunpack.c.h.b16 %v160
  %v411 = vunpack.c.l.b16 %v161
  %v412 = vunpack.c.h.b16 %v161
  %v413 = vunpack.c.l.b16 %v162
  %v414 = vunpack.c.h.b16 %v162
  %v415 = vunpack.c.l.b16 %v163
  %v416 = vunpack.c.h.b16 %v163
  %v417 = vunpack.c.l.b16 %v164
  %v418 = vunpack.c.h.b16 %v164
  %v419 = vunpack.c.l.b16 %v165
  %v420 = vunpack.c.h.b16 %v165
  %v421 = vunpack.c.l.b16 %v166
  %v422 = vunpack.c.h.b16 %v166
  %v423 = vunpack.c.l.b16 %v167
  %v424 = vunpack.c.h.b16 %v167
  %v425 = vunpack.c.l.b16 %v168
  %v426 = vunpack.c.h.b16 %v168
  %v427 = vunpack.c.l.b16 %v169
  %v428 = vunpack.c.h.b16 %v169
  %v429 = vunpack.c.l.b16 %v170
  %v430 = vunpack.c.h.b16 %v170
  %v431 = vunpack.c.l.b16 %v171
  %v432 = vunpack.c.h.b16 %v171
  %v433 = vunpack.c.l.b16 %v172
  %v434 = vunpack.c.h.b16 %v172
  %v435 = vunpack.c.l.b16 %v173
  %v436 = vunpack.c.h.b16 %v173
  %v437 = vunpack.c.l.b16 %v174
  %v438 = vunpack.c.h.b16 %v174
  %v439 = vunpack.c.l.b16 %v175
  %v440 = vunpack.c.h.b16 %v175
  %v441 = vunpack.c.l.b16 %v176
  %v442 = vunpack.c.h.b16 %v176
  %v443 = vunpack.c.l.b16 %v177
  %v444 = vunpack.c.h.b16 %v177
  %v445 = vunpack.c.l.b16 %v178
  %v446 = vunpack.c.h.b16 %v178
  %v447 = vunpack.c.l.b16 %v179
  %v448 = vunpack.c.h.b16 %v179
  %v449 = vunpack.c.l.b16 %v180
  %v450 = vunpack.c.h.b16 %v180
  %v451 = vunpack.c.l.b16 %v181
  %v452 = vunpack.c.h.b16 %v181
  %v453 = vunpack.c.l.b16 %v182
  %v454 = vunpack.c.h.b16 %v182
  %v455 = vpack.c.b16 %v329, %v327
  %v456 = vpack.c.b16 %v330, %v328
  %v457 = vpack.c.b16 %v333, %v331
  %v458 = vpack.c.b16 %v334, %v332
  %v459 = vpack.c.b16 %v337, %v335
  %v460 = vpack.c.b16 %v338, %v336
  %v461 = vpack.c.b16 %v341, %v339
  %v462 = vpack.c.b16 %v342, %v340
  %v463 = vpack.c.b16 %v345, %v343
  %v464 = vpack.c.b16 %v346, %v344
  %v465 = vpack.c.b16 %v349, %v347
  %v466 = vpack.c.b16 %v350, %v348
  %v467 = vpack.c.b16 %v353, %v351
  %v468 = vpack.c.b16 %v354, %v352
  %v469 = vpack.c.b16 %v357, %v355
  %v470 = vpack.c.b16 %v358, %v356
  %v471 = vpack.c.b16 %v361, %v359
  %v472 = vpack.c.b16 %v362, %v360
  %v473 = vpack.c.b16 %v365, %v363
  %v474 = vpack.c.b16 %v366, %v364
  %v475 = vpack.c.b16 %v369, %v367
  %v476 = vpack.c.b16 %v370, %v368
  %v477 = vpack.c.b16 %v373, %v371
  %v478 = vpack.c.b16 %v374, %v372
  %v479 = vpack.c.b16 %v377, %v375
  %v480 = vpack.c.b16 %v378, %v376
  %v481 = vpack.c.b16 %v381, %v379
  %v482 = vpack.c.b16 %v382, %v380
  %v483 = vpack.c.b16 %v385, %v383
  %v484 = vpack.c.b16 %v386, %v384
  %v485 = vpack.c.b16 %v389, %v387
  %v486 = vpack.c.b16 %v390, %v388
  %v487 = vpack.c.b16 %v393, %v391
  %v488 = vpack.c.b16 %v394, %v392
  %v489 = vpack.c.b16 %v397, %v395
  %v490 = vpack.c.b16 %v398, %v396
  %v491 = vpack.c.b16 %v401, %v399
  %v492 = vpack.c.b16 %v402, %v400
  %v493 = vpack.c.b16 %v405, %v403
  %v494 = vpack.c.b16 %v406, %v404
  %v495 = vpack.c.b16 %v409, %v407
  %v496 = vpack.c.b16 %v410, %v408
  %v497 = vpack.c.b16 %v413, %v411
  %v498 = vpack.c.b16 %v414, %v412
  %v499 = vpack.c.b16 %v417, %v415
  %v500 = vpack.c.b16 %v418, %v416
  %v501 = vpack.c.b16 %v421, %v419
  %v502 = vpack.c.b16 %v422, %v420
  %v503 = vpack.c.b16 %v425, %v423
  %v504 = vpack.c.b16 %v426, %v424
  %v505 = vpack.c.b16 %v429, %v427
  %v506 = vpack.c.b16 %v430, %v428
  %v507 = vpack.c.b16 %v433, %v431
  %v508 = vpack.c.b16 %v434, %v432
  %v509 = vpack.c.b16 %v437, %v435
  %v510 = vpack.c.b16 %v438, %v436
  %v511 = vpack.c.b16 %v441, %v439
  %v512 = vpack.c.b16 %v442, %v440
  %v513 = vpack.c.b16 %v445, %v443
  %v514 = vpack.c.b16 %v446, %v444
  %v515 = vpack.c.b16 %v449, %v447
  %v516 = vpack.c.b16 %v450, %v448
  %v517 = vpack.c.b16 %v453, %v451
  %v518 = vpack.c.b16 %v454, %v452
  %583 = vmatprep.subr.bf16.mxu0 %v456
  %584 = vmatpush1.bf16.msra.mxu0 %v455
  %585 = vmatprep.subr.bf16.mxu0 %v458
  %586 = vmatpush1.bf16.msra.mxu0 %v457
  %587 = vmatprep.subr.bf16.mxu0 %v460
  %588 = vmatpush1.bf16.msra.mxu0 %v459
  %589 = vmatprep.subr.bf16.mxu0 %v462
  %590 = vmatpush1.bf16.msra.mxu0 %v461
  %591 = vmatprep.subr.bf16.mxu0 %v464
  %592 = vmatpush1.bf16.msra.mxu0 %v463
  %593 = vmatprep.subr.bf16.mxu0 %v466
  %594 = vmatpush1.bf16.msra.mxu0 %v465
  %595 = vmatprep.subr.bf16.mxu0 %v468
  %596 = vmatpush1.bf16.msra.mxu0 %v467
  %597 = vmatprep.subr.bf16.mxu0 %v470
  %598 = vmatpush1.bf16.msra.mxu0 %v469
  %599 = vmatprep.subr.bf16.mxu0 %v472
  %600 = vmatpush1.bf16.msra.mxu0 %v471
  %601 = vmatprep.subr.bf16.mxu0 %v474
  %602 = vmatpush1.bf16.msra.mxu0 %v473
  %603 = vmatprep.subr.bf16.mxu0 %v476
  %604 = vmatpush1.bf16.msra.mxu0 %v475
  %605 = vmatprep.subr.bf16.mxu0 %v478
  %606 = vmatpush1.bf16.msra.mxu0 %v477
  %607 = vmatprep.subr.bf16.mxu0 %v480
  %608 = vmatpush1.bf16.msra.mxu0 %v479
  %609 = vmatprep.subr.bf16.mxu0 %v482
  %610 = vmatpush1.bf16.msra.mxu0 %v481
  %611 = vmatprep.subr.bf16.mxu0 %v484
  %612 = vmatpush1.bf16.msra.mxu0 %v483
  %613 = vmatprep.subr.bf16.mxu0 %v486
  %614 = vmatpush1.bf16.msra.mxu0 %v485
  %615 = vmatprep.mubr.bf16.mxu0 %v232
  %616 = vmatmul.mubr.bf16.gmra.mrb[0].mxu0 %v231
  %v617 = vpop.f32.mrb[0].mxu0
  %v618 = vadd.f32 0.0, %v617
  %v619 = vpop.f32.mrb[0].mxu0
  %v620 = vadd.f32 0.0, %v619
  %v621 = vpop.f32.mrb[0].mxu0
  %v622 = vadd.f32 0.0, %v621
  %v623 = vpop.f32.mrb[0].mxu0
  %v624 = vadd.f32 0.0, %v623
  %625 = vmatprep.mubr.bf16.mxu0 %v236
  %626 = vmatmul.mubr.bf16.gmra.mrb[0].mxu0 %v235
  %v627 = vpop.f32.mrb[0].mxu0
  %v628 = vadd.f32 0.0, %v627
  %v629 = vpop.f32.mrb[0].mxu0
  %v630 = vadd.f32 0.0, %v629
  %v631 = vpop.f32.mrb[0].mxu0
  %v632 = vadd.f32 0.0, %v631
  %v633 = vpop.f32.mrb[0].mxu0
  %v634 = vadd.f32 0.0, %v633
  %635 = vmatprep.mubr.bf16.mxu0 %v240
  %636 = vmatmul.mubr.bf16.gmra.mrb[0].mxu0 %v239
  %v637 = vpop.f32.mrb[0].mxu0
  %v638 = vadd.f32 0.0, %v637
  %v639 = vpop.f32.mrb[0].mxu0
  %v640 = vadd.f32 0.0, %v639
  %v641 = vpop.f32.mrb[0].mxu0
  %v642 = vadd.f32 0.0, %v641
  %v643 = vpop.f32.mrb[0].mxu0
  %v644 = vadd.f32 0.0, %v643
  %645 = vmatprep.mubr.bf16.mxu0 %v244
  %646 = vmatmul.mubr.bf16.gmra.mrb[0].mxu0 %v243
  %v647 = vpop.f32.mrb[0].mxu0
  %v648 = vadd.f32 0.0, %v647
  %v649 = vpop.f32.mrb[0].mxu0
  %v650 = vadd.f32 0.0, %v649
  %v651 = vpop.f32.mrb[0].mxu0
  %v652 = vadd.f32 0.0, %v651
  %v653 = vpop.f32.mrb[0].mxu0
  %v654 = vadd.f32 0.0, %v653
  %655 = vdwg.mxu0
  %656 = vmatprep.subr.bf16.mxu0 %v488
  %657 = vmatpush1.bf16.msra.mxu0 %v487
  %658 = vmatprep.subr.bf16.mxu0 %v490
  %659 = vmatpush1.bf16.msra.mxu0 %v489
  %660 = vmatprep.subr.bf16.mxu0 %v492
  %661 = vmatpush1.bf16.msra.mxu0 %v491
  %662 = vmatprep.subr.bf16.mxu0 %v494
  %663 = vmatpush1.bf16.msra.mxu0 %v493
  %664 = vmatprep.subr.bf16.mxu0 %v496
  %665 = vmatpush1.bf16.msra.mxu0 %v495
  %666 = vmatprep.subr.bf16.mxu0 %v498
  %667 = vmatpush1.bf16.msra.mxu0 %v497
  %668 = vmatprep.subr.bf16.mxu0 %v500
  %669 = vmatpush1.bf16.msra.mxu0 %v499
  %670 = vmatprep.subr.bf16.mxu0 %v502
  %671 = vmatpush1.bf16.msra.mxu0 %v501
  %672 = vmatprep.subr.bf16.mxu0 %v504
  %673 = vmatpush1.bf16.msra.mxu0 %v503
  %674 = vmatprep.subr.bf16.mxu0 %v506
  %675 = vmatpush1.bf16.msra.mxu0 %v505
  %676 = vmatprep.subr.bf16.mxu0 %v508
  %677 = vmatpush1.bf16.msra.mxu0 %v507
  %678 = vmatprep.subr.bf16.mxu0 %v510
  %679 = vmatpush1.bf16.msra.mxu0 %v509
  %680 = vmatprep.subr.bf16.mxu0 %v512
  %681 = vmatpush1.bf16.msra.mxu0 %v511
  %682 = vmatprep.subr.bf16.mxu0 %v514
  %683 = vmatpush1.bf16.msra.mxu0 %v513
  %684 = vmatprep.subr.bf16.mxu0 %v516
  %685 = vmatpush1.bf16.msra.mxu0 %v515
  %686 = vmatprep.subr.bf16.mxu0 %v518
  %687 = vmatpush1.bf16.msra.mxu0 %v517
  %688 = vmatprep.mubr.bf16.mxu0 %v234
  %689 = vmatmul.mubr.bf16.gmra.mrb[0].mxu0 %v233
  %v690 = vpop.f32.mrb[0].mxu0
  %v691 = vadd.f32 %v618, %v690
  %v692 = vpop.f32.mrb[0].mxu0
  %v693 = vadd.f32 %v620, %v692
  %v694 = vpop.f32.mrb[0].mxu0
  %v695 = vadd.f32 %v622, %v694
  %v696 = vpop.f32.mrb[0].mxu0
  %v697 = vadd.f32 %v624, %v696
  %698 = vmatprep.mubr.bf16.mxu0 %v238
  %699 = vmatmul.mubr.bf16.gmra.mrb[0].mxu0 %v237
  %v700 = vpop.f32.mrb[0].mxu0
  %v701 = vadd.f32 %v628, %v700
  %v702 = vpop.f32.mrb[0].mxu0
  %v703 = vadd.f32 %v630, %v702
  %v704 = vpop.f32.mrb[0].mxu0
  %v705 = vadd.f32 %v632, %v704
  %v706 = vpop.f32.mrb[0].mxu0
  %v707 = vadd.f32 %v634, %v706
  %708 = vmatprep.mubr.bf16.mxu0 %v242
  %709 = vmatmul.mubr.bf16.gmra.mrb[0].mxu0 %v241
  %v710 = vpop.f32.mrb[0].mxu0
  %v711 = vadd.f32 %v638, %v710
  %v712 = vpop.f32.mrb[0].mxu0
  %v713 = vadd.f32 %v640, %v712
  %v714 = vpop.f32.mrb[0].mxu0
  %v715 = vadd.f32 %v642, %v714
  %v716 = vpop.f32.mrb[0].mxu0
  %v717 = vadd.f32 %v644, %v716
  %718 = vmatprep.mubr.bf16.mxu0 %v246
  %719 = vmatmul.mubr.bf16.gmra.mrb[0].mxu0 %v245
  %v720 = vpop.f32.mrb[0].mxu0
  %v721 = vadd.f32 %v648, %v720
  %v722 = vpop.f32.mrb[0].mxu0
  %v723 = vadd.f32 %v650, %v722
  %v724 = vpop.f32.mrb[0].mxu0
  %v725 = vadd.f32 %v652, %v724
  %v726 = vpop.f32.mrb[0].mxu0
  %v727 = vadd.f32 %v654, %v726
  %728 = vdwg.mxu0
  %v729 = vld [vmem:[%s11] sm:$0x1]
  %v730 = vld [vmem:[%s11 + $0x1] sm:$0x1]
  %v731 = vld [vmem:[%s5] sm:$0xff]
  %v732 = vld [vmem:[%s5 + $0x8] sm:$0xff]
  %v733 = vld [vmem:[%s5 + $0x10] sm:$0xff]
  %v734 = vld [vmem:[%s5 + $0x18] sm:$0xff]
  %v735 = vld [vmem:[%s5 + $0x20] sm:$0xff]
  %v736 = vld [vmem:[%s5 + $0x28] sm:$0xff]
  %v737 = vld [vmem:[%s5 + $0x30] sm:$0xff]
  %v738 = vld [vmem:[%s5 + $0x38] sm:$0xff]
  %v739 = vld [vmem:[%s5 + $0x40] sm:$0xff]
  %v740 = vld [vmem:[%s5 + $0x48] sm:$0xff]
  %v741 = vld [vmem:[%s5 + $0x50] sm:$0xff]
  %v742 = vld [vmem:[%s5 + $0x58] sm:$0xff]
  %v743 = vld [vmem:[%s5 + $0x60] sm:$0xff]
  %v744 = vld [vmem:[%s5 + $0x68] sm:$0xff]
  %v745 = vld [vmem:[%s5 + $0x70] sm:$0xff]
  %v746 = vld [vmem:[%s5 + $0x78] sm:$0xff]
  %v747 = vld [vmem:[%s5 + $0x80] sm:$0xff]
  %v748 = vld [vmem:[%s5 + $0x88] sm:$0xff]
  %v749 = vld [vmem:[%s5 + $0x90] sm:$0xff]
  %v750 = vld [vmem:[%s5 + $0x98] sm:$0xff]
  %v751 = vld [vmem:[%s5 + $0xa0] sm:$0xff]
  %v752 = vld [vmem:[%s5 + $0xa8] sm:$0xff]
  %v753 = vld [vmem:[%s5 + $0xb0] sm:$0xff]
  %v754 = vld [vmem:[%s5 + $0xb8] sm:$0xff]
  %v755 = vld [vmem:[%s5 + $0xc0] sm:$0xff]
  %v756 = vld [vmem:[%s5 + $0xc8] sm:$0xff]
  %v757 = vld [vmem:[%s5 + $0xd0] sm:$0xff]
  %v758 = vld [vmem:[%s5 + $0xd8] sm:$0xff]
  %v759 = vld [vmem:[%s5 + $0xe0] sm:$0xff]
  %v760 = vld [vmem:[%s5 + $0xe8] sm:$0xff]
  %v761 = vld [vmem:[%s5 + $0xf0] sm:$0xff]
  %v762 = vld [vmem:[%s5 + $0xf8] sm:$0xff]
  %v763 = vld [vmem:[%s6] sm:$0xff]
  %v764 = vld [vmem:[%s6 + $0x8] sm:$0xff]
  %v765 = vld [vmem:[%s6 + $0x10] sm:$0xff]
  %v766 = vld [vmem:[%s6 + $0x18] sm:$0xff]
  %v767 = vld [vmem:[%s6 + $0x20] sm:$0xff]
  %v768 = vld [vmem:[%s6 + $0x28] sm:$0xff]
  %v769 = vld [vmem:[%s6 + $0x30] sm:$0xff]
  %v770 = vld [vmem:[%s6 + $0x38] sm:$0xff]
  %v771 = vld [vmem:[%s6 + $0x40] sm:$0xff]
  %v772 = vld [vmem:[%s6 + $0x48] sm:$0xff]
  %v773 = vld [vmem:[%s6 + $0x50] sm:$0xff]
  %v774 = vld [vmem:[%s6 + $0x58] sm:$0xff]
  %v775 = vld [vmem:[%s6 + $0x60] sm:$0xff]
  %v776 = vld [vmem:[%s6 + $0x68] sm:$0xff]
  %v777 = vld [vmem:[%s6 + $0x70] sm:$0xff]
  %v778 = vld [vmem:[%s6 + $0x78] sm:$0xff]
  %v779 = vadd.f32 %v691, %v695
  %v780 = vadd.f32 %v779, %v701
  %v781 = vadd.f32 %v780, %v705
  %v782 = vadd.f32 %v781, %v711
  %v783 = vadd.f32 %v782, %v715
  %v784 = vadd.f32 %v783, %v721
  %v785 = vadd.f32 %v784, %v725
  %v786 = vrot.slane %v785, 4
  %v787 = vadd.f32 %v785, %v786
  %v788 = vrot.slane %v787, 2
  %v789 = vadd.f32 %v787, %v788
  %v790 = vrot.slane %v789, 1
  %v791 = vadd.f32 %v789, %v790
  %v792 = vadd.f32 %v693, %v697
  %v793 = vadd.f32 %v792, %v703
  %v794 = vadd.f32 %v793, %v707
  %v795 = vadd.f32 %v794, %v713
  %v796 = vadd.f32 %v795, %v717
  %v797 = vadd.f32 %v796, %v723
  %v798 = vadd.f32 %v797, %v727
  %v799 = vrot.slane %v798, 4
  %v800 = vadd.f32 %v798, %v799
  %v801 = vrot.slane %v800, 2
  %v802 = vadd.f32 %v800, %v801
  %v803 = vrot.slane %v802, 1
  %v804 = vadd.f32 %v802, %v803
  %v805 = vmul.f32 %v691, %v691
  %v806 = vmul.f32 %v693, %v693
  %v807 = vmul.f32 %v695, %v695
  %v808 = vmul.f32 %v697, %v697
  %v809 = vmul.f32 %v701, %v701
  %v810 = vmul.f32 %v703, %v703
  %v811 = vmul.f32 %v705, %v705
  %v812 = vmul.f32 %v707, %v707
  %v813 = vmul.f32 %v711, %v711
  %v814 = vmul.f32 %v713, %v713
  %v815 = vmul.f32 %v715, %v715
  %v816 = vmul.f32 %v717, %v717
  %v817 = vmul.f32 %v721, %v721
  %v818 = vmul.f32 %v723, %v723
  %v819 = vmul.f32 %v725, %v725
  %v820 = vmul.f32 %v727, %v727
  %v821 = vadd.f32 %v805, %v807
  %v822 = vadd.f32 %v821, %v809
  %v823 = vadd.f32 %v822, %v811
  %v824 = vadd.f32 %v823, %v813
  %v825 = vadd.f32 %v824, %v815
  %v826 = vadd.f32 %v825, %v817
  %v827 = vadd.f32 %v826, %v819
  %v828 = vrot.slane %v827, 4
  %v829 = vadd.f32 %v827, %v828
  %v830 = vrot.slane %v829, 2
  %v831 = vadd.f32 %v829, %v830
  %v832 = vrot.slane %v831, 1
  %v833 = vadd.f32 %v831, %v832
  %v834 = vadd.f32 %v806, %v808
  %v835 = vadd.f32 %v834, %v810
  %v836 = vadd.f32 %v835, %v812
  %v837 = vadd.f32 %v836, %v814
  %v838 = vadd.f32 %v837, %v816
  %v839 = vadd.f32 %v838, %v818
  %v840 = vadd.f32 %v839, %v820
  %v841 = vrot.slane %v840, 4
  %v842 = vadd.f32 %v840, %v841
  %v843 = vrot.slane %v842, 2
  %v844 = vadd.f32 %v842, %v843
  %v845 = vrot.slane %v844, 1
  %v846 = vadd.f32 %v844, %v845
  %vm847 = vcmask 1040384
  %v848 = vsel %vm847, %v791, %v833
  %v849 = vsel %vm847, %v804, %v846
  %850 = vmatprep.subr.mxu0 0.0
  %851 = vmatpush1.msra.mxu0 %v731
  %852 = vmatprep.subr.mxu0 0.0
  %853 = vmatpush1.msra.mxu0 %v732
  %854 = vmatprep.subr.mxu0 0.0
  %855 = vmatpush1.msra.mxu0 %v733
  %856 = vmatprep.subr.mxu0 0.0
  %857 = vmatpush1.msra.mxu0 %v734
  %858 = vmatprep.subr.mxu0 0.0
  %859 = vmatpush1.msra.mxu0 %v735
  %860 = vmatprep.subr.mxu0 0.0
  %861 = vmatpush1.msra.mxu0 %v736
  %862 = vmatprep.subr.mxu0 0.0
  %863 = vmatpush1.msra.mxu0 %v737
  %864 = vmatprep.subr.mxu0 0.0
  %865 = vmatpush1.msra.mxu0 %v738
  %866 = vmatprep.subr.mxu0 0.0
  %867 = vmatpush1.msra.mxu0 %v739
  %868 = vmatprep.subr.mxu0 0.0
  %869 = vmatpush1.msra.mxu0 %v740
  %870 = vmatprep.subr.mxu0 0.0
  %871 = vmatpush1.msra.mxu0 %v741
  %872 = vmatprep.subr.mxu0 0.0
  %873 = vmatpush1.msra.mxu0 %v742
  %874 = vmatprep.subr.mxu0 0.0
  %875 = vmatpush1.msra.mxu0 %v743
  %876 = vmatprep.subr.mxu0 0.0
  %877 = vmatpush1.msra.mxu0 %v744
  %878 = vmatprep.subr.mxu0 0.0
  %879 = vmatpush1.msra.mxu0 %v745
  %880 = vmatprep.subr.mxu0 0.0
  %881 = vmatpush1.msra.mxu0 %v746
  %882 = vmatprep.subr.mxu0 0.0
  %883 = vmatpush1.msra.mxu0 %v747
  %884 = vmatprep.subr.mxu0 0.0
  %885 = vmatpush1.msra.mxu0 %v748
  %886 = vmatprep.subr.mxu0 0.0
  %887 = vmatpush1.msra.mxu0 %v749
  %888 = vmatprep.subr.mxu0 0.0
  %889 = vmatpush1.msra.mxu0 %v750
  %890 = vmatprep.subr.mxu0 0.0
  %891 = vmatpush1.msra.mxu0 %v751
  %892 = vmatprep.subr.mxu0 0.0
  %893 = vmatpush1.msra.mxu0 %v752
  %894 = vmatprep.subr.mxu0 0.0
  %895 = vmatpush1.msra.mxu0 %v753
  %896 = vmatprep.subr.mxu0 0.0
  %897 = vmatpush1.msra.mxu0 %v754
  %898 = vmatprep.subr.mxu0 0.0
  %899 = vmatpush1.msra.mxu0 %v755
  %900 = vmatprep.subr.mxu0 0.0
  %901 = vmatpush1.msra.mxu0 %v756
  %902 = vmatprep.subr.mxu0 0.0
  %903 = vmatpush1.msra.mxu0 %v757
  %904 = vmatprep.subr.mxu0 0.0
  %905 = vmatpush1.msra.mxu0 %v758
  %906 = vmatprep.subr.mxu0 0.0
  %907 = vmatpush1.msra.mxu0 %v759
  %908 = vmatprep.subr.mxu0 0.0
  %909 = vmatpush1.msra.mxu0 %v760
  %910 = vmatprep.subr.mxu0 0.0
  %911 = vmatpush1.msra.mxu0 %v761
  %912 = vmatprep.subr.mxu0 0.0
  %913 = vmatpush1.msra.mxu0 %v762
  %914 = vmatprep.mubr.f32.mxu0 %v849
  %915 = vmatmul.mubr.f32.gmra.mrb[0].mxu0 %v848
  %v916 = vpop.f32.mrb[0].mxu0
  %v917 = vadd.f32 0.0, %v916
  %v918 = vpop.f32.mrb[0].mxu0
  %919 = vdwg.mxu0
  %v920 = vmul.f32 %v917, 0.00390625
  %v921 = vmul.f32 %v920, %v920
  %v923 = vrot.slane %v921, 7
  %v925 = vsub.f32 %v920, %v923
  %v926 = vmax.f32 %v925, 0.0
  %v927 = vadd.f32 %v926, 1e-05
  %v928 = vrsqrt.pop %v927
  %v930 = vrot.slane %v928, 1
  %v932 = vmul.f32 %v729, %v930
  %v933 = vmul.f32 %v920, %v932
  %v934 = vsub.f32 %v730, %v933
  %v936 = vrot.slane %v934, 7
  %v938 = vsel %vm847, %v932, %v936
  %vm939 = vcmask 523264
  %v941 = vsel %vm939, %v938, 0
  %943 = vmatprep.subr.mxu0 %v764
  %944 = vmatpush1.msra.mxu0 %v763
  %945 = vmatprep.subr.mxu0 %v766
  %946 = vmatpush1.msra.mxu0 %v765
  %947 = vmatprep.subr.mxu0 %v768
  %948 = vmatpush1.msra.mxu0 %v767
  %949 = vmatprep.subr.mxu0 %v770
  %950 = vmatpush1.msra.mxu0 %v769
  %951 = vmatprep.subr.mxu0 %v772
  %952 = vmatpush1.msra.mxu0 %v771
  %953 = vmatprep.subr.mxu0 %v774
  %954 = vmatpush1.msra.mxu0 %v773
  %955 = vmatprep.subr.mxu0 %v776
  %956 = vmatpush1.msra.mxu0 %v775
  %957 = vmatprep.subr.mxu0 %v778
  %958 = vmatpush1.msra.mxu0 %v777
  %959 = vmatprep.subr.mxu0 0.0
  %960 = vmatpush1.msra.mxu0 0.0
  %961 = vmatprep.subr.mxu0 0.0
  %962 = vmatpush1.msra.mxu0 0.0
  %963 = vmatprep.subr.mxu0 0.0
  %964 = vmatpush1.msra.mxu0 0.0
  %965 = vmatprep.subr.mxu0 0.0
  %966 = vmatpush1.msra.mxu0 0.0
  %967 = vmatprep.subr.mxu0 0.0
  %968 = vmatpush1.msra.mxu0 0.0
  %969 = vmatprep.subr.mxu0 0.0
  %970 = vmatpush1.msra.mxu0 0.0
  %971 = vmatprep.subr.mxu0 0.0
  %972 = vmatpush1.msra.mxu0 0.0
  %973 = vmatprep.subr.mxu0 0.0
  %974 = vmatpush1.msra.mxu0 0.0
  %975 = vmatprep.subr.mxu0 0.0
  %976 = vmatpush1.msra.mxu0 0.0
  %977 = vmatprep.subr.mxu0 0.0
  %978 = vmatpush1.msra.mxu0 0.0
  %979 = vmatprep.subr.mxu0 0.0
  %980 = vmatpush1.msra.mxu0 0.0
  %981 = vmatprep.subr.mxu0 0.0
  %982 = vmatpush1.msra.mxu0 0.0
  %983 = vmatprep.subr.mxu0 0.0
  %984 = vmatpush1.msra.mxu0 0.0
  %985 = vmatprep.subr.mxu0 0.0
  %986 = vmatpush1.msra.mxu0 0.0
  %987 = vmatprep.subr.mxu0 0.0
  %988 = vmatpush1.msra.mxu0 0.0
  %989 = vmatprep.subr.mxu0 0.0
  %990 = vmatpush1.msra.mxu0 0.0
  %991 = vmatprep.subr.mxu0 0.0
  %992 = vmatpush1.msra.mxu0 0.0
  %993 = vmatprep.subr.mxu0 0.0
  %994 = vmatpush1.msra.mxu0 0.0
  %995 = vmatprep.subr.mxu0 0.0
  %996 = vmatpush1.msra.mxu0 0.0
  %997 = vmatprep.subr.mxu0 0.0
  %998 = vmatpush1.msra.mxu0 0.0
  %999 = vmatprep.subr.mxu0 0.0
  %1000 = vmatpush1.msra.mxu0 0.0
  %1001 = vmatprep.subr.mxu0 0.0
  %1002 = vmatpush1.msra.mxu0 0.0
  %1003 = vmatprep.subr.mxu0 0.0
  %1004 = vmatpush1.msra.mxu0 0.0
  %1005 = vmatprep.subr.mxu0 0.0
  %1006 = vmatpush1.msra.mxu0 0.0
  %1007 = vmatprep.mubr.f32.mxu0 0.0
  %1008 = vmatmul.mubr.f32.gmra.mrb[0].mxu0 %v941
  %v1009 = vpop.f32.mrb[0].mxu0
  %v1010 = vadd.f32 0.0, %v1009
  %v1011 = vpop.f32.mrb[0].mxu0
  %v1012 = vadd.f32 0.0, %v1011
  %1013 = vdwg.mxu0
  %v1014 = vlaneseq
  %v1015 = vshrl.u32 %v1014, 7
  %v1016 = vsub.s32 0, %v1015
  %v1017 = vrot.slane %v1010, %v1016
  %v1018 = vlaneseq
  %v1019 = vshrl.u32 %v1018, 7
  %v1020 = vsub.s32 0, %v1019
  %v1021 = vrot.slane %v1012, %v1020
  %v1022 = vmul.f32 %v691, %v1017
  %v1023 = vmul.f32 %v693, %v1021
  %v1024 = vmul.f32 %v695, %v1017
  %v1025 = vmul.f32 %v697, %v1021
  %v1026 = vmul.f32 %v701, %v1017
  %v1027 = vmul.f32 %v703, %v1021
  %v1028 = vmul.f32 %v705, %v1017
  %v1029 = vmul.f32 %v707, %v1021
  %v1030 = vmul.f32 %v711, %v1017
  %v1031 = vmul.f32 %v713, %v1021
  %v1032 = vmul.f32 %v715, %v1017
  %v1033 = vmul.f32 %v717, %v1021
  %v1034 = vmul.f32 %v721, %v1017
  %v1035 = vmul.f32 %v723, %v1021
  %v1036 = vmul.f32 %v725, %v1017
  %v1037 = vmul.f32 %v727, %v1021
  %v1038 = vlaneseq
  %v1039 = vshrl.u32 %v1038, 7
  %v1040 = vsub.s32 1, %v1039
  %v1041 = vrot.slane %v1010, %v1040
  %v1042 = vlaneseq
  %v1043 = vshrl.u32 %v1042, 7
  %v1044 = vsub.s32 1, %v1043
  %v1045 = vrot.slane %v1012, %v1044
  %v1046 = vadd.f32 %v1022, %v1041
  %v1047 = vadd.f32 %v1023, %v1045
  %v1048 = vadd.f32 %v1024, %v1041
  %v1049 = vadd.f32 %v1025, %v1045
  %v1050 = vadd.f32 %v1026, %v1041
  %v1051 = vadd.f32 %v1027, %v1045
  %v1052 = vadd.f32 %v1028, %v1041
  %v1053 = vadd.f32 %v1029, %v1045
  %v1054 = vadd.f32 %v1030, %v1041
  %v1055 = vadd.f32 %v1031, %v1045
  %v1056 = vadd.f32 %v1032, %v1041
  %v1057 = vadd.f32 %v1033, %v1045
  %v1058 = vadd.f32 %v1034, %v1041
  %v1059 = vadd.f32 %v1035, %v1045
  %v1060 = vadd.f32 %v1036, %v1041
  %v1061 = vadd.f32 %v1037, %v1045
  %v1062 = vmax.f32 %v1046, 0.0
  %v1063 = vmax.f32 %v1047, 0.0
  %v1064 = vmax.f32 %v1048, 0.0
  %v1065 = vmax.f32 %v1049, 0.0
  %v1066 = vmax.f32 %v1050, 0.0
  %v1067 = vmax.f32 %v1051, 0.0
  %v1068 = vmax.f32 %v1052, 0.0
  %v1069 = vmax.f32 %v1053, 0.0
  %v1070 = vmax.f32 %v1054, 0.0
  %v1071 = vmax.f32 %v1055, 0.0
  %v1072 = vmax.f32 %v1056, 0.0
  %v1073 = vmax.f32 %v1057, 0.0
  %v1074 = vmax.f32 %v1058, 0.0
  %v1075 = vmax.f32 %v1059, 0.0
  %v1076 = vmax.f32 %v1060, 0.0
  %v1077 = vmax.f32 %v1061, 0.0
  %1078 = vst [vmem:[#allocation2 + $0x10] sm:$0xff] %v1062
  %1079 = vst [vmem:[#allocation2 + $0x18] sm:$0xff] %v1063
  %1080 = vst [vmem:[#allocation2 + $0x20] sm:$0xff] %v1064
  %1081 = vst [vmem:[#allocation2 + $0x28] sm:$0xff] %v1065
  %1082 = vst [vmem:[#allocation2 + $0x30] sm:$0xff] %v1066
  %1083 = vst [vmem:[#allocation2 + $0x38] sm:$0xff] %v1067
  %1084 = vst [vmem:[#allocation2 + $0x40] sm:$0xff] %v1068
  %1085 = vst [vmem:[#allocation2 + $0x48] sm:$0xff] %v1069
  %1086 = vst [vmem:[#allocation2 + $0x50] sm:$0xff] %v1070
  %1087 = vst [vmem:[#allocation2 + $0x58] sm:$0xff] %v1071
  %1088 = vst [vmem:[#allocation2 + $0x60] sm:$0xff] %v1072
  %1089 = vst [vmem:[#allocation2 + $0x68] sm:$0xff] %v1073
  %1090 = vst [vmem:[#allocation2 + $0x70] sm:$0xff] %v1074
  %1091 = vst [vmem:[#allocation2 + $0x78] sm:$0xff] %v1075
  %1092 = vst [vmem:[#allocation2 + $0x80] sm:$0xff] %v1076
  %1093 = vst [vmem:[#allocation2 + $0x88] sm:$0xff] %v1077
  %v1094 = vld [vmem:[#allocation2] sm:$0x80]
  %v1095 = vld [vmem:[#allocation2 + $0x8] sm:$0x80]
  %v1096 = vld [vmem:[#allocation2 + $0x10] sm:$0xff]
  %v1097 = vld [vmem:[#allocation2 + $0x18] sm:$0xff]
  %v1098 = vld [vmem:[#allocation2 + $0x20] sm:$0xff]
  %v1099 = vld [vmem:[#allocation2 + $0x28] sm:$0xff]
  %v1100 = vld [vmem:[#allocation2 + $0x30] sm:$0xff]
  %v1101 = vld [vmem:[#allocation2 + $0x38] sm:$0xff]
  %v1102 = vld [vmem:[#allocation2 + $0x40] sm:$0xff]
  %v1103 = vld [vmem:[#allocation2 + $0x48] sm:$0xff]
  %v1104 = vld [vmem:[#allocation2 + $0x50] sm:$0xff]
  %v1105 = vld [vmem:[#allocation2 + $0x58] sm:$0xff]
  %v1106 = vld [vmem:[#allocation2 + $0x60] sm:$0xff]
  %v1107 = vld [vmem:[#allocation2 + $0x68] sm:$0xff]
  %v1108 = vld [vmem:[#allocation2 + $0x70] sm:$0xff]
  %v1109 = vld [vmem:[#allocation2 + $0x78] sm:$0xff]
  %v1110 = vld [vmem:[#allocation2 + $0x80] sm:$0x7f]
  %v1111 = vld [vmem:[#allocation2 + $0x88] sm:$0x7f]
  %v1130 = vrot.slane %v1094, 7
  %v1131 = vrot.slane %v1096, 7
  %v1132 = vsel %vm847, %v1130, %v1131
  %v1133 = vrot.slane %v1095, 7
  %v1134 = vrot.slane %v1097, 7
  %v1135 = vsel %vm847, %v1133, %v1134
  %v1136 = vrot.slane %v1098, 7
  %v1137 = vsel %vm847, %v1131, %v1136
  %v1138 = vrot.slane %v1099, 7
  %v1139 = vsel %vm847, %v1134, %v1138
  %v1140 = vrot.slane %v1100, 7
  %v1141 = vsel %vm847, %v1136, %v1140
  %v1142 = vrot.slane %v1101, 7
  %v1143 = vsel %vm847, %v1138, %v1142
  %v1144 = vrot.slane %v1102, 7
  %v1145 = vsel %vm847, %v1140, %v1144
  %v1146 = vrot.slane %v1103, 7
  %v1147 = vsel %vm847, %v1142, %v1146
  %v1148 = vrot.slane %v1104, 7
  %v1149 = vsel %vm847, %v1144, %v1148
  %v1150 = vrot.slane %v1105, 7
  %v1151 = vsel %vm847, %v1146, %v1150
  %v1152 = vrot.slane %v1106, 7
  %v1153 = vsel %vm847, %v1148, %v1152
  %v1154 = vrot.slane %v1107, 7
  %v1155 = vsel %vm847, %v1150, %v1154
  %v1156 = vrot.slane %v1108, 7
  %v1157 = vsel %vm847, %v1152, %v1156
  %v1158 = vrot.slane %v1109, 7
  %v1159 = vsel %vm847, %v1154, %v1158
  %v1160 = vrot.slane %v1110, 7
  %v1161 = vsel %vm847, %v1156, %v1160
  %v1162 = vrot.slane %v1111, 7
  %v1163 = vsel %vm847, %v1158, %v1162
  %v1180 = vsel %vm87, %v1132, 0.0
  %v1181 = vsel %vm87, %v1135, 0.0
  %v1182 = vsel %vm88, %v1137, 0.0
  %v1183 = vsel %vm88, %v1139, 0.0
  %v1184 = vsel %vm89, %v1141, 0.0
  %v1185 = vsel %vm89, %v1143, 0.0
  %v1186 = vsel %vm90, %v1145, 0.0
  %v1187 = vsel %vm90, %v1147, 0.0
  %v1188 = vsel %vm91, %v1149, 0.0
  %v1189 = vsel %vm91, %v1151, 0.0
  %v1190 = vsel %vm92, %v1153, 0.0
  %v1191 = vsel %vm92, %v1155, 0.0
  %v1192 = vsel %vm93, %v1157, 0.0
  %v1193 = vsel %vm93, %v1159, 0.0
  %v1194 = vsel %vm94, %v1161, 0.0
  %v1195 = vsel %vm94, %v1163, 0.0
  %v1196 = vld [vmem:[#allocation2 + $0x80] sm:$0xff]
  %v1197 = vld [vmem:[#allocation2 + $0x88] sm:$0xff]
  %v1198 = vld [vmem:[#allocation2 + $0x10] sm:$0xfe]
  %v1199 = vld [vmem:[#allocation2 + $0x18] sm:$0xfe]
  %v1200 = vld [vmem:[#allocation2 + $0x20] sm:$0xff]
  %v1201 = vld [vmem:[#allocation2 + $0x28] sm:$0xff]
  %v1202 = vld [vmem:[#allocation2 + $0x30] sm:$0xff]
  %v1203 = vld [vmem:[#allocation2 + $0x38] sm:$0xff]
  %v1204 = vld [vmem:[#allocation2 + $0x40] sm:$0xff]
  %v1205 = vld [vmem:[#allocation2 + $0x48] sm:$0xff]
  %v1206 = vld [vmem:[#allocation2 + $0x50] sm:$0xff]
  %v1207 = vld [vmem:[#allocation2 + $0x58] sm:$0xff]
  %v1208 = vld [vmem:[#allocation2 + $0x60] sm:$0xff]
  %v1209 = vld [vmem:[#allocation2 + $0x68] sm:$0xff]
  %v1210 = vld [vmem:[#allocation2 + $0x70] sm:$0xff]
  %v1211 = vld [vmem:[#allocation2 + $0x78] sm:$0xff]
  %v1212 = vld [vmem:[#allocation2 + $0x80] sm:$0xff]
  %v1213 = vld [vmem:[#allocation2 + $0x88] sm:$0xff]
  %v1214 = vld [vmem:[#allocation2 + $0x90] sm:$0x1]
  %v1215 = vld [vmem:[#allocation2 + $0x98] sm:$0x1]
  %vm1234 = vcmask 1046528
  %v1235 = vrot.slane %v1198, 1
  %v1236 = vrot.slane %v1200, 1
  %v1237 = vsel %vm1234, %v1235, %v1236
  %v1238 = vrot.slane %v1199, 1
  %v1239 = vrot.slane %v1201, 1
  %v1240 = vsel %vm1234, %v1238, %v1239
  %v1241 = vrot.slane %v1202, 1
  %v1242 = vsel %vm1234, %v1236, %v1241
  %v1243 = vrot.slane %v1203, 1
  %v1244 = vsel %vm1234, %v1239, %v1243
  %v1245 = vrot.slane %v1204, 1
  %v1246 = vsel %vm1234, %v1241, %v1245
  %v1247 = vrot.slane %v1205, 1
  %v1248 = vsel %vm1234, %v1243, %v1247
  %v1249 = vrot.slane %v1206, 1
  %v1250 = vsel %vm1234, %v1245, %v1249
  %v1251 = vrot.slane %v1207, 1
  %v1252 = vsel %vm1234, %v1247, %v1251
  %v1253 = vrot.slane %v1208, 1
  %v1254 = vsel %vm1234, %v1249, %v1253
  %v1255 = vrot.slane %v1209, 1
  %v1256 = vsel %vm1234, %v1251, %v1255
  %v1257 = vrot.slane %v1210, 1
  %v1258 = vsel %vm1234, %v1253, %v1257
  %v1259 = vrot.slane %v1211, 1
  %v1260 = vsel %vm1234, %v1255, %v1259
  %v1261 = vrot.slane %v1212, 1
  %v1262 = vsel %vm1234, %v1257, %v1261
  %v1263 = vrot.slane %v1213, 1
  %v1264 = vsel %vm1234, %v1259, %v1263
  %v1265 = vrot.slane %v1214, 1
  %v1266 = vsel %vm1234, %v1261, %v1265
  %v1267 = vrot.slane %v1215, 1
  %v1268 = vsel %vm1234, %v1263, %v1267
  %v1285 = vsel %vm95, %v1237, 0.0
  %v1286 = vsel %vm95, %v1240, 0.0
  %v1287 = vsel %vm96, %v1242, 0.0
  %v1288 = vsel %vm96, %v1244, 0.0
  %v1289 = vsel %vm97, %v1246, 0.0
  %v1290 = vsel %vm97, %v1248, 0.0
  %v1291 = vsel %vm98, %v1250, 0.0
  %v1292 = vsel %vm98, %v1252, 0.0
  %v1293 = vsel %vm99, %v1254, 0.0
  %v1294 = vsel %vm99, %v1256, 0.0
  %v1295 = vsel %vm100, %v1258, 0.0
  %v1296 = vsel %vm100, %v1260, 0.0
  %v1297 = vsel %vm101, %v1262, 0.0
  %v1298 = vsel %vm101, %v1264, 0.0
  %v1299 = vsel %vm102, %v1266, 0.0
  %v1300 = vsel %vm102, %v1268, 0.0
  %v1301 = vld [vmem:[%s2] sm:$0xff]
  %v1302 = vld [vmem:[%s2 + $0x8] sm:$0xff]
  %v1303 = vld [vmem:[%s2 + $0x10] sm:$0xff]
  %v1304 = vld [vmem:[%s2 + $0x18] sm:$0xff]
  %v1305 = vld [vmem:[%s2 + $0x20] sm:$0xff]
  %v1306 = vld [vmem:[%s2 + $0x28] sm:$0xff]
  %v1307 = vld [vmem:[%s2 + $0x30] sm:$0xff]
  %v1308 = vld [vmem:[%s2 + $0x38] sm:$0xff]
  %v1309 = vld [vmem:[%s2 + $0x40] sm:$0xff]
  %v1310 = vld [vmem:[%s2 + $0x48] sm:$0xff]
  %v1311 = vld [vmem:[%s2 + $0x50] sm:$0xff]
  %v1312 = vld [vmem:[%s2 + $0x58] sm:$0xff]
  %v1313 = vld [vmem:[%s2 + $0x60] sm:$0xff]
  %v1314 = vld [vmem:[%s2 + $0x68] sm:$0xff]
  %v1315 = vld [vmem:[%s2 + $0x70] sm:$0xff]
  %v1316 = vld [vmem:[%s2 + $0x78] sm:$0xff]
  %v1317 = vld [vmem:[%s2 + $0x80] sm:$0xff]
  %v1318 = vld [vmem:[%s2 + $0x88] sm:$0xff]
  %v1319 = vld [vmem:[%s2 + $0x90] sm:$0xff]
  %v1320 = vld [vmem:[%s2 + $0x98] sm:$0xff]
  %v1321 = vld [vmem:[%s2 + $0xa0] sm:$0xff]
  %v1322 = vld [vmem:[%s2 + $0xa8] sm:$0xff]
  %v1323 = vld [vmem:[%s2 + $0xb0] sm:$0xff]
  %v1324 = vld [vmem:[%s2 + $0xb8] sm:$0xff]
  %v1325 = vld [vmem:[%s2 + $0xc0] sm:$0xff]
  %v1326 = vld [vmem:[%s2 + $0xc8] sm:$0xff]
  %v1327 = vld [vmem:[%s2 + $0xd0] sm:$0xff]
  %v1328 = vld [vmem:[%s2 + $0xd8] sm:$0xff]
  %v1329 = vld [vmem:[%s2 + $0xe0] sm:$0xff]
  %v1330 = vld [vmem:[%s2 + $0xe8] sm:$0xff]
  %v1331 = vld [vmem:[%s2 + $0xf0] sm:$0xff]
  %v1332 = vld [vmem:[%s2 + $0xf8] sm:$0xff]
  %v1333 = vld [vmem:[%s2 + $0x100] sm:$0xff]
  %v1334 = vld [vmem:[%s2 + $0x108] sm:$0xff]
  %v1335 = vld [vmem:[%s2 + $0x110] sm:$0xff]
  %v1336 = vld [vmem:[%s2 + $0x118] sm:$0xff]
  %v1337 = vld [vmem:[%s2 + $0x120] sm:$0xff]
  %v1338 = vld [vmem:[%s2 + $0x128] sm:$0xff]
  %v1339 = vld [vmem:[%s2 + $0x130] sm:$0xff]
  %v1340 = vld [vmem:[%s2 + $0x138] sm:$0xff]
  %v1341 = vld [vmem:[%s2 + $0x140] sm:$0xff]
  %v1342 = vld [vmem:[%s2 + $0x148] sm:$0xff]
  %v1343 = vld [vmem:[%s2 + $0x150] sm:$0xff]
  %v1344 = vld [vmem:[%s2 + $0x158] sm:$0xff]
  %v1345 = vld [vmem:[%s2 + $0x160] sm:$0xff]
  %v1346 = vld [vmem:[%s2 + $0x168] sm:$0xff]
  %v1347 = vld [vmem:[%s2 + $0x170] sm:$0xff]
  %v1348 = vld [vmem:[%s2 + $0x178] sm:$0xff]
  %v1349 = vld [vmem:[%s2 + $0x180] sm:$0xff]
  %v1350 = vld [vmem:[%s2 + $0x188] sm:$0xff]
  %v1351 = vld [vmem:[%s2 + $0x190] sm:$0xff]
  %v1352 = vld [vmem:[%s2 + $0x198] sm:$0xff]
  %v1353 = vld [vmem:[%s2 + $0x1a0] sm:$0xff]
  %v1354 = vld [vmem:[%s2 + $0x1a8] sm:$0xff]
  %v1355 = vld [vmem:[%s2 + $0x1b0] sm:$0xff]
  %v1356 = vld [vmem:[%s2 + $0x1b8] sm:$0xff]
  %v1357 = vld [vmem:[%s2 + $0x1c0] sm:$0xff]
  %v1358 = vld [vmem:[%s2 + $0x1c8] sm:$0xff]
  %v1359 = vld [vmem:[%s2 + $0x1d0] sm:$0xff]
  %v1360 = vld [vmem:[%s2 + $0x1d8] sm:$0xff]
  %v1361 = vld [vmem:[%s2 + $0x1e0] sm:$0xff]
  %v1362 = vld [vmem:[%s2 + $0x1e8] sm:$0xff]
  %v1363 = vld [vmem:[%s2 + $0x1f0] sm:$0xff]
  %v1364 = vld [vmem:[%s2 + $0x1f8] sm:$0xff]
  %v1365 = vpack.c.bf16 %v1182, %v1180
  %v1366 = vpack.c.bf16 %v1183, %v1181
  %v1367 = vpack.c.bf16 %v1186, %v1184
  %v1368 = vpack.c.bf16 %v1187, %v1185
  %v1369 = vpack.c.bf16 %v1190, %v1188
  %v1370 = vpack.c.bf16 %v1191, %v1189
  %v1371 = vpack.c.bf16 %v1194, %v1192
  %v1372 = vpack.c.bf16 %v1195, %v1193
  %s1373 = scalar_lea.vmem %s2, 512
  %v1374 = vld [vmem:[%s1373] sm:$0xff]
  %v1375 = vld [vmem:[%s1373 + $0x8] sm:$0xff]
  %v1376 = vld [vmem:[%s1373 + $0x10] sm:$0xff]
  %v1377 = vld [vmem:[%s1373 + $0x18] sm:$0xff]
  %v1378 = vld [vmem:[%s1373 + $0x20] sm:$0xff]
  %v1379 = vld [vmem:[%s1373 + $0x28] sm:$0xff]
  %v1380 = vld [vmem:[%s1373 + $0x30] sm:$0xff]
  %v1381 = vld [vmem:[%s1373 + $0x38] sm:$0xff]
  %v1382 = vld [vmem:[%s1373 + $0x40] sm:$0xff]
  %v1383 = vld [vmem:[%s1373 + $0x48] sm:$0xff]
  %v1384 = vld [vmem:[%s1373 + $0x50] sm:$0xff]
  %v1385 = vld [vmem:[%s1373 + $0x58] sm:$0xff]
  %v1386 = vld [vmem:[%s1373 + $0x60] sm:$0xff]
  %v1387 = vld [vmem:[%s1373 + $0x68] sm:$0xff]
  %v1388 = vld [vmem:[%s1373 + $0x70] sm:$0xff]
  %v1389 = vld [vmem:[%s1373 + $0x78] sm:$0xff]
  %v1390 = vld [vmem:[%s1373 + $0x80] sm:$0xff]
  %v1391 = vld [vmem:[%s1373 + $0x88] sm:$0xff]
  %v1392 = vld [vmem:[%s1373 + $0x90] sm:$0xff]
  %v1393 = vld [vmem:[%s1373 + $0x98] sm:$0xff]
  %v1394 = vld [vmem:[%s1373 + $0xa0] sm:$0xff]
  %v1395 = vld [vmem:[%s1373 + $0xa8] sm:$0xff]
  %v1396 = vld [vmem:[%s1373 + $0xb0] sm:$0xff]
  %v1397 = vld [vmem:[%s1373 + $0xb8] sm:$0xff]
  %v1398 = vld [vmem:[%s1373 + $0xc0] sm:$0xff]
  %v1399 = vld [vmem:[%s1373 + $0xc8] sm:$0xff]
  %v1400 = vld [vmem:[%s1373 + $0xd0] sm:$0xff]
  %v1401 = vld [vmem:[%s1373 + $0xd8] sm:$0xff]
  %v1402 = vld [vmem:[%s1373 + $0xe0] sm:$0xff]
  %v1403 = vld [vmem:[%s1373 + $0xe8] sm:$0xff]
  %v1404 = vld [vmem:[%s1373 + $0xf0] sm:$0xff]
  %v1405 = vld [vmem:[%s1373 + $0xf8] sm:$0xff]
  %v1406 = vld [vmem:[%s1373 + $0x100] sm:$0xff]
  %v1407 = vld [vmem:[%s1373 + $0x108] sm:$0xff]
  %v1408 = vld [vmem:[%s1373 + $0x110] sm:$0xff]
  %v1409 = vld [vmem:[%s1373 + $0x118] sm:$0xff]
  %v1410 = vld [vmem:[%s1373 + $0x120] sm:$0xff]
  %v1411 = vld [vmem:[%s1373 + $0x128] sm:$0xff]
  %v1412 = vld [vmem:[%s1373 + $0x130] sm:$0xff]
  %v1413 = vld [vmem:[%s1373 + $0x138] sm:$0xff]
  %v1414 = vld [vmem:[%s1373 + $0x140] sm:$0xff]
  %v1415 = vld [vmem:[%s1373 + $0x148] sm:$0xff]
  %v1416 = vld [vmem:[%s1373 + $0x150] sm:$0xff]
  %v1417 = vld [vmem:[%s1373 + $0x158] sm:$0xff]
  %v1418 = vld [vmem:[%s1373 + $0x160] sm:$0xff]
  %v1419 = vld [vmem:[%s1373 + $0x168] sm:$0xff]
  %v1420 = vld [vmem:[%s1373 + $0x170] sm:$0xff]
  %v1421 = vld [vmem:[%s1373 + $0x178] sm:$0xff]
  %v1422 = vld [vmem:[%s1373 + $0x180] sm:$0xff]
  %v1423 = vld [vmem:[%s1373 + $0x188] sm:$0xff]
  %v1424 = vld [vmem:[%s1373 + $0x190] sm:$0xff]
  %v1425 = vld [vmem:[%s1373 + $0x198] sm:$0xff]
  %v1426 = vld [vmem:[%s1373 + $0x1a0] sm:$0xff]
  %v1427 = vld [vmem:[%s1373 + $0x1a8] sm:$0xff]
  %v1428 = vld [vmem:[%s1373 + $0x1b0] sm:$0xff]
  %v1429 = vld [vmem:[%s1373 + $0x1b8] sm:$0xff]
  %v1430 = vld [vmem:[%s1373 + $0x1c0] sm:$0xff]
  %v1431 = vld [vmem:[%s1373 + $0x1c8] sm:$0xff]
  %v1432 = vld [vmem:[%s1373 + $0x1d0] sm:$0xff]
  %v1433 = vld [vmem:[%s1373 + $0x1d8] sm:$0xff]
  %v1434 = vld [vmem:[%s1373 + $0x1e0] sm:$0xff]
  %v1435 = vld [vmem:[%s1373 + $0x1e8] sm:$0xff]
  %v1436 = vld [vmem:[%s1373 + $0x1f0] sm:$0xff]
  %v1437 = vld [vmem:[%s1373 + $0x1f8] sm:$0xff]
  %v1438 = vpack.c.bf16 %v1098, %v1096
  %v1439 = vpack.c.bf16 %v1099, %v1097
  %v1440 = vpack.c.bf16 %v1102, %v1100
  %v1441 = vpack.c.bf16 %v1103, %v1101
  %v1442 = vpack.c.bf16 %v1106, %v1104
  %v1443 = vpack.c.bf16 %v1107, %v1105
  %v1444 = vpack.c.bf16 %v1196, %v1108
  %v1445 = vpack.c.bf16 %v1197, %v1109
  %v1510 = vunpack.c.l.b16 %v1374
  %v1511 = vunpack.c.h.b16 %v1374
  %v1512 = vunpack.c.l.b16 %v1375
  %v1513 = vunpack.c.h.b16 %v1375
  %v1514 = vunpack.c.l.b16 %v1376
  %v1515 = vunpack.c.h.b16 %v1376
  %v1516 = vunpack.c.l.b16 %v1377
  %v1517 = vunpack.c.h.b16 %v1377
  %v1518 = vunpack.c.l.b16 %v1378
  %v1519 = vunpack.c.h.b16 %v1378
  %v1520 = vunpack.c.l.b16 %v1379
  %v1521 = vunpack.c.h.b16 %v1379
  %v1522 = vunpack.c.l.b16 %v1380
  %v1523 = vunpack.c.h.b16 %v1380
  %v1524 = vunpack.c.l.b16 %v1381
  %v1525 = vunpack.c.h.b16 %v1381
  %v1526 = vunpack.c.l.b16 %v1382
  %v1527 = vunpack.c.h.b16 %v1382
  %v1528 = vunpack.c.l.b16 %v1383
  %v1529 = vunpack.c.h.b16 %v1383
  %v1530 = vunpack.c.l.b16 %v1384
  %v1531 = vunpack.c.h.b16 %v1384
  %v1532 = vunpack.c.l.b16 %v1385
  %v1533 = vunpack.c.h.b16 %v1385
  %v1534 = vunpack.c.l.b16 %v1386
  %v1535 = vunpack.c.h.b16 %v1386
  %v1536 = vunpack.c.l.b16 %v1387
  %v1537 = vunpack.c.h.b16 %v1387
  %v1538 = vunpack.c.l.b16 %v1388
  %v1539 = vunpack.c.h.b16 %v1388
  %v1540 = vunpack.c.l.b16 %v1389
  %v1541 = vunpack.c.h.b16 %v1389
  %v1542 = vunpack.c.l.b16 %v1390
  %v1543 = vunpack.c.h.b16 %v1390
  %v1544 = vunpack.c.l.b16 %v1391
  %v1545 = vunpack.c.h.b16 %v1391
  %v1546 = vunpack.c.l.b16 %v1392
  %v1547 = vunpack.c.h.b16 %v1392
  %v1548 = vunpack.c.l.b16 %v1393
  %v1549 = vunpack.c.h.b16 %v1393
  %v1550 = vunpack.c.l.b16 %v1394
  %v1551 = vunpack.c.h.b16 %v1394
  %v1552 = vunpack.c.l.b16 %v1395
  %v1553 = vunpack.c.h.b16 %v1395
  %v1554 = vunpack.c.l.b16 %v1396
  %v1555 = vunpack.c.h.b16 %v1396
  %v1556 = vunpack.c.l.b16 %v1397
  %v1557 = vunpack.c.h.b16 %v1397
  %v1558 = vunpack.c.l.b16 %v1398
  %v1559 = vunpack.c.h.b16 %v1398
  %v1560 = vunpack.c.l.b16 %v1399
  %v1561 = vunpack.c.h.b16 %v1399
  %v1562 = vunpack.c.l.b16 %v1400
  %v1563 = vunpack.c.h.b16 %v1400
  %v1564 = vunpack.c.l.b16 %v1401
  %v1565 = vunpack.c.h.b16 %v1401
  %v1566 = vunpack.c.l.b16 %v1402
  %v1567 = vunpack.c.h.b16 %v1402
  %v1568 = vunpack.c.l.b16 %v1403
  %v1569 = vunpack.c.h.b16 %v1403
  %v1570 = vunpack.c.l.b16 %v1404
  %v1571 = vunpack.c.h.b16 %v1404
  %v1572 = vunpack.c.l.b16 %v1405
  %v1573 = vunpack.c.h.b16 %v1405
  %v1574 = vunpack.c.l.b16 %v1406
  %v1575 = vunpack.c.h.b16 %v1406
  %v1576 = vunpack.c.l.b16 %v1407
  %v1577 = vunpack.c.h.b16 %v1407
  %v1578 = vunpack.c.l.b16 %v1408
  %v1579 = vunpack.c.h.b16 %v1408
  %v1580 = vunpack.c.l.b16 %v1409
  %v1581 = vunpack.c.h.b16 %v1409
  %v1582 = vunpack.c.l.b16 %v1410
  %v1583 = vunpack.c.h.b16 %v1410
  %v1584 = vunpack.c.l.b16 %v1411
  %v1585 = vunpack.c.h.b16 %v1411
  %v1586 = vunpack.c.l.b16 %v1412
  %v1587 = vunpack.c.h.b16 %v1412
  %v1588 = vunpack.c.l.b16 %v1413
  %v1589 = vunpack.c.h.b16 %v1413
  %v1590 = vunpack.c.l.b16 %v1414
  %v1591 = vunpack.c.h.b16 %v1414
  %v1592 = vunpack.c.l.b16 %v1415
  %v1593 = vunpack.c.h.b16 %v1415
  %v1594 = vunpack.c.l.b16 %v1416
  %v1595 = vunpack.c.h.b16 %v1416
  %v1596 = vunpack.c.l.b16 %v1417
  %v1597 = vunpack.c.h.b16 %v1417
  %v1598 = vunpack.c.l.b16 %v1418
  %v1599 = vunpack.c.h.b16 %v1418
  %v1600 = vunpack.c.l.b16 %v1419
  %v1601 = vunpack.c.h.b16 %v1419
  %v1602 = vunpack.c.l.b16 %v1420
  %v1603 = vunpack.c.h.b16 %v1420
  %v1604 = vunpack.c.l.b16 %v1421
  %v1605 = vunpack.c.h.b16 %v1421
  %v1606 = vunpack.c.l.b16 %v1422
  %v1607 = vunpack.c.h.b16 %v1422
  %v1608 = vunpack.c.l.b16 %v1423
  %v1609 = vunpack.c.h.b16 %v1423
  %v1610 = vunpack.c.l.b16 %v1424
  %v1611 = vunpack.c.h.b16 %v1424
  %v1612 = vunpack.c.l.b16 %v1425
  %v1613 = vunpack.c.h.b16 %v1425
  %v1614 = vunpack.c.l.b16 %v1426
  %v1615 = vunpack.c.h.b16 %v1426
  %v1616 = vunpack.c.l.b16 %v1427
  %v1617 = vunpack.c.h.b16 %v1427
  %v1618 = vunpack.c.l.b16 %v1428
  %v1619 = vunpack.c.h.b16 %v1428
  %v1620 = vunpack.c.l.b16 %v1429
  %v1621 = vunpack.c.h.b16 %v1429
  %v1622 = vunpack.c.l.b16 %v1430
  %v1623 = vunpack.c.h.b16 %v1430
  %v1624 = vunpack.c.l.b16 %v1431
  %v1625 = vunpack.c.h.b16 %v1431
  %v1626 = vunpack.c.l.b16 %v1432
  %v1627 = vunpack.c.h.b16 %v1432
  %v1628 = vunpack.c.l.b16 %v1433
  %v1629 = vunpack.c.h.b16 %v1433
  %v1630 = vunpack.c.l.b16 %v1434
  %v1631 = vunpack.c.h.b16 %v1434
  %v1632 = vunpack.c.l.b16 %v1435
  %v1633 = vunpack.c.h.b16 %v1435
  %v1634 = vunpack.c.l.b16 %v1436
  %v1635 = vunpack.c.h.b16 %v1436
  %v1636 = vunpack.c.l.b16 %v1437
  %v1637 = vunpack.c.h.b16 %v1437
  %v1638 = vpack.c.b16 %v1514, %v1510
  %v1639 = vpack.c.b16 %v1515, %v1511
  %v1640 = vpack.c.b16 %v1516, %v1512
  %v1641 = vpack.c.b16 %v1517, %v1513
  %v1642 = vpack.c.b16 %v1522, %v1518
  %v1643 = vpack.c.b16 %v1523, %v1519
  %v1644 = vpack.c.b16 %v1524, %v1520
  %v1645 = vpack.c.b16 %v1525, %v1521
  %v1646 = vpack.c.b16 %v1530, %v1526
  %v1647 = vpack.c.b16 %v1531, %v1527
  %v1648 = vpack.c.b16 %v1532, %v1528
  %v1649 = vpack.c.b16 %v1533, %v1529
  %v1650 = vpack.c.b16 %v1538, %v1534
  %v1651 = vpack.c.b16 %v1539, %v1535
  %v1652 = vpack.c.b16 %v1540, %v1536
  %v1653 = vpack.c.b16 %v1541, %v1537
  %v1654 = vpack.c.b16 %v1546, %v1542
  %v1655 = vpack.c.b16 %v1547, %v1543
  %v1656 = vpack.c.b16 %v1548, %v1544
  %v1657 = vpack.c.b16 %v1549, %v1545
  %v1658 = vpack.c.b16 %v1554, %v1550
  %v1659 = vpack.c.b16 %v1555, %v1551
  %v1660 = vpack.c.b16 %v1556, %v1552
  %v1661 = vpack.c.b16 %v1557, %v1553
  %v1662 = vpack.c.b16 %v1562, %v1558
  %v1663 = vpack.c.b16 %v1563, %v1559
  %v1664 = vpack.c.b16 %v1564, %v1560
  %v1665 = vpack.c.b16 %v1565, %v1561
  %v1666 = vpack.c.b16 %v1570, %v1566
  %v1667 = vpack.c.b16 %v1571, %v1567
  %v1668 = vpack.c.b16 %v1572, %v1568
  %v1669 = vpack.c.b16 %v1573, %v1569
  %v1670 = vpack.c.b16 %v1578, %v1574
  %v1671 = vpack.c.b16 %v1579, %v1575
  %v1672 = vpack.c.b16 %v1580, %v1576
  %v1673 = vpack.c.b16 %v1581, %v1577
  %v1674 = vpack.c.b16 %v1586, %v1582
  %v1675 = vpack.c.b16 %v1587, %v1583
  %v1676 = vpack.c.b16 %v1588, %v1584
  %v1677 = vpack.c.b16 %v1589, %v1585
  %v1678 = vpack.c.b16 %v1594, %v1590
  %v1679 = vpack.c.b16 %v1595, %v1591
  %v1680 = vpack.c.b16 %v1596, %v1592
  %v1681 = vpack.c.b16 %v1597, %v1593
  %v1682 = vpack.c.b16 %v1602, %v1598
  %v1683 = vpack.c.b16 %v1603, %v1599
  %v1684 = vpack.c.b16 %v1604, %v1600
  %v1685 = vpack.c.b16 %v1605, %v1601
  %v1686 = vpack.c.b16 %v1610, %v1606
  %v1687 = vpack.c.b16 %v1611, %v1607
  %v1688 = vpack.c.b16 %v1612, %v1608
  %v1689 = vpack.c.b16 %v1613, %v1609
  %v1690 = vpack.c.b16 %v1618, %v1614
  %v1691 = vpack.c.b16 %v1619, %v1615
  %v1692 = vpack.c.b16 %v1620, %v1616
  %v1693 = vpack.c.b16 %v1621, %v1617
  %v1694 = vpack.c.b16 %v1626, %v1622
  %v1695 = vpack.c.b16 %v1627, %v1623
  %v1696 = vpack.c.b16 %v1628, %v1624
  %v1697 = vpack.c.b16 %v1629, %v1625
  %v1698 = vpack.c.b16 %v1634, %v1630
  %v1699 = vpack.c.b16 %v1635, %v1631
  %v1700 = vpack.c.b16 %v1636, %v1632
  %v1701 = vpack.c.b16 %v1637, %v1633
  %1766 = vmatprep.subr.bf16.mxu0 %v1639
  %1767 = vmatpush1.bf16.msra.mxu0 %v1638
  %1768 = vmatprep.subr.bf16.mxu0 %v1643
  %1769 = vmatpush1.bf16.msra.mxu0 %v1642
  %1770 = vmatprep.subr.bf16.mxu0 %v1647
  %1771 = vmatpush1.bf16.msra.mxu0 %v1646
  %1772 = vmatprep.subr.bf16.mxu0 %v1651
  %1773 = vmatpush1.bf16.msra.mxu0 %v1650
  %1774 = vmatprep.subr.bf16.mxu0 %v1655
  %1775 = vmatpush1.bf16.msra.mxu0 %v1654
  %1776 = vmatprep.subr.bf16.mxu0 %v1659
  %1777 = vmatpush1.bf16.msra.mxu0 %v1658
  %1778 = vmatprep.subr.bf16.mxu0 %v1663
  %1779 = vmatpush1.bf16.msra.mxu0 %v1662
  %1780 = vmatprep.subr.bf16.mxu0 %v1667
  %1781 = vmatpush1.bf16.msra.mxu0 %v1666
  %1782 = vmatprep.subr.bf16.mxu0 %v1671
  %1783 = vmatpush1.bf16.msra.mxu0 %v1670
  %1784 = vmatprep.subr.bf16.mxu0 %v1675
  %1785 = vmatpush1.bf16.msra.mxu0 %v1674
  %1786 = vmatprep.subr.bf16.mxu0 %v1679
  %1787 = vmatpush1.bf16.msra.mxu0 %v1678
  %1788 = vmatprep.subr.bf16.mxu0 %v1683
  %1789 = vmatpush1.bf16.msra.mxu0 %v1682
  %1790 = vmatprep.subr.bf16.mxu0 %v1687
  %1791 = vmatpush1.bf16.msra.mxu0 %v1686
  %1792 = vmatprep.subr.bf16.mxu0 %v1691
  %1793 = vmatpush1.bf16.msra.mxu0 %v1690
  %1794 = vmatprep.subr.bf16.mxu0 %v1695
  %1795 = vmatpush1.bf16.msra.mxu0 %v1694
  %1796 = vmatprep.subr.bf16.mxu0 %v1699
  %1797 = vmatpush1.bf16.msra.mxu0 %v1698
  %1798 = vmatprep.mubr.bf16.mxu0 %v1439
  %1799 = vmatmul.mubr.bf16.gmra.mrb[0].mxu0 %v1438
  %v1800 = vpop.f32.mrb[0].mxu0
  %v1801 = vadd.f32 0.0, %v1800
  %v1802 = vpop.f32.mrb[0].mxu0
  %v1803 = vadd.f32 0.0, %v1802
  %v1804 = vpop.f32.mrb[0].mxu0
  %v1805 = vadd.f32 0.0, %v1804
  %v1806 = vpop.f32.mrb[0].mxu0
  %v1807 = vadd.f32 0.0, %v1806
  %1808 = vmatprep.mubr.bf16.mxu0 %v1441
  %1809 = vmatmul.mubr.bf16.gmra.mrb[0].mxu0 %v1440
  %v1810 = vpop.f32.mrb[0].mxu0
  %v1811 = vadd.f32 0.0, %v1810
  %v1812 = vpop.f32.mrb[0].mxu0
  %v1813 = vadd.f32 0.0, %v1812
  %v1814 = vpop.f32.mrb[0].mxu0
  %v1815 = vadd.f32 0.0, %v1814
  %v1816 = vpop.f32.mrb[0].mxu0
  %v1817 = vadd.f32 0.0, %v1816
  %1818 = vmatprep.mubr.bf16.mxu0 %v1443
  %1819 = vmatmul.mubr.bf16.gmra.mrb[0].mxu0 %v1442
  %v1820 = vpop.f32.mrb[0].mxu0
  %v1821 = vadd.f32 0.0, %v1820
  %v1822 = vpop.f32.mrb[0].mxu0
  %v1823 = vadd.f32 0.0, %v1822
  %v1824 = vpop.f32.mrb[0].mxu0
  %v1825 = vadd.f32 0.0, %v1824
  %v1826 = vpop.f32.mrb[0].mxu0
  %v1827 = vadd.f32 0.0, %v1826
  %1828 = vmatprep.mubr.bf16.mxu0 %v1445
  %1829 = vmatmul.mubr.bf16.gmra.mrb[0].mxu0 %v1444
  %v1830 = vpop.f32.mrb[0].mxu0
  %v1831 = vadd.f32 0.0, %v1830
  %v1832 = vpop.f32.mrb[0].mxu0
  %v1833 = vadd.f32 0.0, %v1832
  %v1834 = vpop.f32.mrb[0].mxu0
  %v1835 = vadd.f32 0.0, %v1834
  %v1836 = vpop.f32.mrb[0].mxu0
  %v1837 = vadd.f32 0.0, %v1836
  %1838 = vdwg.mxu0
  %1839 = vmatprep.subr.bf16.mxu0 %v1641
  %1840 = vmatpush1.bf16.msra.mxu0 %v1640
  %1841 = vmatprep.subr.bf16.mxu0 %v1645
  %1842 = vmatpush1.bf16.msra.mxu0 %v1644
  %1843 = vmatprep.subr.bf16.mxu0 %v1649
  %1844 = vmatpush1.bf16.msra.mxu0 %v1648
  %1845 = vmatprep.subr.bf16.mxu0 %v1653
  %1846 = vmatpush1.bf16.msra.mxu0 %v1652
  %1847 = vmatprep.subr.bf16.mxu0 %v1657
  %1848 = vmatpush1.bf16.msra.mxu0 %v1656
  %1849 = vmatprep.subr.bf16.mxu0 %v1661
  %1850 = vmatpush1.bf16.msra.mxu0 %v1660
  %1851 = vmatprep.subr.bf16.mxu0 %v1665
  %1852 = vmatpush1.bf16.msra.mxu0 %v1664
  %1853 = vmatprep.subr.bf16.mxu0 %v1669
  %1854 = vmatpush1.bf16.msra.mxu0 %v1668
  %1855 = vmatprep.subr.bf16.mxu0 %v1673
  %1856 = vmatpush1.bf16.msra.mxu0 %v1672
  %1857 = vmatprep.subr.bf16.mxu0 %v1677
  %1858 = vmatpush1.bf16.msra.mxu0 %v1676
  %1859 = vmatprep.subr.bf16.mxu0 %v1681
  %1860 = vmatpush1.bf16.msra.mxu0 %v1680
  %1861 = vmatprep.subr.bf16.mxu0 %v1685
  %1862 = vmatpush1.bf16.msra.mxu0 %v1684
  %1863 = vmatprep.subr.bf16.mxu0 %v1689
  %1864 = vmatpush1.bf16.msra.mxu0 %v1688
  %1865 = vmatprep.subr.bf16.mxu0 %v1693
  %1866 = vmatpush1.bf16.msra.mxu0 %v1692
  %1867 = vmatprep.subr.bf16.mxu0 %v1697
  %1868 = vmatpush1.bf16.msra.mxu0 %v1696
  %1869 = vmatprep.subr.bf16.mxu0 %v1701
  %1870 = vmatpush1.bf16.msra.mxu0 %v1700
  %1871 = vmatprep.mubr.bf16.mxu0 %v1439
  %1872 = vmatmul.mubr.bf16.gmra.mrb[0].mxu0 %v1438
  %v1873 = vpop.f32.mrb[0].mxu0
  %v1874 = vadd.f32 0.0, %v1873
  %v1875 = vpop.f32.mrb[0].mxu0
  %v1876 = vadd.f32 0.0, %v1875
  %v1877 = vpop.f32.mrb[0].mxu0
  %v1878 = vadd.f32 0.0, %v1877
  %v1879 = vpop.f32.mrb[0].mxu0
  %v1880 = vadd.f32 0.0, %v1879
  %1881 = vmatprep.mubr.bf16.mxu0 %v1441
  %1882 = vmatmul.mubr.bf16.gmra.mrb[0].mxu0 %v1440
  %v1883 = vpop.f32.mrb[0].mxu0
  %v1884 = vadd.f32 0.0, %v1883
  %v1885 = vpop.f32.mrb[0].mxu0
  %v1886 = vadd.f32 0.0, %v1885
  %v1887 = vpop.f32.mrb[0].mxu0
  %v1888 = vadd.f32 0.0, %v1887
  %v1889 = vpop.f32.mrb[0].mxu0
  %v1890 = vadd.f32 0.0, %v1889
  %1891 = vmatprep.mubr.bf16.mxu0 %v1443
  %1892 = vmatmul.mubr.bf16.gmra.mrb[0].mxu0 %v1442
  %v1893 = vpop.f32.mrb[0].mxu0
  %v1894 = vadd.f32 0.0, %v1893
  %v1895 = vpop.f32.mrb[0].mxu0
  %v1896 = vadd.f32 0.0, %v1895
  %v1897 = vpop.f32.mrb[0].mxu0
  %v1898 = vadd.f32 0.0, %v1897
  %v1899 = vpop.f32.mrb[0].mxu0
  %v1900 = vadd.f32 0.0, %v1899
  %1901 = vmatprep.mubr.bf16.mxu0 %v1445
  %1902 = vmatmul.mubr.bf16.gmra.mrb[0].mxu0 %v1444
  %v1903 = vpop.f32.mrb[0].mxu0
  %v1904 = vadd.f32 0.0, %v1903
  %v1905 = vpop.f32.mrb[0].mxu0
  %v1906 = vadd.f32 0.0, %v1905
  %v1907 = vpop.f32.mrb[0].mxu0
  %v1908 = vadd.f32 0.0, %v1907
  %v1909 = vpop.f32.mrb[0].mxu0
  %v1910 = vadd.f32 0.0, %v1909
  %1911 = vdwg.mxu0
  %v1976 = vunpack.c.l.b16 %v1301
  %v1977 = vunpack.c.h.b16 %v1301
  %v1978 = vunpack.c.l.b16 %v1302
  %v1979 = vunpack.c.h.b16 %v1302
  %v1980 = vunpack.c.l.b16 %v1303
  %v1981 = vunpack.c.h.b16 %v1303
  %v1982 = vunpack.c.l.b16 %v1304
  %v1983 = vunpack.c.h.b16 %v1304
  %v1984 = vunpack.c.l.b16 %v1305
  %v1985 = vunpack.c.h.b16 %v1305
  %v1986 = vunpack.c.l.b16 %v1306
  %v1987 = vunpack.c.h.b16 %v1306
  %v1988 = vunpack.c.l.b16 %v1307
  %v1989 = vunpack.c.h.b16 %v1307
  %v1990 = vunpack.c.l.b16 %v1308
  %v1991 = vunpack.c.h.b16 %v1308
  %v1992 = vunpack.c.l.b16 %v1309
  %v1993 = vunpack.c.h.b16 %v1309
  %v1994 = vunpack.c.l.b16 %v1310
  %v1995 = vunpack.c.h.b16 %v1310
  %v1996 = vunpack.c.l.b16 %v1311
  %v1997 = vunpack.c.h.b16 %v1311
  %v1998 = vunpack.c.l.b16 %v1312
  %v1999 = vunpack.c.h.b16 %v1312
  %v2000 = vunpack.c.l.b16 %v1313
  %v2001 = vunpack.c.h.b16 %v1313
  %v2002 = vunpack.c.l.b16 %v1314
  %v2003 = vunpack.c.h.b16 %v1314
  %v2004 = vunpack.c.l.b16 %v1315
  %v2005 = vunpack.c.h.b16 %v1315
  %v2006 = vunpack.c.l.b16 %v1316
  %v2007 = vunpack.c.h.b16 %v1316
  %v2008 = vunpack.c.l.b16 %v1317
  %v2009 = vunpack.c.h.b16 %v1317
  %v2010 = vunpack.c.l.b16 %v1318
  %v2011 = vunpack.c.h.b16 %v1318
  %v2012 = vunpack.c.l.b16 %v1319
  %v2013 = vunpack.c.h.b16 %v1319
  %v2014 = vunpack.c.l.b16 %v1320
  %v2015 = vunpack.c.h.b16 %v1320
  %v2016 = vunpack.c.l.b16 %v1321
  %v2017 = vunpack.c.h.b16 %v1321
  %v2018 = vunpack.c.l.b16 %v1322
  %v2019 = vunpack.c.h.b16 %v1322
  %v2020 = vunpack.c.l.b16 %v1323
  %v2021 = vunpack.c.h.b16 %v1323
  %v2022 = vunpack.c.l.b16 %v1324
  %v2023 = vunpack.c.h.b16 %v1324
  %v2024 = vunpack.c.l.b16 %v1325
  %v2025 = vunpack.c.h.b16 %v1325
  %v2026 = vunpack.c.l.b16 %v1326
  %v2027 = vunpack.c.h.b16 %v1326
  %v2028 = vunpack.c.l.b16 %v1327
  %v2029 = vunpack.c.h.b16 %v1327
  %v2030 = vunpack.c.l.b16 %v1328
  %v2031 = vunpack.c.h.b16 %v1328
  %v2032 = vunpack.c.l.b16 %v1329
  %v2033 = vunpack.c.h.b16 %v1329
  %v2034 = vunpack.c.l.b16 %v1330
  %v2035 = vunpack.c.h.b16 %v1330
  %v2036 = vunpack.c.l.b16 %v1331
  %v2037 = vunpack.c.h.b16 %v1331
  %v2038 = vunpack.c.l.b16 %v1332
  %v2039 = vunpack.c.h.b16 %v1332
  %v2040 = vunpack.c.l.b16 %v1333
  %v2041 = vunpack.c.h.b16 %v1333
  %v2042 = vunpack.c.l.b16 %v1334
  %v2043 = vunpack.c.h.b16 %v1334
  %v2044 = vunpack.c.l.b16 %v1335
  %v2045 = vunpack.c.h.b16 %v1335
  %v2046 = vunpack.c.l.b16 %v1336
  %v2047 = vunpack.c.h.b16 %v1336
  %v2048 = vunpack.c.l.b16 %v1337
  %v2049 = vunpack.c.h.b16 %v1337
  %v2050 = vunpack.c.l.b16 %v1338
  %v2051 = vunpack.c.h.b16 %v1338
  %v2052 = vunpack.c.l.b16 %v1339
  %v2053 = vunpack.c.h.b16 %v1339
  %v2054 = vunpack.c.l.b16 %v1340
  %v2055 = vunpack.c.h.b16 %v1340
  %v2056 = vunpack.c.l.b16 %v1341
  %v2057 = vunpack.c.h.b16 %v1341
  %v2058 = vunpack.c.l.b16 %v1342
  %v2059 = vunpack.c.h.b16 %v1342
  %v2060 = vunpack.c.l.b16 %v1343
  %v2061 = vunpack.c.h.b16 %v1343
  %v2062 = vunpack.c.l.b16 %v1344
  %v2063 = vunpack.c.h.b16 %v1344
  %v2064 = vunpack.c.l.b16 %v1345
  %v2065 = vunpack.c.h.b16 %v1345
  %v2066 = vunpack.c.l.b16 %v1346
  %v2067 = vunpack.c.h.b16 %v1346
  %v2068 = vunpack.c.l.b16 %v1347
  %v2069 = vunpack.c.h.b16 %v1347
  %v2070 = vunpack.c.l.b16 %v1348
  %v2071 = vunpack.c.h.b16 %v1348
  %v2072 = vunpack.c.l.b16 %v1349
  %v2073 = vunpack.c.h.b16 %v1349
  %v2074 = vunpack.c.l.b16 %v1350
  %v2075 = vunpack.c.h.b16 %v1350
  %v2076 = vunpack.c.l.b16 %v1351
  %v2077 = vunpack.c.h.b16 %v1351
  %v2078 = vunpack.c.l.b16 %v1352
  %v2079 = vunpack.c.h.b16 %v1352
  %v2080 = vunpack.c.l.b16 %v1353
  %v2081 = vunpack.c.h.b16 %v1353
  %v2082 = vunpack.c.l.b16 %v1354
  %v2083 = vunpack.c.h.b16 %v1354
  %v2084 = vunpack.c.l.b16 %v1355
  %v2085 = vunpack.c.h.b16 %v1355
  %v2086 = vunpack.c.l.b16 %v1356
  %v2087 = vunpack.c.h.b16 %v1356
  %v2088 = vunpack.c.l.b16 %v1357
  %v2089 = vunpack.c.h.b16 %v1357
  %v2090 = vunpack.c.l.b16 %v1358
  %v2091 = vunpack.c.h.b16 %v1358
  %v2092 = vunpack.c.l.b16 %v1359
  %v2093 = vunpack.c.h.b16 %v1359
  %v2094 = vunpack.c.l.b16 %v1360
  %v2095 = vunpack.c.h.b16 %v1360
  %v2096 = vunpack.c.l.b16 %v1361
  %v2097 = vunpack.c.h.b16 %v1361
  %v2098 = vunpack.c.l.b16 %v1362
  %v2099 = vunpack.c.h.b16 %v1362
  %v2100 = vunpack.c.l.b16 %v1363
  %v2101 = vunpack.c.h.b16 %v1363
  %v2102 = vunpack.c.l.b16 %v1364
  %v2103 = vunpack.c.h.b16 %v1364
  %v2104 = vpack.c.b16 %v1980, %v1976
  %v2105 = vpack.c.b16 %v1981, %v1977
  %v2106 = vpack.c.b16 %v1982, %v1978
  %v2107 = vpack.c.b16 %v1983, %v1979
  %v2108 = vpack.c.b16 %v1988, %v1984
  %v2109 = vpack.c.b16 %v1989, %v1985
  %v2110 = vpack.c.b16 %v1990, %v1986
  %v2111 = vpack.c.b16 %v1991, %v1987
  %v2112 = vpack.c.b16 %v1996, %v1992
  %v2113 = vpack.c.b16 %v1997, %v1993
  %v2114 = vpack.c.b16 %v1998, %v1994
  %v2115 = vpack.c.b16 %v1999, %v1995
  %v2116 = vpack.c.b16 %v2004, %v2000
  %v2117 = vpack.c.b16 %v2005, %v2001
  %v2118 = vpack.c.b16 %v2006, %v2002
  %v2119 = vpack.c.b16 %v2007, %v2003
  %v2120 = vpack.c.b16 %v2012, %v2008
  %v2121 = vpack.c.b16 %v2013, %v2009
  %v2122 = vpack.c.b16 %v2014, %v2010
  %v2123 = vpack.c.b16 %v2015, %v2011
  %v2124 = vpack.c.b16 %v2020, %v2016
  %v2125 = vpack.c.b16 %v2021, %v2017
  %v2126 = vpack.c.b16 %v2022, %v2018
  %v2127 = vpack.c.b16 %v2023, %v2019
  %v2128 = vpack.c.b16 %v2028, %v2024
  %v2129 = vpack.c.b16 %v2029, %v2025
  %v2130 = vpack.c.b16 %v2030, %v2026
  %v2131 = vpack.c.b16 %v2031, %v2027
  %v2132 = vpack.c.b16 %v2036, %v2032
  %v2133 = vpack.c.b16 %v2037, %v2033
  %v2134 = vpack.c.b16 %v2038, %v2034
  %v2135 = vpack.c.b16 %v2039, %v2035
  %v2136 = vpack.c.b16 %v2044, %v2040
  %v2137 = vpack.c.b16 %v2045, %v2041
  %v2138 = vpack.c.b16 %v2046, %v2042
  %v2139 = vpack.c.b16 %v2047, %v2043
  %v2140 = vpack.c.b16 %v2052, %v2048
  %v2141 = vpack.c.b16 %v2053, %v2049
  %v2142 = vpack.c.b16 %v2054, %v2050
  %v2143 = vpack.c.b16 %v2055, %v2051
  %v2144 = vpack.c.b16 %v2060, %v2056
  %v2145 = vpack.c.b16 %v2061, %v2057
  %v2146 = vpack.c.b16 %v2062, %v2058
  %v2147 = vpack.c.b16 %v2063, %v2059
  %v2148 = vpack.c.b16 %v2068, %v2064
  %v2149 = vpack.c.b16 %v2069, %v2065
  %v2150 = vpack.c.b16 %v2070, %v2066
  %v2151 = vpack.c.b16 %v2071, %v2067
  %v2152 = vpack.c.b16 %v2076, %v2072
  %v2153 = vpack.c.b16 %v2077, %v2073
  %v2154 = vpack.c.b16 %v2078, %v2074
  %v2155 = vpack.c.b16 %v2079, %v2075
  %v2156 = vpack.c.b16 %v2084, %v2080
  %v2157 = vpack.c.b16 %v2085, %v2081
  %v2158 = vpack.c.b16 %v2086, %v2082
  %v2159 = vpack.c.b16 %v2087, %v2083
  %v2160 = vpack.c.b16 %v2092, %v2088
  %v2161 = vpack.c.b16 %v2093, %v2089
  %v2162 = vpack.c.b16 %v2094, %v2090
  %v2163 = vpack.c.b16 %v2095, %v2091
  %v2164 = vpack.c.b16 %v2100, %v2096
  %v2165 = vpack.c.b16 %v2101, %v2097
  %v2166 = vpack.c.b16 %v2102, %v2098
  %v2167 = vpack.c.b16 %v2103, %v2099
  %2232 = vmatprep.subr.bf16.mxu0 %v2105
  %2233 = vmatpush1.bf16.msra.mxu0 %v2104
  %2234 = vmatprep.subr.bf16.mxu0 %v2109
  %2235 = vmatpush1.bf16.msra.mxu0 %v2108
  %2236 = vmatprep.subr.bf16.mxu0 %v2113
  %2237 = vmatpush1.bf16.msra.mxu0 %v2112
  %2238 = vmatprep.subr.bf16.mxu0 %v2117
  %2239 = vmatpush1.bf16.msra.mxu0 %v2116
  %2240 = vmatprep.subr.bf16.mxu0 %v2121
  %2241 = vmatpush1.bf16.msra.mxu0 %v2120
  %2242 = vmatprep.subr.bf16.mxu0 %v2125
  %2243 = vmatpush1.bf16.msra.mxu0 %v2124
  %2244 = vmatprep.subr.bf16.mxu0 %v2129
  %2245 = vmatpush1.bf16.msra.mxu0 %v2128
  %2246 = vmatprep.subr.bf16.mxu0 %v2133
  %2247 = vmatpush1.bf16.msra.mxu0 %v2132
  %2248 = vmatprep.subr.bf16.mxu0 %v2137
  %2249 = vmatpush1.bf16.msra.mxu0 %v2136
  %2250 = vmatprep.subr.bf16.mxu0 %v2141
  %2251 = vmatpush1.bf16.msra.mxu0 %v2140
  %2252 = vmatprep.subr.bf16.mxu0 %v2145
  %2253 = vmatpush1.bf16.msra.mxu0 %v2144
  %2254 = vmatprep.subr.bf16.mxu0 %v2149
  %2255 = vmatpush1.bf16.msra.mxu0 %v2148
  %2256 = vmatprep.subr.bf16.mxu0 %v2153
  %2257 = vmatpush1.bf16.msra.mxu0 %v2152
  %2258 = vmatprep.subr.bf16.mxu0 %v2157
  %2259 = vmatpush1.bf16.msra.mxu0 %v2156
  %2260 = vmatprep.subr.bf16.mxu0 %v2161
  %2261 = vmatpush1.bf16.msra.mxu0 %v2160
  %2262 = vmatprep.subr.bf16.mxu0 %v2165
  %2263 = vmatpush1.bf16.msra.mxu0 %v2164
  %2264 = vmatprep.mubr.bf16.mxu0 %v1366
  %2265 = vmatmul.mubr.bf16.gmra.mrb[0].mxu0 %v1365
  %v2266 = vpop.f32.mrb[0].mxu0
  %v2267 = vadd.f32 %v1801, %v2266
  %v2268 = vpop.f32.mrb[0].mxu0
  %v2269 = vadd.f32 %v1803, %v2268
  %v2270 = vpop.f32.mrb[0].mxu0
  %v2271 = vadd.f32 %v1805, %v2270
  %v2272 = vpop.f32.mrb[0].mxu0
  %v2273 = vadd.f32 %v1807, %v2272
  %2274 = vmatprep.mubr.bf16.mxu0 %v1368
  %2275 = vmatmul.mubr.bf16.gmra.mrb[0].mxu0 %v1367
  %v2276 = vpop.f32.mrb[0].mxu0
  %v2277 = vadd.f32 %v1811, %v2276
  %v2278 = vpop.f32.mrb[0].mxu0
  %v2279 = vadd.f32 %v1813, %v2278
  %v2280 = vpop.f32.mrb[0].mxu0
  %v2281 = vadd.f32 %v1815, %v2280
  %v2282 = vpop.f32.mrb[0].mxu0
  %v2283 = vadd.f32 %v1817, %v2282
  %2284 = vmatprep.mubr.bf16.mxu0 %v1370
  %2285 = vmatmul.mubr.bf16.gmra.mrb[0].mxu0 %v1369
  %v2286 = vpop.f32.mrb[0].mxu0
  %v2287 = vadd.f32 %v1821, %v2286
  %v2288 = vpop.f32.mrb[0].mxu0
  %v2289 = vadd.f32 %v1823, %v2288
  %v2290 = vpop.f32.mrb[0].mxu0
  %v2291 = vadd.f32 %v1825, %v2290
  %v2292 = vpop.f32.mrb[0].mxu0
  %v2293 = vadd.f32 %v1827, %v2292
  %2294 = vmatprep.mubr.bf16.mxu0 %v1372
  %2295 = vmatmul.mubr.bf16.gmra.mrb[0].mxu0 %v1371
  %v2296 = vpop.f32.mrb[0].mxu0
  %v2297 = vadd.f32 %v1831, %v2296
  %v2298 = vpop.f32.mrb[0].mxu0
  %v2299 = vadd.f32 %v1833, %v2298
  %v2300 = vpop.f32.mrb[0].mxu0
  %v2301 = vadd.f32 %v1835, %v2300
  %v2302 = vpop.f32.mrb[0].mxu0
  %v2303 = vadd.f32 %v1837, %v2302
  %2304 = vdwg.mxu0
  %2305 = vmatprep.subr.bf16.mxu0 %v2107
  %2306 = vmatpush1.bf16.msra.mxu0 %v2106
  %2307 = vmatprep.subr.bf16.mxu0 %v2111
  %2308 = vmatpush1.bf16.msra.mxu0 %v2110
  %2309 = vmatprep.subr.bf16.mxu0 %v2115
  %2310 = vmatpush1.bf16.msra.mxu0 %v2114
  %2311 = vmatprep.subr.bf16.mxu0 %v2119
  %2312 = vmatpush1.bf16.msra.mxu0 %v2118
  %2313 = vmatprep.subr.bf16.mxu0 %v2123
  %2314 = vmatpush1.bf16.msra.mxu0 %v2122
  %2315 = vmatprep.subr.bf16.mxu0 %v2127
  %2316 = vmatpush1.bf16.msra.mxu0 %v2126
  %2317 = vmatprep.subr.bf16.mxu0 %v2131
  %2318 = vmatpush1.bf16.msra.mxu0 %v2130
  %2319 = vmatprep.subr.bf16.mxu0 %v2135
  %2320 = vmatpush1.bf16.msra.mxu0 %v2134
  %2321 = vmatprep.subr.bf16.mxu0 %v2139
  %2322 = vmatpush1.bf16.msra.mxu0 %v2138
  %2323 = vmatprep.subr.bf16.mxu0 %v2143
  %2324 = vmatpush1.bf16.msra.mxu0 %v2142
  %2325 = vmatprep.subr.bf16.mxu0 %v2147
  %2326 = vmatpush1.bf16.msra.mxu0 %v2146
  %2327 = vmatprep.subr.bf16.mxu0 %v2151
  %2328 = vmatpush1.bf16.msra.mxu0 %v2150
  %2329 = vmatprep.subr.bf16.mxu0 %v2155
  %2330 = vmatpush1.bf16.msra.mxu0 %v2154
  %2331 = vmatprep.subr.bf16.mxu0 %v2159
  %2332 = vmatpush1.bf16.msra.mxu0 %v2158
  %2333 = vmatprep.subr.bf16.mxu0 %v2163
  %2334 = vmatpush1.bf16.msra.mxu0 %v2162
  %2335 = vmatprep.subr.bf16.mxu0 %v2167
  %2336 = vmatpush1.bf16.msra.mxu0 %v2166
  %2337 = vmatprep.mubr.bf16.mxu0 %v1366
  %2338 = vmatmul.mubr.bf16.gmra.mrb[0].mxu0 %v1365
  %v2339 = vpop.f32.mrb[0].mxu0
  %v2340 = vadd.f32 %v1874, %v2339
  %v2341 = vpop.f32.mrb[0].mxu0
  %v2342 = vadd.f32 %v1876, %v2341
  %v2343 = vpop.f32.mrb[0].mxu0
  %v2344 = vadd.f32 %v1878, %v2343
  %v2345 = vpop.f32.mrb[0].mxu0
  %v2346 = vadd.f32 %v1880, %v2345
  %2347 = vmatprep.mubr.bf16.mxu0 %v1368
  %2348 = vmatmul.mubr.bf16.gmra.mrb[0].mxu0 %v1367
  %v2349 = vpop.f32.mrb[0].mxu0
  %v2350 = vadd.f32 %v1884, %v2349
  %v2351 = vpop.f32.mrb[0].mxu0
  %v2352 = vadd.f32 %v1886, %v2351
  %v2353 = vpop.f32.mrb[0].mxu0
  %v2354 = vadd.f32 %v1888, %v2353
  %v2355 = vpop.f32.mrb[0].mxu0
  %v2356 = vadd.f32 %v1890, %v2355
  %2357 = vmatprep.mubr.bf16.mxu0 %v1370
  %2358 = vmatmul.mubr.bf16.gmra.mrb[0].mxu0 %v1369
  %v2359 = vpop.f32.mrb[0].mxu0
  %v2360 = vadd.f32 %v1894, %v2359
  %v2361 = vpop.f32.mrb[0].mxu0
  %v2362 = vadd.f32 %v1896, %v2361
  %v2363 = vpop.f32.mrb[0].mxu0
  %v2364 = vadd.f32 %v1898, %v2363
  %v2365 = vpop.f32.mrb[0].mxu0
  %v2366 = vadd.f32 %v1900, %v2365
  %2367 = vmatprep.mubr.bf16.mxu0 %v1372
  %2368 = vmatmul.mubr.bf16.gmra.mrb[0].mxu0 %v1371
  %v2369 = vpop.f32.mrb[0].mxu0
  %v2370 = vadd.f32 %v1904, %v2369
  %v2371 = vpop.f32.mrb[0].mxu0
  %v2372 = vadd.f32 %v1906, %v2371
  %v2373 = vpop.f32.mrb[0].mxu0
  %v2374 = vadd.f32 %v1908, %v2373
  %v2375 = vpop.f32.mrb[0].mxu0
  %v2376 = vadd.f32 %v1910, %v2375
  %2377 = vdwg.mxu0
  %s2378 = scalar_lea.vmem %s2, 1024
  %v2379 = vld [vmem:[%s2378] sm:$0xff]
  %v2380 = vld [vmem:[%s2378 + $0x8] sm:$0xff]
  %v2381 = vld [vmem:[%s2378 + $0x10] sm:$0xff]
  %v2382 = vld [vmem:[%s2378 + $0x18] sm:$0xff]
  %v2383 = vld [vmem:[%s2378 + $0x20] sm:$0xff]
  %v2384 = vld [vmem:[%s2378 + $0x28] sm:$0xff]
  %v2385 = vld [vmem:[%s2378 + $0x30] sm:$0xff]
  %v2386 = vld [vmem:[%s2378 + $0x38] sm:$0xff]
  %v2387 = vld [vmem:[%s2378 + $0x40] sm:$0xff]
  %v2388 = vld [vmem:[%s2378 + $0x48] sm:$0xff]
  %v2389 = vld [vmem:[%s2378 + $0x50] sm:$0xff]
  %v2390 = vld [vmem:[%s2378 + $0x58] sm:$0xff]
  %v2391 = vld [vmem:[%s2378 + $0x60] sm:$0xff]
  %v2392 = vld [vmem:[%s2378 + $0x68] sm:$0xff]
  %v2393 = vld [vmem:[%s2378 + $0x70] sm:$0xff]
  %v2394 = vld [vmem:[%s2378 + $0x78] sm:$0xff]
  %v2395 = vld [vmem:[%s2378 + $0x80] sm:$0xff]
  %v2396 = vld [vmem:[%s2378 + $0x88] sm:$0xff]
  %v2397 = vld [vmem:[%s2378 + $0x90] sm:$0xff]
  %v2398 = vld [vmem:[%s2378 + $0x98] sm:$0xff]
  %v2399 = vld [vmem:[%s2378 + $0xa0] sm:$0xff]
  %v2400 = vld [vmem:[%s2378 + $0xa8] sm:$0xff]
  %v2401 = vld [vmem:[%s2378 + $0xb0] sm:$0xff]
  %v2402 = vld [vmem:[%s2378 + $0xb8] sm:$0xff]
  %v2403 = vld [vmem:[%s2378 + $0xc0] sm:$0xff]
  %v2404 = vld [vmem:[%s2378 + $0xc8] sm:$0xff]
  %v2405 = vld [vmem:[%s2378 + $0xd0] sm:$0xff]
  %v2406 = vld [vmem:[%s2378 + $0xd8] sm:$0xff]
  %v2407 = vld [vmem:[%s2378 + $0xe0] sm:$0xff]
  %v2408 = vld [vmem:[%s2378 + $0xe8] sm:$0xff]
  %v2409 = vld [vmem:[%s2378 + $0xf0] sm:$0xff]
  %v2410 = vld [vmem:[%s2378 + $0xf8] sm:$0xff]
  %v2411 = vld [vmem:[%s2378 + $0x100] sm:$0xff]
  %v2412 = vld [vmem:[%s2378 + $0x108] sm:$0xff]
  %v2413 = vld [vmem:[%s2378 + $0x110] sm:$0xff]
  %v2414 = vld [vmem:[%s2378 + $0x118] sm:$0xff]
  %v2415 = vld [vmem:[%s2378 + $0x120] sm:$0xff]
  %v2416 = vld [vmem:[%s2378 + $0x128] sm:$0xff]
  %v2417 = vld [vmem:[%s2378 + $0x130] sm:$0xff]
  %v2418 = vld [vmem:[%s2378 + $0x138] sm:$0xff]
  %v2419 = vld [vmem:[%s2378 + $0x140] sm:$0xff]
  %v2420 = vld [vmem:[%s2378 + $0x148] sm:$0xff]
  %v2421 = vld [vmem:[%s2378 + $0x150] sm:$0xff]
  %v2422 = vld [vmem:[%s2378 + $0x158] sm:$0xff]
  %v2423 = vld [vmem:[%s2378 + $0x160] sm:$0xff]
  %v2424 = vld [vmem:[%s2378 + $0x168] sm:$0xff]
  %v2425 = vld [vmem:[%s2378 + $0x170] sm:$0xff]
  %v2426 = vld [vmem:[%s2378 + $0x178] sm:$0xff]
  %v2427 = vld [vmem:[%s2378 + $0x180] sm:$0xff]
  %v2428 = vld [vmem:[%s2378 + $0x188] sm:$0xff]
  %v2429 = vld [vmem:[%s2378 + $0x190] sm:$0xff]
  %v2430 = vld [vmem:[%s2378 + $0x198] sm:$0xff]
  %v2431 = vld [vmem:[%s2378 + $0x1a0] sm:$0xff]
  %v2432 = vld [vmem:[%s2378 + $0x1a8] sm:$0xff]
  %v2433 = vld [vmem:[%s2378 + $0x1b0] sm:$0xff]
  %v2434 = vld [vmem:[%s2378 + $0x1b8] sm:$0xff]
  %v2435 = vld [vmem:[%s2378 + $0x1c0] sm:$0xff]
  %v2436 = vld [vmem:[%s2378 + $0x1c8] sm:$0xff]
  %v2437 = vld [vmem:[%s2378 + $0x1d0] sm:$0xff]
  %v2438 = vld [vmem:[%s2378 + $0x1d8] sm:$0xff]
  %v2439 = vld [vmem:[%s2378 + $0x1e0] sm:$0xff]
  %v2440 = vld [vmem:[%s2378 + $0x1e8] sm:$0xff]
  %v2441 = vld [vmem:[%s2378 + $0x1f0] sm:$0xff]
  %v2442 = vld [vmem:[%s2378 + $0x1f8] sm:$0xff]
  %v2443 = vpack.c.bf16 %v1287, %v1285
  %v2444 = vpack.c.bf16 %v1288, %v1286
  %v2445 = vpack.c.bf16 %v1291, %v1289
  %v2446 = vpack.c.bf16 %v1292, %v1290
  %v2447 = vpack.c.bf16 %v1295, %v1293
  %v2448 = vpack.c.bf16 %v1296, %v1294
  %v2449 = vpack.c.bf16 %v1299, %v1297
  %v2450 = vpack.c.bf16 %v1300, %v1298
  %v2515 = vunpack.c.l.b16 %v2379
  %v2516 = vunpack.c.h.b16 %v2379
  %v2517 = vunpack.c.l.b16 %v2380
  %v2518 = vunpack.c.h.b16 %v2380
  %v2519 = vunpack.c.l.b16 %v2381
  %v2520 = vunpack.c.h.b16 %v2381
  %v2521 = vunpack.c.l.b16 %v2382
  %v2522 = vunpack.c.h.b16 %v2382
  %v2523 = vunpack.c.l.b16 %v2383
  %v2524 = vunpack.c.h.b16 %v2383
  %v2525 = vunpack.c.l.b16 %v2384
  %v2526 = vunpack.c.h.b16 %v2384
  %v2527 = vunpack.c.l.b16 %v2385
  %v2528 = vunpack.c.h.b16 %v2385
  %v2529 = vunpack.c.l.b16 %v2386
  %v2530 = vunpack.c.h.b16 %v2386
  %v2531 = vunpack.c.l.b16 %v2387
  %v2532 = vunpack.c.h.b16 %v2387
  %v2533 = vunpack.c.l.b16 %v2388
  %v2534 = vunpack.c.h.b16 %v2388
  %v2535 = vunpack.c.l.b16 %v2389
  %v2536 = vunpack.c.h.b16 %v2389
  %v2537 = vunpack.c.l.b16 %v2390
  %v2538 = vunpack.c.h.b16 %v2390
  %v2539 = vunpack.c.l.b16 %v2391
  %v2540 = vunpack.c.h.b16 %v2391
  %v2541 = vunpack.c.l.b16 %v2392
  %v2542 = vunpack.c.h.b16 %v2392
  %v2543 = vunpack.c.l.b16 %v2393
  %v2544 = vunpack.c.h.b16 %v2393
  %v2545 = vunpack.c.l.b16 %v2394
  %v2546 = vunpack.c.h.b16 %v2394
  %v2547 = vunpack.c.l.b16 %v2395
  %v2548 = vunpack.c.h.b16 %v2395
  %v2549 = vunpack.c.l.b16 %v2396
  %v2550 = vunpack.c.h.b16 %v2396
  %v2551 = vunpack.c.l.b16 %v2397
  %v2552 = vunpack.c.h.b16 %v2397
  %v2553 = vunpack.c.l.b16 %v2398
  %v2554 = vunpack.c.h.b16 %v2398
  %v2555 = vunpack.c.l.b16 %v2399
  %v2556 = vunpack.c.h.b16 %v2399
  %v2557 = vunpack.c.l.b16 %v2400
  %v2558 = vunpack.c.h.b16 %v2400
  %v2559 = vunpack.c.l.b16 %v2401
  %v2560 = vunpack.c.h.b16 %v2401
  %v2561 = vunpack.c.l.b16 %v2402
  %v2562 = vunpack.c.h.b16 %v2402
  %v2563 = vunpack.c.l.b16 %v2403
  %v2564 = vunpack.c.h.b16 %v2403
  %v2565 = vunpack.c.l.b16 %v2404
  %v2566 = vunpack.c.h.b16 %v2404
  %v2567 = vunpack.c.l.b16 %v2405
  %v2568 = vunpack.c.h.b16 %v2405
  %v2569 = vunpack.c.l.b16 %v2406
  %v2570 = vunpack.c.h.b16 %v2406
  %v2571 = vunpack.c.l.b16 %v2407
  %v2572 = vunpack.c.h.b16 %v2407
  %v2573 = vunpack.c.l.b16 %v2408
  %v2574 = vunpack.c.h.b16 %v2408
  %v2575 = vunpack.c.l.b16 %v2409
  %v2576 = vunpack.c.h.b16 %v2409
  %v2577 = vunpack.c.l.b16 %v2410
  %v2578 = vunpack.c.h.b16 %v2410
  %v2579 = vunpack.c.l.b16 %v2411
  %v2580 = vunpack.c.h.b16 %v2411
  %v2581 = vunpack.c.l.b16 %v2412
  %v2582 = vunpack.c.h.b16 %v2412
  %v2583 = vunpack.c.l.b16 %v2413
  %v2584 = vunpack.c.h.b16 %v2413
  %v2585 = vunpack.c.l.b16 %v2414
  %v2586 = vunpack.c.h.b16 %v2414
  %v2587 = vunpack.c.l.b16 %v2415
  %v2588 = vunpack.c.h.b16 %v2415
  %v2589 = vunpack.c.l.b16 %v2416
  %v2590 = vunpack.c.h.b16 %v2416
  %v2591 = vunpack.c.l.b16 %v2417
  %v2592 = vunpack.c.h.b16 %v2417
  %v2593 = vunpack.c.l.b16 %v2418
  %v2594 = vunpack.c.h.b16 %v2418
  %v2595 = vunpack.c.l.b16 %v2419
  %v2596 = vunpack.c.h.b16 %v2419
  %v2597 = vunpack.c.l.b16 %v2420
  %v2598 = vunpack.c.h.b16 %v2420
  %v2599 = vunpack.c.l.b16 %v2421
  %v2600 = vunpack.c.h.b16 %v2421
  %v2601 = vunpack.c.l.b16 %v2422
  %v2602 = vunpack.c.h.b16 %v2422
  %v2603 = vunpack.c.l.b16 %v2423
  %v2604 = vunpack.c.h.b16 %v2423
  %v2605 = vunpack.c.l.b16 %v2424
  %v2606 = vunpack.c.h.b16 %v2424
  %v2607 = vunpack.c.l.b16 %v2425
  %v2608 = vunpack.c.h.b16 %v2425
  %v2609 = vunpack.c.l.b16 %v2426
  %v2610 = vunpack.c.h.b16 %v2426
  %v2611 = vunpack.c.l.b16 %v2427
  %v2612 = vunpack.c.h.b16 %v2427
  %v2613 = vunpack.c.l.b16 %v2428
  %v2614 = vunpack.c.h.b16 %v2428
  %v2615 = vunpack.c.l.b16 %v2429
  %v2616 = vunpack.c.h.b16 %v2429
  %v2617 = vunpack.c.l.b16 %v2430
  %v2618 = vunpack.c.h.b16 %v2430
  %v2619 = vunpack.c.l.b16 %v2431
  %v2620 = vunpack.c.h.b16 %v2431
  %v2621 = vunpack.c.l.b16 %v2432
  %v2622 = vunpack.c.h.b16 %v2432
  %v2623 = vunpack.c.l.b16 %v2433
  %v2624 = vunpack.c.h.b16 %v2433
  %v2625 = vunpack.c.l.b16 %v2434
  %v2626 = vunpack.c.h.b16 %v2434
  %v2627 = vunpack.c.l.b16 %v2435
  %v2628 = vunpack.c.h.b16 %v2435
  %v2629 = vunpack.c.l.b16 %v2436
  %v2630 = vunpack.c.h.b16 %v2436
  %v2631 = vunpack.c.l.b16 %v2437
  %v2632 = vunpack.c.h.b16 %v2437
  %v2633 = vunpack.c.l.b16 %v2438
  %v2634 = vunpack.c.h.b16 %v2438
  %v2635 = vunpack.c.l.b16 %v2439
  %v2636 = vunpack.c.h.b16 %v2439
  %v2637 = vunpack.c.l.b16 %v2440
  %v2638 = vunpack.c.h.b16 %v2440
  %v2639 = vunpack.c.l.b16 %v2441
  %v2640 = vunpack.c.h.b16 %v2441
  %v2641 = vunpack.c.l.b16 %v2442
  %v2642 = vunpack.c.h.b16 %v2442
  %v2643 = vpack.c.b16 %v2519, %v2515
  %v2644 = vpack.c.b16 %v2520, %v2516
  %v2645 = vpack.c.b16 %v2521, %v2517
  %v2646 = vpack.c.b16 %v2522, %v2518
  %v2647 = vpack.c.b16 %v2527, %v2523
  %v2648 = vpack.c.b16 %v2528, %v2524
  %v2649 = vpack.c.b16 %v2529, %v2525
  %v2650 = vpack.c.b16 %v2530, %v2526
  %v2651 = vpack.c.b16 %v2535, %v2531
  %v2652 = vpack.c.b16 %v2536, %v2532
  %v2653 = vpack.c.b16 %v2537, %v2533
  %v2654 = vpack.c.b16 %v2538, %v2534
  %v2655 = vpack.c.b16 %v2543, %v2539
  %v2656 = vpack.c.b16 %v2544, %v2540
  %v2657 = vpack.c.b16 %v2545, %v2541
  %v2658 = vpack.c.b16 %v2546, %v2542
  %v2659 = vpack.c.b16 %v2551, %v2547
  %v2660 = vpack.c.b16 %v2552, %v2548
  %v2661 = vpack.c.b16 %v2553, %v2549
  %v2662 = vpack.c.b16 %v2554, %v2550
  %v2663 = vpack.c.b16 %v2559, %v2555
  %v2664 = vpack.c.b16 %v2560, %v2556
  %v2665 = vpack.c.b16 %v2561, %v2557
  %v2666 = vpack.c.b16 %v2562, %v2558
  %v2667 = vpack.c.b16 %v2567, %v2563
  %v2668 = vpack.c.b16 %v2568, %v2564
  %v2669 = vpack.c.b16 %v2569, %v2565
  %v2670 = vpack.c.b16 %v2570, %v2566
  %v2671 = vpack.c.b16 %v2575, %v2571
  %v2672 = vpack.c.b16 %v2576, %v2572
  %v2673 = vpack.c.b16 %v2577, %v2573
  %v2674 = vpack.c.b16 %v2578, %v2574
  %v2675 = vpack.c.b16 %v2583, %v2579
  %v2676 = vpack.c.b16 %v2584, %v2580
  %v2677 = vpack.c.b16 %v2585, %v2581
  %v2678 = vpack.c.b16 %v2586, %v2582
  %v2679 = vpack.c.b16 %v2591, %v2587
  %v2680 = vpack.c.b16 %v2592, %v2588
  %v2681 = vpack.c.b16 %v2593, %v2589
  %v2682 = vpack.c.b16 %v2594, %v2590
  %v2683 = vpack.c.b16 %v2599, %v2595
  %v2684 = vpack.c.b16 %v2600, %v2596
  %v2685 = vpack.c.b16 %v2601, %v2597
  %v2686 = vpack.c.b16 %v2602, %v2598
  %v2687 = vpack.c.b16 %v2607, %v2603
  %v2688 = vpack.c.b16 %v2608, %v2604
  %v2689 = vpack.c.b16 %v2609, %v2605
  %v2690 = vpack.c.b16 %v2610, %v2606
  %v2691 = vpack.c.b16 %v2615, %v2611
  %v2692 = vpack.c.b16 %v2616, %v2612
  %v2693 = vpack.c.b16 %v2617, %v2613
  %v2694 = vpack.c.b16 %v2618, %v2614
  %v2695 = vpack.c.b16 %v2623, %v2619
  %v2696 = vpack.c.b16 %v2624, %v2620
  %v2697 = vpack.c.b16 %v2625, %v2621
  %v2698 = vpack.c.b16 %v2626, %v2622
  %v2699 = vpack.c.b16 %v2631, %v2627
  %v2700 = vpack.c.b16 %v2632, %v2628
  %v2701 = vpack.c.b16 %v2633, %v2629
  %v2702 = vpack.c.b16 %v2634, %v2630
  %v2703 = vpack.c.b16 %v2639, %v2635
  %v2704 = vpack.c.b16 %v2640, %v2636
  %v2705 = vpack.c.b16 %v2641, %v2637
  %v2706 = vpack.c.b16 %v2642, %v2638
  %2771 = vmatprep.subr.bf16.mxu0 %v2644
  %2772 = vmatpush1.bf16.msra.mxu0 %v2643
  %2773 = vmatprep.subr.bf16.mxu0 %v2648
  %2774 = vmatpush1.bf16.msra.mxu0 %v2647
  %2775 = vmatprep.subr.bf16.mxu0 %v2652
  %2776 = vmatpush1.bf16.msra.mxu0 %v2651
  %2777 = vmatprep.subr.bf16.mxu0 %v2656
  %2778 = vmatpush1.bf16.msra.mxu0 %v2655
  %2779 = vmatprep.subr.bf16.mxu0 %v2660
  %2780 = vmatpush1.bf16.msra.mxu0 %v2659
  %2781 = vmatprep.subr.bf16.mxu0 %v2664
  %2782 = vmatpush1.bf16.msra.mxu0 %v2663
  %2783 = vmatprep.subr.bf16.mxu0 %v2668
  %2784 = vmatpush1.bf16.msra.mxu0 %v2667
  %2785 = vmatprep.subr.bf16.mxu0 %v2672
  %2786 = vmatpush1.bf16.msra.mxu0 %v2671
  %2787 = vmatprep.subr.bf16.mxu0 %v2676
  %2788 = vmatpush1.bf16.msra.mxu0 %v2675
  %2789 = vmatprep.subr.bf16.mxu0 %v2680
  %2790 = vmatpush1.bf16.msra.mxu0 %v2679
  %2791 = vmatprep.subr.bf16.mxu0 %v2684
  %2792 = vmatpush1.bf16.msra.mxu0 %v2683
  %2793 = vmatprep.subr.bf16.mxu0 %v2688
  %2794 = vmatpush1.bf16.msra.mxu0 %v2687
  %2795 = vmatprep.subr.bf16.mxu0 %v2692
  %2796 = vmatpush1.bf16.msra.mxu0 %v2691
  %2797 = vmatprep.subr.bf16.mxu0 %v2696
  %2798 = vmatpush1.bf16.msra.mxu0 %v2695
  %2799 = vmatprep.subr.bf16.mxu0 %v2700
  %2800 = vmatpush1.bf16.msra.mxu0 %v2699
  %2801 = vmatprep.subr.bf16.mxu0 %v2704
  %2802 = vmatpush1.bf16.msra.mxu0 %v2703
  %2803 = vmatprep.mubr.bf16.mxu0 %v2444
  %2804 = vmatmul.mubr.bf16.gmra.mrb[0].mxu0 %v2443
  %v2805 = vpop.f32.mrb[0].mxu0
  %v2806 = vadd.f32 0.0, %v2805
  %v2807 = vpop.f32.mrb[0].mxu0
  %v2808 = vadd.f32 0.0, %v2807
  %v2809 = vpop.f32.mrb[0].mxu0
  %v2810 = vadd.f32 0.0, %v2809
  %v2811 = vpop.f32.mrb[0].mxu0
  %v2812 = vadd.f32 0.0, %v2811
  %2813 = vmatprep.mubr.bf16.mxu0 %v2446
  %2814 = vmatmul.mubr.bf16.gmra.mrb[0].mxu0 %v2445
  %v2815 = vpop.f32.mrb[0].mxu0
  %v2816 = vadd.f32 0.0, %v2815
  %v2817 = vpop.f32.mrb[0].mxu0
  %v2818 = vadd.f32 0.0, %v2817
  %v2819 = vpop.f32.mrb[0].mxu0
  %v2820 = vadd.f32 0.0, %v2819
  %v2821 = vpop.f32.mrb[0].mxu0
  %v2822 = vadd.f32 0.0, %v2821
  %2823 = vmatprep.mubr.bf16.mxu0 %v2448
  %2824 = vmatmul.mubr.bf16.gmra.mrb[0].mxu0 %v2447
  %v2825 = vpop.f32.mrb[0].mxu0
  %v2826 = vadd.f32 0.0, %v2825
  %v2827 = vpop.f32.mrb[0].mxu0
  %v2828 = vadd.f32 0.0, %v2827
  %v2829 = vpop.f32.mrb[0].mxu0
  %v2830 = vadd.f32 0.0, %v2829
  %v2831 = vpop.f32.mrb[0].mxu0
  %v2832 = vadd.f32 0.0, %v2831
  %2833 = vmatprep.mubr.bf16.mxu0 %v2450
  %2834 = vmatmul.mubr.bf16.gmra.mrb[0].mxu0 %v2449
  %v2835 = vpop.f32.mrb[0].mxu0
  %v2836 = vadd.f32 0.0, %v2835
  %v2837 = vpop.f32.mrb[0].mxu0
  %v2838 = vadd.f32 0.0, %v2837
  %v2839 = vpop.f32.mrb[0].mxu0
  %v2840 = vadd.f32 0.0, %v2839
  %v2841 = vpop.f32.mrb[0].mxu0
  %v2842 = vadd.f32 0.0, %v2841
  %2843 = vdwg.mxu0
  %2844 = vmatprep.subr.bf16.mxu0 %v2646
  %2845 = vmatpush1.bf16.msra.mxu0 %v2645
  %2846 = vmatprep.subr.bf16.mxu0 %v2650
  %2847 = vmatpush1.bf16.msra.mxu0 %v2649
  %2848 = vmatprep.subr.bf16.mxu0 %v2654
  %2849 = vmatpush1.bf16.msra.mxu0 %v2653
  %2850 = vmatprep.subr.bf16.mxu0 %v2658
  %2851 = vmatpush1.bf16.msra.mxu0 %v2657
  %2852 = vmatprep.subr.bf16.mxu0 %v2662
  %2853 = vmatpush1.bf16.msra.mxu0 %v2661
  %2854 = vmatprep.subr.bf16.mxu0 %v2666
  %2855 = vmatpush1.bf16.msra.mxu0 %v2665
  %2856 = vmatprep.subr.bf16.mxu0 %v2670
  %2857 = vmatpush1.bf16.msra.mxu0 %v2669
  %2858 = vmatprep.subr.bf16.mxu0 %v2674
  %2859 = vmatpush1.bf16.msra.mxu0 %v2673
  %2860 = vmatprep.subr.bf16.mxu0 %v2678
  %2861 = vmatpush1.bf16.msra.mxu0 %v2677
  %2862 = vmatprep.subr.bf16.mxu0 %v2682
  %2863 = vmatpush1.bf16.msra.mxu0 %v2681
  %2864 = vmatprep.subr.bf16.mxu0 %v2686
  %2865 = vmatpush1.bf16.msra.mxu0 %v2685
  %2866 = vmatprep.subr.bf16.mxu0 %v2690
  %2867 = vmatpush1.bf16.msra.mxu0 %v2689
  %2868 = vmatprep.subr.bf16.mxu0 %v2694
  %2869 = vmatpush1.bf16.msra.mxu0 %v2693
  %2870 = vmatprep.subr.bf16.mxu0 %v2698
  %2871 = vmatpush1.bf16.msra.mxu0 %v2697
  %2872 = vmatprep.subr.bf16.mxu0 %v2702
  %2873 = vmatpush1.bf16.msra.mxu0 %v2701
  %2874 = vmatprep.subr.bf16.mxu0 %v2706
  %2875 = vmatpush1.bf16.msra.mxu0 %v2705
  %2876 = vmatprep.mubr.bf16.mxu0 %v2444
  %2877 = vmatmul.mubr.bf16.gmra.mrb[0].mxu0 %v2443
  %v2878 = vpop.f32.mrb[0].mxu0
  %v2879 = vadd.f32 0.0, %v2878
  %v2880 = vpop.f32.mrb[0].mxu0
  %v2881 = vadd.f32 0.0, %v2880
  %v2882 = vpop.f32.mrb[0].mxu0
  %v2883 = vadd.f32 0.0, %v2882
  %v2884 = vpop.f32.mrb[0].mxu0
  %v2885 = vadd.f32 0.0, %v2884
  %2886 = vmatprep.mubr.bf16.mxu0 %v2446
  %2887 = vmatmul.mubr.bf16.gmra.mrb[0].mxu0 %v2445
  %v2888 = vpop.f32.mrb[0].mxu0
  %v2889 = vadd.f32 0.0, %v2888
  %v2890 = vpop.f32.mrb[0].mxu0
  %v2891 = vadd.f32 0.0, %v2890
  %v2892 = vpop.f32.mrb[0].mxu0
  %v2893 = vadd.f32 0.0, %v2892
  %v2894 = vpop.f32.mrb[0].mxu0
  %v2895 = vadd.f32 0.0, %v2894
  %2896 = vmatprep.mubr.bf16.mxu0 %v2448
  %2897 = vmatmul.mubr.bf16.gmra.mrb[0].mxu0 %v2447
  %v2898 = vpop.f32.mrb[0].mxu0
  %v2899 = vadd.f32 0.0, %v2898
  %v2900 = vpop.f32.mrb[0].mxu0
  %v2901 = vadd.f32 0.0, %v2900
  %v2902 = vpop.f32.mrb[0].mxu0
  %v2903 = vadd.f32 0.0, %v2902
  %v2904 = vpop.f32.mrb[0].mxu0
  %v2905 = vadd.f32 0.0, %v2904
  %2906 = vmatprep.mubr.bf16.mxu0 %v2450
  %2907 = vmatmul.mubr.bf16.gmra.mrb[0].mxu0 %v2449
  %v2908 = vpop.f32.mrb[0].mxu0
  %v2909 = vadd.f32 0.0, %v2908
  %v2910 = vpop.f32.mrb[0].mxu0
  %v2911 = vadd.f32 0.0, %v2910
  %v2912 = vpop.f32.mrb[0].mxu0
  %v2913 = vadd.f32 0.0, %v2912
  %v2914 = vpop.f32.mrb[0].mxu0
  %v2915 = vadd.f32 0.0, %v2914
  %2916 = vdwg.mxu0
  %v2917 = vadd.f32 %v2267, %v2806
  %v2918 = vadd.f32 %v2269, %v2808
  %v2919 = vadd.f32 %v2340, %v2879
  %v2920 = vadd.f32 %v2342, %v2881
  %v2921 = vadd.f32 %v2271, %v2810
  %v2922 = vadd.f32 %v2273, %v2812
  %v2923 = vadd.f32 %v2344, %v2883
  %v2924 = vadd.f32 %v2346, %v2885
  %v2925 = vadd.f32 %v2277, %v2816
  %v2926 = vadd.f32 %v2279, %v2818
  %v2927 = vadd.f32 %v2350, %v2889
  %v2928 = vadd.f32 %v2352, %v2891
  %v2929 = vadd.f32 %v2281, %v2820
  %v2930 = vadd.f32 %v2283, %v2822
  %v2931 = vadd.f32 %v2354, %v2893
  %v2932 = vadd.f32 %v2356, %v2895
  %v2933 = vadd.f32 %v2287, %v2826
  %v2934 = vadd.f32 %v2289, %v2828
  %v2935 = vadd.f32 %v2360, %v2899
  %v2936 = vadd.f32 %v2362, %v2901
  %v2937 = vadd.f32 %v2291, %v2830
  %v2938 = vadd.f32 %v2293, %v2832
  %v2939 = vadd.f32 %v2364, %v2903
  %v2940 = vadd.f32 %v2366, %v2905
  %v2941 = vadd.f32 %v2297, %v2836
  %v2942 = vadd.f32 %v2299, %v2838
  %v2943 = vadd.f32 %v2370, %v2909
  %v2944 = vadd.f32 %v2372, %v2911
  %v2945 = vadd.f32 %v2301, %v2840
  %v2946 = vadd.f32 %v2303, %v2842
  %v2947 = vadd.f32 %v2374, %v2913
  %v2948 = vadd.f32 %v2376, %v2915
  %v2949 = vld [vmem:[%s11 + $0x2] sm:$0x1]
  %v2950 = vld [vmem:[%s11 + $0x3] sm:$0x1]
  %v2951 = vld [vmem:[%s7] sm:$0xff]
  %v2952 = vld [vmem:[%s7 + $0x8] sm:$0xff]
  %v2953 = vld [vmem:[%s7 + $0x10] sm:$0xff]
  %v2954 = vld [vmem:[%s7 + $0x18] sm:$0xff]
  %v2955 = vld [vmem:[%s7 + $0x20] sm:$0xff]
  %v2956 = vld [vmem:[%s7 + $0x28] sm:$0xff]
  %v2957 = vld [vmem:[%s7 + $0x30] sm:$0xff]
  %v2958 = vld [vmem:[%s7 + $0x38] sm:$0xff]
  %v2959 = vld [vmem:[%s7 + $0x40] sm:$0xff]
  %v2960 = vld [vmem:[%s7 + $0x48] sm:$0xff]
  %v2961 = vld [vmem:[%s7 + $0x50] sm:$0xff]
  %v2962 = vld [vmem:[%s7 + $0x58] sm:$0xff]
  %v2963 = vld [vmem:[%s7 + $0x60] sm:$0xff]
  %v2964 = vld [vmem:[%s7 + $0x68] sm:$0xff]
  %v2965 = vld [vmem:[%s7 + $0x70] sm:$0xff]
  %v2966 = vld [vmem:[%s7 + $0x78] sm:$0xff]
  %v2967 = vld [vmem:[%s7 + $0x80] sm:$0xff]
  %v2968 = vld [vmem:[%s7 + $0x88] sm:$0xff]
  %v2969 = vld [vmem:[%s7 + $0x90] sm:$0xff]
  %v2970 = vld [vmem:[%s7 + $0x98] sm:$0xff]
  %v2971 = vld [vmem:[%s7 + $0xa0] sm:$0xff]
  %v2972 = vld [vmem:[%s7 + $0xa8] sm:$0xff]
  %v2973 = vld [vmem:[%s7 + $0xb0] sm:$0xff]
  %v2974 = vld [vmem:[%s7 + $0xb8] sm:$0xff]
  %v2975 = vld [vmem:[%s7 + $0xc0] sm:$0xff]
  %v2976 = vld [vmem:[%s7 + $0xc8] sm:$0xff]
  %v2977 = vld [vmem:[%s7 + $0xd0] sm:$0xff]
  %v2978 = vld [vmem:[%s7 + $0xd8] sm:$0xff]
  %v2979 = vld [vmem:[%s7 + $0xe0] sm:$0xff]
  %v2980 = vld [vmem:[%s7 + $0xe8] sm:$0xff]
  %v2981 = vld [vmem:[%s7 + $0xf0] sm:$0xff]
  %v2982 = vld [vmem:[%s7 + $0xf8] sm:$0xff]
  %v2983 = vld [vmem:[%s7 + $0x100] sm:$0xff]
  %v2984 = vld [vmem:[%s7 + $0x108] sm:$0xff]
  %v2985 = vld [vmem:[%s7 + $0x110] sm:$0xff]
  %v2986 = vld [vmem:[%s7 + $0x118] sm:$0xff]
  %v2987 = vld [vmem:[%s7 + $0x120] sm:$0xff]
  %v2988 = vld [vmem:[%s7 + $0x128] sm:$0xff]
  %v2989 = vld [vmem:[%s7 + $0x130] sm:$0xff]
  %v2990 = vld [vmem:[%s7 + $0x138] sm:$0xff]
  %v2991 = vld [vmem:[%s7 + $0x140] sm:$0xff]
  %v2992 = vld [vmem:[%s7 + $0x148] sm:$0xff]
  %v2993 = vld [vmem:[%s7 + $0x150] sm:$0xff]
  %v2994 = vld [vmem:[%s7 + $0x158] sm:$0xff]
  %v2995 = vld [vmem:[%s7 + $0x160] sm:$0xff]
  %v2996 = vld [vmem:[%s7 + $0x168] sm:$0xff]
  %v2997 = vld [vmem:[%s7 + $0x170] sm:$0xff]
  %v2998 = vld [vmem:[%s7 + $0x178] sm:$0xff]
  %v2999 = vld [vmem:[%s7 + $0x180] sm:$0xff]
  %v3000 = vld [vmem:[%s7 + $0x188] sm:$0xff]
  %v3001 = vld [vmem:[%s7 + $0x190] sm:$0xff]
  %v3002 = vld [vmem:[%s7 + $0x198] sm:$0xff]
  %v3003 = vld [vmem:[%s7 + $0x1a0] sm:$0xff]
  %v3004 = vld [vmem:[%s7 + $0x1a8] sm:$0xff]
  %v3005 = vld [vmem:[%s7 + $0x1b0] sm:$0xff]
  %v3006 = vld [vmem:[%s7 + $0x1b8] sm:$0xff]
  %v3007 = vld [vmem:[%s7 + $0x1c0] sm:$0xff]
  %v3008 = vld [vmem:[%s7 + $0x1c8] sm:$0xff]
  %v3009 = vld [vmem:[%s7 + $0x1d0] sm:$0xff]
  %v3010 = vld [vmem:[%s7 + $0x1d8] sm:$0xff]
  %v3011 = vld [vmem:[%s7 + $0x1e0] sm:$0xff]
  %v3012 = vld [vmem:[%s7 + $0x1e8] sm:$0xff]
  %v3013 = vld [vmem:[%s7 + $0x1f0] sm:$0xff]
  %v3014 = vld [vmem:[%s7 + $0x1f8] sm:$0xff]
  %v3015 = vld [vmem:[%s8] sm:$0xff]
  %v3016 = vld [vmem:[%s8 + $0x8] sm:$0xff]
  %v3017 = vld [vmem:[%s8 + $0x10] sm:$0xff]
  %v3018 = vld [vmem:[%s8 + $0x18] sm:$0xff]
  %v3019 = vld [vmem:[%s8 + $0x20] sm:$0xff]
  %v3020 = vld [vmem:[%s8 + $0x28] sm:$0xff]
  %v3021 = vld [vmem:[%s8 + $0x30] sm:$0xff]
  %v3022 = vld [vmem:[%s8 + $0x38] sm:$0xff]
  %v3023 = vld [vmem:[%s8 + $0x40] sm:$0xff]
  %v3024 = vld [vmem:[%s8 + $0x48] sm:$0xff]
  %v3025 = vld [vmem:[%s8 + $0x50] sm:$0xff]
  %v3026 = vld [vmem:[%s8 + $0x58] sm:$0xff]
  %v3027 = vld [vmem:[%s8 + $0x60] sm:$0xff]
  %v3028 = vld [vmem:[%s8 + $0x68] sm:$0xff]
  %v3029 = vld [vmem:[%s8 + $0x70] sm:$0xff]
  %v3030 = vld [vmem:[%s8 + $0x78] sm:$0xff]
  %v3031 = vadd.f32 %v2917, %v2921
  %v3032 = vadd.f32 %v3031, %v2925
  %v3033 = vadd.f32 %v3032, %v2929
  %v3034 = vadd.f32 %v3033, %v2933
  %v3035 = vadd.f32 %v3034, %v2937
  %v3036 = vadd.f32 %v3035, %v2941
  %v3037 = vadd.f32 %v3036, %v2945
  %v3038 = vrot.slane %v3037, 4
  %v3039 = vadd.f32 %v3037, %v3038
  %v3040 = vrot.slane %v3039, 2
  %v3041 = vadd.f32 %v3039, %v3040
  %v3042 = vrot.slane %v3041, 1
  %v3043 = vadd.f32 %v3041, %v3042
  %v3044 = vadd.f32 %v2918, %v2922
  %v3045 = vadd.f32 %v3044, %v2926
  %v3046 = vadd.f32 %v3045, %v2930
  %v3047 = vadd.f32 %v3046, %v2934
  %v3048 = vadd.f32 %v3047, %v2938
  %v3049 = vadd.f32 %v3048, %v2942
  %v3050 = vadd.f32 %v3049, %v2946
  %v3051 = vrot.slane %v3050, 4
  %v3052 = vadd.f32 %v3050, %v3051
  %v3053 = vrot.slane %v3052, 2
  %v3054 = vadd.f32 %v3052, %v3053
  %v3055 = vrot.slane %v3054, 1
  %v3056 = vadd.f32 %v3054, %v3055
  %v3057 = vadd.f32 %v2919, %v2923
  %v3058 = vadd.f32 %v3057, %v2927
  %v3059 = vadd.f32 %v3058, %v2931
  %v3060 = vadd.f32 %v3059, %v2935
  %v3061 = vadd.f32 %v3060, %v2939
  %v3062 = vadd.f32 %v3061, %v2943
  %v3063 = vadd.f32 %v3062, %v2947
  %v3064 = vrot.slane %v3063, 4
  %v3065 = vadd.f32 %v3063, %v3064
  %v3066 = vrot.slane %v3065, 2
  %v3067 = vadd.f32 %v3065, %v3066
  %v3068 = vrot.slane %v3067, 1
  %v3069 = vadd.f32 %v3067, %v3068
  %v3070 = vadd.f32 %v2920, %v2924
  %v3071 = vadd.f32 %v3070, %v2928
  %v3072 = vadd.f32 %v3071, %v2932
  %v3073 = vadd.f32 %v3072, %v2936
  %v3074 = vadd.f32 %v3073, %v2940
  %v3075 = vadd.f32 %v3074, %v2944
  %v3076 = vadd.f32 %v3075, %v2948
  %v3077 = vrot.slane %v3076, 4
  %v3078 = vadd.f32 %v3076, %v3077
  %v3079 = vrot.slane %v3078, 2
  %v3080 = vadd.f32 %v3078, %v3079
  %v3081 = vrot.slane %v3080, 1
  %v3082 = vadd.f32 %v3080, %v3081
  %v3083 = vmul.f32 %v2917, %v2917
  %v3084 = vmul.f32 %v2918, %v2918
  %v3085 = vmul.f32 %v2919, %v2919
  %v3086 = vmul.f32 %v2920, %v2920
  %v3087 = vmul.f32 %v2921, %v2921
  %v3088 = vmul.f32 %v2922, %v2922
  %v3089 = vmul.f32 %v2923, %v2923
  %v3090 = vmul.f32 %v2924, %v2924
  %v3091 = vmul.f32 %v2925, %v2925
  %v3092 = vmul.f32 %v2926, %v2926
  %v3093 = vmul.f32 %v2927, %v2927
  %v3094 = vmul.f32 %v2928, %v2928
  %v3095 = vmul.f32 %v2929, %v2929
  %v3096 = vmul.f32 %v2930, %v2930
  %v3097 = vmul.f32 %v2931, %v2931
  %v3098 = vmul.f32 %v2932, %v2932
  %v3099 = vmul.f32 %v2933, %v2933
  %v3100 = vmul.f32 %v2934, %v2934
  %v3101 = vmul.f32 %v2935, %v2935
  %v3102 = vmul.f32 %v2936, %v2936
  %v3103 = vmul.f32 %v2937, %v2937
  %v3104 = vmul.f32 %v2938, %v2938
  %v3105 = vmul.f32 %v2939, %v2939
  %v3106 = vmul.f32 %v2940, %v2940
  %v3107 = vmul.f32 %v2941, %v2941
  %v3108 = vmul.f32 %v2942, %v2942
  %v3109 = vmul.f32 %v2943, %v2943
  %v3110 = vmul.f32 %v2944, %v2944
  %v3111 = vmul.f32 %v2945, %v2945
  %v3112 = vmul.f32 %v2946, %v2946
  %v3113 = vmul.f32 %v2947, %v2947
  %v3114 = vmul.f32 %v2948, %v2948
  %v3115 = vadd.f32 %v3083, %v3087
  %v3116 = vadd.f32 %v3115, %v3091
  %v3117 = vadd.f32 %v3116, %v3095
  %v3118 = vadd.f32 %v3117, %v3099
  %v3119 = vadd.f32 %v3118, %v3103
  %v3120 = vadd.f32 %v3119, %v3107
  %v3121 = vadd.f32 %v3120, %v3111
  %v3122 = vrot.slane %v3121, 4
  %v3123 = vadd.f32 %v3121, %v3122
  %v3124 = vrot.slane %v3123, 2
  %v3125 = vadd.f32 %v3123, %v3124
  %v3126 = vrot.slane %v3125, 1
  %v3127 = vadd.f32 %v3125, %v3126
  %v3128 = vadd.f32 %v3084, %v3088
  %v3129 = vadd.f32 %v3128, %v3092
  %v3130 = vadd.f32 %v3129, %v3096
  %v3131 = vadd.f32 %v3130, %v3100
  %v3132 = vadd.f32 %v3131, %v3104
  %v3133 = vadd.f32 %v3132, %v3108
  %v3134 = vadd.f32 %v3133, %v3112
  %v3135 = vrot.slane %v3134, 4
  %v3136 = vadd.f32 %v3134, %v3135
  %v3137 = vrot.slane %v3136, 2
  %v3138 = vadd.f32 %v3136, %v3137
  %v3139 = vrot.slane %v3138, 1
  %v3140 = vadd.f32 %v3138, %v3139
  %v3141 = vadd.f32 %v3085, %v3089
  %v3142 = vadd.f32 %v3141, %v3093
  %v3143 = vadd.f32 %v3142, %v3097
  %v3144 = vadd.f32 %v3143, %v3101
  %v3145 = vadd.f32 %v3144, %v3105
  %v3146 = vadd.f32 %v3145, %v3109
  %v3147 = vadd.f32 %v3146, %v3113
  %v3148 = vrot.slane %v3147, 4
  %v3149 = vadd.f32 %v3147, %v3148
  %v3150 = vrot.slane %v3149, 2
  %v3151 = vadd.f32 %v3149, %v3150
  %v3152 = vrot.slane %v3151, 1
  %v3153 = vadd.f32 %v3151, %v3152
  %v3154 = vadd.f32 %v3086, %v3090
  %v3155 = vadd.f32 %v3154, %v3094
  %v3156 = vadd.f32 %v3155, %v3098
  %v3157 = vadd.f32 %v3156, %v3102
  %v3158 = vadd.f32 %v3157, %v3106
  %v3159 = vadd.f32 %v3158, %v3110
  %v3160 = vadd.f32 %v3159, %v3114
  %v3161 = vrot.slane %v3160, 4
  %v3162 = vadd.f32 %v3160, %v3161
  %v3163 = vrot.slane %v3162, 2
  %v3164 = vadd.f32 %v3162, %v3163
  %v3165 = vrot.slane %v3164, 1
  %v3166 = vadd.f32 %v3164, %v3165
  %v3167 = vsel %vm847, %v3043, %v3127
  %v3168 = vsel %vm847, %v3056, %v3140
  %v3169 = vsel %vm847, %v3069, %v3153
  %v3170 = vsel %vm847, %v3082, %v3166
  %3171 = vmatprep.subr.mxu0 0.0
  %3172 = vmatpush1.msra.mxu0 %v2951
  %3173 = vmatprep.subr.mxu0 0.0
  %3174 = vmatpush1.msra.mxu0 %v2952
  %3175 = vmatprep.subr.mxu0 0.0
  %3176 = vmatpush1.msra.mxu0 %v2953
  %3177 = vmatprep.subr.mxu0 0.0
  %3178 = vmatpush1.msra.mxu0 %v2954
  %3179 = vmatprep.subr.mxu0 0.0
  %3180 = vmatpush1.msra.mxu0 %v2955
  %3181 = vmatprep.subr.mxu0 0.0
  %3182 = vmatpush1.msra.mxu0 %v2956
  %3183 = vmatprep.subr.mxu0 0.0
  %3184 = vmatpush1.msra.mxu0 %v2957
  %3185 = vmatprep.subr.mxu0 0.0
  %3186 = vmatpush1.msra.mxu0 %v2958
  %3187 = vmatprep.subr.mxu0 0.0
  %3188 = vmatpush1.msra.mxu0 %v2959
  %3189 = vmatprep.subr.mxu0 0.0
  %3190 = vmatpush1.msra.mxu0 %v2960
  %3191 = vmatprep.subr.mxu0 0.0
  %3192 = vmatpush1.msra.mxu0 %v2961
  %3193 = vmatprep.subr.mxu0 0.0
  %3194 = vmatpush1.msra.mxu0 %v2962
  %3195 = vmatprep.subr.mxu0 0.0
  %3196 = vmatpush1.msra.mxu0 %v2963
  %3197 = vmatprep.subr.mxu0 0.0
  %3198 = vmatpush1.msra.mxu0 %v2964
  %3199 = vmatprep.subr.mxu0 0.0
  %3200 = vmatpush1.msra.mxu0 %v2965
  %3201 = vmatprep.subr.mxu0 0.0
  %3202 = vmatpush1.msra.mxu0 %v2966
  %3203 = vmatprep.subr.mxu0 0.0
  %3204 = vmatpush1.msra.mxu0 %v2967
  %3205 = vmatprep.subr.mxu0 0.0
  %3206 = vmatpush1.msra.mxu0 %v2968
  %3207 = vmatprep.subr.mxu0 0.0
  %3208 = vmatpush1.msra.mxu0 %v2969
  %3209 = vmatprep.subr.mxu0 0.0
  %3210 = vmatpush1.msra.mxu0 %v2970
  %3211 = vmatprep.subr.mxu0 0.0
  %3212 = vmatpush1.msra.mxu0 %v2971
  %3213 = vmatprep.subr.mxu0 0.0
  %3214 = vmatpush1.msra.mxu0 %v2972
  %3215 = vmatprep.subr.mxu0 0.0
  %3216 = vmatpush1.msra.mxu0 %v2973
  %3217 = vmatprep.subr.mxu0 0.0
  %3218 = vmatpush1.msra.mxu0 %v2974
  %3219 = vmatprep.subr.mxu0 0.0
  %3220 = vmatpush1.msra.mxu0 %v2975
  %3221 = vmatprep.subr.mxu0 0.0
  %3222 = vmatpush1.msra.mxu0 %v2976
  %3223 = vmatprep.subr.mxu0 0.0
  %3224 = vmatpush1.msra.mxu0 %v2977
  %3225 = vmatprep.subr.mxu0 0.0
  %3226 = vmatpush1.msra.mxu0 %v2978
  %3227 = vmatprep.subr.mxu0 0.0
  %3228 = vmatpush1.msra.mxu0 %v2979
  %3229 = vmatprep.subr.mxu0 0.0
  %3230 = vmatpush1.msra.mxu0 %v2980
  %3231 = vmatprep.subr.mxu0 0.0
  %3232 = vmatpush1.msra.mxu0 %v2981
  %3233 = vmatprep.subr.mxu0 0.0
  %3234 = vmatpush1.msra.mxu0 %v2982
  %3235 = vmatprep.mubr.f32.mxu0 %v3168
  %3236 = vmatmul.mubr.f32.gmra.mrb[0].mxu0 %v3167
  %v3237 = vpop.f32.mrb[0].mxu0
  %v3238 = vadd.f32 0.0, %v3237
  %v3239 = vpop.f32.mrb[0].mxu0
  %3240 = vdwg.mxu0
  %3241 = vmatprep.subr.mxu0 0.0
  %3242 = vmatpush1.msra.mxu0 %v2983
  %3243 = vmatprep.subr.mxu0 0.0
  %3244 = vmatpush1.msra.mxu0 %v2984
  %3245 = vmatprep.subr.mxu0 0.0
  %3246 = vmatpush1.msra.mxu0 %v2985
  %3247 = vmatprep.subr.mxu0 0.0
  %3248 = vmatpush1.msra.mxu0 %v2986
  %3249 = vmatprep.subr.mxu0 0.0
  %3250 = vmatpush1.msra.mxu0 %v2987
  %3251 = vmatprep.subr.mxu0 0.0
  %3252 = vmatpush1.msra.mxu0 %v2988
  %3253 = vmatprep.subr.mxu0 0.0
  %3254 = vmatpush1.msra.mxu0 %v2989
  %3255 = vmatprep.subr.mxu0 0.0
  %3256 = vmatpush1.msra.mxu0 %v2990
  %3257 = vmatprep.subr.mxu0 0.0
  %3258 = vmatpush1.msra.mxu0 %v2991
  %3259 = vmatprep.subr.mxu0 0.0
  %3260 = vmatpush1.msra.mxu0 %v2992
  %3261 = vmatprep.subr.mxu0 0.0
  %3262 = vmatpush1.msra.mxu0 %v2993
  %3263 = vmatprep.subr.mxu0 0.0
  %3264 = vmatpush1.msra.mxu0 %v2994
  %3265 = vmatprep.subr.mxu0 0.0
  %3266 = vmatpush1.msra.mxu0 %v2995
  %3267 = vmatprep.subr.mxu0 0.0
  %3268 = vmatpush1.msra.mxu0 %v2996
  %3269 = vmatprep.subr.mxu0 0.0
  %3270 = vmatpush1.msra.mxu0 %v2997
  %3271 = vmatprep.subr.mxu0 0.0
  %3272 = vmatpush1.msra.mxu0 %v2998
  %3273 = vmatprep.subr.mxu0 0.0
  %3274 = vmatpush1.msra.mxu0 %v2999
  %3275 = vmatprep.subr.mxu0 0.0
  %3276 = vmatpush1.msra.mxu0 %v3000
  %3277 = vmatprep.subr.mxu0 0.0
  %3278 = vmatpush1.msra.mxu0 %v3001
  %3279 = vmatprep.subr.mxu0 0.0
  %3280 = vmatpush1.msra.mxu0 %v3002
  %3281 = vmatprep.subr.mxu0 0.0
  %3282 = vmatpush1.msra.mxu0 %v3003
  %3283 = vmatprep.subr.mxu0 0.0
  %3284 = vmatpush1.msra.mxu0 %v3004
  %3285 = vmatprep.subr.mxu0 0.0
  %3286 = vmatpush1.msra.mxu0 %v3005
  %3287 = vmatprep.subr.mxu0 0.0
  %3288 = vmatpush1.msra.mxu0 %v3006
  %3289 = vmatprep.subr.mxu0 0.0
  %3290 = vmatpush1.msra.mxu0 %v3007
  %3291 = vmatprep.subr.mxu0 0.0
  %3292 = vmatpush1.msra.mxu0 %v3008
  %3293 = vmatprep.subr.mxu0 0.0
  %3294 = vmatpush1.msra.mxu0 %v3009
  %3295 = vmatprep.subr.mxu0 0.0
  %3296 = vmatpush1.msra.mxu0 %v3010
  %3297 = vmatprep.subr.mxu0 0.0
  %3298 = vmatpush1.msra.mxu0 %v3011
  %3299 = vmatprep.subr.mxu0 0.0
  %3300 = vmatpush1.msra.mxu0 %v3012
  %3301 = vmatprep.subr.mxu0 0.0
  %3302 = vmatpush1.msra.mxu0 %v3013
  %3303 = vmatprep.subr.mxu0 0.0
  %3304 = vmatpush1.msra.mxu0 %v3014
  %3305 = vmatprep.mubr.f32.mxu0 %v3170
  %3306 = vmatmul.mubr.f32.gmra.mrb[0].mxu0 %v3169
  %v3307 = vpop.f32.mrb[0].mxu0
  %v3308 = vadd.f32 %v3238, %v3307
  %v3309 = vpop.f32.mrb[0].mxu0
  %3310 = vdwg.mxu0
  %v3311 = vmul.f32 %v3308, 0.0009765625
  %v3312 = vmul.f32 %v3311, %v3311
  %v3314 = vrot.slane %v3312, 7
  %v3316 = vsub.f32 %v3311, %v3314
  %v3317 = vmax.f32 %v3316, 0.0
  %v3318 = vadd.f32 %v3317, 1e-05
  %v3319 = vrsqrt.pop %v3318
  %v3321 = vrot.slane %v3319, 1
  %v3323 = vmul.f32 %v2949, %v3321
  %v3324 = vmul.f32 %v3311, %v3323
  %v3325 = vsub.f32 %v2950, %v3324
  %v3327 = vrot.slane %v3325, 7
  %v3329 = vsel %vm847, %v3323, %v3327
  %vm3330 = vcmask 261120
  %v3332 = vsel %vm3330, %v3329, 0
  %3334 = vmatprep.subr.mxu0 %v3016
  %3335 = vmatpush1.msra.mxu0 %v3015
  %3336 = vmatprep.subr.mxu0 %v3020
  %3337 = vmatpush1.msra.mxu0 %v3019
  %3338 = vmatprep.subr.mxu0 %v3024
  %3339 = vmatpush1.msra.mxu0 %v3023
  %3340 = vmatprep.subr.mxu0 %v3028
  %3341 = vmatpush1.msra.mxu0 %v3027
  %3342 = vmatprep.subr.mxu0 0.0
  %3343 = vmatpush1.msra.mxu0 0.0
  %3344 = vmatprep.subr.mxu0 0.0
  %3345 = vmatpush1.msra.mxu0 0.0
  %3346 = vmatprep.subr.mxu0 0.0
  %3347 = vmatpush1.msra.mxu0 0.0
  %3348 = vmatprep.subr.mxu0 0.0
  %3349 = vmatpush1.msra.mxu0 0.0
  %3350 = vmatprep.subr.mxu0 0.0
  %3351 = vmatpush1.msra.mxu0 0.0
  %3352 = vmatprep.subr.mxu0 0.0
  %3353 = vmatpush1.msra.mxu0 0.0
  %3354 = vmatprep.subr.mxu0 0.0
  %3355 = vmatpush1.msra.mxu0 0.0
  %3356 = vmatprep.subr.mxu0 0.0
  %3357 = vmatpush1.msra.mxu0 0.0
  %3358 = vmatprep.subr.mxu0 0.0
  %3359 = vmatpush1.msra.mxu0 0.0
  %3360 = vmatprep.subr.mxu0 0.0
  %3361 = vmatpush1.msra.mxu0 0.0
  %3362 = vmatprep.subr.mxu0 0.0
  %3363 = vmatpush1.msra.mxu0 0.0
  %3364 = vmatprep.subr.mxu0 0.0
  %3365 = vmatpush1.msra.mxu0 0.0
  %3366 = vmatprep.subr.mxu0 0.0
  %3367 = vmatpush1.msra.mxu0 0.0
  %3368 = vmatprep.subr.mxu0 0.0
  %3369 = vmatpush1.msra.mxu0 0.0
  %3370 = vmatprep.subr.mxu0 0.0
  %3371 = vmatpush1.msra.mxu0 0.0
  %3372 = vmatprep.subr.mxu0 0.0
  %3373 = vmatpush1.msra.mxu0 0.0
  %3374 = vmatprep.subr.mxu0 0.0
  %3375 = vmatpush1.msra.mxu0 0.0
  %3376 = vmatprep.subr.mxu0 0.0
  %3377 = vmatpush1.msra.mxu0 0.0
  %3378 = vmatprep.subr.mxu0 0.0
  %3379 = vmatpush1.msra.mxu0 0.0
  %3380 = vmatprep.subr.mxu0 0.0
  %3381 = vmatpush1.msra.mxu0 0.0
  %3382 = vmatprep.subr.mxu0 0.0
  %3383 = vmatpush1.msra.mxu0 0.0
  %3384 = vmatprep.subr.mxu0 0.0
  %3385 = vmatpush1.msra.mxu0 0.0
  %3386 = vmatprep.subr.mxu0 0.0
  %3387 = vmatpush1.msra.mxu0 0.0
  %3388 = vmatprep.subr.mxu0 0.0
  %3389 = vmatpush1.msra.mxu0 0.0
  %3390 = vmatprep.subr.mxu0 0.0
  %3391 = vmatpush1.msra.mxu0 0.0
  %3392 = vmatprep.subr.mxu0 0.0
  %3393 = vmatpush1.msra.mxu0 0.0
  %3394 = vmatprep.subr.mxu0 0.0
  %3395 = vmatpush1.msra.mxu0 0.0
  %3396 = vmatprep.subr.mxu0 0.0
  %3397 = vmatpush1.msra.mxu0 0.0
  %3398 = vmatprep.mubr.f32.mxu0 0.0
  %3399 = vmatmul.mubr.f32.gmra.mrb[0].mxu0 %v3332
  %v3400 = vpop.f32.mrb[0].mxu0
  %v3401 = vadd.f32 0.0, %v3400
  %v3402 = vpop.f32.mrb[0].mxu0
  %v3403 = vadd.f32 0.0, %v3402
  %3404 = vdwg.mxu0
  %3405 = vmatprep.subr.mxu0 %v3018
  %3406 = vmatpush1.msra.mxu0 %v3017
  %3407 = vmatprep.subr.mxu0 %v3022
  %3408 = vmatpush1.msra.mxu0 %v3021
  %3409 = vmatprep.subr.mxu0 %v3026
  %3410 = vmatpush1.msra.mxu0 %v3025
  %3411 = vmatprep.subr.mxu0 %v3030
  %3412 = vmatpush1.msra.mxu0 %v3029
  %3413 = vmatprep.subr.mxu0 0.0
  %3414 = vmatpush1.msra.mxu0 0.0
  %3415 = vmatprep.subr.mxu0 0.0
  %3416 = vmatpush1.msra.mxu0 0.0
  %3417 = vmatprep.subr.mxu0 0.0
  %3418 = vmatpush1.msra.mxu0 0.0
  %3419 = vmatprep.subr.mxu0 0.0
  %3420 = vmatpush1.msra.mxu0 0.0
  %3421 = vmatprep.subr.mxu0 0.0
  %3422 = vmatpush1.msra.mxu0 0.0
  %3423 = vmatprep.subr.mxu0 0.0
  %3424 = vmatpush1.msra.mxu0 0.0
  %3425 = vmatprep.subr.mxu0 0.0
  %3426 = vmatpush1.msra.mxu0 0.0
  %3427 = vmatprep.subr.mxu0 0.0
  %3428 = vmatpush1.msra.mxu0 0.0
  %3429 = vmatprep.subr.mxu0 0.0
  %3430 = vmatpush1.msra.mxu0 0.0
  %3431 = vmatprep.subr.mxu0 0.0
  %3432 = vmatpush1.msra.mxu0 0.0
  %3433 = vmatprep.subr.mxu0 0.0
  %3434 = vmatpush1.msra.mxu0 0.0
  %3435 = vmatprep.subr.mxu0 0.0
  %3436 = vmatpush1.msra.mxu0 0.0
  %3437 = vmatprep.subr.mxu0 0.0
  %3438 = vmatpush1.msra.mxu0 0.0
  %3439 = vmatprep.subr.mxu0 0.0
  %3440 = vmatpush1.msra.mxu0 0.0
  %3441 = vmatprep.subr.mxu0 0.0
  %3442 = vmatpush1.msra.mxu0 0.0
  %3443 = vmatprep.subr.mxu0 0.0
  %3444 = vmatpush1.msra.mxu0 0.0
  %3445 = vmatprep.subr.mxu0 0.0
  %3446 = vmatpush1.msra.mxu0 0.0
  %3447 = vmatprep.subr.mxu0 0.0
  %3448 = vmatpush1.msra.mxu0 0.0
  %3449 = vmatprep.subr.mxu0 0.0
  %3450 = vmatpush1.msra.mxu0 0.0
  %3451 = vmatprep.subr.mxu0 0.0
  %3452 = vmatpush1.msra.mxu0 0.0
  %3453 = vmatprep.subr.mxu0 0.0
  %3454 = vmatpush1.msra.mxu0 0.0
  %3455 = vmatprep.subr.mxu0 0.0
  %3456 = vmatpush1.msra.mxu0 0.0
  %3457 = vmatprep.subr.mxu0 0.0
  %3458 = vmatpush1.msra.mxu0 0.0
  %3459 = vmatprep.subr.mxu0 0.0
  %3460 = vmatpush1.msra.mxu0 0.0
  %3461 = vmatprep.subr.mxu0 0.0
  %3462 = vmatpush1.msra.mxu0 0.0
  %3463 = vmatprep.subr.mxu0 0.0
  %3464 = vmatpush1.msra.mxu0 0.0
  %3465 = vmatprep.subr.mxu0 0.0
  %3466 = vmatpush1.msra.mxu0 0.0
  %3467 = vmatprep.subr.mxu0 0.0
  %3468 = vmatpush1.msra.mxu0 0.0
  %3469 = vmatprep.mubr.f32.mxu0 0.0
  %3470 = vmatmul.mubr.f32.gmra.mrb[0].mxu0 %v3332
  %v3471 = vpop.f32.mrb[0].mxu0
  %v3472 = vadd.f32 0.0, %v3471
  %v3473 = vpop.f32.mrb[0].mxu0
  %v3474 = vadd.f32 0.0, %v3473
  %3475 = vdwg.mxu0
  %v3476 = vlaneseq
  %v3477 = vshrl.u32 %v3476, 7
  %v3478 = vsub.s32 0, %v3477
  %v3479 = vrot.slane %v3401, %v3478
  %v3480 = vlaneseq
  %v3481 = vshrl.u32 %v3480, 7
  %v3482 = vsub.s32 0, %v3481
  %v3483 = vrot.slane %v3403, %v3482
  %v3484 = vlaneseq
  %v3485 = vshrl.u32 %v3484, 7
  %v3486 = vsub.s32 0, %v3485
  %v3487 = vrot.slane %v3472, %v3486
  %v3488 = vlaneseq
  %v3489 = vshrl.u32 %v3488, 7
  %v3490 = vsub.s32 0, %v3489
  %v3491 = vrot.slane %v3474, %v3490
  %v3492 = vmul.f32 %v2917, %v3479
  %v3493 = vmul.f32 %v2918, %v3483
  %v3494 = vmul.f32 %v2919, %v3487
  %v3495 = vmul.f32 %v2920, %v3491
  %v3496 = vmul.f32 %v2921, %v3479
  %v3497 = vmul.f32 %v2922, %v3483
  %v3498 = vmul.f32 %v2923, %v3487
  %v3499 = vmul.f32 %v2924, %v3491
  %v3500 = vmul.f32 %v2925, %v3479
  %v3501 = vmul.f32 %v2926, %v3483
  %v3502 = vmul.f32 %v2927, %v3487
  %v3503 = vmul.f32 %v2928, %v3491
  %v3504 = vmul.f32 %v2929, %v3479
  %v3505 = vmul.f32 %v2930, %v3483
  %v3506 = vmul.f32 %v2931, %v3487
  %v3507 = vmul.f32 %v2932, %v3491
  %v3508 = vmul.f32 %v2933, %v3479
  %v3509 = vmul.f32 %v2934, %v3483
  %v3510 = vmul.f32 %v2935, %v3487
  %v3511 = vmul.f32 %v2936, %v3491
  %v3512 = vmul.f32 %v2937, %v3479
  %v3513 = vmul.f32 %v2938, %v3483
  %v3514 = vmul.f32 %v2939, %v3487
  %v3515 = vmul.f32 %v2940, %v3491
  %v3516 = vmul.f32 %v2941, %v3479
  %v3517 = vmul.f32 %v2942, %v3483
  %v3518 = vmul.f32 %v2943, %v3487
  %v3519 = vmul.f32 %v2944, %v3491
  %v3520 = vmul.f32 %v2945, %v3479
  %v3521 = vmul.f32 %v2946, %v3483
  %v3522 = vmul.f32 %v2947, %v3487
  %v3523 = vmul.f32 %v2948, %v3491
  %v3524 = vlaneseq
  %v3525 = vshrl.u32 %v3524, 7
  %v3526 = vsub.s32 1, %v3525
  %v3527 = vrot.slane %v3401, %v3526
  %v3528 = vlaneseq
  %v3529 = vshrl.u32 %v3528, 7
  %v3530 = vsub.s32 1, %v3529
  %v3531 = vrot.slane %v3403, %v3530
  %v3532 = vlaneseq
  %v3533 = vshrl.u32 %v3532, 7
  %v3534 = vsub.s32 1, %v3533
  %v3535 = vrot.slane %v3472, %v3534
  %v3536 = vlaneseq
  %v3537 = vshrl.u32 %v3536, 7
  %v3538 = vsub.s32 1, %v3537
  %v3539 = vrot.slane %v3474, %v3538
  %v3540 = vadd.f32 %v3492, %v3527
  %v3541 = vadd.f32 %v3493, %v3531
  %v3542 = vadd.f32 %v3494, %v3535
  %v3543 = vadd.f32 %v3495, %v3539
  %v3544 = vadd.f32 %v3496, %v3527
  %v3545 = vadd.f32 %v3497, %v3531
  %v3546 = vadd.f32 %v3498, %v3535
  %v3547 = vadd.f32 %v3499, %v3539
  %v3548 = vadd.f32 %v3500, %v3527
  %v3549 = vadd.f32 %v3501, %v3531
  %v3550 = vadd.f32 %v3502, %v3535
  %v3551 = vadd.f32 %v3503, %v3539
  %v3552 = vadd.f32 %v3504, %v3527
  %v3553 = vadd.f32 %v3505, %v3531
  %v3554 = vadd.f32 %v3506, %v3535
  %v3555 = vadd.f32 %v3507, %v3539
  %v3556 = vadd.f32 %v3508, %v3527
  %v3557 = vadd.f32 %v3509, %v3531
  %v3558 = vadd.f32 %v3510, %v3535
  %v3559 = vadd.f32 %v3511, %v3539
  %v3560 = vadd.f32 %v3512, %v3527
  %v3561 = vadd.f32 %v3513, %v3531
  %v3562 = vadd.f32 %v3514, %v3535
  %v3563 = vadd.f32 %v3515, %v3539
  %v3564 = vadd.f32 %v3516, %v3527
  %v3565 = vadd.f32 %v3517, %v3531
  %v3566 = vadd.f32 %v3518, %v3535
  %v3567 = vadd.f32 %v3519, %v3539
  %v3568 = vadd.f32 %v3520, %v3527
  %v3569 = vadd.f32 %v3521, %v3531
  %v3570 = vadd.f32 %v3522, %v3535
  %v3571 = vadd.f32 %v3523, %v3539
  %v3572 = vmax.f32 %v3540, 0.0
  %v3573 = vmax.f32 %v3541, 0.0
  %v3574 = vmax.f32 %v3542, 0.0
  %v3575 = vmax.f32 %v3543, 0.0
  %v3576 = vmax.f32 %v3544, 0.0
  %v3577 = vmax.f32 %v3545, 0.0
  %v3578 = vmax.f32 %v3546, 0.0
  %v3579 = vmax.f32 %v3547, 0.0
  %v3580 = vmax.f32 %v3548, 0.0
  %v3581 = vmax.f32 %v3549, 0.0
  %v3582 = vmax.f32 %v3550, 0.0
  %v3583 = vmax.f32 %v3551, 0.0
  %v3584 = vmax.f32 %v3552, 0.0
  %v3585 = vmax.f32 %v3553, 0.0
  %v3586 = vmax.f32 %v3554, 0.0
  %v3587 = vmax.f32 %v3555, 0.0
  %v3588 = vmax.f32 %v3556, 0.0
  %v3589 = vmax.f32 %v3557, 0.0
  %v3590 = vmax.f32 %v3558, 0.0
  %v3591 = vmax.f32 %v3559, 0.0
  %v3592 = vmax.f32 %v3560, 0.0
  %v3593 = vmax.f32 %v3561, 0.0
  %v3594 = vmax.f32 %v3562, 0.0
  %v3595 = vmax.f32 %v3563, 0.0
  %v3596 = vmax.f32 %v3564, 0.0
  %v3597 = vmax.f32 %v3565, 0.0
  %v3598 = vmax.f32 %v3566, 0.0
  %v3599 = vmax.f32 %v3567, 0.0
  %v3600 = vmax.f32 %v3568, 0.0
  %v3601 = vmax.f32 %v3569, 0.0
  %v3602 = vmax.f32 %v3570, 0.0
  %v3603 = vmax.f32 %v3571, 0.0
  %3604 = vst [vmem:[#allocation3 + $0x20] sm:$0xff] %v3572
  %3605 = vst [vmem:[#allocation3 + $0x28] sm:$0xff] %v3573
  %3606 = vst [vmem:[#allocation3 + $0x30] sm:$0xff] %v3574
  %3607 = vst [vmem:[#allocation3 + $0x38] sm:$0xff] %v3575
  %3608 = vst [vmem:[#allocation3 + $0x40] sm:$0xff] %v3576
  %3609 = vst [vmem:[#allocation3 + $0x48] sm:$0xff] %v3577
  %3610 = vst [vmem:[#allocation3 + $0x50] sm:$0xff] %v3578
  %3611 = vst [vmem:[#allocation3 + $0x58] sm:$0xff] %v3579
  %3612 = vst [vmem:[#allocation3 + $0x60] sm:$0xff] %v3580
  %3613 = vst [vmem:[#allocation3 + $0x68] sm:$0xff] %v3581
  %3614 = vst [vmem:[#allocation3 + $0x70] sm:$0xff] %v3582
  %3615 = vst [vmem:[#allocation3 + $0x78] sm:$0xff] %v3583
  %3616 = vst [vmem:[#allocation3 + $0x80] sm:$0xff] %v3584
  %3617 = vst [vmem:[#allocation3 + $0x88] sm:$0xff] %v3585
  %3618 = vst [vmem:[#allocation3 + $0x90] sm:$0xff] %v3586
  %3619 = vst [vmem:[#allocation3 + $0x98] sm:$0xff] %v3587
  %3620 = vst [vmem:[#allocation3 + $0xa0] sm:$0xff] %v3588
  %3621 = vst [vmem:[#allocation3 + $0xa8] sm:$0xff] %v3589
  %3622 = vst [vmem:[#allocation3 + $0xb0] sm:$0xff] %v3590
  %3623 = vst [vmem:[#allocation3 + $0xb8] sm:$0xff] %v3591
  %3624 = vst [vmem:[#allocation3 + $0xc0] sm:$0xff] %v3592
  %3625 = vst [vmem:[#allocation3 + $0xc8] sm:$0xff] %v3593
  %3626 = vst [vmem:[#allocation3 + $0xd0] sm:$0xff] %v3594
  %3627 = vst [vmem:[#allocation3 + $0xd8] sm:$0xff] %v3595
  %3628 = vst [vmem:[#allocation3 + $0xe0] sm:$0xff] %v3596
  %3629 = vst [vmem:[#allocation3 + $0xe8] sm:$0xff] %v3597
  %3630 = vst [vmem:[#allocation3 + $0xf0] sm:$0xff] %v3598
  %3631 = vst [vmem:[#allocation3 + $0xf8] sm:$0xff] %v3599
  %3632 = vst [vmem:[#allocation3 + $0x100] sm:$0xff] %v3600
  %3633 = vst [vmem:[#allocation3 + $0x108] sm:$0xff] %v3601
  %3634 = vst [vmem:[#allocation3 + $0x110] sm:$0xff] %v3602
  %3635 = vst [vmem:[#allocation3 + $0x118] sm:$0xff] %v3603
  %v3636 = vld [vmem:[#allocation3 + $0x10] sm:$0x80]
  %v3637 = vld [vmem:[#allocation3 + $0x18] sm:$0x80]
  %v3638 = vld [vmem:[#allocation3 + $0x30] sm:$0xff]
  %v3639 = vld [vmem:[#allocation3 + $0x38] sm:$0xff]
  %v3640 = vld [vmem:[#allocation3 + $0x50] sm:$0xff]
  %v3641 = vld [vmem:[#allocation3 + $0x58] sm:$0xff]
  %v3642 = vld [vmem:[#allocation3 + $0x70] sm:$0xff]
  %v3643 = vld [vmem:[#allocation3 + $0x78] sm:$0xff]
  %v3644 = vld [vmem:[#allocation3 + $0x90] sm:$0xff]
  %v3645 = vld [vmem:[#allocation3 + $0x98] sm:$0xff]
  %v3646 = vld [vmem:[#allocation3 + $0xb0] sm:$0xff]
  %v3647 = vld [vmem:[#allocation3 + $0xb8] sm:$0xff]
  %v3648 = vld [vmem:[#allocation3 + $0xd0] sm:$0xff]
  %v3649 = vld [vmem:[#allocation3 + $0xd8] sm:$0xff]
  %v3650 = vld [vmem:[#allocation3 + $0xf0] sm:$0xff]
  %v3651 = vld [vmem:[#allocation3 + $0xf8] sm:$0xff]
  %v3652 = vld [vmem:[#allocation3 + $0x110] sm:$0x7f]
  %v3653 = vld [vmem:[#allocation3 + $0x118] sm:$0x7f]
  %v3672 = vrot.slane %v3636, 7
  %v3673 = vrot.slane %v3638, 7
  %v3674 = vsel %vm847, %v3672, %v3673
  %v3675 = vrot.slane %v3637, 7
  %v3676 = vrot.slane %v3639, 7
  %v3677 = vsel %vm847, %v3675, %v3676
  %v3678 = vrot.slane %v3640, 7
  %v3679 = vsel %vm847, %v3673, %v3678
  %v3680 = vrot.slane %v3641, 7
  %v3681 = vsel %vm847, %v3676, %v3680
  %v3682 = vrot.slane %v3642, 7
  %v3683 = vsel %vm847, %v3678, %v3682
  %v3684 = vrot.slane %v3643, 7
  %v3685 = vsel %vm847, %v3680, %v3684
  %v3686 = vrot.slane %v3644, 7
  %v3687 = vsel %vm847, %v3682, %v3686
  %v3688 = vrot.slane %v3645, 7
  %v3689 = vsel %vm847, %v3684, %v3688
  %v3690 = vrot.slane %v3646, 7
  %v3691 = vsel %vm847, %v3686, %v3690
  %v3692 = vrot.slane %v3647, 7
  %v3693 = vsel %vm847, %v3688, %v3692
  %v3694 = vrot.slane %v3648, 7
  %v3695 = vsel %vm847, %v3690, %v3694
  %v3696 = vrot.slane %v3649, 7
  %v3697 = vsel %vm847, %v3692, %v3696
  %v3698 = vrot.slane %v3650, 7
  %v3699 = vsel %vm847, %v3694, %v3698
  %v3700 = vrot.slane %v3651, 7
  %v3701 = vsel %vm847, %v3696, %v3700
  %v3702 = vrot.slane %v3652, 7
  %v3703 = vsel %vm847, %v3698, %v3702
  %v3704 = vrot.slane %v3653, 7
  %v3705 = vsel %vm847, %v3700, %v3704
  %v3722 = vsel %vm87, %v3674, 0.0
  %v3723 = vsel %vm87, %v3677, 0.0
  %v3724 = vsel %vm88, %v3679, 0.0
  %v3725 = vsel %vm88, %v3681, 0.0
  %v3726 = vsel %vm89, %v3683, 0.0
  %v3727 = vsel %vm89, %v3685, 0.0
  %v3728 = vsel %vm90, %v3687, 0.0
  %v3729 = vsel %vm90, %v3689, 0.0
  %v3730 = vsel %vm91, %v3691, 0.0
  %v3731 = vsel %vm91, %v3693, 0.0
  %v3732 = vsel %vm92, %v3695, 0.0
  %v3733 = vsel %vm92, %v3697, 0.0
  %v3734 = vsel %vm93, %v3699, 0.0
  %v3735 = vsel %vm93, %v3701, 0.0
  %v3736 = vsel %vm94, %v3703, 0.0
  %v3737 = vsel %vm94, %v3705, 0.0
  %v3738 = vld [vmem:[#allocation3 + $0x20] sm:$0xff]
  %v3739 = vld [vmem:[#allocation3 + $0x28] sm:$0xff]
  %v3740 = vld [vmem:[#allocation3 + $0x40] sm:$0xff]
  %v3741 = vld [vmem:[#allocation3 + $0x48] sm:$0xff]
  %v3742 = vld [vmem:[#allocation3 + $0x60] sm:$0xff]
  %v3743 = vld [vmem:[#allocation3 + $0x68] sm:$0xff]
  %v3744 = vld [vmem:[#allocation3 + $0x80] sm:$0xff]
  %v3745 = vld [vmem:[#allocation3 + $0x88] sm:$0xff]
  %v3746 = vld [vmem:[#allocation3 + $0xa0] sm:$0xff]
  %v3747 = vld [vmem:[#allocation3 + $0xa8] sm:$0xff]
  %v3748 = vld [vmem:[#allocation3 + $0xc0] sm:$0xff]
  %v3749 = vld [vmem:[#allocation3 + $0xc8] sm:$0xff]
  %v3750 = vld [vmem:[#allocation3 + $0xe0] sm:$0xff]
  %v3751 = vld [vmem:[#allocation3 + $0xe8] sm:$0xff]
  %v3752 = vld [vmem:[#allocation3 + $0x100] sm:$0xff]
  %v3753 = vld [vmem:[#allocation3 + $0x108] sm:$0xff]
  %v3754 = vld [vmem:[#allocation3 + $0x110] sm:$0xff]
  %v3755 = vld [vmem:[#allocation3 + $0x118] sm:$0xff]
  %v3756 = vld [vmem:[#allocation3 + $0x20] sm:$0xfe]
  %v3757 = vld [vmem:[#allocation3 + $0x28] sm:$0xfe]
  %v3758 = vld [vmem:[#allocation3 + $0x120] sm:$0x1]
  %v3759 = vld [vmem:[#allocation3 + $0x128] sm:$0x1]
  %v3778 = vrot.slane %v3756, 1
  %v3779 = vrot.slane %v3740, 1
  %v3780 = vsel %vm1234, %v3778, %v3779
  %v3781 = vrot.slane %v3757, 1
  %v3782 = vrot.slane %v3741, 1
  %v3783 = vsel %vm1234, %v3781, %v3782
  %v3784 = vrot.slane %v3742, 1
  %v3785 = vsel %vm1234, %v3779, %v3784
  %v3786 = vrot.slane %v3743, 1
  %v3787 = vsel %vm1234, %v3782, %v3786
  %v3788 = vrot.slane %v3744, 1
  %v3789 = vsel %vm1234, %v3784, %v3788
  %v3790 = vrot.slane %v3745, 1
  %v3791 = vsel %vm1234, %v3786, %v3790
  %v3792 = vrot.slane %v3746, 1
  %v3793 = vsel %vm1234, %v3788, %v3792
  %v3794 = vrot.slane %v3747, 1
  %v3795 = vsel %vm1234, %v3790, %v3794
  %v3796 = vrot.slane %v3748, 1
  %v3797 = vsel %vm1234, %v3792, %v3796
  %v3798 = vrot.slane %v3749, 1
  %v3799 = vsel %vm1234, %v3794, %v3798
  %v3800 = vrot.slane %v3750, 1
  %v3801 = vsel %vm1234, %v3796, %v3800
  %v3802 = vrot.slane %v3751, 1
  %v3803 = vsel %vm1234, %v3798, %v3802
  %v3804 = vrot.slane %v3752, 1
  %v3805 = vsel %vm1234, %v3800, %v3804
  %v3806 = vrot.slane %v3753, 1
  %v3807 = vsel %vm1234, %v3802, %v3806
  %v3808 = vrot.slane %v3758, 1
  %v3809 = vsel %vm1234, %v3804, %v3808
  %v3810 = vrot.slane %v3759, 1
  %v3811 = vsel %vm1234, %v3806, %v3810
  %v3828 = vsel %vm95, %v3780, 0.0
  %v3829 = vsel %vm95, %v3783, 0.0
  %v3830 = vsel %vm96, %v3785, 0.0
  %v3831 = vsel %vm96, %v3787, 0.0
  %v3832 = vsel %vm97, %v3789, 0.0
  %v3833 = vsel %vm97, %v3791, 0.0
  %v3834 = vsel %vm98, %v3793, 0.0
  %v3835 = vsel %vm98, %v3795, 0.0
  %v3836 = vsel %vm99, %v3797, 0.0
  %v3837 = vsel %vm99, %v3799, 0.0
  %v3838 = vsel %vm100, %v3801, 0.0
  %v3839 = vsel %vm100, %v3803, 0.0
  %v3840 = vsel %vm101, %v3805, 0.0
  %v3841 = vsel %vm101, %v3807, 0.0
  %v3842 = vsel %vm102, %v3809, 0.0
  %v3843 = vsel %vm102, %v3811, 0.0
  %v3844 = vld [vmem:[%s3] sm:$0xff]
  %v3845 = vld [vmem:[%s3 + $0x8] sm:$0xff]
  %v3846 = vld [vmem:[%s3 + $0x10] sm:$0xff]
  %v3847 = vld [vmem:[%s3 + $0x18] sm:$0xff]
  %v3848 = vld [vmem:[%s3 + $0x20] sm:$0xff]
  %v3849 = vld [vmem:[%s3 + $0x28] sm:$0xff]
  %v3850 = vld [vmem:[%s3 + $0x30] sm:$0xff]
  %v3851 = vld [vmem:[%s3 + $0x38] sm:$0xff]
  %v3852 = vld [vmem:[%s3 + $0x40] sm:$0xff]
  %v3853 = vld [vmem:[%s3 + $0x48] sm:$0xff]
  %v3854 = vld [vmem:[%s3 + $0x50] sm:$0xff]
  %v3855 = vld [vmem:[%s3 + $0x58] sm:$0xff]
  %v3856 = vld [vmem:[%s3 + $0x60] sm:$0xff]
  %v3857 = vld [vmem:[%s3 + $0x68] sm:$0xff]
  %v3858 = vld [vmem:[%s3 + $0x70] sm:$0xff]
  %v3859 = vld [vmem:[%s3 + $0x78] sm:$0xff]
  %v3860 = vld [vmem:[%s3 + $0x80] sm:$0xff]
  %v3861 = vld [vmem:[%s3 + $0x88] sm:$0xff]
  %v3862 = vld [vmem:[%s3 + $0x90] sm:$0xff]
  %v3863 = vld [vmem:[%s3 + $0x98] sm:$0xff]
  %v3864 = vld [vmem:[%s3 + $0xa0] sm:$0xff]
  %v3865 = vld [vmem:[%s3 + $0xa8] sm:$0xff]
  %v3866 = vld [vmem:[%s3 + $0xb0] sm:$0xff]
  %v3867 = vld [vmem:[%s3 + $0xb8] sm:$0xff]
  %v3868 = vld [vmem:[%s3 + $0xc0] sm:$0xff]
  %v3869 = vld [vmem:[%s3 + $0xc8] sm:$0xff]
  %v3870 = vld [vmem:[%s3 + $0xd0] sm:$0xff]
  %v3871 = vld [vmem:[%s3 + $0xd8] sm:$0xff]
  %v3872 = vld [vmem:[%s3 + $0xe0] sm:$0xff]
  %v3873 = vld [vmem:[%s3 + $0xe8] sm:$0xff]
  %v3874 = vld [vmem:[%s3 + $0xf0] sm:$0xff]
  %v3875 = vld [vmem:[%s3 + $0xf8] sm:$0xff]
  %v3876 = vld [vmem:[%s3 + $0x100] sm:$0xff]
  %v3877 = vld [vmem:[%s3 + $0x108] sm:$0xff]
  %v3878 = vld [vmem:[%s3 + $0x110] sm:$0xff]
  %v3879 = vld [vmem:[%s3 + $0x118] sm:$0xff]
  %v3880 = vld [vmem:[%s3 + $0x120] sm:$0xff]
  %v3881 = vld [vmem:[%s3 + $0x128] sm:$0xff]
  %v3882 = vld [vmem:[%s3 + $0x130] sm:$0xff]
  %v3883 = vld [vmem:[%s3 + $0x138] sm:$0xff]
  %v3884 = vld [vmem:[%s3 + $0x140] sm:$0xff]
  %v3885 = vld [vmem:[%s3 + $0x148] sm:$0xff]
  %v3886 = vld [vmem:[%s3 + $0x150] sm:$0xff]
  %v3887 = vld [vmem:[%s3 + $0x158] sm:$0xff]
  %v3888 = vld [vmem:[%s3 + $0x160] sm:$0xff]
  %v3889 = vld [vmem:[%s3 + $0x168] sm:$0xff]
  %v3890 = vld [vmem:[%s3 + $0x170] sm:$0xff]
  %v3891 = vld [vmem:[%s3 + $0x178] sm:$0xff]
  %v3892 = vld [vmem:[%s3 + $0x180] sm:$0xff]
  %v3893 = vld [vmem:[%s3 + $0x188] sm:$0xff]
  %v3894 = vld [vmem:[%s3 + $0x190] sm:$0xff]
  %v3895 = vld [vmem:[%s3 + $0x198] sm:$0xff]
  %v3896 = vld [vmem:[%s3 + $0x1a0] sm:$0xff]
  %v3897 = vld [vmem:[%s3 + $0x1a8] sm:$0xff]
  %v3898 = vld [vmem:[%s3 + $0x1b0] sm:$0xff]
  %v3899 = vld [vmem:[%s3 + $0x1b8] sm:$0xff]
  %v3900 = vld [vmem:[%s3 + $0x1c0] sm:$0xff]
  %v3901 = vld [vmem:[%s3 + $0x1c8] sm:$0xff]
  %v3902 = vld [vmem:[%s3 + $0x1d0] sm:$0xff]
  %v3903 = vld [vmem:[%s3 + $0x1d8] sm:$0xff]
  %v3904 = vld [vmem:[%s3 + $0x1e0] sm:$0xff]
  %v3905 = vld [vmem:[%s3 + $0x1e8] sm:$0xff]
  %v3906 = vld [vmem:[%s3 + $0x1f0] sm:$0xff]
  %v3907 = vld [vmem:[%s3 + $0x1f8] sm:$0xff]
  %v3908 = vpack.c.bf16 %v3724, %v3722
  %v3909 = vpack.c.bf16 %v3725, %v3723
  %v3910 = vpack.c.bf16 %v3728, %v3726
  %v3911 = vpack.c.bf16 %v3729, %v3727
  %v3912 = vpack.c.bf16 %v3732, %v3730
  %v3913 = vpack.c.bf16 %v3733, %v3731
  %v3914 = vpack.c.bf16 %v3736, %v3734
  %v3915 = vpack.c.bf16 %v3737, %v3735
  %s3916 = scalar_lea.vmem %s3, 512
  %v3917 = vld [vmem:[%s3916] sm:$0xff]
  %v3918 = vld [vmem:[%s3916 + $0x8] sm:$0xff]
  %v3919 = vld [vmem:[%s3916 + $0x10] sm:$0xff]
  %v3920 = vld [vmem:[%s3916 + $0x18] sm:$0xff]
  %v3921 = vld [vmem:[%s3916 + $0x20] sm:$0xff]
  %v3922 = vld [vmem:[%s3916 + $0x28] sm:$0xff]
  %v3923 = vld [vmem:[%s3916 + $0x30] sm:$0xff]
  %v3924 = vld [vmem:[%s3916 + $0x38] sm:$0xff]
  %v3925 = vld [vmem:[%s3916 + $0x40] sm:$0xff]
  %v3926 = vld [vmem:[%s3916 + $0x48] sm:$0xff]
  %v3927 = vld [vmem:[%s3916 + $0x50] sm:$0xff]
  %v3928 = vld [vmem:[%s3916 + $0x58] sm:$0xff]
  %v3929 = vld [vmem:[%s3916 + $0x60] sm:$0xff]
  %v3930 = vld [vmem:[%s3916 + $0x68] sm:$0xff]
  %v3931 = vld [vmem:[%s3916 + $0x70] sm:$0xff]
  %v3932 = vld [vmem:[%s3916 + $0x78] sm:$0xff]
  %v3933 = vld [vmem:[%s3916 + $0x80] sm:$0xff]
  %v3934 = vld [vmem:[%s3916 + $0x88] sm:$0xff]
  %v3935 = vld [vmem:[%s3916 + $0x90] sm:$0xff]
  %v3936 = vld [vmem:[%s3916 + $0x98] sm:$0xff]
  %v3937 = vld [vmem:[%s3916 + $0xa0] sm:$0xff]
  %v3938 = vld [vmem:[%s3916 + $0xa8] sm:$0xff]
  %v3939 = vld [vmem:[%s3916 + $0xb0] sm:$0xff]
  %v3940 = vld [vmem:[%s3916 + $0xb8] sm:$0xff]
  %v3941 = vld [vmem:[%s3916 + $0xc0] sm:$0xff]
  %v3942 = vld [vmem:[%s3916 + $0xc8] sm:$0xff]
  %v3943 = vld [vmem:[%s3916 + $0xd0] sm:$0xff]
  %v3944 = vld [vmem:[%s3916 + $0xd8] sm:$0xff]
  %v3945 = vld [vmem:[%s3916 + $0xe0] sm:$0xff]
  %v3946 = vld [vmem:[%s3916 + $0xe8] sm:$0xff]
  %v3947 = vld [vmem:[%s3916 + $0xf0] sm:$0xff]
  %v3948 = vld [vmem:[%s3916 + $0xf8] sm:$0xff]
  %v3949 = vld [vmem:[%s3916 + $0x100] sm:$0xff]
  %v3950 = vld [vmem:[%s3916 + $0x108] sm:$0xff]
  %v3951 = vld [vmem:[%s3916 + $0x110] sm:$0xff]
  %v3952 = vld [vmem:[%s3916 + $0x118] sm:$0xff]
  %v3953 = vld [vmem:[%s3916 + $0x120] sm:$0xff]
  %v3954 = vld [vmem:[%s3916 + $0x128] sm:$0xff]
  %v3955 = vld [vmem:[%s3916 + $0x130] sm:$0xff]
  %v3956 = vld [vmem:[%s3916 + $0x138] sm:$0xff]
  %v3957 = vld [vmem:[%s3916 + $0x140] sm:$0xff]
  %v3958 = vld [vmem:[%s3916 + $0x148] sm:$0xff]
  %v3959 = vld [vmem:[%s3916 + $0x150] sm:$0xff]
  %v3960 = vld [vmem:[%s3916 + $0x158] sm:$0xff]
  %v3961 = vld [vmem:[%s3916 + $0x160] sm:$0xff]
  %v3962 = vld [vmem:[%s3916 + $0x168] sm:$0xff]
  %v3963 = vld [vmem:[%s3916 + $0x170] sm:$0xff]
  %v3964 = vld [vmem:[%s3916 + $0x178] sm:$0xff]
  %v3965 = vld [vmem:[%s3916 + $0x180] sm:$0xff]
  %v3966 = vld [vmem:[%s3916 + $0x188] sm:$0xff]
  %v3967 = vld [vmem:[%s3916 + $0x190] sm:$0xff]
  %v3968 = vld [vmem:[%s3916 + $0x198] sm:$0xff]
  %v3969 = vld [vmem:[%s3916 + $0x1a0] sm:$0xff]
  %v3970 = vld [vmem:[%s3916 + $0x1a8] sm:$0xff]
  %v3971 = vld [vmem:[%s3916 + $0x1b0] sm:$0xff]
  %v3972 = vld [vmem:[%s3916 + $0x1b8] sm:$0xff]
  %v3973 = vld [vmem:[%s3916 + $0x1c0] sm:$0xff]
  %v3974 = vld [vmem:[%s3916 + $0x1c8] sm:$0xff]
  %v3975 = vld [vmem:[%s3916 + $0x1d0] sm:$0xff]
  %v3976 = vld [vmem:[%s3916 + $0x1d8] sm:$0xff]
  %v3977 = vld [vmem:[%s3916 + $0x1e0] sm:$0xff]
  %v3978 = vld [vmem:[%s3916 + $0x1e8] sm:$0xff]
  %v3979 = vld [vmem:[%s3916 + $0x1f0] sm:$0xff]
  %v3980 = vld [vmem:[%s3916 + $0x1f8] sm:$0xff]
  %v3981 = vpack.c.bf16 %v3740, %v3738
  %v3982 = vpack.c.bf16 %v3741, %v3739
  %v3983 = vpack.c.bf16 %v3744, %v3742
  %v3984 = vpack.c.bf16 %v3745, %v3743
  %v3985 = vpack.c.bf16 %v3748, %v3746
  %v3986 = vpack.c.bf16 %v3749, %v3747
  %v3987 = vpack.c.bf16 %v3752, %v3750
  %v3988 = vpack.c.bf16 %v3753, %v3751
  %v4053 = vunpack.c.l.b16 %v3917
  %v4054 = vunpack.c.h.b16 %v3917
  %v4055 = vunpack.c.l.b16 %v3918
  %v4056 = vunpack.c.h.b16 %v3918
  %v4057 = vunpack.c.l.b16 %v3919
  %v4058 = vunpack.c.h.b16 %v3919
  %v4059 = vunpack.c.l.b16 %v3920
  %v4060 = vunpack.c.h.b16 %v3920
  %v4061 = vunpack.c.l.b16 %v3921
  %v4062 = vunpack.c.h.b16 %v3921
  %v4063 = vunpack.c.l.b16 %v3922
  %v4064 = vunpack.c.h.b16 %v3922
  %v4065 = vunpack.c.l.b16 %v3923
  %v4066 = vunpack.c.h.b16 %v3923
  %v4067 = vunpack.c.l.b16 %v3924
  %v4068 = vunpack.c.h.b16 %v3924
  %v4069 = vunpack.c.l.b16 %v3925
  %v4070 = vunpack.c.h.b16 %v3925
  %v4071 = vunpack.c.l.b16 %v3926
  %v4072 = vunpack.c.h.b16 %v3926
  %v4073 = vunpack.c.l.b16 %v3927
  %v4074 = vunpack.c.h.b16 %v3927
  %v4075 = vunpack.c.l.b16 %v3928
  %v4076 = vunpack.c.h.b16 %v3928
  %v4077 = vunpack.c.l.b16 %v3929
  %v4078 = vunpack.c.h.b16 %v3929
  %v4079 = vunpack.c.l.b16 %v3930
  %v4080 = vunpack.c.h.b16 %v3930
  %v4081 = vunpack.c.l.b16 %v3931
  %v4082 = vunpack.c.h.b16 %v3931
  %v4083 = vunpack.c.l.b16 %v3932
  %v4084 = vunpack.c.h.b16 %v3932
  %v4085 = vunpack.c.l.b16 %v3933
  %v4086 = vunpack.c.h.b16 %v3933
  %v4087 = vunpack.c.l.b16 %v3934
  %v4088 = vunpack.c.h.b16 %v3934
  %v4089 = vunpack.c.l.b16 %v3935
  %v4090 = vunpack.c.h.b16 %v3935
  %v4091 = vunpack.c.l.b16 %v3936
  %v4092 = vunpack.c.h.b16 %v3936
  %v4093 = vunpack.c.l.b16 %v3937
  %v4094 = vunpack.c.h.b16 %v3937
  %v4095 = vunpack.c.l.b16 %v3938
  %v4096 = vunpack.c.h.b16 %v3938
  %v4097 = vunpack.c.l.b16 %v3939
  %v4098 = vunpack.c.h.b16 %v3939
  %v4099 = vunpack.c.l.b16 %v3940
  %v4100 = vunpack.c.h.b16 %v3940
  %v4101 = vunpack.c.l.b16 %v3941
  %v4102 = vunpack.c.h.b16 %v3941
  %v4103 = vunpack.c.l.b16 %v3942
  %v4104 = vunpack.c.h.b16 %v3942
  %v4105 = vunpack.c.l.b16 %v3943
  %v4106 = vunpack.c.h.b16 %v3943
  %v4107 = vunpack.c.l.b16 %v3944
  %v4108 = vunpack.c.h.b16 %v3944
  %v4109 = vunpack.c.l.b16 %v3945
  %v4110 = vunpack.c.h.b16 %v3945
  %v4111 = vunpack.c.l.b16 %v3946
  %v4112 = vunpack.c.h.b16 %v3946
  %v4113 = vunpack.c.l.b16 %v3947
  %v4114 = vunpack.c.h.b16 %v3947
  %v4115 = vunpack.c.l.b16 %v3948
  %v4116 = vunpack.c.h.b16 %v3948
  %v4117 = vunpack.c.l.b16 %v3949
  %v4118 = vunpack.c.h.b16 %v3949
  %v4119 = vunpack.c.l.b16 %v3950
  %v4120 = vunpack.c.h.b16 %v3950
  %v4121 = vunpack.c.l.b16 %v3951
  %v4122 = vunpack.c.h.b16 %v3951
  %v4123 = vunpack.c.l.b16 %v3952
  %v4124 = vunpack.c.h.b16 %v3952
  %v4125 = vunpack.c.l.b16 %v3953
  %v4126 = vunpack.c.h.b16 %v3953
  %v4127 = vunpack.c.l.b16 %v3954
  %v4128 = vunpack.c.h.b16 %v3954
  %v4129 = vunpack.c.l.b16 %v3955
  %v4130 = vunpack.c.h.b16 %v3955
  %v4131 = vunpack.c.l.b16 %v3956
  %v4132 = vunpack.c.h.b16 %v3956
  %v4133 = vunpack.c.l.b16 %v3957
  %v4134 = vunpack.c.h.b16 %v3957
  %v4135 = vunpack.c.l.b16 %v3958
  %v4136 = vunpack.c.h.b16 %v3958
  %v4137 = vunpack.c.l.b16 %v3959
  %v4138 = vunpack.c.h.b16 %v3959
  %v4139 = vunpack.c.l.b16 %v3960
  %v4140 = vunpack.c.h.b16 %v3960
  %v4141 = vunpack.c.l.b16 %v3961
  %v4142 = vunpack.c.h.b16 %v3961
  %v4143 = vunpack.c.l.b16 %v3962
  %v4144 = vunpack.c.h.b16 %v3962
  %v4145 = vunpack.c.l.b16 %v3963
  %v4146 = vunpack.c.h.b16 %v3963
  %v4147 = vunpack.c.l.b16 %v3964
  %v4148 = vunpack.c.h.b16 %v3964
  %v4149 = vunpack.c.l.b16 %v3965
  %v4150 = vunpack.c.h.b16 %v3965
  %v4151 = vunpack.c.l.b16 %v3966
  %v4152 = vunpack.c.h.b16 %v3966
  %v4153 = vunpack.c.l.b16 %v3967
  %v4154 = vunpack.c.h.b16 %v3967
  %v4155 = vunpack.c.l.b16 %v3968
  %v4156 = vunpack.c.h.b16 %v3968
  %v4157 = vunpack.c.l.b16 %v3969
  %v4158 = vunpack.c.h.b16 %v3969
  %v4159 = vunpack.c.l.b16 %v3970
  %v4160 = vunpack.c.h.b16 %v3970
  %v4161 = vunpack.c.l.b16 %v3971
  %v4162 = vunpack.c.h.b16 %v3971
  %v4163 = vunpack.c.l.b16 %v3972
  %v4164 = vunpack.c.h.b16 %v3972
  %v4165 = vunpack.c.l.b16 %v3973
  %v4166 = vunpack.c.h.b16 %v3973
  %v4167 = vunpack.c.l.b16 %v3974
  %v4168 = vunpack.c.h.b16 %v3974
  %v4169 = vunpack.c.l.b16 %v3975
  %v4170 = vunpack.c.h.b16 %v3975
  %v4171 = vunpack.c.l.b16 %v3976
  %v4172 = vunpack.c.h.b16 %v3976
  %v4173 = vunpack.c.l.b16 %v3977
  %v4174 = vunpack.c.h.b16 %v3977
  %v4175 = vunpack.c.l.b16 %v3978
  %v4176 = vunpack.c.h.b16 %v3978
  %v4177 = vunpack.c.l.b16 %v3979
  %v4178 = vunpack.c.h.b16 %v3979
  %v4179 = vunpack.c.l.b16 %v3980
  %v4180 = vunpack.c.h.b16 %v3980
  %v4181 = vpack.c.b16 %v4057, %v4053
  %v4182 = vpack.c.b16 %v4058, %v4054
  %v4183 = vpack.c.b16 %v4059, %v4055
  %v4184 = vpack.c.b16 %v4060, %v4056
  %v4185 = vpack.c.b16 %v4065, %v4061
  %v4186 = vpack.c.b16 %v4066, %v4062
  %v4187 = vpack.c.b16 %v4067, %v4063
  %v4188 = vpack.c.b16 %v4068, %v4064
  %v4189 = vpack.c.b16 %v4073, %v4069
  %v4190 = vpack.c.b16 %v4074, %v4070
  %v4191 = vpack.c.b16 %v4075, %v4071
  %v4192 = vpack.c.b16 %v4076, %v4072
  %v4193 = vpack.c.b16 %v4081, %v4077
  %v4194 = vpack.c.b16 %v4082, %v4078
  %v4195 = vpack.c.b16 %v4083, %v4079
  %v4196 = vpack.c.b16 %v4084, %v4080
  %v4197 = vpack.c.b16 %v4089, %v4085
  %v4198 = vpack.c.b16 %v4090, %v4086
  %v4199 = vpack.c.b16 %v4091, %v4087
  %v4200 = vpack.c.b16 %v4092, %v4088
  %v4201 = vpack.c.b16 %v4097, %v4093
  %v4202 = vpack.c.b16 %v4098, %v4094
  %v4203 = vpack.c.b16 %v4099, %v4095
  %v4204 = vpack.c.b16 %v4100, %v4096
  %v4205 = vpack.c.b16 %v4105, %v4101
  %v4206 = vpack.c.b16 %v4106, %v4102
  %v4207 = vpack.c.b16 %v4107, %v4103
  %v4208 = vpack.c.b16 %v4108, %v4104
  %v4209 = vpack.c.b16 %v4113, %v4109
  %v4210 = vpack.c.b16 %v4114, %v4110
  %v4211 = vpack.c.b16 %v4115, %v4111
  %v4212 = vpack.c.b16 %v4116, %v4112
  %v4213 = vpack.c.b16 %v4121, %v4117
  %v4214 = vpack.c.b16 %v4122, %v4118
  %v4215 = vpack.c.b16 %v4123, %v4119
  %v4216 = vpack.c.b16 %v4124, %v4120
  %v4217 = vpack.c.b16 %v4129, %v4125
  %v4218 = vpack.c.b16 %v4130, %v4126
  %v4219 = vpack.c.b16 %v4131, %v4127
  %v4220 = vpack.c.b16 %v4132, %v4128
  %v4221 = vpack.c.b16 %v4137, %v4133
  %v4222 = vpack.c.b16 %v4138, %v4134
  %v4223 = vpack.c.b16 %v4139, %v4135
  %v4224 = vpack.c.b16 %v4140, %v4136
  %v4225 = vpack.c.b16 %v4145, %v4141
  %v4226 = vpack.c.b16 %v4146, %v4142
  %v4227 = vpack.c.b16 %v4147, %v4143
  %v4228 = vpack.c.b16 %v4148, %v4144
  %v4229 = vpack.c.b16 %v4153, %v4149
  %v4230 = vpack.c.b16 %v4154, %v4150
  %v4231 = vpack.c.b16 %v4155, %v4151
  %v4232 = vpack.c.b16 %v4156, %v4152
  %v4233 = vpack.c.b16 %v4161, %v4157
  %v4234 = vpack.c.b16 %v4162, %v4158
  %v4235 = vpack.c.b16 %v4163, %v4159
  %v4236 = vpack.c.b16 %v4164, %v4160
  %v4237 = vpack.c.b16 %v4169, %v4165
  %v4238 = vpack.c.b16 %v4170, %v4166
  %v4239 = vpack.c.b16 %v4171, %v4167
  %v4240 = vpack.c.b16 %v4172, %v4168
  %v4241 = vpack.c.b16 %v4177, %v4173
  %v4242 = vpack.c.b16 %v4178, %v4174
  %v4243 = vpack.c.b16 %v4179, %v4175
  %v4244 = vpack.c.b16 %v4180, %v4176
  %4309 = vmatprep.subr.bf16.mxu0 %v4182
  %4310 = vmatpush1.bf16.msra.mxu0 %v4181
  %4311 = vmatprep.subr.bf16.mxu0 %v4186
  %4312 = vmatpush1.bf16.msra.mxu0 %v4185
  %4313 = vmatprep.subr.bf16.mxu0 %v4190
  %4314 = vmatpush1.bf16.msra.mxu0 %v4189
  %4315 = vmatprep.subr.bf16.mxu0 %v4194
  %4316 = vmatpush1.bf16.msra.mxu0 %v4193
  %4317 = vmatprep.subr.bf16.mxu0 %v4198
  %4318 = vmatpush1.bf16.msra.mxu0 %v4197
  %4319 = vmatprep.subr.bf16.mxu0 %v4202
  %4320 = vmatpush1.bf16.msra.mxu0 %v4201
  %4321 = vmatprep.subr.bf16.mxu0 %v4206
  %4322 = vmatpush1.bf16.msra.mxu0 %v4205
  %4323 = vmatprep.subr.bf16.mxu0 %v4210
  %4324 = vmatpush1.bf16.msra.mxu0 %v4209
  %4325 = vmatprep.subr.bf16.mxu0 %v4214
  %4326 = vmatpush1.bf16.msra.mxu0 %v4213
  %4327 = vmatprep.subr.bf16.mxu0 %v4218
  %4328 = vmatpush1.bf16.msra.mxu0 %v4217
  %4329 = vmatprep.subr.bf16.mxu0 %v4222
  %4330 = vmatpush1.bf16.msra.mxu0 %v4221
  %4331 = vmatprep.subr.bf16.mxu0 %v4226
  %4332 = vmatpush1.bf16.msra.mxu0 %v4225
  %4333 = vmatprep.subr.bf16.mxu0 %v4230
  %4334 = vmatpush1.bf16.msra.mxu0 %v4229
  %4335 = vmatprep.subr.bf16.mxu0 %v4234
  %4336 = vmatpush1.bf16.msra.mxu0 %v4233
  %4337 = vmatprep.subr.bf16.mxu0 %v4238
  %4338 = vmatpush1.bf16.msra.mxu0 %v4237
  %4339 = vmatprep.subr.bf16.mxu0 %v4242
  %4340 = vmatpush1.bf16.msra.mxu0 %v4241
  %4341 = vmatprep.mubr.bf16.mxu0 %v3982
  %4342 = vmatmul.mubr.bf16.gmra.mrb[0].mxu0 %v3981
  %v4343 = vpop.f32.mrb[0].mxu0
  %v4344 = vadd.f32 0.0, %v4343
  %v4345 = vpop.f32.mrb[0].mxu0
  %v4346 = vadd.f32 0.0, %v4345
  %v4347 = vpop.f32.mrb[0].mxu0
  %v4348 = vadd.f32 0.0, %v4347
  %v4349 = vpop.f32.mrb[0].mxu0
  %v4350 = vadd.f32 0.0, %v4349
  %4351 = vmatprep.mubr.bf16.mxu0 %v3984
  %4352 = vmatmul.mubr.bf16.gmra.mrb[0].mxu0 %v3983
  %v4353 = vpop.f32.mrb[0].mxu0
  %v4354 = vadd.f32 0.0, %v4353
  %v4355 = vpop.f32.mrb[0].mxu0
  %v4356 = vadd.f32 0.0, %v4355
  %v4357 = vpop.f32.mrb[0].mxu0
  %v4358 = vadd.f32 0.0, %v4357
  %v4359 = vpop.f32.mrb[0].mxu0
  %v4360 = vadd.f32 0.0, %v4359
  %4361 = vmatprep.mubr.bf16.mxu0 %v3986
  %4362 = vmatmul.mubr.bf16.gmra.mrb[0].mxu0 %v3985
  %v4363 = vpop.f32.mrb[0].mxu0
  %v4364 = vadd.f32 0.0, %v4363
  %v4365 = vpop.f32.mrb[0].mxu0
  %v4366 = vadd.f32 0.0, %v4365
  %v4367 = vpop.f32.mrb[0].mxu0
  %v4368 = vadd.f32 0.0, %v4367
  %v4369 = vpop.f32.mrb[0].mxu0
  %v4370 = vadd.f32 0.0, %v4369
  %4371 = vmatprep.mubr.bf16.mxu0 %v3988
  %4372 = vmatmul.mubr.bf16.gmra.mrb[0].mxu0 %v3987
  %v4373 = vpop.f32.mrb[0].mxu0
  %v4374 = vadd.f32 0.0, %v4373
  %v4375 = vpop.f32.mrb[0].mxu0
  %v4376 = vadd.f32 0.0, %v4375
  %v4377 = vpop.f32.mrb[0].mxu0
  %v4378 = vadd.f32 0.0, %v4377
  %v4379 = vpop.f32.mrb[0].mxu0
  %v4380 = vadd.f32 0.0, %v4379
  %4381 = vdwg.mxu0
  %4382 = vmatprep.subr.bf16.mxu0 %v4184
  %4383 = vmatpush1.bf16.msra.mxu0 %v4183
  %4384 = vmatprep.subr.bf16.mxu0 %v4188
  %4385 = vmatpush1.bf16.msra.mxu0 %v4187
  %4386 = vmatprep.subr.bf16.mxu0 %v4192
  %4387 = vmatpush1.bf16.msra.mxu0 %v4191
  %4388 = vmatprep.subr.bf16.mxu0 %v4196
  %4389 = vmatpush1.bf16.msra.mxu0 %v4195
  %4390 = vmatprep.subr.bf16.mxu0 %v4200
  %4391 = vmatpush1.bf16.msra.mxu0 %v4199
  %4392 = vmatprep.subr.bf16.mxu0 %v4204
  %4393 = vmatpush1.bf16.msra.mxu0 %v4203
  %4394 = vmatprep.subr.bf16.mxu0 %v4208
  %4395 = vmatpush1.bf16.msra.mxu0 %v4207
  %4396 = vmatprep.subr.bf16.mxu0 %v4212
  %4397 = vmatpush1.bf16.msra.mxu0 %v4211
  %4398 = vmatprep.subr.bf16.mxu0 %v4216
  %4399 = vmatpush1.bf16.msra.mxu0 %v4215
  %4400 = vmatprep.subr.bf16.mxu0 %v4220
  %4401 = vmatpush1.bf16.msra.mxu0 %v4219
  %4402 = vmatprep.subr.bf16.mxu0 %v4224
  %4403 = vmatpush1.bf16.msra.mxu0 %v4223
  %4404 = vmatprep.subr.bf16.mxu0 %v4228
  %4405 = vmatpush1.bf16.msra.mxu0 %v4227
  %4406 = vmatprep.subr.bf16.mxu0 %v4232
  %4407 = vmatpush1.bf16.msra.mxu0 %v4231
  %4408 = vmatprep.subr.bf16.mxu0 %v4236
  %4409 = vmatpush1.bf16.msra.mxu0 %v4235
  %4410 = vmatprep.subr.bf16.mxu0 %v4240
  %4411 = vmatpush1.bf16.msra.mxu0 %v4239
  %4412 = vmatprep.subr.bf16.mxu0 %v4244
  %4413 = vmatpush1.bf16.msra.mxu0 %v4243
  %4414 = vmatprep.mubr.bf16.mxu0 %v3982
  %4415 = vmatmul.mubr.bf16.gmra.mrb[0].mxu0 %v3981
  %v4416 = vpop.f32.mrb[0].mxu0
  %v4417 = vadd.f32 0.0, %v4416
  %v4418 = vpop.f32.mrb[0].mxu0
  %v4419 = vadd.f32 0.0, %v4418
  %v4420 = vpop.f32.mrb[0].mxu0
  %v4421 = vadd.f32 0.0, %v4420
  %v4422 = vpop.f32.mrb[0].mxu0
  %v4423 = vadd.f32 0.0, %v4422
  %4424 = vmatprep.mubr.bf16.mxu0 %v3984
  %4425 = vmatmul.mubr.bf16.gmra.mrb[0].mxu0 %v3983
  %v4426 = vpop.f32.mrb[0].mxu0
  %v4427 = vadd.f32 0.0, %v4426
  %v4428 = vpop.f32.mrb[0].mxu0
  %v4429 = vadd.f32 0.0, %v4428
  %v4430 = vpop.f32.mrb[0].mxu0
  %v4431 = vadd.f32 0.0, %v4430
  %v4432 = vpop.f32.mrb[0].mxu0
  %v4433 = vadd.f32 0.0, %v4432
  %4434 = vmatprep.mubr.bf16.mxu0 %v3986
  %4435 = vmatmul.mubr.bf16.gmra.mrb[0].mxu0 %v3985
  %v4436 = vpop.f32.mrb[0].mxu0
  %v4437 = vadd.f32 0.0, %v4436
  %v4438 = vpop.f32.mrb[0].mxu0
  %v4439 = vadd.f32 0.0, %v4438
  %v4440 = vpop.f32.mrb[0].mxu0
  %v4441 = vadd.f32 0.0, %v4440
  %v4442 = vpop.f32.mrb[0].mxu0
  %v4443 = vadd.f32 0.0, %v4442
  %4444 = vmatprep.mubr.bf16.mxu0 %v3988
  %4445 = vmatmul.mubr.bf16.gmra.mrb[0].mxu0 %v3987
  %v4446 = vpop.f32.mrb[0].mxu0
  %v4447 = vadd.f32 0.0, %v4446
  %v4448 = vpop.f32.mrb[0].mxu0
  %v4449 = vadd.f32 0.0, %v4448
  %v4450 = vpop.f32.mrb[0].mxu0
  %v4451 = vadd.f32 0.0, %v4450
  %v4452 = vpop.f32.mrb[0].mxu0
  %v4453 = vadd.f32 0.0, %v4452
  %4454 = vdwg.mxu0
  %v4519 = vunpack.c.l.b16 %v3844
  %v4520 = vunpack.c.h.b16 %v3844
  %v4521 = vunpack.c.l.b16 %v3845
  %v4522 = vunpack.c.h.b16 %v3845
  %v4523 = vunpack.c.l.b16 %v3846
  %v4524 = vunpack.c.h.b16 %v3846
  %v4525 = vunpack.c.l.b16 %v3847
  %v4526 = vunpack.c.h.b16 %v3847
  %v4527 = vunpack.c.l.b16 %v3848
  %v4528 = vunpack.c.h.b16 %v3848
  %v4529 = vunpack.c.l.b16 %v3849
  %v4530 = vunpack.c.h.b16 %v3849
  %v4531 = vunpack.c.l.b16 %v3850
  %v4532 = vunpack.c.h.b16 %v3850
  %v4533 = vunpack.c.l.b16 %v3851
  %v4534 = vunpack.c.h.b16 %v3851
  %v4535 = vunpack.c.l.b16 %v3852
  %v4536 = vunpack.c.h.b16 %v3852
  %v4537 = vunpack.c.l.b16 %v3853
  %v4538 = vunpack.c.h.b16 %v3853
  %v4539 = vunpack.c.l.b16 %v3854
  %v4540 = vunpack.c.h.b16 %v3854
  %v4541 = vunpack.c.l.b16 %v3855
  %v4542 = vunpack.c.h.b16 %v3855
  %v4543 = vunpack.c.l.b16 %v3856
  %v4544 = vunpack.c.h.b16 %v3856
  %v4545 = vunpack.c.l.b16 %v3857
  %v4546 = vunpack.c.h.b16 %v3857
  %v4547 = vunpack.c.l.b16 %v3858
  %v4548 = vunpack.c.h.b16 %v3858
  %v4549 = vunpack.c.l.b16 %v3859
  %v4550 = vunpack.c.h.b16 %v3859
  %v4551 = vunpack.c.l.b16 %v3860
  %v4552 = vunpack.c.h.b16 %v3860
  %v4553 = vunpack.c.l.b16 %v3861
  %v4554 = vunpack.c.h.b16 %v3861
  %v4555 = vunpack.c.l.b16 %v3862
  %v4556 = vunpack.c.h.b16 %v3862
  %v4557 = vunpack.c.l.b16 %v3863
  %v4558 = vunpack.c.h.b16 %v3863
  %v4559 = vunpack.c.l.b16 %v3864
  %v4560 = vunpack.c.h.b16 %v3864
  %v4561 = vunpack.c.l.b16 %v3865
  %v4562 = vunpack.c.h.b16 %v3865
  %v4563 = vunpack.c.l.b16 %v3866
  %v4564 = vunpack.c.h.b16 %v3866
  %v4565 = vunpack.c.l.b16 %v3867
  %v4566 = vunpack.c.h.b16 %v3867
  %v4567 = vunpack.c.l.b16 %v3868
  %v4568 = vunpack.c.h.b16 %v3868
  %v4569 = vunpack.c.l.b16 %v3869
  %v4570 = vunpack.c.h.b16 %v3869
  %v4571 = vunpack.c.l.b16 %v3870
  %v4572 = vunpack.c.h.b16 %v3870
  %v4573 = vunpack.c.l.b16 %v3871
  %v4574 = vunpack.c.h.b16 %v3871
  %v4575 = vunpack.c.l.b16 %v3872
  %v4576 = vunpack.c.h.b16 %v3872
  %v4577 = vunpack.c.l.b16 %v3873
  %v4578 = vunpack.c.h.b16 %v3873
  %v4579 = vunpack.c.l.b16 %v3874
  %v4580 = vunpack.c.h.b16 %v3874
  %v4581 = vunpack.c.l.b16 %v3875
  %v4582 = vunpack.c.h.b16 %v3875
  %v4583 = vunpack.c.l.b16 %v3876
  %v4584 = vunpack.c.h.b16 %v3876
  %v4585 = vunpack.c.l.b16 %v3877
  %v4586 = vunpack.c.h.b16 %v3877
  %v4587 = vunpack.c.l.b16 %v3878
  %v4588 = vunpack.c.h.b16 %v3878
  %v4589 = vunpack.c.l.b16 %v3879
  %v4590 = vunpack.c.h.b16 %v3879
  %v4591 = vunpack.c.l.b16 %v3880
  %v4592 = vunpack.c.h.b16 %v3880
  %v4593 = vunpack.c.l.b16 %v3881
  %v4594 = vunpack.c.h.b16 %v3881
  %v4595 = vunpack.c.l.b16 %v3882
  %v4596 = vunpack.c.h.b16 %v3882
  %v4597 = vunpack.c.l.b16 %v3883
  %v4598 = vunpack.c.h.b16 %v3883
  %v4599 = vunpack.c.l.b16 %v3884
  %v4600 = vunpack.c.h.b16 %v3884
  %v4601 = vunpack.c.l.b16 %v3885
  %v4602 = vunpack.c.h.b16 %v3885
  %v4603 = vunpack.c.l.b16 %v3886
  %v4604 = vunpack.c.h.b16 %v3886
  %v4605 = vunpack.c.l.b16 %v3887
  %v4606 = vunpack.c.h.b16 %v3887
  %v4607 = vunpack.c.l.b16 %v3888
  %v4608 = vunpack.c.h.b16 %v3888
  %v4609 = vunpack.c.l.b16 %v3889
  %v4610 = vunpack.c.h.b16 %v3889
  %v4611 = vunpack.c.l.b16 %v3890
  %v4612 = vunpack.c.h.b16 %v3890
  %v4613 = vunpack.c.l.b16 %v3891
  %v4614 = vunpack.c.h.b16 %v3891
  %v4615 = vunpack.c.l.b16 %v3892
  %v4616 = vunpack.c.h.b16 %v3892
  %v4617 = vunpack.c.l.b16 %v3893
  %v4618 = vunpack.c.h.b16 %v3893
  %v4619 = vunpack.c.l.b16 %v3894
  %v4620 = vunpack.c.h.b16 %v3894
  %v4621 = vunpack.c.l.b16 %v3895
  %v4622 = vunpack.c.h.b16 %v3895
  %v4623 = vunpack.c.l.b16 %v3896
  %v4624 = vunpack.c.h.b16 %v3896
  %v4625 = vunpack.c.l.b16 %v3897
  %v4626 = vunpack.c.h.b16 %v3897
  %v4627 = vunpack.c.l.b16 %v3898
  %v4628 = vunpack.c.h.b16 %v3898
  %v4629 = vunpack.c.l.b16 %v3899
  %v4630 = vunpack.c.h.b16 %v3899
  %v4631 = vunpack.c.l.b16 %v3900
  %v4632 = vunpack.c.h.b16 %v3900
  %v4633 = vunpack.c.l.b16 %v3901
  %v4634 = vunpack.c.h.b16 %v3901
  %v4635 = vunpack.c.l.b16 %v3902
  %v4636 = vunpack.c.h.b16 %v3902
  %v4637 = vunpack.c.l.b16 %v3903
  %v4638 = vunpack.c.h.b16 %v3903
  %v4639 = vunpack.c.l.b16 %v3904
  %v4640 = vunpack.c.h.b16 %v3904
  %v4641 = vunpack.c.l.b16 %v3905
  %v4642 = vunpack.c.h.b16 %v3905
  %v4643 = vunpack.c.l.b16 %v3906
  %v4644 = vunpack.c.h.b16 %v3906
  %v4645 = vunpack.c.l.b16 %v3907
  %v4646 = vunpack.c.h.b16 %v3907
  %v4647 = vpack.c.b16 %v4523, %v4519
  %v4648 = vpack.c.b16 %v4524, %v4520
  %v4649 = vpack.c.b16 %v4525, %v4521
  %v4650 = vpack.c.b16 %v4526, %v4522
  %v4651 = vpack.c.b16 %v4531, %v4527
  %v4652 = vpack.c.b16 %v4532, %v4528
  %v4653 = vpack.c.b16 %v4533, %v4529
  %v4654 = vpack.c.b16 %v4534, %v4530
  %v4655 = vpack.c.b16 %v4539, %v4535
  %v4656 = vpack.c.b16 %v4540, %v4536
  %v4657 = vpack.c.b16 %v4541, %v4537
  %v4658 = vpack.c.b16 %v4542, %v4538
  %v4659 = vpack.c.b16 %v4547, %v4543
  %v4660 = vpack.c.b16 %v4548, %v4544
  %v4661 = vpack.c.b16 %v4549, %v4545
  %v4662 = vpack.c.b16 %v4550, %v4546
  %v4663 = vpack.c.b16 %v4555, %v4551
  %v4664 = vpack.c.b16 %v4556, %v4552
  %v4665 = vpack.c.b16 %v4557, %v4553
  %v4666 = vpack.c.b16 %v4558, %v4554
  %v4667 = vpack.c.b16 %v4563, %v4559
  %v4668 = vpack.c.b16 %v4564, %v4560
  %v4669 = vpack.c.b16 %v4565, %v4561
  %v4670 = vpack.c.b16 %v4566, %v4562
  %v4671 = vpack.c.b16 %v4571, %v4567
  %v4672 = vpack.c.b16 %v4572, %v4568
  %v4673 = vpack.c.b16 %v4573, %v4569
  %v4674 = vpack.c.b16 %v4574, %v4570
  %v4675 = vpack.c.b16 %v4579, %v4575
  %v4676 = vpack.c.b16 %v4580, %v4576
  %v4677 = vpack.c.b16 %v4581, %v4577
  %v4678 = vpack.c.b16 %v4582, %v4578
  %v4679 = vpack.c.b16 %v4587, %v4583
  %v4680 = vpack.c.b16 %v4588, %v4584
  %v4681 = vpack.c.b16 %v4589, %v4585
  %v4682 = vpack.c.b16 %v4590, %v4586
  %v4683 = vpack.c.b16 %v4595, %v4591
  %v4684 = vpack.c.b16 %v4596, %v4592
  %v4685 = vpack.c.b16 %v4597, %v4593
  %v4686 = vpack.c.b16 %v4598, %v4594
  %v4687 = vpack.c.b16 %v4603, %v4599
  %v4688 = vpack.c.b16 %v4604, %v4600
  %v4689 = vpack.c.b16 %v4605, %v4601
  %v4690 = vpack.c.b16 %v4606, %v4602
  %v4691 = vpack.c.b16 %v4611, %v4607
  %v4692 = vpack.c.b16 %v4612, %v4608
  %v4693 = vpack.c.b16 %v4613, %v4609
  %v4694 = vpack.c.b16 %v4614, %v4610
  %v4695 = vpack.c.b16 %v4619, %v4615
  %v4696 = vpack.c.b16 %v4620, %v4616
  %v4697 = vpack.c.b16 %v4621, %v4617
  %v4698 = vpack.c.b16 %v4622, %v4618
  %v4699 = vpack.c.b16 %v4627, %v4623
  %v4700 = vpack.c.b16 %v4628, %v4624
  %v4701 = vpack.c.b16 %v4629, %v4625
  %v4702 = vpack.c.b16 %v4630, %v4626
  %v4703 = vpack.c.b16 %v4635, %v4631
  %v4704 = vpack.c.b16 %v4636, %v4632
  %v4705 = vpack.c.b16 %v4637, %v4633
  %v4706 = vpack.c.b16 %v4638, %v4634
  %v4707 = vpack.c.b16 %v4643, %v4639
  %v4708 = vpack.c.b16 %v4644, %v4640
  %v4709 = vpack.c.b16 %v4645, %v4641
  %v4710 = vpack.c.b16 %v4646, %v4642
  %4775 = vmatprep.subr.bf16.mxu0 %v4648
  %4776 = vmatpush1.bf16.msra.mxu0 %v4647
  %4777 = vmatprep.subr.bf16.mxu0 %v4652
  %4778 = vmatpush1.bf16.msra.mxu0 %v4651
  %4779 = vmatprep.subr.bf16.mxu0 %v4656
  %4780 = vmatpush1.bf16.msra.mxu0 %v4655
  %4781 = vmatprep.subr.bf16.mxu0 %v4660
  %4782 = vmatpush1.bf16.msra.mxu0 %v4659
  %4783 = vmatprep.subr.bf16.mxu0 %v4664
  %4784 = vmatpush1.bf16.msra.mxu0 %v4663
  %4785 = vmatprep.subr.bf16.mxu0 %v4668
  %4786 = vmatpush1.bf16.msra.mxu0 %v4667
  %4787 = vmatprep.subr.bf16.mxu0 %v4672
  %4788 = vmatpush1.bf16.msra.mxu0 %v4671
  %4789 = vmatprep.subr.bf16.mxu0 %v4676
  %4790 = vmatpush1.bf16.msra.mxu0 %v4675
  %4791 = vmatprep.subr.bf16.mxu0 %v4680
  %4792 = vmatpush1.bf16.msra.mxu0 %v4679
  %4793 = vmatprep.subr.bf16.mxu0 %v4684
  %4794 = vmatpush1.bf16.msra.mxu0 %v4683
  %4795 = vmatprep.subr.bf16.mxu0 %v4688
  %4796 = vmatpush1.bf16.msra.mxu0 %v4687
  %4797 = vmatprep.subr.bf16.mxu0 %v4692
  %4798 = vmatpush1.bf16.msra.mxu0 %v4691
  %4799 = vmatprep.subr.bf16.mxu0 %v4696
  %4800 = vmatpush1.bf16.msra.mxu0 %v4695
  %4801 = vmatprep.subr.bf16.mxu0 %v4700
  %4802 = vmatpush1.bf16.msra.mxu0 %v4699
  %4803 = vmatprep.subr.bf16.mxu0 %v4704
  %4804 = vmatpush1.bf16.msra.mxu0 %v4703
  %4805 = vmatprep.subr.bf16.mxu0 %v4708
  %4806 = vmatpush1.bf16.msra.mxu0 %v4707
  %4807 = vmatprep.mubr.bf16.mxu0 %v3909
  %4808 = vmatmul.mubr.bf16.gmra.mrb[0].mxu0 %v3908
  %v4809 = vpop.f32.mrb[0].mxu0
  %v4810 = vadd.f32 %v4344, %v4809
  %v4811 = vpop.f32.mrb[0].mxu0
  %v4812 = vadd.f32 %v4346, %v4811
  %v4813 = vpop.f32.mrb[0].mxu0
  %v4814 = vadd.f32 %v4348, %v4813
  %v4815 = vpop.f32.mrb[0].mxu0
  %v4816 = vadd.f32 %v4350, %v4815
  %4817 = vmatprep.mubr.bf16.mxu0 %v3911
  %4818 = vmatmul.mubr.bf16.gmra.mrb[0].mxu0 %v3910
  %v4819 = vpop.f32.mrb[0].mxu0
  %v4820 = vadd.f32 %v4354, %v4819
  %v4821 = vpop.f32.mrb[0].mxu0
  %v4822 = vadd.f32 %v4356, %v4821
  %v4823 = vpop.f32.mrb[0].mxu0
  %v4824 = vadd.f32 %v4358, %v4823
  %v4825 = vpop.f32.mrb[0].mxu0
  %v4826 = vadd.f32 %v4360, %v4825
  %4827 = vmatprep.mubr.bf16.mxu0 %v3913
  %4828 = vmatmul.mubr.bf16.gmra.mrb[0].mxu0 %v3912
  %v4829 = vpop.f32.mrb[0].mxu0
  %v4830 = vadd.f32 %v4364, %v4829
  %v4831 = vpop.f32.mrb[0].mxu0
  %v4832 = vadd.f32 %v4366, %v4831
  %v4833 = vpop.f32.mrb[0].mxu0
  %v4834 = vadd.f32 %v4368, %v4833
  %v4835 = vpop.f32.mrb[0].mxu0
  %v4836 = vadd.f32 %v4370, %v4835
  %4837 = vmatprep.mubr.bf16.mxu0 %v3915
  %4838 = vmatmul.mubr.bf16.gmra.mrb[0].mxu0 %v3914
  %v4839 = vpop.f32.mrb[0].mxu0
  %v4840 = vadd.f32 %v4374, %v4839
  %v4841 = vpop.f32.mrb[0].mxu0
  %v4842 = vadd.f32 %v4376, %v4841
  %v4843 = vpop.f32.mrb[0].mxu0
  %v4844 = vadd.f32 %v4378, %v4843
  %v4845 = vpop.f32.mrb[0].mxu0
  %v4846 = vadd.f32 %v4380, %v4845
  %4847 = vdwg.mxu0
  %4848 = vmatprep.subr.bf16.mxu0 %v4650
  %4849 = vmatpush1.bf16.msra.mxu0 %v4649
  %4850 = vmatprep.subr.bf16.mxu0 %v4654
  %4851 = vmatpush1.bf16.msra.mxu0 %v4653
  %4852 = vmatprep.subr.bf16.mxu0 %v4658
  %4853 = vmatpush1.bf16.msra.mxu0 %v4657
  %4854 = vmatprep.subr.bf16.mxu0 %v4662
  %4855 = vmatpush1.bf16.msra.mxu0 %v4661
  %4856 = vmatprep.subr.bf16.mxu0 %v4666
  %4857 = vmatpush1.bf16.msra.mxu0 %v4665
  %4858 = vmatprep.subr.bf16.mxu0 %v4670
  %4859 = vmatpush1.bf16.msra.mxu0 %v4669
  %4860 = vmatprep.subr.bf16.mxu0 %v4674
  %4861 = vmatpush1.bf16.msra.mxu0 %v4673
  %4862 = vmatprep.subr.bf16.mxu0 %v4678
  %4863 = vmatpush1.bf16.msra.mxu0 %v4677
  %4864 = vmatprep.subr.bf16.mxu0 %v4682
  %4865 = vmatpush1.bf16.msra.mxu0 %v4681
  %4866 = vmatprep.subr.bf16.mxu0 %v4686
  %4867 = vmatpush1.bf16.msra.mxu0 %v4685
  %4868 = vmatprep.subr.bf16.mxu0 %v4690
  %4869 = vmatpush1.bf16.msra.mxu0 %v4689
  %4870 = vmatprep.subr.bf16.mxu0 %v4694
  %4871 = vmatpush1.bf16.msra.mxu0 %v4693
  %4872 = vmatprep.subr.bf16.mxu0 %v4698
  %4873 = vmatpush1.bf16.msra.mxu0 %v4697
  %4874 = vmatprep.subr.bf16.mxu0 %v4702
  %4875 = vmatpush1.bf16.msra.mxu0 %v4701
  %4876 = vmatprep.subr.bf16.mxu0 %v4706
  %4877 = vmatpush1.bf16.msra.mxu0 %v4705
  %4878 = vmatprep.subr.bf16.mxu0 %v4710
  %4879 = vmatpush1.bf16.msra.mxu0 %v4709
  %4880 = vmatprep.mubr.bf16.mxu0 %v3909
  %4881 = vmatmul.mubr.bf16.gmra.mrb[0].mxu0 %v3908
  %v4882 = vpop.f32.mrb[0].mxu0
  %v4883 = vadd.f32 %v4417, %v4882
  %v4884 = vpop.f32.mrb[0].mxu0
  %v4885 = vadd.f32 %v4419, %v4884
  %v4886 = vpop.f32.mrb[0].mxu0
  %v4887 = vadd.f32 %v4421, %v4886
  %v4888 = vpop.f32.mrb[0].mxu0
  %v4889 = vadd.f32 %v4423, %v4888
  %4890 = vmatprep.mubr.bf16.mxu0 %v3911
  %4891 = vmatmul.mubr.bf16.gmra.mrb[0].mxu0 %v3910
  %v4892 = vpop.f32.mrb[0].mxu0
  %v4893 = vadd.f32 %v4427, %v4892
  %v4894 = vpop.f32.mrb[0].mxu0
  %v4895 = vadd.f32 %v4429, %v4894
  %v4896 = vpop.f32.mrb[0].mxu0
  %v4897 = vadd.f32 %v4431, %v4896
  %v4898 = vpop.f32.mrb[0].mxu0
  %v4899 = vadd.f32 %v4433, %v4898
  %4900 = vmatprep.mubr.bf16.mxu0 %v3913
  %4901 = vmatmul.mubr.bf16.gmra.mrb[0].mxu0 %v3912
  %v4902 = vpop.f32.mrb[0].mxu0
  %v4903 = vadd.f32 %v4437, %v4902
  %v4904 = vpop.f32.mrb[0].mxu0
  %v4905 = vadd.f32 %v4439, %v4904
  %v4906 = vpop.f32.mrb[0].mxu0
  %v4907 = vadd.f32 %v4441, %v4906
  %v4908 = vpop.f32.mrb[0].mxu0
  %v4909 = vadd.f32 %v4443, %v4908
  %4910 = vmatprep.mubr.bf16.mxu0 %v3915
  %4911 = vmatmul.mubr.bf16.gmra.mrb[0].mxu0 %v3914
  %v4912 = vpop.f32.mrb[0].mxu0
  %v4913 = vadd.f32 %v4447, %v4912
  %v4914 = vpop.f32.mrb[0].mxu0
  %v4915 = vadd.f32 %v4449, %v4914
  %v4916 = vpop.f32.mrb[0].mxu0
  %v4917 = vadd.f32 %v4451, %v4916
  %v4918 = vpop.f32.mrb[0].mxu0
  %v4919 = vadd.f32 %v4453, %v4918
  %4920 = vdwg.mxu0
  %s4921 = scalar_lea.vmem %s3, 1024
  %v4922 = vld [vmem:[%s4921] sm:$0xff]
  %v4923 = vld [vmem:[%s4921 + $0x8] sm:$0xff]
  %v4924 = vld [vmem:[%s4921 + $0x10] sm:$0xff]
  %v4925 = vld [vmem:[%s4921 + $0x18] sm:$0xff]
  %v4926 = vld [vmem:[%s4921 + $0x20] sm:$0xff]
  %v4927 = vld [vmem:[%s4921 + $0x28] sm:$0xff]
  %v4928 = vld [vmem:[%s4921 + $0x30] sm:$0xff]
  %v4929 = vld [vmem:[%s4921 + $0x38] sm:$0xff]
  %v4930 = vld [vmem:[%s4921 + $0x40] sm:$0xff]
  %v4931 = vld [vmem:[%s4921 + $0x48] sm:$0xff]
  %v4932 = vld [vmem:[%s4921 + $0x50] sm:$0xff]
  %v4933 = vld [vmem:[%s4921 + $0x58] sm:$0xff]
  %v4934 = vld [vmem:[%s4921 + $0x60] sm:$0xff]
  %v4935 = vld [vmem:[%s4921 + $0x68] sm:$0xff]
  %v4936 = vld [vmem:[%s4921 + $0x70] sm:$0xff]
  %v4937 = vld [vmem:[%s4921 + $0x78] sm:$0xff]
  %v4938 = vld [vmem:[%s4921 + $0x80] sm:$0xff]
  %v4939 = vld [vmem:[%s4921 + $0x88] sm:$0xff]
  %v4940 = vld [vmem:[%s4921 + $0x90] sm:$0xff]
  %v4941 = vld [vmem:[%s4921 + $0x98] sm:$0xff]
  %v4942 = vld [vmem:[%s4921 + $0xa0] sm:$0xff]
  %v4943 = vld [vmem:[%s4921 + $0xa8] sm:$0xff]
  %v4944 = vld [vmem:[%s4921 + $0xb0] sm:$0xff]
  %v4945 = vld [vmem:[%s4921 + $0xb8] sm:$0xff]
  %v4946 = vld [vmem:[%s4921 + $0xc0] sm:$0xff]
  %v4947 = vld [vmem:[%s4921 + $0xc8] sm:$0xff]
  %v4948 = vld [vmem:[%s4921 + $0xd0] sm:$0xff]
  %v4949 = vld [vmem:[%s4921 + $0xd8] sm:$0xff]
  %v4950 = vld [vmem:[%s4921 + $0xe0] sm:$0xff]
  %v4951 = vld [vmem:[%s4921 + $0xe8] sm:$0xff]
  %v4952 = vld [vmem:[%s4921 + $0xf0] sm:$0xff]
  %v4953 = vld [vmem:[%s4921 + $0xf8] sm:$0xff]
  %v4954 = vld [vmem:[%s4921 + $0x100] sm:$0xff]
  %v4955 = vld [vmem:[%s4921 + $0x108] sm:$0xff]
  %v4956 = vld [vmem:[%s4921 + $0x110] sm:$0xff]
  %v4957 = vld [vmem:[%s4921 + $0x118] sm:$0xff]
  %v4958 = vld [vmem:[%s4921 + $0x120] sm:$0xff]
  %v4959 = vld [vmem:[%s4921 + $0x128] sm:$0xff]
  %v4960 = vld [vmem:[%s4921 + $0x130] sm:$0xff]
  %v4961 = vld [vmem:[%s4921 + $0x138] sm:$0xff]
  %v4962 = vld [vmem:[%s4921 + $0x140] sm:$0xff]
  %v4963 = vld [vmem:[%s4921 + $0x148] sm:$0xff]
  %v4964 = vld [vmem:[%s4921 + $0x150] sm:$0xff]
  %v4965 = vld [vmem:[%s4921 + $0x158] sm:$0xff]
  %v4966 = vld [vmem:[%s4921 + $0x160] sm:$0xff]
  %v4967 = vld [vmem:[%s4921 + $0x168] sm:$0xff]
  %v4968 = vld [vmem:[%s4921 + $0x170] sm:$0xff]
  %v4969 = vld [vmem:[%s4921 + $0x178] sm:$0xff]
  %v4970 = vld [vmem:[%s4921 + $0x180] sm:$0xff]
  %v4971 = vld [vmem:[%s4921 + $0x188] sm:$0xff]
  %v4972 = vld [vmem:[%s4921 + $0x190] sm:$0xff]
  %v4973 = vld [vmem:[%s4921 + $0x198] sm:$0xff]
  %v4974 = vld [vmem:[%s4921 + $0x1a0] sm:$0xff]
  %v4975 = vld [vmem:[%s4921 + $0x1a8] sm:$0xff]
  %v4976 = vld [vmem:[%s4921 + $0x1b0] sm:$0xff]
  %v4977 = vld [vmem:[%s4921 + $0x1b8] sm:$0xff]
  %v4978 = vld [vmem:[%s4921 + $0x1c0] sm:$0xff]
  %v4979 = vld [vmem:[%s4921 + $0x1c8] sm:$0xff]
  %v4980 = vld [vmem:[%s4921 + $0x1d0] sm:$0xff]
  %v4981 = vld [vmem:[%s4921 + $0x1d8] sm:$0xff]
  %v4982 = vld [vmem:[%s4921 + $0x1e0] sm:$0xff]
  %v4983 = vld [vmem:[%s4921 + $0x1e8] sm:$0xff]
  %v4984 = vld [vmem:[%s4921 + $0x1f0] sm:$0xff]
  %v4985 = vld [vmem:[%s4921 + $0x1f8] sm:$0xff]
  %v4986 = vpack.c.bf16 %v3640, %v3638
  %v4987 = vpack.c.bf16 %v3641, %v3639
  %v4988 = vpack.c.bf16 %v3644, %v3642
  %v4989 = vpack.c.bf16 %v3645, %v3643
  %v4990 = vpack.c.bf16 %v3648, %v3646
  %v4991 = vpack.c.bf16 %v3649, %v3647
  %v4992 = vpack.c.bf16 %v3754, %v3650
  %v4993 = vpack.c.bf16 %v3755, %v3651
  %v5058 = vunpack.c.l.b16 %v4922
  %v5059 = vunpack.c.h.b16 %v4922
  %v5060 = vunpack.c.l.b16 %v4923
  %v5061 = vunpack.c.h.b16 %v4923
  %v5062 = vunpack.c.l.b16 %v4924
  %v5063 = vunpack.c.h.b16 %v4924
  %v5064 = vunpack.c.l.b16 %v4925
  %v5065 = vunpack.c.h.b16 %v4925
  %v5066 = vunpack.c.l.b16 %v4926
  %v5067 = vunpack.c.h.b16 %v4926
  %v5068 = vunpack.c.l.b16 %v4927
  %v5069 = vunpack.c.h.b16 %v4927
  %v5070 = vunpack.c.l.b16 %v4928
  %v5071 = vunpack.c.h.b16 %v4928
  %v5072 = vunpack.c.l.b16 %v4929
  %v5073 = vunpack.c.h.b16 %v4929
  %v5074 = vunpack.c.l.b16 %v4930
  %v5075 = vunpack.c.h.b16 %v4930
  %v5076 = vunpack.c.l.b16 %v4931
  %v5077 = vunpack.c.h.b16 %v4931
  %v5078 = vunpack.c.l.b16 %v4932
  %v5079 = vunpack.c.h.b16 %v4932
  %v5080 = vunpack.c.l.b16 %v4933
  %v5081 = vunpack.c.h.b16 %v4933
  %v5082 = vunpack.c.l.b16 %v4934
  %v5083 = vunpack.c.h.b16 %v4934
  %v5084 = vunpack.c.l.b16 %v4935
  %v5085 = vunpack.c.h.b16 %v4935
  %v5086 = vunpack.c.l.b16 %v4936
  %v5087 = vunpack.c.h.b16 %v4936
  %v5088 = vunpack.c.l.b16 %v4937
  %v5089 = vunpack.c.h.b16 %v4937
  %v5090 = vunpack.c.l.b16 %v4938
  %v5091 = vunpack.c.h.b16 %v4938
  %v5092 = vunpack.c.l.b16 %v4939
  %v5093 = vunpack.c.h.b16 %v4939
  %v5094 = vunpack.c.l.b16 %v4940
  %v5095 = vunpack.c.h.b16 %v4940
  %v5096 = vunpack.c.l.b16 %v4941
  %v5097 = vunpack.c.h.b16 %v4941
  %v5098 = vunpack.c.l.b16 %v4942
  %v5099 = vunpack.c.h.b16 %v4942
  %v5100 = vunpack.c.l.b16 %v4943
  %v5101 = vunpack.c.h.b16 %v4943
  %v5102 = vunpack.c.l.b16 %v4944
  %v5103 = vunpack.c.h.b16 %v4944
  %v5104 = vunpack.c.l.b16 %v4945
  %v5105 = vunpack.c.h.b16 %v4945
  %v5106 = vunpack.c.l.b16 %v4946
  %v5107 = vunpack.c.h.b16 %v4946
  %v5108 = vunpack.c.l.b16 %v4947
  %v5109 = vunpack.c.h.b16 %v4947
  %v5110 = vunpack.c.l.b16 %v4948
  %v5111 = vunpack.c.h.b16 %v4948
  %v5112 = vunpack.c.l.b16 %v4949
  %v5113 = vunpack.c.h.b16 %v4949
  %v5114 = vunpack.c.l.b16 %v4950
  %v5115 = vunpack.c.h.b16 %v4950
  %v5116 = vunpack.c.l.b16 %v4951
  %v5117 = vunpack.c.h.b16 %v4951
  %v5118 = vunpack.c.l.b16 %v4952
  %v5119 = vunpack.c.h.b16 %v4952
  %v5120 = vunpack.c.l.b16 %v4953
  %v5121 = vunpack.c.h.b16 %v4953
  %v5122 = vunpack.c.l.b16 %v4954
  %v5123 = vunpack.c.h.b16 %v4954
  %v5124 = vunpack.c.l.b16 %v4955
  %v5125 = vunpack.c.h.b16 %v4955
  %v5126 = vunpack.c.l.b16 %v4956
  %v5127 = vunpack.c.h.b16 %v4956
  %v5128 = vunpack.c.l.b16 %v4957
  %v5129 = vunpack.c.h.b16 %v4957
  %v5130 = vunpack.c.l.b16 %v4958
  %v5131 = vunpack.c.h.b16 %v4958
  %v5132 = vunpack.c.l.b16 %v4959
  %v5133 = vunpack.c.h.b16 %v4959
  %v5134 = vunpack.c.l.b16 %v4960
  %v5135 = vunpack.c.h.b16 %v4960
  %v5136 = vunpack.c.l.b16 %v4961
  %v5137 = vunpack.c.h.b16 %v4961
  %v5138 = vunpack.c.l.b16 %v4962
  %v5139 = vunpack.c.h.b16 %v4962
  %v5140 = vunpack.c.l.b16 %v4963
  %v5141 = vunpack.c.h.b16 %v4963
  %v5142 = vunpack.c.l.b16 %v4964
  %v5143 = vunpack.c.h.b16 %v4964
  %v5144 = vunpack.c.l.b16 %v4965
  %v5145 = vunpack.c.h.b16 %v4965
  %v5146 = vunpack.c.l.b16 %v4966
  %v5147 = vunpack.c.h.b16 %v4966
  %v5148 = vunpack.c.l.b16 %v4967
  %v5149 = vunpack.c.h.b16 %v4967
  %v5150 = vunpack.c.l.b16 %v4968
  %v5151 = vunpack.c.h.b16 %v4968
  %v5152 = vunpack.c.l.b16 %v4969
  %v5153 = vunpack.c.h.b16 %v4969
  %v5154 = vunpack.c.l.b16 %v4970
  %v5155 = vunpack.c.h.b16 %v4970
  %v5156 = vunpack.c.l.b16 %v4971
  %v5157 = vunpack.c.h.b16 %v4971
  %v5158 = vunpack.c.l.b16 %v4972
  %v5159 = vunpack.c.h.b16 %v4972
  %v5160 = vunpack.c.l.b16 %v4973
  %v5161 = vunpack.c.h.b16 %v4973
  %v5162 = vunpack.c.l.b16 %v4974
  %v5163 = vunpack.c.h.b16 %v4974
  %v5164 = vunpack.c.l.b16 %v4975
  %v5165 = vunpack.c.h.b16 %v4975
  %v5166 = vunpack.c.l.b16 %v4976
  %v5167 = vunpack.c.h.b16 %v4976
  %v5168 = vunpack.c.l.b16 %v4977
  %v5169 = vunpack.c.h.b16 %v4977
  %v5170 = vunpack.c.l.b16 %v4978
  %v5171 = vunpack.c.h.b16 %v4978
  %v5172 = vunpack.c.l.b16 %v4979
  %v5173 = vunpack.c.h.b16 %v4979
  %v5174 = vunpack.c.l.b16 %v4980
  %v5175 = vunpack.c.h.b16 %v4980
  %v5176 = vunpack.c.l.b16 %v4981
  %v5177 = vunpack.c.h.b16 %v4981
  %v5178 = vunpack.c.l.b16 %v4982
  %v5179 = vunpack.c.h.b16 %v4982
  %v5180 = vunpack.c.l.b16 %v4983
  %v5181 = vunpack.c.h.b16 %v4983
  %v5182 = vunpack.c.l.b16 %v4984
  %v5183 = vunpack.c.h.b16 %v4984
  %v5184 = vunpack.c.l.b16 %v4985
  %v5185 = vunpack.c.h.b16 %v4985
  %v5186 = vpack.c.b16 %v5062, %v5058
  %v5187 = vpack.c.b16 %v5063, %v5059
  %v5188 = vpack.c.b16 %v5064, %v5060
  %v5189 = vpack.c.b16 %v5065, %v5061
  %v5190 = vpack.c.b16 %v5070, %v5066
  %v5191 = vpack.c.b16 %v5071, %v5067
  %v5192 = vpack.c.b16 %v5072, %v5068
  %v5193 = vpack.c.b16 %v5073, %v5069
  %v5194 = vpack.c.b16 %v5078, %v5074
  %v5195 = vpack.c.b16 %v5079, %v5075
  %v5196 = vpack.c.b16 %v5080, %v5076
  %v5197 = vpack.c.b16 %v5081, %v5077
  %v5198 = vpack.c.b16 %v5086, %v5082
  %v5199 = vpack.c.b16 %v5087, %v5083
  %v5200 = vpack.c.b16 %v5088, %v5084
  %v5201 = vpack.c.b16 %v5089, %v5085
  %v5202 = vpack.c.b16 %v5094, %v5090
  %v5203 = vpack.c.b16 %v5095, %v5091
  %v5204 = vpack.c.b16 %v5096, %v5092
  %v5205 = vpack.c.b16 %v5097, %v5093
  %v5206 = vpack.c.b16 %v5102, %v5098
  %v5207 = vpack.c.b16 %v5103, %v5099
  %v5208 = vpack.c.b16 %v5104, %v5100
  %v5209 = vpack.c.b16 %v5105, %v5101
  %v5210 = vpack.c.b16 %v5110, %v5106
  %v5211 = vpack.c.b16 %v5111, %v5107
  %v5212 = vpack.c.b16 %v5112, %v5108
  %v5213 = vpack.c.b16 %v5113, %v5109
  %v5214 = vpack.c.b16 %v5118, %v5114
  %v5215 = vpack.c.b16 %v5119, %v5115
  %v5216 = vpack.c.b16 %v5120, %v5116
  %v5217 = vpack.c.b16 %v5121, %v5117
  %v5218 = vpack.c.b16 %v5126, %v5122
  %v5219 = vpack.c.b16 %v5127, %v5123
  %v5220 = vpack.c.b16 %v5128, %v5124
  %v5221 = vpack.c.b16 %v5129, %v5125
  %v5222 = vpack.c.b16 %v5134, %v5130
  %v5223 = vpack.c.b16 %v5135, %v5131
  %v5224 = vpack.c.b16 %v5136, %v5132
  %v5225 = vpack.c.b16 %v5137, %v5133
  %v5226 = vpack.c.b16 %v5142, %v5138
  %v5227 = vpack.c.b16 %v5143, %v5139
  %v5228 = vpack.c.b16 %v5144, %v5140
  %v5229 = vpack.c.b16 %v5145, %v5141
  %v5230 = vpack.c.b16 %v5150, %v5146
  %v5231 = vpack.c.b16 %v5151, %v5147
  %v5232 = vpack.c.b16 %v5152, %v5148
  %v5233 = vpack.c.b16 %v5153, %v5149
  %v5234 = vpack.c.b16 %v5158, %v5154
  %v5235 = vpack.c.b16 %v5159, %v5155
  %v5236 = vpack.c.b16 %v5160, %v5156
  %v5237 = vpack.c.b16 %v5161, %v5157
  %v5238 = vpack.c.b16 %v5166, %v5162
  %v5239 = vpack.c.b16 %v5167, %v5163
  %v5240 = vpack.c.b16 %v5168, %v5164
  %v5241 = vpack.c.b16 %v5169, %v5165
  %v5242 = vpack.c.b16 %v5174, %v5170
  %v5243 = vpack.c.b16 %v5175, %v5171
  %v5244 = vpack.c.b16 %v5176, %v5172
  %v5245 = vpack.c.b16 %v5177, %v5173
  %v5246 = vpack.c.b16 %v5182, %v5178
  %v5247 = vpack.c.b16 %v5183, %v5179
  %v5248 = vpack.c.b16 %v5184, %v5180
  %v5249 = vpack.c.b16 %v5185, %v5181
  %5314 = vmatprep.subr.bf16.mxu0 %v5187
  %5315 = vmatpush1.bf16.msra.mxu0 %v5186
  %5316 = vmatprep.subr.bf16.mxu0 %v5191
  %5317 = vmatpush1.bf16.msra.mxu0 %v5190
  %5318 = vmatprep.subr.bf16.mxu0 %v5195
  %5319 = vmatpush1.bf16.msra.mxu0 %v5194
  %5320 = vmatprep.subr.bf16.mxu0 %v5199
  %5321 = vmatpush1.bf16.msra.mxu0 %v5198
  %5322 = vmatprep.subr.bf16.mxu0 %v5203
  %5323 = vmatpush1.bf16.msra.mxu0 %v5202
  %5324 = vmatprep.subr.bf16.mxu0 %v5207
  %5325 = vmatpush1.bf16.msra.mxu0 %v5206
  %5326 = vmatprep.subr.bf16.mxu0 %v5211
  %5327 = vmatpush1.bf16.msra.mxu0 %v5210
  %5328 = vmatprep.subr.bf16.mxu0 %v5215
  %5329 = vmatpush1.bf16.msra.mxu0 %v5214
  %5330 = vmatprep.subr.bf16.mxu0 %v5219
  %5331 = vmatpush1.bf16.msra.mxu0 %v5218
  %5332 = vmatprep.subr.bf16.mxu0 %v5223
  %5333 = vmatpush1.bf16.msra.mxu0 %v5222
  %5334 = vmatprep.subr.bf16.mxu0 %v5227
  %5335 = vmatpush1.bf16.msra.mxu0 %v5226
  %5336 = vmatprep.subr.bf16.mxu0 %v5231
  %5337 = vmatpush1.bf16.msra.mxu0 %v5230
  %5338 = vmatprep.subr.bf16.mxu0 %v5235
  %5339 = vmatpush1.bf16.msra.mxu0 %v5234
  %5340 = vmatprep.subr.bf16.mxu0 %v5239
  %5341 = vmatpush1.bf16.msra.mxu0 %v5238
  %5342 = vmatprep.subr.bf16.mxu0 %v5243
  %5343 = vmatpush1.bf16.msra.mxu0 %v5242
  %5344 = vmatprep.subr.bf16.mxu0 %v5247
  %5345 = vmatpush1.bf16.msra.mxu0 %v5246
  %5346 = vmatprep.mubr.bf16.mxu0 %v4987
  %5347 = vmatmul.mubr.bf16.gmra.mrb[0].mxu0 %v4986
  %v5348 = vpop.f32.mrb[0].mxu0
  %v5349 = vadd.f32 0.0, %v5348
  %v5350 = vpop.f32.mrb[0].mxu0
  %v5351 = vadd.f32 0.0, %v5350
  %v5352 = vpop.f32.mrb[0].mxu0
  %v5353 = vadd.f32 0.0, %v5352
  %v5354 = vpop.f32.mrb[0].mxu0
  %v5355 = vadd.f32 0.0, %v5354
  %5356 = vmatprep.mubr.bf16.mxu0 %v4989
  %5357 = vmatmul.mubr.bf16.gmra.mrb[0].mxu0 %v4988
  %v5358 = vpop.f32.mrb[0].mxu0
  %v5359 = vadd.f32 0.0, %v5358
  %v5360 = vpop.f32.mrb[0].mxu0
  %v5361 = vadd.f32 0.0, %v5360
  %v5362 = vpop.f32.mrb[0].mxu0
  %v5363 = vadd.f32 0.0, %v5362
  %v5364 = vpop.f32.mrb[0].mxu0
  %v5365 = vadd.f32 0.0, %v5364
  %5366 = vmatprep.mubr.bf16.mxu0 %v4991
  %5367 = vmatmul.mubr.bf16.gmra.mrb[0].mxu0 %v4990
  %v5368 = vpop.f32.mrb[0].mxu0
  %v5369 = vadd.f32 0.0, %v5368
  %v5370 = vpop.f32.mrb[0].mxu0
  %v5371 = vadd.f32 0.0, %v5370
  %v5372 = vpop.f32.mrb[0].mxu0
  %v5373 = vadd.f32 0.0, %v5372
  %v5374 = vpop.f32.mrb[0].mxu0
  %v5375 = vadd.f32 0.0, %v5374
  %5376 = vmatprep.mubr.bf16.mxu0 %v4993
  %5377 = vmatmul.mubr.bf16.gmra.mrb[0].mxu0 %v4992
  %v5378 = vpop.f32.mrb[0].mxu0
  %v5379 = vadd.f32 0.0, %v5378
  %v5380 = vpop.f32.mrb[0].mxu0
  %v5381 = vadd.f32 0.0, %v5380
  %v5382 = vpop.f32.mrb[0].mxu0
  %v5383 = vadd.f32 0.0, %v5382
  %v5384 = vpop.f32.mrb[0].mxu0
  %v5385 = vadd.f32 0.0, %v5384
  %5386 = vdwg.mxu0
  %5387 = vmatprep.subr.bf16.mxu0 %v5189
  %5388 = vmatpush1.bf16.msra.mxu0 %v5188
  %5389 = vmatprep.subr.bf16.mxu0 %v5193
  %5390 = vmatpush1.bf16.msra.mxu0 %v5192
  %5391 = vmatprep.subr.bf16.mxu0 %v5197
  %5392 = vmatpush1.bf16.msra.mxu0 %v5196
  %5393 = vmatprep.subr.bf16.mxu0 %v5201
  %5394 = vmatpush1.bf16.msra.mxu0 %v5200
  %5395 = vmatprep.subr.bf16.mxu0 %v5205
  %5396 = vmatpush1.bf16.msra.mxu0 %v5204
  %5397 = vmatprep.subr.bf16.mxu0 %v5209
  %5398 = vmatpush1.bf16.msra.mxu0 %v5208
  %5399 = vmatprep.subr.bf16.mxu0 %v5213
  %5400 = vmatpush1.bf16.msra.mxu0 %v5212
  %5401 = vmatprep.subr.bf16.mxu0 %v5217
  %5402 = vmatpush1.bf16.msra.mxu0 %v5216
  %5403 = vmatprep.subr.bf16.mxu0 %v5221
  %5404 = vmatpush1.bf16.msra.mxu0 %v5220
  %5405 = vmatprep.subr.bf16.mxu0 %v5225
  %5406 = vmatpush1.bf16.msra.mxu0 %v5224
  %5407 = vmatprep.subr.bf16.mxu0 %v5229
  %5408 = vmatpush1.bf16.msra.mxu0 %v5228
  %5409 = vmatprep.subr.bf16.mxu0 %v5233
  %5410 = vmatpush1.bf16.msra.mxu0 %v5232
  %5411 = vmatprep.subr.bf16.mxu0 %v5237
  %5412 = vmatpush1.bf16.msra.mxu0 %v5236
  %5413 = vmatprep.subr.bf16.mxu0 %v5241
  %5414 = vmatpush1.bf16.msra.mxu0 %v5240
  %5415 = vmatprep.subr.bf16.mxu0 %v5245
  %5416 = vmatpush1.bf16.msra.mxu0 %v5244
  %5417 = vmatprep.subr.bf16.mxu0 %v5249
  %5418 = vmatpush1.bf16.msra.mxu0 %v5248
  %5419 = vmatprep.mubr.bf16.mxu0 %v4987
  %5420 = vmatmul.mubr.bf16.gmra.mrb[0].mxu0 %v4986
  %v5421 = vpop.f32.mrb[0].mxu0
  %v5422 = vadd.f32 0.0, %v5421
  %v5423 = vpop.f32.mrb[0].mxu0
  %v5424 = vadd.f32 0.0, %v5423
  %v5425 = vpop.f32.mrb[0].mxu0
  %v5426 = vadd.f32 0.0, %v5425
  %v5427 = vpop.f32.mrb[0].mxu0
  %v5428 = vadd.f32 0.0, %v5427
  %5429 = vmatprep.mubr.bf16.mxu0 %v4989
  %5430 = vmatmul.mubr.bf16.gmra.mrb[0].mxu0 %v4988
  %v5431 = vpop.f32.mrb[0].mxu0
  %v5432 = vadd.f32 0.0, %v5431
  %v5433 = vpop.f32.mrb[0].mxu0
  %v5434 = vadd.f32 0.0, %v5433
  %v5435 = vpop.f32.mrb[0].mxu0
  %v5436 = vadd.f32 0.0, %v5435
  %v5437 = vpop.f32.mrb[0].mxu0
  %v5438 = vadd.f32 0.0, %v5437
  %5439 = vmatprep.mubr.bf16.mxu0 %v4991
  %5440 = vmatmul.mubr.bf16.gmra.mrb[0].mxu0 %v4990
  %v5441 = vpop.f32.mrb[0].mxu0
  %v5442 = vadd.f32 0.0, %v5441
  %v5443 = vpop.f32.mrb[0].mxu0
  %v5444 = vadd.f32 0.0, %v5443
  %v5445 = vpop.f32.mrb[0].mxu0
  %v5446 = vadd.f32 0.0, %v5445
  %v5447 = vpop.f32.mrb[0].mxu0
  %v5448 = vadd.f32 0.0, %v5447
  %5449 = vmatprep.mubr.bf16.mxu0 %v4993
  %5450 = vmatmul.mubr.bf16.gmra.mrb[0].mxu0 %v4992
  %v5451 = vpop.f32.mrb[0].mxu0
  %v5452 = vadd.f32 0.0, %v5451
  %v5453 = vpop.f32.mrb[0].mxu0
  %v5454 = vadd.f32 0.0, %v5453
  %v5455 = vpop.f32.mrb[0].mxu0
  %v5456 = vadd.f32 0.0, %v5455
  %v5457 = vpop.f32.mrb[0].mxu0
  %v5458 = vadd.f32 0.0, %v5457
  %5459 = vdwg.mxu0
  %v5460 = vadd.f32 %v4810, %v5349
  %v5461 = vadd.f32 %v4812, %v5351
  %v5462 = vadd.f32 %v4883, %v5422
  %v5463 = vadd.f32 %v4885, %v5424
  %v5464 = vadd.f32 %v4814, %v5353
  %v5465 = vadd.f32 %v4816, %v5355
  %v5466 = vadd.f32 %v4887, %v5426
  %v5467 = vadd.f32 %v4889, %v5428
  %v5468 = vadd.f32 %v4820, %v5359
  %v5469 = vadd.f32 %v4822, %v5361
  %v5470 = vadd.f32 %v4893, %v5432
  %v5471 = vadd.f32 %v4895, %v5434
  %v5472 = vadd.f32 %v4824, %v5363
  %v5473 = vadd.f32 %v4826, %v5365
  %v5474 = vadd.f32 %v4897, %v5436
  %v5475 = vadd.f32 %v4899, %v5438
  %v5476 = vadd.f32 %v4830, %v5369
  %v5477 = vadd.f32 %v4832, %v5371
  %v5478 = vadd.f32 %v4903, %v5442
  %v5479 = vadd.f32 %v4905, %v5444
  %v5480 = vadd.f32 %v4834, %v5373
  %v5481 = vadd.f32 %v4836, %v5375
  %v5482 = vadd.f32 %v4907, %v5446
  %v5483 = vadd.f32 %v4909, %v5448
  %v5484 = vadd.f32 %v4840, %v5379
  %v5485 = vadd.f32 %v4842, %v5381
  %v5486 = vadd.f32 %v4913, %v5452
  %v5487 = vadd.f32 %v4915, %v5454
  %v5488 = vadd.f32 %v4844, %v5383
  %v5489 = vadd.f32 %v4846, %v5385
  %v5490 = vadd.f32 %v4917, %v5456
  %v5491 = vadd.f32 %v4919, %v5458
  %5492 = vmatprep.subr.bf16.mxu0 %v4182
  %5493 = vmatpush1.bf16.msra.mxu0 %v4181
  %5494 = vmatprep.subr.bf16.mxu0 %v4186
  %5495 = vmatpush1.bf16.msra.mxu0 %v4185
  %5496 = vmatprep.subr.bf16.mxu0 %v4190
  %5497 = vmatpush1.bf16.msra.mxu0 %v4189
  %5498 = vmatprep.subr.bf16.mxu0 %v4194
  %5499 = vmatpush1.bf16.msra.mxu0 %v4193
  %5500 = vmatprep.subr.bf16.mxu0 %v4198
  %5501 = vmatpush1.bf16.msra.mxu0 %v4197
  %5502 = vmatprep.subr.bf16.mxu0 %v4202
  %5503 = vmatpush1.bf16.msra.mxu0 %v4201
  %5504 = vmatprep.subr.bf16.mxu0 %v4206
  %5505 = vmatpush1.bf16.msra.mxu0 %v4205
  %5506 = vmatprep.subr.bf16.mxu0 %v4210
  %5507 = vmatpush1.bf16.msra.mxu0 %v4209
  %5508 = vmatprep.subr.bf16.mxu0 %v4214
  %5509 = vmatpush1.bf16.msra.mxu0 %v4213
  %5510 = vmatprep.subr.bf16.mxu0 %v4218
  %5511 = vmatpush1.bf16.msra.mxu0 %v4217
  %5512 = vmatprep.subr.bf16.mxu0 %v4222
  %5513 = vmatpush1.bf16.msra.mxu0 %v4221
  %5514 = vmatprep.subr.bf16.mxu0 %v4226
  %5515 = vmatpush1.bf16.msra.mxu0 %v4225
  %5516 = vmatprep.subr.bf16.mxu0 %v4230
  %5517 = vmatpush1.bf16.msra.mxu0 %v4229
  %5518 = vmatprep.subr.bf16.mxu0 %v4234
  %5519 = vmatpush1.bf16.msra.mxu0 %v4233
  %5520 = vmatprep.subr.bf16.mxu0 %v4238
  %5521 = vmatpush1.bf16.msra.mxu0 %v4237
  %5522 = vmatprep.subr.bf16.mxu0 %v4242
  %5523 = vmatpush1.bf16.msra.mxu0 %v4241
  %5524 = vmatprep.mubr.bf16.mxu0 %v4987
  %5525 = vmatmul.mubr.bf16.gmra.mrb[0].mxu0 %v4986
  %v5526 = vpop.f32.mrb[0].mxu0
  %v5527 = vadd.f32 0.0, %v5526
  %v5528 = vpop.f32.mrb[0].mxu0
  %v5529 = vadd.f32 0.0, %v5528
  %v5530 = vpop.f32.mrb[0].mxu0
  %v5531 = vadd.f32 0.0, %v5530
  %v5532 = vpop.f32.mrb[0].mxu0
  %v5533 = vadd.f32 0.0, %v5532
  %5534 = vmatprep.mubr.bf16.mxu0 %v4989
  %5535 = vmatmul.mubr.bf16.gmra.mrb[0].mxu0 %v4988
  %v5536 = vpop.f32.mrb[0].mxu0
  %v5537 = vadd.f32 0.0, %v5536
  %v5538 = vpop.f32.mrb[0].mxu0
  %v5539 = vadd.f32 0.0, %v5538
  %v5540 = vpop.f32.mrb[0].mxu0
  %v5541 = vadd.f32 0.0, %v5540
  %v5542 = vpop.f32.mrb[0].mxu0
  %v5543 = vadd.f32 0.0, %v5542
  %5544 = vmatprep.mubr.bf16.mxu0 %v4991
  %5545 = vmatmul.mubr.bf16.gmra.mrb[0].mxu0 %v4990
  %v5546 = vpop.f32.mrb[0].mxu0
  %v5547 = vadd.f32 0.0, %v5546
  %v5548 = vpop.f32.mrb[0].mxu0
  %v5549 = vadd.f32 0.0, %v5548
  %v5550 = vpop.f32.mrb[0].mxu0
  %v5551 = vadd.f32 0.0, %v5550
  %v5552 = vpop.f32.mrb[0].mxu0
  %v5553 = vadd.f32 0.0, %v5552
  %5554 = vmatprep.mubr.bf16.mxu0 %v4993
  %5555 = vmatmul.mubr.bf16.gmra.mrb[0].mxu0 %v4992
  %v5556 = vpop.f32.mrb[0].mxu0
  %v5557 = vadd.f32 0.0, %v5556
  %v5558 = vpop.f32.mrb[0].mxu0
  %v5559 = vadd.f32 0.0, %v5558
  %v5560 = vpop.f32.mrb[0].mxu0
  %v5561 = vadd.f32 0.0, %v5560
  %v5562 = vpop.f32.mrb[0].mxu0
  %v5563 = vadd.f32 0.0, %v5562
  %5564 = vdwg.mxu0
  %5565 = vmatprep.subr.bf16.mxu0 %v4184
  %5566 = vmatpush1.bf16.msra.mxu0 %v4183
  %5567 = vmatprep.subr.bf16.mxu0 %v4188
  %5568 = vmatpush1.bf16.msra.mxu0 %v4187
  %5569 = vmatprep.subr.bf16.mxu0 %v4192
  %5570 = vmatpush1.bf16.msra.mxu0 %v4191
  %5571 = vmatprep.subr.bf16.mxu0 %v4196
  %5572 = vmatpush1.bf16.msra.mxu0 %v4195
  %5573 = vmatprep.subr.bf16.mxu0 %v4200
  %5574 = vmatpush1.bf16.msra.mxu0 %v4199
  %5575 = vmatprep.subr.bf16.mxu0 %v4204
  %5576 = vmatpush1.bf16.msra.mxu0 %v4203
  %5577 = vmatprep.subr.bf16.mxu0 %v4208
  %5578 = vmatpush1.bf16.msra.mxu0 %v4207
  %5579 = vmatprep.subr.bf16.mxu0 %v4212
  %5580 = vmatpush1.bf16.msra.mxu0 %v4211
  %5581 = vmatprep.subr.bf16.mxu0 %v4216
  %5582 = vmatpush1.bf16.msra.mxu0 %v4215
  %5583 = vmatprep.subr.bf16.mxu0 %v4220
  %5584 = vmatpush1.bf16.msra.mxu0 %v4219
  %5585 = vmatprep.subr.bf16.mxu0 %v4224
  %5586 = vmatpush1.bf16.msra.mxu0 %v4223
  %5587 = vmatprep.subr.bf16.mxu0 %v4228
  %5588 = vmatpush1.bf16.msra.mxu0 %v4227
  %5589 = vmatprep.subr.bf16.mxu0 %v4232
  %5590 = vmatpush1.bf16.msra.mxu0 %v4231
  %5591 = vmatprep.subr.bf16.mxu0 %v4236
  %5592 = vmatpush1.bf16.msra.mxu0 %v4235
  %5593 = vmatprep.subr.bf16.mxu0 %v4240
  %5594 = vmatpush1.bf16.msra.mxu0 %v4239
  %5595 = vmatprep.subr.bf16.mxu0 %v4244
  %5596 = vmatpush1.bf16.msra.mxu0 %v4243
  %5597 = vmatprep.mubr.bf16.mxu0 %v4987
  %5598 = vmatmul.mubr.bf16.gmra.mrb[0].mxu0 %v4986
  %v5599 = vpop.f32.mrb[0].mxu0
  %v5600 = vadd.f32 0.0, %v5599
  %v5601 = vpop.f32.mrb[0].mxu0
  %v5602 = vadd.f32 0.0, %v5601
  %v5603 = vpop.f32.mrb[0].mxu0
  %v5604 = vadd.f32 0.0, %v5603
  %v5605 = vpop.f32.mrb[0].mxu0
  %v5606 = vadd.f32 0.0, %v5605
  %5607 = vmatprep.mubr.bf16.mxu0 %v4989
  %5608 = vmatmul.mubr.bf16.gmra.mrb[0].mxu0 %v4988
  %v5609 = vpop.f32.mrb[0].mxu0
  %v5610 = vadd.f32 0.0, %v5609
  %v5611 = vpop.f32.mrb[0].mxu0
  %v5612 = vadd.f32 0.0, %v5611
  %v5613 = vpop.f32.mrb[0].mxu0
  %v5614 = vadd.f32 0.0, %v5613
  %v5615 = vpop.f32.mrb[0].mxu0
  %v5616 = vadd.f32 0.0, %v5615
  %5617 = vmatprep.mubr.bf16.mxu0 %v4991
  %5618 = vmatmul.mubr.bf16.gmra.mrb[0].mxu0 %v4990
  %v5619 = vpop.f32.mrb[0].mxu0
  %v5620 = vadd.f32 0.0, %v5619
  %v5621 = vpop.f32.mrb[0].mxu0
  %v5622 = vadd.f32 0.0, %v5621
  %v5623 = vpop.f32.mrb[0].mxu0
  %v5624 = vadd.f32 0.0, %v5623
  %v5625 = vpop.f32.mrb[0].mxu0
  %v5626 = vadd.f32 0.0, %v5625
  %5627 = vmatprep.mubr.bf16.mxu0 %v4993
  %5628 = vmatmul.mubr.bf16.gmra.mrb[0].mxu0 %v4992
  %v5629 = vpop.f32.mrb[0].mxu0
  %v5630 = vadd.f32 0.0, %v5629
  %v5631 = vpop.f32.mrb[0].mxu0
  %v5632 = vadd.f32 0.0, %v5631
  %v5633 = vpop.f32.mrb[0].mxu0
  %v5634 = vadd.f32 0.0, %v5633
  %v5635 = vpop.f32.mrb[0].mxu0
  %v5636 = vadd.f32 0.0, %v5635
  %5637 = vdwg.mxu0
  %5638 = vmatprep.subr.bf16.mxu0 %v4648
  %5639 = vmatpush1.bf16.msra.mxu0 %v4647
  %5640 = vmatprep.subr.bf16.mxu0 %v4652
  %5641 = vmatpush1.bf16.msra.mxu0 %v4651
  %5642 = vmatprep.subr.bf16.mxu0 %v4656
  %5643 = vmatpush1.bf16.msra.mxu0 %v4655
  %5644 = vmatprep.subr.bf16.mxu0 %v4660
  %5645 = vmatpush1.bf16.msra.mxu0 %v4659
  %5646 = vmatprep.subr.bf16.mxu0 %v4664
  %5647 = vmatpush1.bf16.msra.mxu0 %v4663
  %5648 = vmatprep.subr.bf16.mxu0 %v4668
  %5649 = vmatpush1.bf16.msra.mxu0 %v4667
  %5650 = vmatprep.subr.bf16.mxu0 %v4672
  %5651 = vmatpush1.bf16.msra.mxu0 %v4671
  %5652 = vmatprep.subr.bf16.mxu0 %v4676
  %5653 = vmatpush1.bf16.msra.mxu0 %v4675
  %5654 = vmatprep.subr.bf16.mxu0 %v4680
  %5655 = vmatpush1.bf16.msra.mxu0 %v4679
  %5656 = vmatprep.subr.bf16.mxu0 %v4684
  %5657 = vmatpush1.bf16.msra.mxu0 %v4683
  %5658 = vmatprep.subr.bf16.mxu0 %v4688
  %5659 = vmatpush1.bf16.msra.mxu0 %v4687
  %5660 = vmatprep.subr.bf16.mxu0 %v4692
  %5661 = vmatpush1.bf16.msra.mxu0 %v4691
  %5662 = vmatprep.subr.bf16.mxu0 %v4696
  %5663 = vmatpush1.bf16.msra.mxu0 %v4695
  %5664 = vmatprep.subr.bf16.mxu0 %v4700
  %5665 = vmatpush1.bf16.msra.mxu0 %v4699
  %5666 = vmatprep.subr.bf16.mxu0 %v4704
  %5667 = vmatpush1.bf16.msra.mxu0 %v4703
  %5668 = vmatprep.subr.bf16.mxu0 %v4708
  %5669 = vmatpush1.bf16.msra.mxu0 %v4707
  %5670 = vmatprep.mubr.bf16.mxu0 %v3982
  %5671 = vmatmul.mubr.bf16.gmra.mrb[0].mxu0 %v3981
  %v5672 = vpop.f32.mrb[0].mxu0
  %v5673 = vadd.f32 %v5527, %v5672
  %v5674 = vpop.f32.mrb[0].mxu0
  %v5675 = vadd.f32 %v5529, %v5674
  %v5676 = vpop.f32.mrb[0].mxu0
  %v5677 = vadd.f32 %v5531, %v5676
  %v5678 = vpop.f32.mrb[0].mxu0
  %v5679 = vadd.f32 %v5533, %v5678
  %5680 = vmatprep.mubr.bf16.mxu0 %v3984
  %5681 = vmatmul.mubr.bf16.gmra.mrb[0].mxu0 %v3983
  %v5682 = vpop.f32.mrb[0].mxu0
  %v5683 = vadd.f32 %v5537, %v5682
  %v5684 = vpop.f32.mrb[0].mxu0
  %v5685 = vadd.f32 %v5539, %v5684
  %v5686 = vpop.f32.mrb[0].mxu0
  %v5687 = vadd.f32 %v5541, %v5686
  %v5688 = vpop.f32.mrb[0].mxu0
  %v5689 = vadd.f32 %v5543, %v5688
  %5690 = vmatprep.mubr.bf16.mxu0 %v3986
  %5691 = vmatmul.mubr.bf16.gmra.mrb[0].mxu0 %v3985
  %v5692 = vpop.f32.mrb[0].mxu0
  %v5693 = vadd.f32 %v5547, %v5692
  %v5694 = vpop.f32.mrb[0].mxu0
  %v5695 = vadd.f32 %v5549, %v5694
  %v5696 = vpop.f32.mrb[0].mxu0
  %v5697 = vadd.f32 %v5551, %v5696
  %v5698 = vpop.f32.mrb[0].mxu0
  %v5699 = vadd.f32 %v5553, %v5698
  %5700 = vmatprep.mubr.bf16.mxu0 %v3988
  %5701 = vmatmul.mubr.bf16.gmra.mrb[0].mxu0 %v3987
  %v5702 = vpop.f32.mrb[0].mxu0
  %v5703 = vadd.f32 %v5557, %v5702
  %v5704 = vpop.f32.mrb[0].mxu0
  %v5705 = vadd.f32 %v5559, %v5704
  %v5706 = vpop.f32.mrb[0].mxu0
  %v5707 = vadd.f32 %v5561, %v5706
  %v5708 = vpop.f32.mrb[0].mxu0
  %v5709 = vadd.f32 %v5563, %v5708
  %5710 = vdwg.mxu0
  %5711 = vmatprep.subr.bf16.mxu0 %v4650
  %5712 = vmatpush1.bf16.msra.mxu0 %v4649
  %5713 = vmatprep.subr.bf16.mxu0 %v4654
  %5714 = vmatpush1.bf16.msra.mxu0 %v4653
  %5715 = vmatprep.subr.bf16.mxu0 %v4658
  %5716 = vmatpush1.bf16.msra.mxu0 %v4657
  %5717 = vmatprep.subr.bf16.mxu0 %v4662
  %5718 = vmatpush1.bf16.msra.mxu0 %v4661
  %5719 = vmatprep.subr.bf16.mxu0 %v4666
  %5720 = vmatpush1.bf16.msra.mxu0 %v4665
  %5721 = vmatprep.subr.bf16.mxu0 %v4670
  %5722 = vmatpush1.bf16.msra.mxu0 %v4669
  %5723 = vmatprep.subr.bf16.mxu0 %v4674
  %5724 = vmatpush1.bf16.msra.mxu0 %v4673
  %5725 = vmatprep.subr.bf16.mxu0 %v4678
  %5726 = vmatpush1.bf16.msra.mxu0 %v4677
  %5727 = vmatprep.subr.bf16.mxu0 %v4682
  %5728 = vmatpush1.bf16.msra.mxu0 %v4681
  %5729 = vmatprep.subr.bf16.mxu0 %v4686
  %5730 = vmatpush1.bf16.msra.mxu0 %v4685
  %5731 = vmatprep.subr.bf16.mxu0 %v4690
  %5732 = vmatpush1.bf16.msra.mxu0 %v4689
  %5733 = vmatprep.subr.bf16.mxu0 %v4694
  %5734 = vmatpush1.bf16.msra.mxu0 %v4693
  %5735 = vmatprep.subr.bf16.mxu0 %v4698
  %5736 = vmatpush1.bf16.msra.mxu0 %v4697
  %5737 = vmatprep.subr.bf16.mxu0 %v4702
  %5738 = vmatpush1.bf16.msra.mxu0 %v4701
  %5739 = vmatprep.subr.bf16.mxu0 %v4706
  %5740 = vmatpush1.bf16.msra.mxu0 %v4705
  %5741 = vmatprep.subr.bf16.mxu0 %v4710
  %5742 = vmatpush1.bf16.msra.mxu0 %v4709
  %5743 = vmatprep.mubr.bf16.mxu0 %v3982
  %5744 = vmatmul.mubr.bf16.gmra.mrb[0].mxu0 %v3981
  %v5745 = vpop.f32.mrb[0].mxu0
  %v5746 = vadd.f32 %v5600, %v5745
  %v5747 = vpop.f32.mrb[0].mxu0
  %v5748 = vadd.f32 %v5602, %v5747
  %v5749 = vpop.f32.mrb[0].mxu0
  %v5750 = vadd.f32 %v5604, %v5749
  %v5751 = vpop.f32.mrb[0].mxu0
  %v5752 = vadd.f32 %v5606, %v5751
  %5753 = vmatprep.mubr.bf16.mxu0 %v3984
  %5754 = vmatmul.mubr.bf16.gmra.mrb[0].mxu0 %v3983
  %v5755 = vpop.f32.mrb[0].mxu0
  %v5756 = vadd.f32 %v5610, %v5755
  %v5757 = vpop.f32.mrb[0].mxu0
  %v5758 = vadd.f32 %v5612, %v5757
  %v5759 = vpop.f32.mrb[0].mxu0
  %v5760 = vadd.f32 %v5614, %v5759
  %v5761 = vpop.f32.mrb[0].mxu0
  %v5762 = vadd.f32 %v5616, %v5761
  %5763 = vmatprep.mubr.bf16.mxu0 %v3986
  %5764 = vmatmul.mubr.bf16.gmra.mrb[0].mxu0 %v3985
  %v5765 = vpop.f32.mrb[0].mxu0
  %v5766 = vadd.f32 %v5620, %v5765
  %v5767 = vpop.f32.mrb[0].mxu0
  %v5768 = vadd.f32 %v5622, %v5767
  %v5769 = vpop.f32.mrb[0].mxu0
  %v5770 = vadd.f32 %v5624, %v5769
  %v5771 = vpop.f32.mrb[0].mxu0
  %v5772 = vadd.f32 %v5626, %v5771
  %5773 = vmatprep.mubr.bf16.mxu0 %v3988
  %5774 = vmatmul.mubr.bf16.gmra.mrb[0].mxu0 %v3987
  %v5775 = vpop.f32.mrb[0].mxu0
  %v5776 = vadd.f32 %v5630, %v5775
  %v5777 = vpop.f32.mrb[0].mxu0
  %v5778 = vadd.f32 %v5632, %v5777
  %v5779 = vpop.f32.mrb[0].mxu0
  %v5780 = vadd.f32 %v5634, %v5779
  %v5781 = vpop.f32.mrb[0].mxu0
  %v5782 = vadd.f32 %v5636, %v5781
  %5783 = vdwg.mxu0
  %v5784 = vpack.c.bf16 %v3830, %v3828
  %v5785 = vpack.c.bf16 %v3831, %v3829
  %v5786 = vpack.c.bf16 %v3834, %v3832
  %v5787 = vpack.c.bf16 %v3835, %v3833
  %v5788 = vpack.c.bf16 %v3838, %v3836
  %v5789 = vpack.c.bf16 %v3839, %v3837
  %v5790 = vpack.c.bf16 %v3842, %v3840
  %v5791 = vpack.c.bf16 %v3843, %v3841
  %5792 = vmatprep.subr.bf16.mxu0 %v5187
  %5793 = vmatpush1.bf16.msra.mxu0 %v5186
  %5794 = vmatprep.subr.bf16.mxu0 %v5191
  %5795 = vmatpush1.bf16.msra.mxu0 %v5190
  %5796 = vmatprep.subr.bf16.mxu0 %v5195
  %5797 = vmatpush1.bf16.msra.mxu0 %v5194
  %5798 = vmatprep.subr.bf16.mxu0 %v5199
  %5799 = vmatpush1.bf16.msra.mxu0 %v5198
  %5800 = vmatprep.subr.bf16.mxu0 %v5203
  %5801 = vmatpush1.bf16.msra.mxu0 %v5202
  %5802 = vmatprep.subr.bf16.mxu0 %v5207
  %5803 = vmatpush1.bf16.msra.mxu0 %v5206
  %5804 = vmatprep.subr.bf16.mxu0 %v5211
  %5805 = vmatpush1.bf16.msra.mxu0 %v5210
  %5806 = vmatprep.subr.bf16.mxu0 %v5215
  %5807 = vmatpush1.bf16.msra.mxu0 %v5214
  %5808 = vmatprep.subr.bf16.mxu0 %v5219
  %5809 = vmatpush1.bf16.msra.mxu0 %v5218
  %5810 = vmatprep.subr.bf16.mxu0 %v5223
  %5811 = vmatpush1.bf16.msra.mxu0 %v5222
  %5812 = vmatprep.subr.bf16.mxu0 %v5227
  %5813 = vmatpush1.bf16.msra.mxu0 %v5226
  %5814 = vmatprep.subr.bf16.mxu0 %v5231
  %5815 = vmatpush1.bf16.msra.mxu0 %v5230
  %5816 = vmatprep.subr.bf16.mxu0 %v5235
  %5817 = vmatpush1.bf16.msra.mxu0 %v5234
  %5818 = vmatprep.subr.bf16.mxu0 %v5239
  %5819 = vmatpush1.bf16.msra.mxu0 %v5238
  %5820 = vmatprep.subr.bf16.mxu0 %v5243
  %5821 = vmatpush1.bf16.msra.mxu0 %v5242
  %5822 = vmatprep.subr.bf16.mxu0 %v5247
  %5823 = vmatpush1.bf16.msra.mxu0 %v5246
  %5824 = vmatprep.mubr.bf16.mxu0 %v5785
  %5825 = vmatmul.mubr.bf16.gmra.mrb[0].mxu0 %v5784
  %v5826 = vpop.f32.mrb[0].mxu0
  %v5827 = vadd.f32 0.0, %v5826
  %v5828 = vpop.f32.mrb[0].mxu0
  %v5829 = vadd.f32 0.0, %v5828
  %v5830 = vpop.f32.mrb[0].mxu0
  %v5831 = vadd.f32 0.0, %v5830
  %v5832 = vpop.f32.mrb[0].mxu0
  %v5833 = vadd.f32 0.0, %v5832
  %5834 = vmatprep.mubr.bf16.mxu0 %v5787
  %5835 = vmatmul.mubr.bf16.gmra.mrb[0].mxu0 %v5786
  %v5836 = vpop.f32.mrb[0].mxu0
  %v5837 = vadd.f32 0.0, %v5836
  %v5838 = vpop.f32.mrb[0].mxu0
  %v5839 = vadd.f32 0.0, %v5838
  %v5840 = vpop.f32.mrb[0].mxu0
  %v5841 = vadd.f32 0.0, %v5840
  %v5842 = vpop.f32.mrb[0].mxu0
  %v5843 = vadd.f32 0.0, %v5842
  %5844 = vmatprep.mubr.bf16.mxu0 %v5789
  %5845 = vmatmul.mubr.bf16.gmra.mrb[0].mxu0 %v5788
  %v5846 = vpop.f32.mrb[0].mxu0
  %v5847 = vadd.f32 0.0, %v5846
  %v5848 = vpop.f32.mrb[0].mxu0
  %v5849 = vadd.f32 0.0, %v5848
  %v5850 = vpop.f32.mrb[0].mxu0
  %v5851 = vadd.f32 0.0, %v5850
  %v5852 = vpop.f32.mrb[0].mxu0
  %v5853 = vadd.f32 0.0, %v5852
  %5854 = vmatprep.mubr.bf16.mxu0 %v5791
  %5855 = vmatmul.mubr.bf16.gmra.mrb[0].mxu0 %v5790
  %v5856 = vpop.f32.mrb[0].mxu0
  %v5857 = vadd.f32 0.0, %v5856
  %v5858 = vpop.f32.mrb[0].mxu0
  %v5859 = vadd.f32 0.0, %v5858
  %v5860 = vpop.f32.mrb[0].mxu0
  %v5861 = vadd.f32 0.0, %v5860
  %v5862 = vpop.f32.mrb[0].mxu0
  %v5863 = vadd.f32 0.0, %v5862
  %5864 = vdwg.mxu0
  %5865 = vmatprep.subr.bf16.mxu0 %v5189
  %5866 = vmatpush1.bf16.msra.mxu0 %v5188
  %5867 = vmatprep.subr.bf16.mxu0 %v5193
  %5868 = vmatpush1.bf16.msra.mxu0 %v5192
  %5869 = vmatprep.subr.bf16.mxu0 %v5197
  %5870 = vmatpush1.bf16.msra.mxu0 %v5196
  %5871 = vmatprep.subr.bf16.mxu0 %v5201
  %5872 = vmatpush1.bf16.msra.mxu0 %v5200
  %5873 = vmatprep.subr.bf16.mxu0 %v5205
  %5874 = vmatpush1.bf16.msra.mxu0 %v5204
  %5875 = vmatprep.subr.bf16.mxu0 %v5209
  %5876 = vmatpush1.bf16.msra.mxu0 %v5208
  %5877 = vmatprep.subr.bf16.mxu0 %v5213
  %5878 = vmatpush1.bf16.msra.mxu0 %v5212
  %5879 = vmatprep.subr.bf16.mxu0 %v5217
  %5880 = vmatpush1.bf16.msra.mxu0 %v5216
  %5881 = vmatprep.subr.bf16.mxu0 %v5221
  %5882 = vmatpush1.bf16.msra.mxu0 %v5220
  %5883 = vmatprep.subr.bf16.mxu0 %v5225
  %5884 = vmatpush1.bf16.msra.mxu0 %v5224
  %5885 = vmatprep.subr.bf16.mxu0 %v5229
  %5886 = vmatpush1.bf16.msra.mxu0 %v5228
  %5887 = vmatprep.subr.bf16.mxu0 %v5233
  %5888 = vmatpush1.bf16.msra.mxu0 %v5232
  %5889 = vmatprep.subr.bf16.mxu0 %v5237
  %5890 = vmatpush1.bf16.msra.mxu0 %v5236
  %5891 = vmatprep.subr.bf16.mxu0 %v5241
  %5892 = vmatpush1.bf16.msra.mxu0 %v5240
  %5893 = vmatprep.subr.bf16.mxu0 %v5245
  %5894 = vmatpush1.bf16.msra.mxu0 %v5244
  %5895 = vmatprep.subr.bf16.mxu0 %v5249
  %5896 = vmatpush1.bf16.msra.mxu0 %v5248
  %5897 = vmatprep.mubr.bf16.mxu0 %v5785
  %5898 = vmatmul.mubr.bf16.gmra.mrb[0].mxu0 %v5784
  %v5899 = vpop.f32.mrb[0].mxu0
  %v5900 = vadd.f32 0.0, %v5899
  %v5901 = vpop.f32.mrb[0].mxu0
  %v5902 = vadd.f32 0.0, %v5901
  %v5903 = vpop.f32.mrb[0].mxu0
  %v5904 = vadd.f32 0.0, %v5903
  %v5905 = vpop.f32.mrb[0].mxu0
  %v5906 = vadd.f32 0.0, %v5905
  %5907 = vmatprep.mubr.bf16.mxu0 %v5787
  %5908 = vmatmul.mubr.bf16.gmra.mrb[0].mxu0 %v5786
  %v5909 = vpop.f32.mrb[0].mxu0
  %v5910 = vadd.f32 0.0, %v5909
  %v5911 = vpop.f32.mrb[0].mxu0
  %v5912 = vadd.f32 0.0, %v5911
  %v5913 = vpop.f32.mrb[0].mxu0
  %v5914 = vadd.f32 0.0, %v5913
  %v5915 = vpop.f32.mrb[0].mxu0
  %v5916 = vadd.f32 0.0, %v5915
  %5917 = vmatprep.mubr.bf16.mxu0 %v5789
  %5918 = vmatmul.mubr.bf16.gmra.mrb[0].mxu0 %v5788
  %v5919 = vpop.f32.mrb[0].mxu0
  %v5920 = vadd.f32 0.0, %v5919
  %v5921 = vpop.f32.mrb[0].mxu0
  %v5922 = vadd.f32 0.0, %v5921
  %v5923 = vpop.f32.mrb[0].mxu0
  %v5924 = vadd.f32 0.0, %v5923
  %v5925 = vpop.f32.mrb[0].mxu0
  %v5926 = vadd.f32 0.0, %v5925
  %5927 = vmatprep.mubr.bf16.mxu0 %v5791
  %5928 = vmatmul.mubr.bf16.gmra.mrb[0].mxu0 %v5790
  %v5929 = vpop.f32.mrb[0].mxu0
  %v5930 = vadd.f32 0.0, %v5929
  %v5931 = vpop.f32.mrb[0].mxu0
  %v5932 = vadd.f32 0.0, %v5931
  %v5933 = vpop.f32.mrb[0].mxu0
  %v5934 = vadd.f32 0.0, %v5933
  %v5935 = vpop.f32.mrb[0].mxu0
  %v5936 = vadd.f32 0.0, %v5935
  %5937 = vdwg.mxu0
  %v5938 = vadd.f32 %v5673, %v5827
  %v5939 = vadd.f32 %v5675, %v5829
  %v5940 = vadd.f32 %v5746, %v5900
  %v5941 = vadd.f32 %v5748, %v5902
  %v5942 = vadd.f32 %v5677, %v5831
  %v5943 = vadd.f32 %v5679, %v5833
  %v5944 = vadd.f32 %v5750, %v5904
  %v5945 = vadd.f32 %v5752, %v5906
  %v5946 = vadd.f32 %v5683, %v5837
  %v5947 = vadd.f32 %v5685, %v5839
  %v5948 = vadd.f32 %v5756, %v5910
  %v5949 = vadd.f32 %v5758, %v5912
  %v5950 = vadd.f32 %v5687, %v5841
  %v5951 = vadd.f32 %v5689, %v5843
  %v5952 = vadd.f32 %v5760, %v5914
  %v5953 = vadd.f32 %v5762, %v5916
  %v5954 = vadd.f32 %v5693, %v5847
  %v5955 = vadd.f32 %v5695, %v5849
  %v5956 = vadd.f32 %v5766, %v5920
  %v5957 = vadd.f32 %v5768, %v5922
  %v5958 = vadd.f32 %v5697, %v5851
  %v5959 = vadd.f32 %v5699, %v5853
  %v5960 = vadd.f32 %v5770, %v5924
  %v5961 = vadd.f32 %v5772, %v5926
  %v5962 = vadd.f32 %v5703, %v5857
  %v5963 = vadd.f32 %v5705, %v5859
  %v5964 = vadd.f32 %v5776, %v5930
  %v5965 = vadd.f32 %v5778, %v5932
  %v5966 = vadd.f32 %v5707, %v5861
  %v5967 = vadd.f32 %v5709, %v5863
  %v5968 = vadd.f32 %v5780, %v5934
  %v5969 = vadd.f32 %v5782, %v5936
  %v5970 = vld [vmem:[%s11 + $0x4] sm:$0x1]
  %v5971 = vld [vmem:[%s11 + $0x5] sm:$0x1]
  %v5972 = vld [vmem:[%s9] sm:$0xff]
  %v5973 = vld [vmem:[%s9 + $0x8] sm:$0xff]
  %v5974 = vld [vmem:[%s9 + $0x10] sm:$0xff]
  %v5975 = vld [vmem:[%s9 + $0x18] sm:$0xff]
  %v5976 = vld [vmem:[%s9 + $0x20] sm:$0xff]
  %v5977 = vld [vmem:[%s9 + $0x28] sm:$0xff]
  %v5978 = vld [vmem:[%s9 + $0x30] sm:$0xff]
  %v5979 = vld [vmem:[%s9 + $0x38] sm:$0xff]
  %v5980 = vld [vmem:[%s9 + $0x40] sm:$0xff]
  %v5981 = vld [vmem:[%s9 + $0x48] sm:$0xff]
  %v5982 = vld [vmem:[%s9 + $0x50] sm:$0xff]
  %v5983 = vld [vmem:[%s9 + $0x58] sm:$0xff]
  %v5984 = vld [vmem:[%s9 + $0x60] sm:$0xff]
  %v5985 = vld [vmem:[%s9 + $0x68] sm:$0xff]
  %v5986 = vld [vmem:[%s9 + $0x70] sm:$0xff]
  %v5987 = vld [vmem:[%s9 + $0x78] sm:$0xff]
  %v5988 = vld [vmem:[%s9 + $0x80] sm:$0xff]
  %v5989 = vld [vmem:[%s9 + $0x88] sm:$0xff]
  %v5990 = vld [vmem:[%s9 + $0x90] sm:$0xff]
  %v5991 = vld [vmem:[%s9 + $0x98] sm:$0xff]
  %v5992 = vld [vmem:[%s9 + $0xa0] sm:$0xff]
  %v5993 = vld [vmem:[%s9 + $0xa8] sm:$0xff]
  %v5994 = vld [vmem:[%s9 + $0xb0] sm:$0xff]
  %v5995 = vld [vmem:[%s9 + $0xb8] sm:$0xff]
  %v5996 = vld [vmem:[%s9 + $0xc0] sm:$0xff]
  %v5997 = vld [vmem:[%s9 + $0xc8] sm:$0xff]
  %v5998 = vld [vmem:[%s9 + $0xd0] sm:$0xff]
  %v5999 = vld [vmem:[%s9 + $0xd8] sm:$0xff]
  %v6000 = vld [vmem:[%s9 + $0xe0] sm:$0xff]
  %v6001 = vld [vmem:[%s9 + $0xe8] sm:$0xff]
  %v6002 = vld [vmem:[%s9 + $0xf0] sm:$0xff]
  %v6003 = vld [vmem:[%s9 + $0xf8] sm:$0xff]
  %v6004 = vld [vmem:[%s9 + $0x100] sm:$0xff]
  %v6005 = vld [vmem:[%s9 + $0x108] sm:$0xff]
  %v6006 = vld [vmem:[%s9 + $0x110] sm:$0xff]
  %v6007 = vld [vmem:[%s9 + $0x118] sm:$0xff]
  %v6008 = vld [vmem:[%s9 + $0x120] sm:$0xff]
  %v6009 = vld [vmem:[%s9 + $0x128] sm:$0xff]
  %v6010 = vld [vmem:[%s9 + $0x130] sm:$0xff]
  %v6011 = vld [vmem:[%s9 + $0x138] sm:$0xff]
  %v6012 = vld [vmem:[%s9 + $0x140] sm:$0xff]
  %v6013 = vld [vmem:[%s9 + $0x148] sm:$0xff]
  %v6014 = vld [vmem:[%s9 + $0x150] sm:$0xff]
  %v6015 = vld [vmem:[%s9 + $0x158] sm:$0xff]
  %v6016 = vld [vmem:[%s9 + $0x160] sm:$0xff]
  %v6017 = vld [vmem:[%s9 + $0x168] sm:$0xff]
  %v6018 = vld [vmem:[%s9 + $0x170] sm:$0xff]
  %v6019 = vld [vmem:[%s9 + $0x178] sm:$0xff]
  %v6020 = vld [vmem:[%s9 + $0x180] sm:$0xff]
  %v6021 = vld [vmem:[%s9 + $0x188] sm:$0xff]
  %v6022 = vld [vmem:[%s9 + $0x190] sm:$0xff]
  %v6023 = vld [vmem:[%s9 + $0x198] sm:$0xff]
  %v6024 = vld [vmem:[%s9 + $0x1a0] sm:$0xff]
  %v6025 = vld [vmem:[%s9 + $0x1a8] sm:$0xff]
  %v6026 = vld [vmem:[%s9 + $0x1b0] sm:$0xff]
  %v6027 = vld [vmem:[%s9 + $0x1b8] sm:$0xff]
  %v6028 = vld [vmem:[%s9 + $0x1c0] sm:$0xff]
  %v6029 = vld [vmem:[%s9 + $0x1c8] sm:$0xff]
  %v6030 = vld [vmem:[%s9 + $0x1d0] sm:$0xff]
  %v6031 = vld [vmem:[%s9 + $0x1d8] sm:$0xff]
  %v6032 = vld [vmem:[%s9 + $0x1e0] sm:$0xff]
  %v6033 = vld [vmem:[%s9 + $0x1e8] sm:$0xff]
  %v6034 = vld [vmem:[%s9 + $0x1f0] sm:$0xff]
  %v6035 = vld [vmem:[%s9 + $0x1f8] sm:$0xff]
  %v6036 = vld [vmem:[%s10] sm:$0xff]
  %v6037 = vld [vmem:[%s10 + $0x8] sm:$0xff]
  %v6038 = vld [vmem:[%s10 + $0x10] sm:$0xff]
  %v6039 = vld [vmem:[%s10 + $0x18] sm:$0xff]
  %v6040 = vld [vmem:[%s10 + $0x20] sm:$0xff]
  %v6041 = vld [vmem:[%s10 + $0x28] sm:$0xff]
  %v6042 = vld [vmem:[%s10 + $0x30] sm:$0xff]
  %v6043 = vld [vmem:[%s10 + $0x38] sm:$0xff]
  %v6044 = vadd.f32 %v5460, %v5464
  %v6045 = vadd.f32 %v6044, %v5468
  %v6046 = vadd.f32 %v6045, %v5472
  %v6047 = vadd.f32 %v6046, %v5476
  %v6048 = vadd.f32 %v6047, %v5480
  %v6049 = vadd.f32 %v6048, %v5484
  %v6050 = vadd.f32 %v6049, %v5488
  %v6051 = vrot.slane %v6050, 4
  %v6052 = vadd.f32 %v6050, %v6051
  %v6053 = vrot.slane %v6052, 2
  %v6054 = vadd.f32 %v6052, %v6053
  %v6055 = vrot.slane %v6054, 1
  %v6056 = vadd.f32 %v6054, %v6055
  %v6057 = vadd.f32 %v5461, %v5465
  %v6058 = vadd.f32 %v6057, %v5469
  %v6059 = vadd.f32 %v6058, %v5473
  %v6060 = vadd.f32 %v6059, %v5477
  %v6061 = vadd.f32 %v6060, %v5481
  %v6062 = vadd.f32 %v6061, %v5485
  %v6063 = vadd.f32 %v6062, %v5489
  %v6064 = vrot.slane %v6063, 4
  %v6065 = vadd.f32 %v6063, %v6064
  %v6066 = vrot.slane %v6065, 2
  %v6067 = vadd.f32 %v6065, %v6066
  %v6068 = vrot.slane %v6067, 1
  %v6069 = vadd.f32 %v6067, %v6068
  %v6070 = vadd.f32 %v5462, %v5466
  %v6071 = vadd.f32 %v6070, %v5470
  %v6072 = vadd.f32 %v6071, %v5474
  %v6073 = vadd.f32 %v6072, %v5478
  %v6074 = vadd.f32 %v6073, %v5482
  %v6075 = vadd.f32 %v6074, %v5486
  %v6076 = vadd.f32 %v6075, %v5490
  %v6077 = vrot.slane %v6076, 4
  %v6078 = vadd.f32 %v6076, %v6077
  %v6079 = vrot.slane %v6078, 2
  %v6080 = vadd.f32 %v6078, %v6079
  %v6081 = vrot.slane %v6080, 1
  %v6082 = vadd.f32 %v6080, %v6081
  %v6083 = vadd.f32 %v5463, %v5467
  %v6084 = vadd.f32 %v6083, %v5471
  %v6085 = vadd.f32 %v6084, %v5475
  %v6086 = vadd.f32 %v6085, %v5479
  %v6087 = vadd.f32 %v6086, %v5483
  %v6088 = vadd.f32 %v6087, %v5487
  %v6089 = vadd.f32 %v6088, %v5491
  %v6090 = vrot.slane %v6089, 4
  %v6091 = vadd.f32 %v6089, %v6090
  %v6092 = vrot.slane %v6091, 2
  %v6093 = vadd.f32 %v6091, %v6092
  %v6094 = vrot.slane %v6093, 1
  %v6095 = vadd.f32 %v6093, %v6094
  %v6096 = vmul.f32 %v5460, %v5460
  %v6097 = vmul.f32 %v5461, %v5461
  %v6098 = vmul.f32 %v5462, %v5462
  %v6099 = vmul.f32 %v5463, %v5463
  %v6100 = vmul.f32 %v5464, %v5464
  %v6101 = vmul.f32 %v5465, %v5465
  %v6102 = vmul.f32 %v5466, %v5466
  %v6103 = vmul.f32 %v5467, %v5467
  %v6104 = vmul.f32 %v5468, %v5468
  %v6105 = vmul.f32 %v5469, %v5469
  %v6106 = vmul.f32 %v5470, %v5470
  %v6107 = vmul.f32 %v5471, %v5471
  %v6108 = vmul.f32 %v5472, %v5472
  %v6109 = vmul.f32 %v5473, %v5473
  %v6110 = vmul.f32 %v5474, %v5474
  %v6111 = vmul.f32 %v5475, %v5475
  %v6112 = vmul.f32 %v5476, %v5476
  %v6113 = vmul.f32 %v5477, %v5477
  %v6114 = vmul.f32 %v5478, %v5478
  %v6115 = vmul.f32 %v5479, %v5479
  %v6116 = vmul.f32 %v5480, %v5480
  %v6117 = vmul.f32 %v5481, %v5481
  %v6118 = vmul.f32 %v5482, %v5482
  %v6119 = vmul.f32 %v5483, %v5483
  %v6120 = vmul.f32 %v5484, %v5484
  %v6121 = vmul.f32 %v5485, %v5485
  %v6122 = vmul.f32 %v5486, %v5486
  %v6123 = vmul.f32 %v5487, %v5487
  %v6124 = vmul.f32 %v5488, %v5488
  %v6125 = vmul.f32 %v5489, %v5489
  %v6126 = vmul.f32 %v5490, %v5490
  %v6127 = vmul.f32 %v5491, %v5491
  %v6128 = vadd.f32 %v6096, %v6100
  %v6129 = vadd.f32 %v6128, %v6104
  %v6130 = vadd.f32 %v6129, %v6108
  %v6131 = vadd.f32 %v6130, %v6112
  %v6132 = vadd.f32 %v6131, %v6116
  %v6133 = vadd.f32 %v6132, %v6120
  %v6134 = vadd.f32 %v6133, %v6124
  %v6135 = vrot.slane %v6134, 4
  %v6136 = vadd.f32 %v6134, %v6135
  %v6137 = vrot.slane %v6136, 2
  %v6138 = vadd.f32 %v6136, %v6137
  %v6139 = vrot.slane %v6138, 1
  %v6140 = vadd.f32 %v6138, %v6139
  %v6141 = vadd.f32 %v6097, %v6101
  %v6142 = vadd.f32 %v6141, %v6105
  %v6143 = vadd.f32 %v6142, %v6109
  %v6144 = vadd.f32 %v6143, %v6113
  %v6145 = vadd.f32 %v6144, %v6117
  %v6146 = vadd.f32 %v6145, %v6121
  %v6147 = vadd.f32 %v6146, %v6125
  %v6148 = vrot.slane %v6147, 4
  %v6149 = vadd.f32 %v6147, %v6148
  %v6150 = vrot.slane %v6149, 2
  %v6151 = vadd.f32 %v6149, %v6150
  %v6152 = vrot.slane %v6151, 1
  %v6153 = vadd.f32 %v6151, %v6152
  %v6154 = vadd.f32 %v6098, %v6102
  %v6155 = vadd.f32 %v6154, %v6106
  %v6156 = vadd.f32 %v6155, %v6110
  %v6157 = vadd.f32 %v6156, %v6114
  %v6158 = vadd.f32 %v6157, %v6118
  %v6159 = vadd.f32 %v6158, %v6122
  %v6160 = vadd.f32 %v6159, %v6126
  %v6161 = vrot.slane %v6160, 4
  %v6162 = vadd.f32 %v6160, %v6161
  %v6163 = vrot.slane %v6162, 2
  %v6164 = vadd.f32 %v6162, %v6163
  %v6165 = vrot.slane %v6164, 1
  %v6166 = vadd.f32 %v6164, %v6165
  %v6167 = vadd.f32 %v6099, %v6103
  %v6168 = vadd.f32 %v6167, %v6107
  %v6169 = vadd.f32 %v6168, %v6111
  %v6170 = vadd.f32 %v6169, %v6115
  %v6171 = vadd.f32 %v6170, %v6119
  %v6172 = vadd.f32 %v6171, %v6123
  %v6173 = vadd.f32 %v6172, %v6127
  %v6174 = vrot.slane %v6173, 4
  %v6175 = vadd.f32 %v6173, %v6174
  %v6176 = vrot.slane %v6175, 2
  %v6177 = vadd.f32 %v6175, %v6176
  %v6178 = vrot.slane %v6177, 1
  %v6179 = vadd.f32 %v6177, %v6178
  %v6180 = vadd.f32 %v5938, %v5942
  %v6181 = vadd.f32 %v6180, %v5946
  %v6182 = vadd.f32 %v6181, %v5950
  %v6183 = vadd.f32 %v6182, %v5954
  %v6184 = vadd.f32 %v6183, %v5958
  %v6185 = vadd.f32 %v6184, %v5962
  %v6186 = vadd.f32 %v6185, %v5966
  %v6187 = vrot.slane %v6186, 4
  %v6188 = vadd.f32 %v6186, %v6187
  %v6189 = vrot.slane %v6188, 2
  %v6190 = vadd.f32 %v6188, %v6189
  %v6191 = vrot.slane %v6190, 1
  %v6192 = vadd.f32 %v6190, %v6191
  %v6193 = vadd.f32 %v5939, %v5943
  %v6194 = vadd.f32 %v6193, %v5947
  %v6195 = vadd.f32 %v6194, %v5951
  %v6196 = vadd.f32 %v6195, %v5955
  %v6197 = vadd.f32 %v6196, %v5959
  %v6198 = vadd.f32 %v6197, %v5963
  %v6199 = vadd.f32 %v6198, %v5967
  %v6200 = vrot.slane %v6199, 4
  %v6201 = vadd.f32 %v6199, %v6200
  %v6202 = vrot.slane %v6201, 2
  %v6203 = vadd.f32 %v6201, %v6202
  %v6204 = vrot.slane %v6203, 1
  %v6205 = vadd.f32 %v6203, %v6204
  %v6206 = vadd.f32 %v5940, %v5944
  %v6207 = vadd.f32 %v6206, %v5948
  %v6208 = vadd.f32 %v6207, %v5952
  %v6209 = vadd.f32 %v6208, %v5956
  %v6210 = vadd.f32 %v6209, %v5960
  %v6211 = vadd.f32 %v6210, %v5964
  %v6212 = vadd.f32 %v6211, %v5968
  %v6213 = vrot.slane %v6212, 4
  %v6214 = vadd.f32 %v6212, %v6213
  %v6215 = vrot.slane %v6214, 2
  %v6216 = vadd.f32 %v6214, %v6215
  %v6217 = vrot.slane %v6216, 1
  %v6218 = vadd.f32 %v6216, %v6217
  %v6219 = vadd.f32 %v5941, %v5945
  %v6220 = vadd.f32 %v6219, %v5949
  %v6221 = vadd.f32 %v6220, %v5953
  %v6222 = vadd.f32 %v6221, %v5957
  %v6223 = vadd.f32 %v6222, %v5961
  %v6224 = vadd.f32 %v6223, %v5965
  %v6225 = vadd.f32 %v6224, %v5969
  %v6226 = vrot.slane %v6225, 4
  %v6227 = vadd.f32 %v6225, %v6226
  %v6228 = vrot.slane %v6227, 2
  %v6229 = vadd.f32 %v6227, %v6228
  %v6230 = vrot.slane %v6229, 1
  %v6231 = vadd.f32 %v6229, %v6230
  %v6232 = vadd.f32 %v6056, %v6192
  %v6233 = vadd.f32 %v6069, %v6205
  %v6234 = vadd.f32 %v6082, %v6218
  %v6235 = vadd.f32 %v6095, %v6231
  %v6236 = vmul.f32 %v5938, %v5938
  %v6237 = vmul.f32 %v5939, %v5939
  %v6238 = vmul.f32 %v5940, %v5940
  %v6239 = vmul.f32 %v5941, %v5941
  %v6240 = vmul.f32 %v5942, %v5942
  %v6241 = vmul.f32 %v5943, %v5943
  %v6242 = vmul.f32 %v5944, %v5944
  %v6243 = vmul.f32 %v5945, %v5945
  %v6244 = vmul.f32 %v5946, %v5946
  %v6245 = vmul.f32 %v5947, %v5947
  %v6246 = vmul.f32 %v5948, %v5948
  %v6247 = vmul.f32 %v5949, %v5949
  %v6248 = vmul.f32 %v5950, %v5950
  %v6249 = vmul.f32 %v5951, %v5951
  %v6250 = vmul.f32 %v5952, %v5952
  %v6251 = vmul.f32 %v5953, %v5953
  %v6252 = vmul.f32 %v5954, %v5954
  %v6253 = vmul.f32 %v5955, %v5955
  %v6254 = vmul.f32 %v5956, %v5956
  %v6255 = vmul.f32 %v5957, %v5957
  %v6256 = vmul.f32 %v5958, %v5958
  %v6257 = vmul.f32 %v5959, %v5959
  %v6258 = vmul.f32 %v5960, %v5960
  %v6259 = vmul.f32 %v5961, %v5961
  %v6260 = vmul.f32 %v5962, %v5962
  %v6261 = vmul.f32 %v5963, %v5963
  %v6262 = vmul.f32 %v5964, %v5964
  %v6263 = vmul.f32 %v5965, %v5965
  %v6264 = vmul.f32 %v5966, %v5966
  %v6265 = vmul.f32 %v5967, %v5967
  %v6266 = vmul.f32 %v5968, %v5968
  %v6267 = vmul.f32 %v5969, %v5969
  %v6268 = vadd.f32 %v6236, %v6240
  %v6269 = vadd.f32 %v6268, %v6244
  %v6270 = vadd.f32 %v6269, %v6248
  %v6271 = vadd.f32 %v6270, %v6252
  %v6272 = vadd.f32 %v6271, %v6256
  %v6273 = vadd.f32 %v6272, %v6260
  %v6274 = vadd.f32 %v6273, %v6264
  %v6275 = vrot.slane %v6274, 4
  %v6276 = vadd.f32 %v6274, %v6275
  %v6277 = vrot.slane %v6276, 2
  %v6278 = vadd.f32 %v6276, %v6277
  %v6279 = vrot.slane %v6278, 1
  %v6280 = vadd.f32 %v6278, %v6279
  %v6281 = vadd.f32 %v6237, %v6241
  %v6282 = vadd.f32 %v6281, %v6245
  %v6283 = vadd.f32 %v6282, %v6249
  %v6284 = vadd.f32 %v6283, %v6253
  %v6285 = vadd.f32 %v6284, %v6257
  %v6286 = vadd.f32 %v6285, %v6261
  %v6287 = vadd.f32 %v6286, %v6265
  %v6288 = vrot.slane %v6287, 4
  %v6289 = vadd.f32 %v6287, %v6288
  %v6290 = vrot.slane %v6289, 2
  %v6291 = vadd.f32 %v6289, %v6290
  %v6292 = vrot.slane %v6291, 1
  %v6293 = vadd.f32 %v6291, %v6292
  %v6294 = vadd.f32 %v6238, %v6242
  %v6295 = vadd.f32 %v6294, %v6246
  %v6296 = vadd.f32 %v6295, %v6250
  %v6297 = vadd.f32 %v6296, %v6254
  %v6298 = vadd.f32 %v6297, %v6258
  %v6299 = vadd.f32 %v6298, %v6262
  %v6300 = vadd.f32 %v6299, %v6266
  %v6301 = vrot.slane %v6300, 4
  %v6302 = vadd.f32 %v6300, %v6301
  %v6303 = vrot.slane %v6302, 2
  %v6304 = vadd.f32 %v6302, %v6303
  %v6305 = vrot.slane %v6304, 1
  %v6306 = vadd.f32 %v6304, %v6305
  %v6307 = vadd.f32 %v6239, %v6243
  %v6308 = vadd.f32 %v6307, %v6247
  %v6309 = vadd.f32 %v6308, %v6251
  %v6310 = vadd.f32 %v6309, %v6255
  %v6311 = vadd.f32 %v6310, %v6259
  %v6312 = vadd.f32 %v6311, %v6263
  %v6313 = vadd.f32 %v6312, %v6267
  %v6314 = vrot.slane %v6313, 4
  %v6315 = vadd.f32 %v6313, %v6314
  %v6316 = vrot.slane %v6315, 2
  %v6317 = vadd.f32 %v6315, %v6316
  %v6318 = vrot.slane %v6317, 1
  %v6319 = vadd.f32 %v6317, %v6318
  %v6320 = vadd.f32 %v6140, %v6280
  %v6321 = vadd.f32 %v6153, %v6293
  %v6322 = vadd.f32 %v6166, %v6306
  %v6323 = vadd.f32 %v6179, %v6319
  %v6324 = vsel %vm847, %v6232, %v6320
  %v6325 = vsel %vm847, %v6233, %v6321
  %v6326 = vsel %vm847, %v6234, %v6322
  %v6327 = vsel %vm847, %v6235, %v6323
  %6328 = vmatprep.subr.mxu0 0.0
  %6329 = vmatpush1.msra.mxu0 %v5972
  %6330 = vmatprep.subr.mxu0 0.0
  %6331 = vmatpush1.msra.mxu0 %v5973
  %6332 = vmatprep.subr.mxu0 0.0
  %6333 = vmatpush1.msra.mxu0 %v5974
  %6334 = vmatprep.subr.mxu0 0.0
  %6335 = vmatpush1.msra.mxu0 %v5975
  %6336 = vmatprep.subr.mxu0 0.0
  %6337 = vmatpush1.msra.mxu0 %v5976
  %6338 = vmatprep.subr.mxu0 0.0
  %6339 = vmatpush1.msra.mxu0 %v5977
  %6340 = vmatprep.subr.mxu0 0.0
  %6341 = vmatpush1.msra.mxu0 %v5978
  %6342 = vmatprep.subr.mxu0 0.0
  %6343 = vmatpush1.msra.mxu0 %v5979
  %6344 = vmatprep.subr.mxu0 0.0
  %6345 = vmatpush1.msra.mxu0 %v5980
  %6346 = vmatprep.subr.mxu0 0.0
  %6347 = vmatpush1.msra.mxu0 %v5981
  %6348 = vmatprep.subr.mxu0 0.0
  %6349 = vmatpush1.msra.mxu0 %v5982
  %6350 = vmatprep.subr.mxu0 0.0
  %6351 = vmatpush1.msra.mxu0 %v5983
  %6352 = vmatprep.subr.mxu0 0.0
  %6353 = vmatpush1.msra.mxu0 %v5984
  %6354 = vmatprep.subr.mxu0 0.0
  %6355 = vmatpush1.msra.mxu0 %v5985
  %6356 = vmatprep.subr.mxu0 0.0
  %6357 = vmatpush1.msra.mxu0 %v5986
  %6358 = vmatprep.subr.mxu0 0.0
  %6359 = vmatpush1.msra.mxu0 %v5987
  %6360 = vmatprep.subr.mxu0 0.0
  %6361 = vmatpush1.msra.mxu0 %v5988
  %6362 = vmatprep.subr.mxu0 0.0
  %6363 = vmatpush1.msra.mxu0 %v5989
  %6364 = vmatprep.subr.mxu0 0.0
  %6365 = vmatpush1.msra.mxu0 %v5990
  %6366 = vmatprep.subr.mxu0 0.0
  %6367 = vmatpush1.msra.mxu0 %v5991
  %6368 = vmatprep.subr.mxu0 0.0
  %6369 = vmatpush1.msra.mxu0 %v5992
  %6370 = vmatprep.subr.mxu0 0.0
  %6371 = vmatpush1.msra.mxu0 %v5993
  %6372 = vmatprep.subr.mxu0 0.0
  %6373 = vmatpush1.msra.mxu0 %v5994
  %6374 = vmatprep.subr.mxu0 0.0
  %6375 = vmatpush1.msra.mxu0 %v5995
  %6376 = vmatprep.subr.mxu0 0.0
  %6377 = vmatpush1.msra.mxu0 %v5996
  %6378 = vmatprep.subr.mxu0 0.0
  %6379 = vmatpush1.msra.mxu0 %v5997
  %6380 = vmatprep.subr.mxu0 0.0
  %6381 = vmatpush1.msra.mxu0 %v5998
  %6382 = vmatprep.subr.mxu0 0.0
  %6383 = vmatpush1.msra.mxu0 %v5999
  %6384 = vmatprep.subr.mxu0 0.0
  %6385 = vmatpush1.msra.mxu0 %v6000
  %6386 = vmatprep.subr.mxu0 0.0
  %6387 = vmatpush1.msra.mxu0 %v6001
  %6388 = vmatprep.subr.mxu0 0.0
  %6389 = vmatpush1.msra.mxu0 %v6002
  %6390 = vmatprep.subr.mxu0 0.0
  %6391 = vmatpush1.msra.mxu0 %v6003
  %6392 = vmatprep.mubr.f32.mxu0 %v6325
  %6393 = vmatmul.mubr.f32.gmra.mrb[0].mxu0 %v6324
  %v6394 = vpop.f32.mrb[0].mxu0
  %v6395 = vadd.f32 0.0, %v6394
  %v6396 = vpop.f32.mrb[0].mxu0
  %6397 = vdwg.mxu0
  %6398 = vmatprep.subr.mxu0 0.0
  %6399 = vmatpush1.msra.mxu0 %v6004
  %6400 = vmatprep.subr.mxu0 0.0
  %6401 = vmatpush1.msra.mxu0 %v6005
  %6402 = vmatprep.subr.mxu0 0.0
  %6403 = vmatpush1.msra.mxu0 %v6006
  %6404 = vmatprep.subr.mxu0 0.0
  %6405 = vmatpush1.msra.mxu0 %v6007
  %6406 = vmatprep.subr.mxu0 0.0
  %6407 = vmatpush1.msra.mxu0 %v6008
  %6408 = vmatprep.subr.mxu0 0.0
  %6409 = vmatpush1.msra.mxu0 %v6009
  %6410 = vmatprep.subr.mxu0 0.0
  %6411 = vmatpush1.msra.mxu0 %v6010
  %6412 = vmatprep.subr.mxu0 0.0
  %6413 = vmatpush1.msra.mxu0 %v6011
  %6414 = vmatprep.subr.mxu0 0.0
  %6415 = vmatpush1.msra.mxu0 %v6012
  %6416 = vmatprep.subr.mxu0 0.0
  %6417 = vmatpush1.msra.mxu0 %v6013
  %6418 = vmatprep.subr.mxu0 0.0
  %6419 = vmatpush1.msra.mxu0 %v6014
  %6420 = vmatprep.subr.mxu0 0.0
  %6421 = vmatpush1.msra.mxu0 %v6015
  %6422 = vmatprep.subr.mxu0 0.0
  %6423 = vmatpush1.msra.mxu0 %v6016
  %6424 = vmatprep.subr.mxu0 0.0
  %6425 = vmatpush1.msra.mxu0 %v6017
  %6426 = vmatprep.subr.mxu0 0.0
  %6427 = vmatpush1.msra.mxu0 %v6018
  %6428 = vmatprep.subr.mxu0 0.0
  %6429 = vmatpush1.msra.mxu0 %v6019
  %6430 = vmatprep.subr.mxu0 0.0
  %6431 = vmatpush1.msra.mxu0 %v6020
  %6432 = vmatprep.subr.mxu0 0.0
  %6433 = vmatpush1.msra.mxu0 %v6021
  %6434 = vmatprep.subr.mxu0 0.0
  %6435 = vmatpush1.msra.mxu0 %v6022
  %6436 = vmatprep.subr.mxu0 0.0
  %6437 = vmatpush1.msra.mxu0 %v6023
  %6438 = vmatprep.subr.mxu0 0.0
  %6439 = vmatpush1.msra.mxu0 %v6024
  %6440 = vmatprep.subr.mxu0 0.0
  %6441 = vmatpush1.msra.mxu0 %v6025
  %6442 = vmatprep.subr.mxu0 0.0
  %6443 = vmatpush1.msra.mxu0 %v6026
  %6444 = vmatprep.subr.mxu0 0.0
  %6445 = vmatpush1.msra.mxu0 %v6027
  %6446 = vmatprep.subr.mxu0 0.0
  %6447 = vmatpush1.msra.mxu0 %v6028
  %6448 = vmatprep.subr.mxu0 0.0
  %6449 = vmatpush1.msra.mxu0 %v6029
  %6450 = vmatprep.subr.mxu0 0.0
  %6451 = vmatpush1.msra.mxu0 %v6030
  %6452 = vmatprep.subr.mxu0 0.0
  %6453 = vmatpush1.msra.mxu0 %v6031
  %6454 = vmatprep.subr.mxu0 0.0
  %6455 = vmatpush1.msra.mxu0 %v6032
  %6456 = vmatprep.subr.mxu0 0.0
  %6457 = vmatpush1.msra.mxu0 %v6033
  %6458 = vmatprep.subr.mxu0 0.0
  %6459 = vmatpush1.msra.mxu0 %v6034
  %6460 = vmatprep.subr.mxu0 0.0
  %6461 = vmatpush1.msra.mxu0 %v6035
  %6462 = vmatprep.mubr.f32.mxu0 %v6327
  %6463 = vmatmul.mubr.f32.gmra.mrb[0].mxu0 %v6326
  %v6464 = vpop.f32.mrb[0].mxu0
  %v6465 = vadd.f32 %v6395, %v6464
  %v6466 = vpop.f32.mrb[0].mxu0
  %6467 = vdwg.mxu0
  %v6468 = vmul.f32 %v6465, 0.00024414063
  %v6469 = vmul.f32 %v6468, %v6468
  %v6471 = vrot.slane %v6469, 7
  %v6473 = vsub.f32 %v6468, %v6471
  %v6474 = vmax.f32 %v6473, 0.0
  %v6475 = vadd.f32 %v6474, 1e-05
  %v6476 = vrsqrt.pop %v6475
  %v6478 = vrot.slane %v6476, 1
  %v6480 = vmul.f32 %v5970, %v6478
  %v6481 = vmul.f32 %v6468, %v6480
  %v6482 = vsub.f32 %v5971, %v6481
  %v6484 = vrot.slane %v6482, 7
  %v6486 = vsel %vm847, %v6480, %v6484
  %vm6487 = vcmask 130048
  %v6489 = vsel %vm6487, %v6486, 0
  %6491 = vmatprep.subr.mxu0 %v6037
  %6492 = vmatpush1.msra.mxu0 %v6036
  %6493 = vmatprep.subr.mxu0 %v6041
  %6494 = vmatpush1.msra.mxu0 %v6040
  %6495 = vmatprep.subr.mxu0 0.0
  %6496 = vmatpush1.msra.mxu0 0.0
  %6497 = vmatprep.subr.mxu0 0.0
  %6498 = vmatpush1.msra.mxu0 0.0
  %6499 = vmatprep.subr.mxu0 0.0
  %6500 = vmatpush1.msra.mxu0 0.0
  %6501 = vmatprep.subr.mxu0 0.0
  %6502 = vmatpush1.msra.mxu0 0.0
  %6503 = vmatprep.subr.mxu0 0.0
  %6504 = vmatpush1.msra.mxu0 0.0
  %6505 = vmatprep.subr.mxu0 0.0
  %6506 = vmatpush1.msra.mxu0 0.0
  %6507 = vmatprep.subr.mxu0 0.0
  %6508 = vmatpush1.msra.mxu0 0.0
  %6509 = vmatprep.subr.mxu0 0.0
  %6510 = vmatpush1.msra.mxu0 0.0
  %6511 = vmatprep.subr.mxu0 0.0
  %6512 = vmatpush1.msra.mxu0 0.0
  %6513 = vmatprep.subr.mxu0 0.0
  %6514 = vmatpush1.msra.mxu0 0.0
  %6515 = vmatprep.subr.mxu0 0.0
  %6516 = vmatpush1.msra.mxu0 0.0
  %6517 = vmatprep.subr.mxu0 0.0
  %6518 = vmatpush1.msra.mxu0 0.0
  %6519 = vmatprep.subr.mxu0 0.0
  %6520 = vmatpush1.msra.mxu0 0.0
  %6521 = vmatprep.subr.mxu0 0.0
  %6522 = vmatpush1.msra.mxu0 0.0
  %6523 = vmatprep.subr.mxu0 0.0
  %6524 = vmatpush1.msra.mxu0 0.0
  %6525 = vmatprep.subr.mxu0 0.0
  %6526 = vmatpush1.msra.mxu0 0.0
  %6527 = vmatprep.subr.mxu0 0.0
  %6528 = vmatpush1.msra.mxu0 0.0
  %6529 = vmatprep.subr.mxu0 0.0
  %6530 = vmatpush1.msra.mxu0 0.0
  %6531 = vmatprep.subr.mxu0 0.0
  %6532 = vmatpush1.msra.mxu0 0.0
  %6533 = vmatprep.subr.mxu0 0.0
  %6534 = vmatpush1.msra.mxu0 0.0
  %6535 = vmatprep.subr.mxu0 0.0
  %6536 = vmatpush1.msra.mxu0 0.0
  %6537 = vmatprep.subr.mxu0 0.0
  %6538 = vmatpush1.msra.mxu0 0.0
  %6539 = vmatprep.subr.mxu0 0.0
  %6540 = vmatpush1.msra.mxu0 0.0
  %6541 = vmatprep.subr.mxu0 0.0
  %6542 = vmatpush1.msra.mxu0 0.0
  %6543 = vmatprep.subr.mxu0 0.0
  %6544 = vmatpush1.msra.mxu0 0.0
  %6545 = vmatprep.subr.mxu0 0.0
  %6546 = vmatpush1.msra.mxu0 0.0
  %6547 = vmatprep.subr.mxu0 0.0
  %6548 = vmatpush1.msra.mxu0 0.0
  %6549 = vmatprep.subr.mxu0 0.0
  %6550 = vmatpush1.msra.mxu0 0.0
  %6551 = vmatprep.subr.mxu0 0.0
  %6552 = vmatpush1.msra.mxu0 0.0
  %6553 = vmatprep.subr.mxu0 0.0
  %6554 = vmatpush1.msra.mxu0 0.0
  %6555 = vmatprep.mubr.f32.mxu0 0.0
  %6556 = vmatmul.mubr.f32.gmra.mrb[0].mxu0 %v6489
  %v6557 = vpop.f32.mrb[0].mxu0
  %v6558 = vadd.f32 0.0, %v6557
  %v6559 = vpop.f32.mrb[0].mxu0
  %v6560 = vadd.f32 0.0, %v6559
  %6561 = vdwg.mxu0
  %6562 = vmatprep.subr.mxu0 %v6039
  %6563 = vmatpush1.msra.mxu0 %v6038
  %6564 = vmatprep.subr.mxu0 %v6043
  %6565 = vmatpush1.msra.mxu0 %v6042
  %6566 = vmatprep.subr.mxu0 0.0
  %6567 = vmatpush1.msra.mxu0 0.0
  %6568 = vmatprep.subr.mxu0 0.0
  %6569 = vmatpush1.msra.mxu0 0.0
  %6570 = vmatprep.subr.mxu0 0.0
  %6571 = vmatpush1.msra.mxu0 0.0
  %6572 = vmatprep.subr.mxu0 0.0
  %6573 = vmatpush1.msra.mxu0 0.0
  %6574 = vmatprep.subr.mxu0 0.0
  %6575 = vmatpush1.msra.mxu0 0.0
  %6576 = vmatprep.subr.mxu0 0.0
  %6577 = vmatpush1.msra.mxu0 0.0
  %6578 = vmatprep.subr.mxu0 0.0
  %6579 = vmatpush1.msra.mxu0 0.0
  %6580 = vmatprep.subr.mxu0 0.0
  %6581 = vmatpush1.msra.mxu0 0.0
  %6582 = vmatprep.subr.mxu0 0.0
  %6583 = vmatpush1.msra.mxu0 0.0
  %6584 = vmatprep.subr.mxu0 0.0
  %6585 = vmatpush1.msra.mxu0 0.0
  %6586 = vmatprep.subr.mxu0 0.0
  %6587 = vmatpush1.msra.mxu0 0.0
  %6588 = vmatprep.subr.mxu0 0.0
  %6589 = vmatpush1.msra.mxu0 0.0
  %6590 = vmatprep.subr.mxu0 0.0
  %6591 = vmatpush1.msra.mxu0 0.0
  %6592 = vmatprep.subr.mxu0 0.0
  %6593 = vmatpush1.msra.mxu0 0.0
  %6594 = vmatprep.subr.mxu0 0.0
  %6595 = vmatpush1.msra.mxu0 0.0
  %6596 = vmatprep.subr.mxu0 0.0
  %6597 = vmatpush1.msra.mxu0 0.0
  %6598 = vmatprep.subr.mxu0 0.0
  %6599 = vmatpush1.msra.mxu0 0.0
  %6600 = vmatprep.subr.mxu0 0.0
  %6601 = vmatpush1.msra.mxu0 0.0
  %6602 = vmatprep.subr.mxu0 0.0
  %6603 = vmatpush1.msra.mxu0 0.0
  %6604 = vmatprep.subr.mxu0 0.0
  %6605 = vmatpush1.msra.mxu0 0.0
  %6606 = vmatprep.subr.mxu0 0.0
  %6607 = vmatpush1.msra.mxu0 0.0
  %6608 = vmatprep.subr.mxu0 0.0
  %6609 = vmatpush1.msra.mxu0 0.0
  %6610 = vmatprep.subr.mxu0 0.0
  %6611 = vmatpush1.msra.mxu0 0.0
  %6612 = vmatprep.subr.mxu0 0.0
  %6613 = vmatpush1.msra.mxu0 0.0
  %6614 = vmatprep.subr.mxu0 0.0
  %6615 = vmatpush1.msra.mxu0 0.0
  %6616 = vmatprep.subr.mxu0 0.0
  %6617 = vmatpush1.msra.mxu0 0.0
  %6618 = vmatprep.subr.mxu0 0.0
  %6619 = vmatpush1.msra.mxu0 0.0
  %6620 = vmatprep.subr.mxu0 0.0
  %6621 = vmatpush1.msra.mxu0 0.0
  %6622 = vmatprep.subr.mxu0 0.0
  %6623 = vmatpush1.msra.mxu0 0.0
  %6624 = vmatprep.subr.mxu0 0.0
  %6625 = vmatpush1.msra.mxu0 0.0
  %6626 = vmatprep.mubr.f32.mxu0 0.0
  %6627 = vmatmul.mubr.f32.gmra.mrb[0].mxu0 %v6489
  %v6628 = vpop.f32.mrb[0].mxu0
  %v6629 = vadd.f32 0.0, %v6628
  %v6630 = vpop.f32.mrb[0].mxu0
  %v6631 = vadd.f32 0.0, %v6630
  %6632 = vdwg.mxu0
  %v6633 = vlaneseq
  %v6634 = vshrl.u32 %v6633, 7
  %v6635 = vsub.s32 0, %v6634
  %v6636 = vrot.slane %v6558, %v6635
  %v6637 = vlaneseq
  %v6638 = vshrl.u32 %v6637, 7
  %v6639 = vsub.s32 0, %v6638
  %v6640 = vrot.slane %v6560, %v6639
  %v6641 = vlaneseq
  %v6642 = vshrl.u32 %v6641, 7
  %v6643 = vsub.s32 0, %v6642
  %v6644 = vrot.slane %v6629, %v6643
  %v6645 = vlaneseq
  %v6646 = vshrl.u32 %v6645, 7
  %v6647 = vsub.s32 0, %v6646
  %v6648 = vrot.slane %v6631, %v6647
  %v6649 = vmul.f32 %v5460, %v6636
  %v6650 = vmul.f32 %v5461, %v6640
  %v6651 = vmul.f32 %v5462, %v6644
  %v6652 = vmul.f32 %v5463, %v6648
  %v6653 = vmul.f32 %v5464, %v6636
  %v6654 = vmul.f32 %v5465, %v6640
  %v6655 = vmul.f32 %v5466, %v6644
  %v6656 = vmul.f32 %v5467, %v6648
  %v6657 = vmul.f32 %v5468, %v6636
  %v6658 = vmul.f32 %v5469, %v6640
  %v6659 = vmul.f32 %v5470, %v6644
  %v6660 = vmul.f32 %v5471, %v6648
  %v6661 = vmul.f32 %v5472, %v6636
  %v6662 = vmul.f32 %v5473, %v6640
  %v6663 = vmul.f32 %v5474, %v6644
  %v6664 = vmul.f32 %v5475, %v6648
  %v6665 = vmul.f32 %v5476, %v6636
  %v6666 = vmul.f32 %v5477, %v6640
  %v6667 = vmul.f32 %v5478, %v6644
  %v6668 = vmul.f32 %v5479, %v6648
  %v6669 = vmul.f32 %v5480, %v6636
  %v6670 = vmul.f32 %v5481, %v6640
  %v6671 = vmul.f32 %v5482, %v6644
  %v6672 = vmul.f32 %v5483, %v6648
  %v6673 = vmul.f32 %v5484, %v6636
  %v6674 = vmul.f32 %v5485, %v6640
  %v6675 = vmul.f32 %v5486, %v6644
  %v6676 = vmul.f32 %v5487, %v6648
  %v6677 = vmul.f32 %v5488, %v6636
  %v6678 = vmul.f32 %v5489, %v6640
  %v6679 = vmul.f32 %v5490, %v6644
  %v6680 = vmul.f32 %v5491, %v6648
  %v6681 = vlaneseq
  %v6682 = vshrl.u32 %v6681, 7
  %v6683 = vsub.s32 1, %v6682
  %v6684 = vrot.slane %v6558, %v6683
  %v6685 = vlaneseq
  %v6686 = vshrl.u32 %v6685, 7
  %v6687 = vsub.s32 1, %v6686
  %v6688 = vrot.slane %v6560, %v6687
  %v6689 = vlaneseq
  %v6690 = vshrl.u32 %v6689, 7
  %v6691 = vsub.s32 1, %v6690
  %v6692 = vrot.slane %v6629, %v6691
  %v6693 = vlaneseq
  %v6694 = vshrl.u32 %v6693, 7
  %v6695 = vsub.s32 1, %v6694
  %v6696 = vrot.slane %v6631, %v6695
  %v6697 = vadd.f32 %v6649, %v6684
  %v6698 = vadd.f32 %v6650, %v6688
  %v6699 = vadd.f32 %v6651, %v6692
  %v6700 = vadd.f32 %v6652, %v6696
  %v6701 = vadd.f32 %v6653, %v6684
  %v6702 = vadd.f32 %v6654, %v6688
  %v6703 = vadd.f32 %v6655, %v6692
  %v6704 = vadd.f32 %v6656, %v6696
  %v6705 = vadd.f32 %v6657, %v6684
  %v6706 = vadd.f32 %v6658, %v6688
  %v6707 = vadd.f32 %v6659, %v6692
  %v6708 = vadd.f32 %v6660, %v6696
  %v6709 = vadd.f32 %v6661, %v6684
  %v6710 = vadd.f32 %v6662, %v6688
  %v6711 = vadd.f32 %v6663, %v6692
  %v6712 = vadd.f32 %v6664, %v6696
  %v6713 = vadd.f32 %v6665, %v6684
  %v6714 = vadd.f32 %v6666, %v6688
  %v6715 = vadd.f32 %v6667, %v6692
  %v6716 = vadd.f32 %v6668, %v6696
  %v6717 = vadd.f32 %v6669, %v6684
  %v6718 = vadd.f32 %v6670, %v6688
  %v6719 = vadd.f32 %v6671, %v6692
  %v6720 = vadd.f32 %v6672, %v6696
  %v6721 = vadd.f32 %v6673, %v6684
  %v6722 = vadd.f32 %v6674, %v6688
  %v6723 = vadd.f32 %v6675, %v6692
  %v6724 = vadd.f32 %v6676, %v6696
  %v6725 = vadd.f32 %v6677, %v6684
  %v6726 = vadd.f32 %v6678, %v6688
  %v6727 = vadd.f32 %v6679, %v6692
  %v6728 = vadd.f32 %v6680, %v6696
  %v6729 = vmax.f32 %v6697, 0.0
  %v6730 = vmax.f32 %v6698, 0.0
  %v6731 = vmax.f32 %v6699, 0.0
  %v6732 = vmax.f32 %v6700, 0.0
  %v6733 = vmax.f32 %v6701, 0.0
  %v6734 = vmax.f32 %v6702, 0.0
  %v6735 = vmax.f32 %v6703, 0.0
  %v6736 = vmax.f32 %v6704, 0.0
  %v6737 = vmax.f32 %v6705, 0.0
  %v6738 = vmax.f32 %v6706, 0.0
  %v6739 = vmax.f32 %v6707, 0.0
  %v6740 = vmax.f32 %v6708, 0.0
  %v6741 = vmax.f32 %v6709, 0.0
  %v6742 = vmax.f32 %v6710, 0.0
  %v6743 = vmax.f32 %v6711, 0.0
  %v6744 = vmax.f32 %v6712, 0.0
  %v6745 = vmax.f32 %v6713, 0.0
  %v6746 = vmax.f32 %v6714, 0.0
  %v6747 = vmax.f32 %v6715, 0.0
  %v6748 = vmax.f32 %v6716, 0.0
  %v6749 = vmax.f32 %v6717, 0.0
  %v6750 = vmax.f32 %v6718, 0.0
  %v6751 = vmax.f32 %v6719, 0.0
  %v6752 = vmax.f32 %v6720, 0.0
  %v6753 = vmax.f32 %v6721, 0.0
  %v6754 = vmax.f32 %v6722, 0.0
  %v6755 = vmax.f32 %v6723, 0.0
  %v6756 = vmax.f32 %v6724, 0.0
  %v6757 = vmax.f32 %v6725, 0.0
  %v6758 = vmax.f32 %v6726, 0.0
  %v6759 = vmax.f32 %v6727, 0.0
  %v6760 = vmax.f32 %v6728, 0.0
  %v6761 = vmul.f32 %v5938, %v6636
  %v6762 = vmul.f32 %v5939, %v6640
  %v6763 = vmul.f32 %v5940, %v6644
  %v6764 = vmul.f32 %v5941, %v6648
  %v6765 = vmul.f32 %v5942, %v6636
  %v6766 = vmul.f32 %v5943, %v6640
  %v6767 = vmul.f32 %v5944, %v6644
  %v6768 = vmul.f32 %v5945, %v6648
  %v6769 = vmul.f32 %v5946, %v6636
  %v6770 = vmul.f32 %v5947, %v6640
  %v6771 = vmul.f32 %v5948, %v6644
  %v6772 = vmul.f32 %v5949, %v6648
  %v6773 = vmul.f32 %v5950, %v6636
  %v6774 = vmul.f32 %v5951, %v6640
  %v6775 = vmul.f32 %v5952, %v6644
  %v6776 = vmul.f32 %v5953, %v6648
  %v6777 = vmul.f32 %v5954, %v6636
  %v6778 = vmul.f32 %v5955, %v6640
  %v6779 = vmul.f32 %v5956, %v6644
  %v6780 = vmul.f32 %v5957, %v6648
  %v6781 = vmul.f32 %v5958, %v6636
  %v6782 = vmul.f32 %v5959, %v6640
  %v6783 = vmul.f32 %v5960, %v6644
  %v6784 = vmul.f32 %v5961, %v6648
  %v6785 = vmul.f32 %v5962, %v6636
  %v6786 = vmul.f32 %v5963, %v6640
  %v6787 = vmul.f32 %v5964, %v6644
  %v6788 = vmul.f32 %v5965, %v6648
  %v6789 = vmul.f32 %v5966, %v6636
  %v6790 = vmul.f32 %v5967, %v6640
  %v6791 = vmul.f32 %v5968, %v6644
  %v6792 = vmul.f32 %v5969, %v6648
  %v6793 = vadd.f32 %v6761, %v6684
  %v6794 = vadd.f32 %v6762, %v6688
  %v6795 = vadd.f32 %v6763, %v6692
  %v6796 = vadd.f32 %v6764, %v6696
  %v6797 = vadd.f32 %v6765, %v6684
  %v6798 = vadd.f32 %v6766, %v6688
  %v6799 = vadd.f32 %v6767, %v6692
  %v6800 = vadd.f32 %v6768, %v6696
  %v6801 = vadd.f32 %v6769, %v6684
  %v6802 = vadd.f32 %v6770, %v6688
  %v6803 = vadd.f32 %v6771, %v6692
  %v6804 = vadd.f32 %v6772, %v6696
  %v6805 = vadd.f32 %v6773, %v6684
  %v6806 = vadd.f32 %v6774, %v6688
  %v6807 = vadd.f32 %v6775, %v6692
  %v6808 = vadd.f32 %v6776, %v6696
  %v6809 = vadd.f32 %v6777, %v6684
  %v6810 = vadd.f32 %v6778, %v6688
  %v6811 = vadd.f32 %v6779, %v6692
  %v6812 = vadd.f32 %v6780, %v6696
  %v6813 = vadd.f32 %v6781, %v6684
  %v6814 = vadd.f32 %v6782, %v6688
  %v6815 = vadd.f32 %v6783, %v6692
  %v6816 = vadd.f32 %v6784, %v6696
  %v6817 = vadd.f32 %v6785, %v6684
  %v6818 = vadd.f32 %v6786, %v6688
  %v6819 = vadd.f32 %v6787, %v6692
  %v6820 = vadd.f32 %v6788, %v6696
  %v6821 = vadd.f32 %v6789, %v6684
  %v6822 = vadd.f32 %v6790, %v6688
  %v6823 = vadd.f32 %v6791, %v6692
  %v6824 = vadd.f32 %v6792, %v6696
  %v6825 = vmax.f32 %v6793, 0.0
  %v6826 = vmax.f32 %v6794, 0.0
  %v6827 = vmax.f32 %v6795, 0.0
  %v6828 = vmax.f32 %v6796, 0.0
  %v6829 = vmax.f32 %v6797, 0.0
  %v6830 = vmax.f32 %v6798, 0.0
  %v6831 = vmax.f32 %v6799, 0.0
  %v6832 = vmax.f32 %v6800, 0.0
  %v6833 = vmax.f32 %v6801, 0.0
  %v6834 = vmax.f32 %v6802, 0.0
  %v6835 = vmax.f32 %v6803, 0.0
  %v6836 = vmax.f32 %v6804, 0.0
  %v6837 = vmax.f32 %v6805, 0.0
  %v6838 = vmax.f32 %v6806, 0.0
  %v6839 = vmax.f32 %v6807, 0.0
  %v6840 = vmax.f32 %v6808, 0.0
  %v6841 = vmax.f32 %v6809, 0.0
  %v6842 = vmax.f32 %v6810, 0.0
  %v6843 = vmax.f32 %v6811, 0.0
  %v6844 = vmax.f32 %v6812, 0.0
  %v6845 = vmax.f32 %v6813, 0.0
  %v6846 = vmax.f32 %v6814, 0.0
  %v6847 = vmax.f32 %v6815, 0.0
  %v6848 = vmax.f32 %v6816, 0.0
  %v6849 = vmax.f32 %v6817, 0.0
  %v6850 = vmax.f32 %v6818, 0.0
  %v6851 = vmax.f32 %v6819, 0.0
  %v6852 = vmax.f32 %v6820, 0.0
  %v6853 = vmax.f32 %v6821, 0.0
  %v6854 = vmax.f32 %v6822, 0.0
  %v6855 = vmax.f32 %v6823, 0.0
  %v6856 = vmax.f32 %v6824, 0.0
  %6857 = vst [vmem:[#allocation4 + $0x20] sm:$0xff] %v6729
  %6858 = vst [vmem:[#allocation4 + $0x28] sm:$0xff] %v6730
  %6859 = vst [vmem:[#allocation4 + $0x30] sm:$0xff] %v6731
  %6860 = vst [vmem:[#allocation4 + $0x38] sm:$0xff] %v6732
  %6861 = vst [vmem:[#allocation4 + $0x40] sm:$0xff] %v6733
  %6862 = vst [vmem:[#allocation4 + $0x48] sm:$0xff] %v6734
  %6863 = vst [vmem:[#allocation4 + $0x50] sm:$0xff] %v6735
  %6864 = vst [vmem:[#allocation4 + $0x58] sm:$0xff] %v6736
  %6865 = vst [vmem:[#allocation4 + $0x60] sm:$0xff] %v6737
  %6866 = vst [vmem:[#allocation4 + $0x68] sm:$0xff] %v6738
  %6867 = vst [vmem:[#allocation4 + $0x70] sm:$0xff] %v6739
  %6868 = vst [vmem:[#allocation4 + $0x78] sm:$0xff] %v6740
  %6869 = vst [vmem:[#allocation4 + $0x80] sm:$0xff] %v6741
  %6870 = vst [vmem:[#allocation4 + $0x88] sm:$0xff] %v6742
  %6871 = vst [vmem:[#allocation4 + $0x90] sm:$0xff] %v6743
  %6872 = vst [vmem:[#allocation4 + $0x98] sm:$0xff] %v6744
  %6873 = vst [vmem:[#allocation4 + $0xa0] sm:$0xff] %v6745
  %6874 = vst [vmem:[#allocation4 + $0xa8] sm:$0xff] %v6746
  %6875 = vst [vmem:[#allocation4 + $0xb0] sm:$0xff] %v6747
  %6876 = vst [vmem:[#allocation4 + $0xb8] sm:$0xff] %v6748
  %6877 = vst [vmem:[#allocation4 + $0xc0] sm:$0xff] %v6749
  %6878 = vst [vmem:[#allocation4 + $0xc8] sm:$0xff] %v6750
  %6879 = vst [vmem:[#allocation4 + $0xd0] sm:$0xff] %v6751
  %6880 = vst [vmem:[#allocation4 + $0xd8] sm:$0xff] %v6752
  %6881 = vst [vmem:[#allocation4 + $0xe0] sm:$0xff] %v6753
  %6882 = vst [vmem:[#allocation4 + $0xe8] sm:$0xff] %v6754
  %6883 = vst [vmem:[#allocation4 + $0xf0] sm:$0xff] %v6755
  %6884 = vst [vmem:[#allocation4 + $0xf8] sm:$0xff] %v6756
  %6885 = vst [vmem:[#allocation4 + $0x100] sm:$0xff] %v6757
  %6886 = vst [vmem:[#allocation4 + $0x108] sm:$0xff] %v6758
  %6887 = vst [vmem:[#allocation4 + $0x110] sm:$0xff] %v6759
  %6888 = vst [vmem:[#allocation4 + $0x118] sm:$0xff] %v6760
  %6889 = vst [vmem:[#allocation5 + $0x20] sm:$0xff] %v6825
  %6890 = vst [vmem:[#allocation5 + $0x28] sm:$0xff] %v6826
  %6891 = vst [vmem:[#allocation5 + $0x30] sm:$0xff] %v6827
  %6892 = vst [vmem:[#allocation5 + $0x38] sm:$0xff] %v6828
  %6893 = vst [vmem:[#allocation5 + $0x40] sm:$0xff] %v6829
  %6894 = vst [vmem:[#allocation5 + $0x48] sm:$0xff] %v6830
  %6895 = vst [vmem:[#allocation5 + $0x50] sm:$0xff] %v6831
  %6896 = vst [vmem:[#allocation5 + $0x58] sm:$0xff] %v6832
  %6897 = vst [vmem:[#allocation5 + $0x60] sm:$0xff] %v6833
  %6898 = vst [vmem:[#allocation5 + $0x68] sm:$0xff] %v6834
  %6899 = vst [vmem:[#allocation5 + $0x70] sm:$0xff] %v6835
  %6900 = vst [vmem:[#allocation5 + $0x78] sm:$0xff] %v6836
  %6901 = vst [vmem:[#allocation5 + $0x80] sm:$0xff] %v6837
  %6902 = vst [vmem:[#allocation5 + $0x88] sm:$0xff] %v6838
  %6903 = vst [vmem:[#allocation5 + $0x90] sm:$0xff] %v6839
  %6904 = vst [vmem:[#allocation5 + $0x98] sm:$0xff] %v6840
  %6905 = vst [vmem:[#allocation5 + $0xa0] sm:$0xff] %v6841
  %6906 = vst [vmem:[#allocation5 + $0xa8] sm:$0xff] %v6842
  %6907 = vst [vmem:[#allocation5 + $0xb0] sm:$0xff] %v6843
  %6908 = vst [vmem:[#allocation5 + $0xb8] sm:$0xff] %v6844
  %6909 = vst [vmem:[#allocation5 + $0xc0] sm:$0xff] %v6845
  %6910 = vst [vmem:[#allocation5 + $0xc8] sm:$0xff] %v6846
  %6911 = vst [vmem:[#allocation5 + $0xd0] sm:$0xff] %v6847
  %6912 = vst [vmem:[#allocation5 + $0xd8] sm:$0xff] %v6848
  %6913 = vst [vmem:[#allocation5 + $0xe0] sm:$0xff] %v6849
  %6914 = vst [vmem:[#allocation5 + $0xe8] sm:$0xff] %v6850
  %6915 = vst [vmem:[#allocation5 + $0xf0] sm:$0xff] %v6851
  %6916 = vst [vmem:[#allocation5 + $0xf8] sm:$0xff] %v6852
  %6917 = vst [vmem:[#allocation5 + $0x100] sm:$0xff] %v6853
  %6918 = vst [vmem:[#allocation5 + $0x108] sm:$0xff] %v6854
  %6919 = vst [vmem:[#allocation5 + $0x110] sm:$0xff] %v6855
  %6920 = vst [vmem:[#allocation5 + $0x118] sm:$0xff] %v6856
  %v6921 = vld [vmem:[#allocation4 + $0x20] sm:$0xff]
  %v6922 = vld [vmem:[#allocation4 + $0x28] sm:$0xff]
  %v6923 = vld [vmem:[#allocation4 + $0x40] sm:$0xff]
  %v6924 = vld [vmem:[#allocation4 + $0x48] sm:$0xff]
  %v6925 = vld [vmem:[#allocation4 + $0x60] sm:$0xff]
  %v6926 = vld [vmem:[#allocation4 + $0x68] sm:$0xff]
  %v6927 = vld [vmem:[#allocation4 + $0x80] sm:$0xff]
  %v6928 = vld [vmem:[#allocation4 + $0x88] sm:$0xff]
  %v6929 = vld [vmem:[#allocation4 + $0xa0] sm:$0xff]
  %v6930 = vld [vmem:[#allocation4 + $0xa8] sm:$0xff]
  %v6931 = vld [vmem:[#allocation4 + $0xc0] sm:$0xff]
  %v6932 = vld [vmem:[#allocation4 + $0xc8] sm:$0xff]
  %v6933 = vld [vmem:[#allocation4 + $0xe0] sm:$0xff]
  %v6934 = vld [vmem:[#allocation4 + $0xe8] sm:$0xff]
  %v6935 = vld [vmem:[#allocation4 + $0x100] sm:$0xff]
  %v6936 = vld [vmem:[#allocation4 + $0x108] sm:$0xff]
  %v6937 = vld [vmem:[#allocation4 + $0x30] sm:$0xff]
  %v6938 = vld [vmem:[#allocation4 + $0x38] sm:$0xff]
  %v6939 = vld [vmem:[#allocation4 + $0x50] sm:$0xff]
  %v6940 = vld [vmem:[#allocation4 + $0x58] sm:$0xff]
  %v6941 = vld [vmem:[#allocation4 + $0x70] sm:$0xff]
  %v6942 = vld [vmem:[#allocation4 + $0x78] sm:$0xff]
  %v6943 = vld [vmem:[#allocation4 + $0x90] sm:$0xff]
  %v6944 = vld [vmem:[#allocation4 + $0x98] sm:$0xff]
  %v6945 = vld [vmem:[#allocation4 + $0xb0] sm:$0xff]
  %v6946 = vld [vmem:[#allocation4 + $0xb8] sm:$0xff]
  %v6947 = vld [vmem:[#allocation4 + $0xd0] sm:$0xff]
  %v6948 = vld [vmem:[#allocation4 + $0xd8] sm:$0xff]
  %v6949 = vld [vmem:[#allocation4 + $0xf0] sm:$0xff]
  %v6950 = vld [vmem:[#allocation4 + $0xf8] sm:$0xff]
  %v6951 = vld [vmem:[#allocation4 + $0x110] sm:$0xff]
  %v6952 = vld [vmem:[#allocation4 + $0x118] sm:$0xff]
  %v6953 = vld [vmem:[#allocation5 + $0x20] sm:$0xff]
  %v6954 = vld [vmem:[#allocation5 + $0x28] sm:$0xff]
  %v6955 = vld [vmem:[#allocation5 + $0x40] sm:$0xff]
  %v6956 = vld [vmem:[#allocation5 + $0x48] sm:$0xff]
  %v6957 = vld [vmem:[#allocation5 + $0x60] sm:$0xff]
  %v6958 = vld [vmem:[#allocation5 + $0x68] sm:$0xff]
  %v6959 = vld [vmem:[#allocation5 + $0x80] sm:$0xff]
  %v6960 = vld [vmem:[#allocation5 + $0x88] sm:$0xff]
  %v6961 = vld [vmem:[#allocation5 + $0xa0] sm:$0xff]
  %v6962 = vld [vmem:[#allocation5 + $0xa8] sm:$0xff]
  %v6963 = vld [vmem:[#allocation5 + $0xc0] sm:$0xff]
  %v6964 = vld [vmem:[#allocation5 + $0xc8] sm:$0xff]
  %v6965 = vld [vmem:[#allocation5 + $0xe0] sm:$0xff]
  %v6966 = vld [vmem:[#allocation5 + $0xe8] sm:$0xff]
  %v6967 = vld [vmem:[#allocation5 + $0x100] sm:$0xff]
  %v6968 = vld [vmem:[#allocation5 + $0x108] sm:$0xff]
  %v6969 = vld [vmem:[#allocation5 + $0x30] sm:$0xff]
  %v6970 = vld [vmem:[#allocation5 + $0x38] sm:$0xff]
  %v6971 = vld [vmem:[#allocation5 + $0x50] sm:$0xff]
  %v6972 = vld [vmem:[#allocation5 + $0x58] sm:$0xff]
  %v6973 = vld [vmem:[#allocation5 + $0x70] sm:$0xff]
  %v6974 = vld [vmem:[#allocation5 + $0x78] sm:$0xff]
  %v6975 = vld [vmem:[#allocation5 + $0x90] sm:$0xff]
  %v6976 = vld [vmem:[#allocation5 + $0x98] sm:$0xff]
  %v6977 = vld [vmem:[#allocation5 + $0xb0] sm:$0xff]
  %v6978 = vld [vmem:[#allocation5 + $0xb8] sm:$0xff]
  %v6979 = vld [vmem:[#allocation5 + $0xd0] sm:$0xff]
  %v6980 = vld [vmem:[#allocation5 + $0xd8] sm:$0xff]
  %v6981 = vld [vmem:[#allocation5 + $0xf0] sm:$0xff]
  %v6982 = vld [vmem:[#allocation5 + $0xf8] sm:$0xff]
  %v6983 = vld [vmem:[#allocation5 + $0x110] sm:$0xff]
  %v6984 = vld [vmem:[#allocation5 + $0x118] sm:$0xff]
  %v6985 = vld [vmem:[#allocation4 + $0x20] sm:$0xfe]
  %v6986 = vld [vmem:[#allocation4 + $0x28] sm:$0xfe]
  %v6987 = vld [vmem:[#allocation4 + $0x120] sm:$0x1]
  %v6988 = vld [vmem:[#allocation4 + $0x128] sm:$0x1]
  %v6989 = vld [vmem:[#allocation4 + $0x30] sm:$0xfe]
  %v6990 = vld [vmem:[#allocation4 + $0x38] sm:$0xfe]
  %v6991 = vld [vmem:[#allocation4 + $0x50] sm:$0xff]
  %v6992 = vld [vmem:[#allocation4 + $0x58] sm:$0xff]
  %v6993 = vld [vmem:[#allocation4 + $0x70] sm:$0xff]
  %v6994 = vld [vmem:[#allocation4 + $0x78] sm:$0xff]
  %v6995 = vld [vmem:[#allocation4 + $0x90] sm:$0xff]
  %v6996 = vld [vmem:[#allocation4 + $0x98] sm:$0xff]
  %v6997 = vld [vmem:[#allocation4 + $0xb0] sm:$0xff]
  %v6998 = vld [vmem:[#allocation4 + $0xb8] sm:$0xff]
  %v6999 = vld [vmem:[#allocation4 + $0xd0] sm:$0xff]
  %v7000 = vld [vmem:[#allocation4 + $0xd8] sm:$0xff]
  %v7001 = vld [vmem:[#allocation4 + $0xf0] sm:$0xff]
  %v7002 = vld [vmem:[#allocation4 + $0xf8] sm:$0xff]
  %v7003 = vld [vmem:[#allocation4 + $0x110] sm:$0xff]
  %v7004 = vld [vmem:[#allocation4 + $0x118] sm:$0xff]
  %v7005 = vld [vmem:[#allocation4 + $0x130] sm:$0x1]
  %v7006 = vld [vmem:[#allocation4 + $0x138] sm:$0x1]
  %v7007 = vld [vmem:[%s4] sm:$0xf]
  %v7008 = vld [vmem:[%s4 + $0x4] sm:$0xf]
  %v7009 = vld [vmem:[%s4 + $0x8] sm:$0xf]
  %v7010 = vld [vmem:[%s4 + $0xc] sm:$0xf]
  %v7011 = vld [vmem:[%s4 + $0x10] sm:$0xf]
  %v7012 = vld [vmem:[%s4 + $0x14] sm:$0xf]
  %v7013 = vld [vmem:[%s4 + $0x18] sm:$0xf]
  %v7014 = vld [vmem:[%s4 + $0x1c] sm:$0xf]
  %v7015 = vld [vmem:[%s4 + $0x20] sm:$0xf]
  %v7016 = vld [vmem:[%s4 + $0x24] sm:$0xf]
  %v7017 = vld [vmem:[%s4 + $0x28] sm:$0xf]
  %v7018 = vld [vmem:[%s4 + $0x2c] sm:$0xf]
  %v7019 = vld [vmem:[%s4 + $0x30] sm:$0xf]
  %v7020 = vld [vmem:[%s4 + $0x34] sm:$0xf]
  %v7021 = vld [vmem:[%s4 + $0x38] sm:$0xf]
  %v7022 = vld [vmem:[%s4 + $0x3c] sm:$0xf]
  %v7023 = vld [vmem:[%s4 + $0x40] sm:$0xf]
  %v7024 = vld [vmem:[%s4 + $0x44] sm:$0xf]
  %v7025 = vld [vmem:[%s4 + $0x48] sm:$0xf]
  %v7026 = vld [vmem:[%s4 + $0x4c] sm:$0xf]
  %v7027 = vld [vmem:[%s4 + $0x50] sm:$0xf]
  %v7028 = vld [vmem:[%s4 + $0x54] sm:$0xf]
  %v7029 = vld [vmem:[%s4 + $0x58] sm:$0xf]
  %v7030 = vld [vmem:[%s4 + $0x5c] sm:$0xf]
  %v7031 = vld [vmem:[%s4 + $0x60] sm:$0xf]
  %v7032 = vld [vmem:[%s4 + $0x64] sm:$0xf]
  %v7033 = vld [vmem:[%s4 + $0x68] sm:$0xf]
  %v7034 = vld [vmem:[%s4 + $0x6c] sm:$0xf]
  %v7035 = vld [vmem:[%s4 + $0x70] sm:$0xf]
  %v7036 = vld [vmem:[%s4 + $0x74] sm:$0xf]
  %v7037 = vld [vmem:[%s4 + $0x78] sm:$0xf]
  %v7038 = vld [vmem:[%s4 + $0x7c] sm:$0xf]
  %v7039 = vpack.c.bf16 %v6923, %v6921
  %v7040 = vpack.c.bf16 %v6924, %v6922
  %v7041 = vpack.c.bf16 %v6927, %v6925
  %v7042 = vpack.c.bf16 %v6928, %v6926
  %v7043 = vpack.c.bf16 %v6931, %v6929
  %v7044 = vpack.c.bf16 %v6932, %v6930
  %v7045 = vpack.c.bf16 %v6935, %v6933
  %v7046 = vpack.c.bf16 %v6936, %v6934
  %s7047 = scalar_lea.vmem %s4, 128
  %v7048 = vld [vmem:[%s7047] sm:$0xf]
  %v7049 = vld [vmem:[%s7047 + $0x4] sm:$0xf]
  %v7050 = vld [vmem:[%s7047 + $0x8] sm:$0xf]
  %v7051 = vld [vmem:[%s7047 + $0xc] sm:$0xf]
  %v7052 = vld [vmem:[%s7047 + $0x10] sm:$0xf]
  %v7053 = vld [vmem:[%s7047 + $0x14] sm:$0xf]
  %v7054 = vld [vmem:[%s7047 + $0x18] sm:$0xf]
  %v7055 = vld [vmem:[%s7047 + $0x1c] sm:$0xf]
  %v7056 = vld [vmem:[%s7047 + $0x20] sm:$0xf]
  %v7057 = vld [vmem:[%s7047 + $0x24] sm:$0xf]
  %v7058 = vld [vmem:[%s7047 + $0x28] sm:$0xf]
  %v7059 = vld [vmem:[%s7047 + $0x2c] sm:$0xf]
  %v7060 = vld [vmem:[%s7047 + $0x30] sm:$0xf]
  %v7061 = vld [vmem:[%s7047 + $0x34] sm:$0xf]
  %v7062 = vld [vmem:[%s7047 + $0x38] sm:$0xf]
  %v7063 = vld [vmem:[%s7047 + $0x3c] sm:$0xf]
  %v7064 = vld [vmem:[%s7047 + $0x40] sm:$0xf]
  %v7065 = vld [vmem:[%s7047 + $0x44] sm:$0xf]
  %v7066 = vld [vmem:[%s7047 + $0x48] sm:$0xf]
  %v7067 = vld [vmem:[%s7047 + $0x4c] sm:$0xf]
  %v7068 = vld [vmem:[%s7047 + $0x50] sm:$0xf]
  %v7069 = vld [vmem:[%s7047 + $0x54] sm:$0xf]
  %v7070 = vld [vmem:[%s7047 + $0x58] sm:$0xf]
  %v7071 = vld [vmem:[%s7047 + $0x5c] sm:$0xf]
  %v7072 = vld [vmem:[%s7047 + $0x60] sm:$0xf]
  %v7073 = vld [vmem:[%s7047 + $0x64] sm:$0xf]
  %v7074 = vld [vmem:[%s7047 + $0x68] sm:$0xf]
  %v7075 = vld [vmem:[%s7047 + $0x6c] sm:$0xf]
  %v7076 = vld [vmem:[%s7047 + $0x70] sm:$0xf]
  %v7077 = vld [vmem:[%s7047 + $0x74] sm:$0xf]
  %v7078 = vld [vmem:[%s7047 + $0x78] sm:$0xf]
  %v7079 = vld [vmem:[%s7047 + $0x7c] sm:$0xf]
  %v7080 = vpack.c.bf16 %v6939, %v6937
  %v7081 = vpack.c.bf16 %v6940, %v6938
  %v7082 = vpack.c.bf16 %v6943, %v6941
  %v7083 = vpack.c.bf16 %v6944, %v6942
  %v7084 = vpack.c.bf16 %v6947, %v6945
  %v7085 = vpack.c.bf16 %v6948, %v6946
  %v7086 = vpack.c.bf16 %v6951, %v6949
  %v7087 = vpack.c.bf16 %v6952, %v6950
  %v7120 = vunpack.c.l.b16 %v7048
  %v7121 = vunpack.c.l.b16 %v7049
  %v7122 = vunpack.c.l.b16 %v7050
  %v7123 = vunpack.c.l.b16 %v7051
  %v7124 = vunpack.c.l.b16 %v7052
  %v7125 = vunpack.c.l.b16 %v7053
  %v7126 = vunpack.c.l.b16 %v7054
  %v7127 = vunpack.c.l.b16 %v7055
  %v7128 = vunpack.c.l.b16 %v7056
  %v7129 = vunpack.c.l.b16 %v7057
  %v7130 = vunpack.c.l.b16 %v7058
  %v7131 = vunpack.c.l.b16 %v7059
  %v7132 = vunpack.c.l.b16 %v7060
  %v7133 = vunpack.c.l.b16 %v7061
  %v7134 = vunpack.c.l.b16 %v7062
  %v7135 = vunpack.c.l.b16 %v7063
  %v7136 = vunpack.c.l.b16 %v7064
  %v7137 = vunpack.c.l.b16 %v7065
  %v7138 = vunpack.c.l.b16 %v7066
  %v7139 = vunpack.c.l.b16 %v7067
  %v7140 = vunpack.c.l.b16 %v7068
  %v7141 = vunpack.c.l.b16 %v7069
  %v7142 = vunpack.c.l.b16 %v7070
  %v7143 = vunpack.c.l.b16 %v7071
  %v7144 = vunpack.c.l.b16 %v7072
  %v7145 = vunpack.c.l.b16 %v7073
  %v7146 = vunpack.c.l.b16 %v7074
  %v7147 = vunpack.c.l.b16 %v7075
  %v7148 = vunpack.c.l.b16 %v7076
  %v7149 = vunpack.c.l.b16 %v7077
  %v7150 = vunpack.c.l.b16 %v7078
  %v7151 = vunpack.c.l.b16 %v7079
  %v7152 = vpack.c.b16 %v7121, %v7120
  %v7153 = vpack.c.b16 %v7123, %v7122
  %v7154 = vpack.c.b16 %v7125, %v7124
  %v7155 = vpack.c.b16 %v7127, %v7126
  %v7156 = vpack.c.b16 %v7129, %v7128
  %v7157 = vpack.c.b16 %v7131, %v7130
  %v7158 = vpack.c.b16 %v7133, %v7132
  %v7159 = vpack.c.b16 %v7135, %v7134
  %v7160 = vpack.c.b16 %v7137, %v7136
  %v7161 = vpack.c.b16 %v7139, %v7138
  %v7162 = vpack.c.b16 %v7141, %v7140
  %v7163 = vpack.c.b16 %v7143, %v7142
  %v7164 = vpack.c.b16 %v7145, %v7144
  %v7165 = vpack.c.b16 %v7147, %v7146
  %v7166 = vpack.c.b16 %v7149, %v7148
  %v7167 = vpack.c.b16 %v7151, %v7150
  %7184 = vmatprep.subr.bf16.mxu0 0
  %7185 = vmatpush1.bf16.msra.mxu0 %v7152
  %7186 = vmatprep.subr.bf16.mxu0 0
  %7187 = vmatpush1.bf16.msra.mxu0 %v7153
  %7188 = vmatprep.subr.bf16.mxu0 0
  %7189 = vmatpush1.bf16.msra.mxu0 %v7154
  %7190 = vmatprep.subr.bf16.mxu0 0
  %7191 = vmatpush1.bf16.msra.mxu0 %v7155
  %7192 = vmatprep.subr.bf16.mxu0 0
  %7193 = vmatpush1.bf16.msra.mxu0 %v7156
  %7194 = vmatprep.subr.bf16.mxu0 0
  %7195 = vmatpush1.bf16.msra.mxu0 %v7157
  %7196 = vmatprep.subr.bf16.mxu0 0
  %7197 = vmatpush1.bf16.msra.mxu0 %v7158
  %7198 = vmatprep.subr.bf16.mxu0 0
  %7199 = vmatpush1.bf16.msra.mxu0 %v7159
  %7200 = vmatprep.subr.bf16.mxu0 0
  %7201 = vmatpush1.bf16.msra.mxu0 %v7160
  %7202 = vmatprep.subr.bf16.mxu0 0
  %7203 = vmatpush1.bf16.msra.mxu0 %v7161
  %7204 = vmatprep.subr.bf16.mxu0 0
  %7205 = vmatpush1.bf16.msra.mxu0 %v7162
  %7206 = vmatprep.subr.bf16.mxu0 0
  %7207 = vmatpush1.bf16.msra.mxu0 %v7163
  %7208 = vmatprep.subr.bf16.mxu0 0
  %7209 = vmatpush1.bf16.msra.mxu0 %v7164
  %7210 = vmatprep.subr.bf16.mxu0 0
  %7211 = vmatpush1.bf16.msra.mxu0 %v7165
  %7212 = vmatprep.subr.bf16.mxu0 0
  %7213 = vmatpush1.bf16.msra.mxu0 %v7166
  %7214 = vmatprep.subr.bf16.mxu0 0
  %7215 = vmatpush1.bf16.msra.mxu0 %v7167
  %7216 = vmatprep.mubr.bf16.mxu0 %v7081
  %7217 = vmatmul.mubr.bf16.gmra.mrb[0].mxu0 %v7080
  %v7218 = vpop.f32.mrb[0].mxu0
  %v7219 = vadd.f32 0.0, %v7218
  %v7220 = vpop.f32.mrb[0].mxu0
  %v7221 = vpop.f32.mrb[0].mxu0
  %v7222 = vadd.f32 0.0, %v7221
  %v7223 = vpop.f32.mrb[0].mxu0
  %7224 = vmatprep.mubr.bf16.mxu0 %v7083
  %7225 = vmatmul.mubr.bf16.gmra.mrb[0].mxu0 %v7082
  %v7226 = vpop.f32.mrb[0].mxu0
  %v7227 = vadd.f32 0.0, %v7226
  %v7228 = vpop.f32.mrb[0].mxu0
  %v7229 = vpop.f32.mrb[0].mxu0
  %v7230 = vadd.f32 0.0, %v7229
  %v7231 = vpop.f32.mrb[0].mxu0
  %7232 = vmatprep.mubr.bf16.mxu0 %v7085
  %7233 = vmatmul.mubr.bf16.gmra.mrb[0].mxu0 %v7084
  %v7234 = vpop.f32.mrb[0].mxu0
  %v7235 = vadd.f32 0.0, %v7234
  %v7236 = vpop.f32.mrb[0].mxu0
  %v7237 = vpop.f32.mrb[0].mxu0
  %v7238 = vadd.f32 0.0, %v7237
  %v7239 = vpop.f32.mrb[0].mxu0
  %7240 = vmatprep.mubr.bf16.mxu0 %v7087
  %7241 = vmatmul.mubr.bf16.gmra.mrb[0].mxu0 %v7086
  %v7242 = vpop.f32.mrb[0].mxu0
  %v7243 = vadd.f32 0.0, %v7242
  %v7244 = vpop.f32.mrb[0].mxu0
  %v7245 = vpop.f32.mrb[0].mxu0
  %v7246 = vadd.f32 0.0, %v7245
  %v7247 = vpop.f32.mrb[0].mxu0
  %7248 = vdwg.mxu0
  %v7281 = vunpack.c.l.b16 %v7007
  %v7282 = vunpack.c.l.b16 %v7008
  %v7283 = vunpack.c.l.b16 %v7009
  %v7284 = vunpack.c.l.b16 %v7010
  %v7285 = vunpack.c.l.b16 %v7011
  %v7286 = vunpack.c.l.b16 %v7012
  %v7287 = vunpack.c.l.b16 %v7013
  %v7288 = vunpack.c.l.b16 %v7014
  %v7289 = vunpack.c.l.b16 %v7015
  %v7290 = vunpack.c.l.b16 %v7016
  %v7291 = vunpack.c.l.b16 %v7017
  %v7292 = vunpack.c.l.b16 %v7018
  %v7293 = vunpack.c.l.b16 %v7019
  %v7294 = vunpack.c.l.b16 %v7020
  %v7295 = vunpack.c.l.b16 %v7021
  %v7296 = vunpack.c.l.b16 %v7022
  %v7297 = vunpack.c.l.b16 %v7023
  %v7298 = vunpack.c.l.b16 %v7024
  %v7299 = vunpack.c.l.b16 %v7025
  %v7300 = vunpack.c.l.b16 %v7026
  %v7301 = vunpack.c.l.b16 %v7027
  %v7302 = vunpack.c.l.b16 %v7028
  %v7303 = vunpack.c.l.b16 %v7029
  %v7304 = vunpack.c.l.b16 %v7030
  %v7305 = vunpack.c.l.b16 %v7031
  %v7306 = vunpack.c.l.b16 %v7032
  %v7307 = vunpack.c.l.b16 %v7033
  %v7308 = vunpack.c.l.b16 %v7034
  %v7309 = vunpack.c.l.b16 %v7035
  %v7310 = vunpack.c.l.b16 %v7036
  %v7311 = vunpack.c.l.b16 %v7037
  %v7312 = vunpack.c.l.b16 %v7038
  %v7313 = vpack.c.b16 %v7282, %v7281
  %v7314 = vpack.c.b16 %v7284, %v7283
  %v7315 = vpack.c.b16 %v7286, %v7285
  %v7316 = vpack.c.b16 %v7288, %v7287
  %v7317 = vpack.c.b16 %v7290, %v7289
  %v7318 = vpack.c.b16 %v7292, %v7291
  %v7319 = vpack.c.b16 %v7294, %v7293
  %v7320 = vpack.c.b16 %v7296, %v7295
  %v7321 = vpack.c.b16 %v7298, %v7297
  %v7322 = vpack.c.b16 %v7300, %v7299
  %v7323 = vpack.c.b16 %v7302, %v7301
  %v7324 = vpack.c.b16 %v7304, %v7303
  %v7325 = vpack.c.b16 %v7306, %v7305
  %v7326 = vpack.c.b16 %v7308, %v7307
  %v7327 = vpack.c.b16 %v7310, %v7309
  %v7328 = vpack.c.b16 %v7312, %v7311
  %7345 = vmatprep.subr.bf16.mxu0 0
  %7346 = vmatpush1.bf16.msra.mxu0 %v7313
  %7347 = vmatprep.subr.bf16.mxu0 0
  %7348 = vmatpush1.bf16.msra.mxu0 %v7314
  %7349 = vmatprep.subr.bf16.mxu0 0
  %7350 = vmatpush1.bf16.msra.mxu0 %v7315
  %7351 = vmatprep.subr.bf16.mxu0 0
  %7352 = vmatpush1.bf16.msra.mxu0 %v7316
  %7353 = vmatprep.subr.bf16.mxu0 0
  %7354 = vmatpush1.bf16.msra.mxu0 %v7317
  %7355 = vmatprep.subr.bf16.mxu0 0
  %7356 = vmatpush1.bf16.msra.mxu0 %v7318
  %7357 = vmatprep.subr.bf16.mxu0 0
  %7358 = vmatpush1.bf16.msra.mxu0 %v7319
  %7359 = vmatprep.subr.bf16.mxu0 0
  %7360 = vmatpush1.bf16.msra.mxu0 %v7320
  %7361 = vmatprep.subr.bf16.mxu0 0
  %7362 = vmatpush1.bf16.msra.mxu0 %v7321
  %7363 = vmatprep.subr.bf16.mxu0 0
  %7364 = vmatpush1.bf16.msra.mxu0 %v7322
  %7365 = vmatprep.subr.bf16.mxu0 0
  %7366 = vmatpush1.bf16.msra.mxu0 %v7323
  %7367 = vmatprep.subr.bf16.mxu0 0
  %7368 = vmatpush1.bf16.msra.mxu0 %v7324
  %7369 = vmatprep.subr.bf16.mxu0 0
  %7370 = vmatpush1.bf16.msra.mxu0 %v7325
  %7371 = vmatprep.subr.bf16.mxu0 0
  %7372 = vmatpush1.bf16.msra.mxu0 %v7326
  %7373 = vmatprep.subr.bf16.mxu0 0
  %7374 = vmatpush1.bf16.msra.mxu0 %v7327
  %7375 = vmatprep.subr.bf16.mxu0 0
  %7376 = vmatpush1.bf16.msra.mxu0 %v7328
  %7377 = vmatprep.mubr.bf16.mxu0 %v7040
  %7378 = vmatmul.mubr.bf16.gmra.mrb[0].mxu0 %v7039
  %v7379 = vpop.f32.mrb[0].mxu0
  %v7380 = vadd.f32 %v7219, %v7379
  %v7381 = vpop.f32.mrb[0].mxu0
  %v7382 = vpop.f32.mrb[0].mxu0
  %v7383 = vadd.f32 %v7222, %v7382
  %v7384 = vpop.f32.mrb[0].mxu0
  %7385 = vmatprep.mubr.bf16.mxu0 %v7042
  %7386 = vmatmul.mubr.bf16.gmra.mrb[0].mxu0 %v7041
  %v7387 = vpop.f32.mrb[0].mxu0
  %v7388 = vadd.f32 %v7227, %v7387
  %v7389 = vpop.f32.mrb[0].mxu0
  %v7390 = vpop.f32.mrb[0].mxu0
  %v7391 = vadd.f32 %v7230, %v7390
  %v7392 = vpop.f32.mrb[0].mxu0
  %7393 = vmatprep.mubr.bf16.mxu0 %v7044
  %7394 = vmatmul.mubr.bf16.gmra.mrb[0].mxu0 %v7043
  %v7395 = vpop.f32.mrb[0].mxu0
  %v7396 = vadd.f32 %v7235, %v7395
  %v7397 = vpop.f32.mrb[0].mxu0
  %v7398 = vpop.f32.mrb[0].mxu0
  %v7399 = vadd.f32 %v7238, %v7398
  %v7400 = vpop.f32.mrb[0].mxu0
  %7401 = vmatprep.mubr.bf16.mxu0 %v7046
  %7402 = vmatmul.mubr.bf16.gmra.mrb[0].mxu0 %v7045
  %v7403 = vpop.f32.mrb[0].mxu0
  %v7404 = vadd.f32 %v7243, %v7403
  %v7405 = vpop.f32.mrb[0].mxu0
  %v7406 = vpop.f32.mrb[0].mxu0
  %v7407 = vadd.f32 %v7246, %v7406
  %v7408 = vpop.f32.mrb[0].mxu0
  %7409 = vdwg.mxu0
  %s7410 = scalar_lea.vmem %s4, 256
  %v7411 = vld [vmem:[%s7410] sm:$0xf]
  %v7412 = vld [vmem:[%s7410 + $0x4] sm:$0xf]
  %v7413 = vld [vmem:[%s7410 + $0x8] sm:$0xf]
  %v7414 = vld [vmem:[%s7410 + $0xc] sm:$0xf]
  %v7415 = vld [vmem:[%s7410 + $0x10] sm:$0xf]
  %v7416 = vld [vmem:[%s7410 + $0x14] sm:$0xf]
  %v7417 = vld [vmem:[%s7410 + $0x18] sm:$0xf]
  %v7418 = vld [vmem:[%s7410 + $0x1c] sm:$0xf]
  %v7419 = vld [vmem:[%s7410 + $0x20] sm:$0xf]
  %v7420 = vld [vmem:[%s7410 + $0x24] sm:$0xf]
  %v7421 = vld [vmem:[%s7410 + $0x28] sm:$0xf]
  %v7422 = vld [vmem:[%s7410 + $0x2c] sm:$0xf]
  %v7423 = vld [vmem:[%s7410 + $0x30] sm:$0xf]
  %v7424 = vld [vmem:[%s7410 + $0x34] sm:$0xf]
  %v7425 = vld [vmem:[%s7410 + $0x38] sm:$0xf]
  %v7426 = vld [vmem:[%s7410 + $0x3c] sm:$0xf]
  %v7427 = vld [vmem:[%s7410 + $0x40] sm:$0xf]
  %v7428 = vld [vmem:[%s7410 + $0x44] sm:$0xf]
  %v7429 = vld [vmem:[%s7410 + $0x48] sm:$0xf]
  %v7430 = vld [vmem:[%s7410 + $0x4c] sm:$0xf]
  %v7431 = vld [vmem:[%s7410 + $0x50] sm:$0xf]
  %v7432 = vld [vmem:[%s7410 + $0x54] sm:$0xf]
  %v7433 = vld [vmem:[%s7410 + $0x58] sm:$0xf]
  %v7434 = vld [vmem:[%s7410 + $0x5c] sm:$0xf]
  %v7435 = vld [vmem:[%s7410 + $0x60] sm:$0xf]
  %v7436 = vld [vmem:[%s7410 + $0x64] sm:$0xf]
  %v7437 = vld [vmem:[%s7410 + $0x68] sm:$0xf]
  %v7438 = vld [vmem:[%s7410 + $0x6c] sm:$0xf]
  %v7439 = vld [vmem:[%s7410 + $0x70] sm:$0xf]
  %v7440 = vld [vmem:[%s7410 + $0x74] sm:$0xf]
  %v7441 = vld [vmem:[%s7410 + $0x78] sm:$0xf]
  %v7442 = vld [vmem:[%s7410 + $0x7c] sm:$0xf]
  %v7443 = vpack.c.bf16 %v6955, %v6953
  %v7444 = vpack.c.bf16 %v6956, %v6954
  %v7445 = vpack.c.bf16 %v6959, %v6957
  %v7446 = vpack.c.bf16 %v6960, %v6958
  %v7447 = vpack.c.bf16 %v6963, %v6961
  %v7448 = vpack.c.bf16 %v6964, %v6962
  %v7449 = vpack.c.bf16 %v6967, %v6965
  %v7450 = vpack.c.bf16 %v6968, %v6966
  %v7483 = vunpack.c.l.b16 %v7411
  %v7484 = vunpack.c.l.b16 %v7412
  %v7485 = vunpack.c.l.b16 %v7413
  %v7486 = vunpack.c.l.b16 %v7414
  %v7487 = vunpack.c.l.b16 %v7415
  %v7488 = vunpack.c.l.b16 %v7416
  %v7489 = vunpack.c.l.b16 %v7417
  %v7490 = vunpack.c.l.b16 %v7418
  %v7491 = vunpack.c.l.b16 %v7419
  %v7492 = vunpack.c.l.b16 %v7420
  %v7493 = vunpack.c.l.b16 %v7421
  %v7494 = vunpack.c.l.b16 %v7422
  %v7495 = vunpack.c.l.b16 %v7423
  %v7496 = vunpack.c.l.b16 %v7424
  %v7497 = vunpack.c.l.b16 %v7425
  %v7498 = vunpack.c.l.b16 %v7426
  %v7499 = vunpack.c.l.b16 %v7427
  %v7500 = vunpack.c.l.b16 %v7428
  %v7501 = vunpack.c.l.b16 %v7429
  %v7502 = vunpack.c.l.b16 %v7430
  %v7503 = vunpack.c.l.b16 %v7431
  %v7504 = vunpack.c.l.b16 %v7432
  %v7505 = vunpack.c.l.b16 %v7433
  %v7506 = vunpack.c.l.b16 %v7434
  %v7507 = vunpack.c.l.b16 %v7435
  %v7508 = vunpack.c.l.b16 %v7436
  %v7509 = vunpack.c.l.b16 %v7437
  %v7510 = vunpack.c.l.b16 %v7438
  %v7511 = vunpack.c.l.b16 %v7439
  %v7512 = vunpack.c.l.b16 %v7440
  %v7513 = vunpack.c.l.b16 %v7441
  %v7514 = vunpack.c.l.b16 %v7442
  %v7515 = vpack.c.b16 %v7484, %v7483
  %v7516 = vpack.c.b16 %v7486, %v7485
  %v7517 = vpack.c.b16 %v7488, %v7487
  %v7518 = vpack.c.b16 %v7490, %v7489
  %v7519 = vpack.c.b16 %v7492, %v7491
  %v7520 = vpack.c.b16 %v7494, %v7493
  %v7521 = vpack.c.b16 %v7496, %v7495
  %v7522 = vpack.c.b16 %v7498, %v7497
  %v7523 = vpack.c.b16 %v7500, %v7499
  %v7524 = vpack.c.b16 %v7502, %v7501
  %v7525 = vpack.c.b16 %v7504, %v7503
  %v7526 = vpack.c.b16 %v7506, %v7505
  %v7527 = vpack.c.b16 %v7508, %v7507
  %v7528 = vpack.c.b16 %v7510, %v7509
  %v7529 = vpack.c.b16 %v7512, %v7511
  %v7530 = vpack.c.b16 %v7514, %v7513
  %7547 = vmatprep.subr.bf16.mxu0 0
  %7548 = vmatpush1.bf16.msra.mxu0 %v7515
  %7549 = vmatprep.subr.bf16.mxu0 0
  %7550 = vmatpush1.bf16.msra.mxu0 %v7516
  %7551 = vmatprep.subr.bf16.mxu0 0
  %7552 = vmatpush1.bf16.msra.mxu0 %v7517
  %7553 = vmatprep.subr.bf16.mxu0 0
  %7554 = vmatpush1.bf16.msra.mxu0 %v7518
  %7555 = vmatprep.subr.bf16.mxu0 0
  %7556 = vmatpush1.bf16.msra.mxu0 %v7519
  %7557 = vmatprep.subr.bf16.mxu0 0
  %7558 = vmatpush1.bf16.msra.mxu0 %v7520
  %7559 = vmatprep.subr.bf16.mxu0 0
  %7560 = vmatpush1.bf16.msra.mxu0 %v7521
  %7561 = vmatprep.subr.bf16.mxu0 0
  %7562 = vmatpush1.bf16.msra.mxu0 %v7522
  %7563 = vmatprep.subr.bf16.mxu0 0
  %7564 = vmatpush1.bf16.msra.mxu0 %v7523
  %7565 = vmatprep.subr.bf16.mxu0 0
  %7566 = vmatpush1.bf16.msra.mxu0 %v7524
  %7567 = vmatprep.subr.bf16.mxu0 0
  %7568 = vmatpush1.bf16.msra.mxu0 %v7525
  %7569 = vmatprep.subr.bf16.mxu0 0
  %7570 = vmatpush1.bf16.msra.mxu0 %v7526
  %7571 = vmatprep.subr.bf16.mxu0 0
  %7572 = vmatpush1.bf16.msra.mxu0 %v7527
  %7573 = vmatprep.subr.bf16.mxu0 0
  %7574 = vmatpush1.bf16.msra.mxu0 %v7528
  %7575 = vmatprep.subr.bf16.mxu0 0
  %7576 = vmatpush1.bf16.msra.mxu0 %v7529
  %7577 = vmatprep.subr.bf16.mxu0 0
  %7578 = vmatpush1.bf16.msra.mxu0 %v7530
  %7579 = vmatprep.mubr.bf16.mxu0 %v7444
  %7580 = vmatmul.mubr.bf16.gmra.mrb[0].mxu0 %v7443
  %v7581 = vpop.f32.mrb[0].mxu0
  %v7582 = vadd.f32 0.0, %v7581
  %v7583 = vpop.f32.mrb[0].mxu0
  %v7584 = vpop.f32.mrb[0].mxu0
  %v7585 = vadd.f32 0.0, %v7584
  %v7586 = vpop.f32.mrb[0].mxu0
  %7587 = vmatprep.mubr.bf16.mxu0 %v7446
  %7588 = vmatmul.mubr.bf16.gmra.mrb[0].mxu0 %v7445
  %v7589 = vpop.f32.mrb[0].mxu0
  %v7590 = vadd.f32 0.0, %v7589
  %v7591 = vpop.f32.mrb[0].mxu0
  %v7592 = vpop.f32.mrb[0].mxu0
  %v7593 = vadd.f32 0.0, %v7592
  %v7594 = vpop.f32.mrb[0].mxu0
  %7595 = vmatprep.mubr.bf16.mxu0 %v7448
  %7596 = vmatmul.mubr.bf16.gmra.mrb[0].mxu0 %v7447
  %v7597 = vpop.f32.mrb[0].mxu0
  %v7598 = vadd.f32 0.0, %v7597
  %v7599 = vpop.f32.mrb[0].mxu0
  %v7600 = vpop.f32.mrb[0].mxu0
  %v7601 = vadd.f32 0.0, %v7600
  %v7602 = vpop.f32.mrb[0].mxu0
  %7603 = vmatprep.mubr.bf16.mxu0 %v7450
  %7604 = vmatmul.mubr.bf16.gmra.mrb[0].mxu0 %v7449
  %v7605 = vpop.f32.mrb[0].mxu0
  %v7606 = vadd.f32 0.0, %v7605
  %v7607 = vpop.f32.mrb[0].mxu0
  %v7608 = vpop.f32.mrb[0].mxu0
  %v7609 = vadd.f32 0.0, %v7608
  %v7610 = vpop.f32.mrb[0].mxu0
  %7611 = vdwg.mxu0
  %v7612 = vadd.f32 %v7380, %v7582
  %v7613 = vadd.f32 %v7383, %v7585
  %v7614 = vadd.f32 %v7388, %v7590
  %v7615 = vadd.f32 %v7391, %v7593
  %v7616 = vadd.f32 %v7396, %v7598
  %v7617 = vadd.f32 %v7399, %v7601
  %v7618 = vadd.f32 %v7404, %v7606
  %v7619 = vadd.f32 %v7407, %v7609
  %7620 = vmatprep.subr.bf16.mxu0 0
  %7621 = vmatpush1.bf16.msra.mxu0 %v7152
  %7622 = vmatprep.subr.bf16.mxu0 0
  %7623 = vmatpush1.bf16.msra.mxu0 %v7153
  %7624 = vmatprep.subr.bf16.mxu0 0
  %7625 = vmatpush1.bf16.msra.mxu0 %v7154
  %7626 = vmatprep.subr.bf16.mxu0 0
  %7627 = vmatpush1.bf16.msra.mxu0 %v7155
  %7628 = vmatprep.subr.bf16.mxu0 0
  %7629 = vmatpush1.bf16.msra.mxu0 %v7156
  %7630 = vmatprep.subr.bf16.mxu0 0
  %7631 = vmatpush1.bf16.msra.mxu0 %v7157
  %7632 = vmatprep.subr.bf16.mxu0 0
  %7633 = vmatpush1.bf16.msra.mxu0 %v7158
  %7634 = vmatprep.subr.bf16.mxu0 0
  %7635 = vmatpush1.bf16.msra.mxu0 %v7159
  %7636 = vmatprep.subr.bf16.mxu0 0
  %7637 = vmatpush1.bf16.msra.mxu0 %v7160
  %7638 = vmatprep.subr.bf16.mxu0 0
  %7639 = vmatpush1.bf16.msra.mxu0 %v7161
  %7640 = vmatprep.subr.bf16.mxu0 0
  %7641 = vmatpush1.bf16.msra.mxu0 %v7162
  %7642 = vmatprep.subr.bf16.mxu0 0
  %7643 = vmatpush1.bf16.msra.mxu0 %v7163
  %7644 = vmatprep.subr.bf16.mxu0 0
  %7645 = vmatpush1.bf16.msra.mxu0 %v7164
  %7646 = vmatprep.subr.bf16.mxu0 0
  %7647 = vmatpush1.bf16.msra.mxu0 %v7165
  %7648 = vmatprep.subr.bf16.mxu0 0
  %7649 = vmatpush1.bf16.msra.mxu0 %v7166
  %7650 = vmatprep.subr.bf16.mxu0 0
  %7651 = vmatpush1.bf16.msra.mxu0 %v7167
  %7652 = vmatprep.mubr.bf16.mxu0 %v7444
  %7653 = vmatmul.mubr.bf16.gmra.mrb[0].mxu0 %v7443
  %v7654 = vpop.f32.mrb[0].mxu0
  %v7655 = vadd.f32 0.0, %v7654
  %v7656 = vpop.f32.mrb[0].mxu0
  %v7657 = vpop.f32.mrb[0].mxu0
  %v7658 = vadd.f32 0.0, %v7657
  %v7659 = vpop.f32.mrb[0].mxu0
  %7660 = vmatprep.mubr.bf16.mxu0 %v7446
  %7661 = vmatmul.mubr.bf16.gmra.mrb[0].mxu0 %v7445
  %v7662 = vpop.f32.mrb[0].mxu0
  %v7663 = vadd.f32 0.0, %v7662
  %v7664 = vpop.f32.mrb[0].mxu0
  %v7665 = vpop.f32.mrb[0].mxu0
  %v7666 = vadd.f32 0.0, %v7665
  %v7667 = vpop.f32.mrb[0].mxu0
  %7668 = vmatprep.mubr.bf16.mxu0 %v7448
  %7669 = vmatmul.mubr.bf16.gmra.mrb[0].mxu0 %v7447
  %v7670 = vpop.f32.mrb[0].mxu0
  %v7671 = vadd.f32 0.0, %v7670
  %v7672 = vpop.f32.mrb[0].mxu0
  %v7673 = vpop.f32.mrb[0].mxu0
  %v7674 = vadd.f32 0.0, %v7673
  %v7675 = vpop.f32.mrb[0].mxu0
  %7676 = vmatprep.mubr.bf16.mxu0 %v7450
  %7677 = vmatmul.mubr.bf16.gmra.mrb[0].mxu0 %v7449
  %v7678 = vpop.f32.mrb[0].mxu0
  %v7679 = vadd.f32 0.0, %v7678
  %v7680 = vpop.f32.mrb[0].mxu0
  %v7681 = vpop.f32.mrb[0].mxu0
  %v7682 = vadd.f32 0.0, %v7681
  %v7683 = vpop.f32.mrb[0].mxu0
  %7684 = vdwg.mxu0
  %7685 = vmatprep.subr.bf16.mxu0 0
  %7686 = vmatpush1.bf16.msra.mxu0 %v7313
  %7687 = vmatprep.subr.bf16.mxu0 0
  %7688 = vmatpush1.bf16.msra.mxu0 %v7314
  %7689 = vmatprep.subr.bf16.mxu0 0
  %7690 = vmatpush1.bf16.msra.mxu0 %v7315
  %7691 = vmatprep.subr.bf16.mxu0 0
  %7692 = vmatpush1.bf16.msra.mxu0 %v7316
  %7693 = vmatprep.subr.bf16.mxu0 0
  %7694 = vmatpush1.bf16.msra.mxu0 %v7317
  %7695 = vmatprep.subr.bf16.mxu0 0
  %7696 = vmatpush1.bf16.msra.mxu0 %v7318
  %7697 = vmatprep.subr.bf16.mxu0 0
  %7698 = vmatpush1.bf16.msra.mxu0 %v7319
  %7699 = vmatprep.subr.bf16.mxu0 0
  %7700 = vmatpush1.bf16.msra.mxu0 %v7320
  %7701 = vmatprep.subr.bf16.mxu0 0
  %7702 = vmatpush1.bf16.msra.mxu0 %v7321
  %7703 = vmatprep.subr.bf16.mxu0 0
  %7704 = vmatpush1.bf16.msra.mxu0 %v7322
  %7705 = vmatprep.subr.bf16.mxu0 0
  %7706 = vmatpush1.bf16.msra.mxu0 %v7323
  %7707 = vmatprep.subr.bf16.mxu0 0
  %7708 = vmatpush1.bf16.msra.mxu0 %v7324
  %7709 = vmatprep.subr.bf16.mxu0 0
  %7710 = vmatpush1.bf16.msra.mxu0 %v7325
  %7711 = vmatprep.subr.bf16.mxu0 0
  %7712 = vmatpush1.bf16.msra.mxu0 %v7326
  %7713 = vmatprep.subr.bf16.mxu0 0
  %7714 = vmatpush1.bf16.msra.mxu0 %v7327
  %7715 = vmatprep.subr.bf16.mxu0 0
  %7716 = vmatpush1.bf16.msra.mxu0 %v7328
  %7717 = vmatprep.mubr.bf16.mxu0 %v7081
  %7718 = vmatmul.mubr.bf16.gmra.mrb[0].mxu0 %v7080
  %v7719 = vpop.f32.mrb[0].mxu0
  %v7720 = vadd.f32 %v7655, %v7719
  %v7721 = vpop.f32.mrb[0].mxu0
  %v7722 = vpop.f32.mrb[0].mxu0
  %v7723 = vadd.f32 %v7658, %v7722
  %v7724 = vpop.f32.mrb[0].mxu0
  %7725 = vmatprep.mubr.bf16.mxu0 %v7083
  %7726 = vmatmul.mubr.bf16.gmra.mrb[0].mxu0 %v7082
  %v7727 = vpop.f32.mrb[0].mxu0
  %v7728 = vadd.f32 %v7663, %v7727
  %v7729 = vpop.f32.mrb[0].mxu0
  %v7730 = vpop.f32.mrb[0].mxu0
  %v7731 = vadd.f32 %v7666, %v7730
  %v7732 = vpop.f32.mrb[0].mxu0
  %7733 = vmatprep.mubr.bf16.mxu0 %v7085
  %7734 = vmatmul.mubr.bf16.gmra.mrb[0].mxu0 %v7084
  %v7735 = vpop.f32.mrb[0].mxu0
  %v7736 = vadd.f32 %v7671, %v7735
  %v7737 = vpop.f32.mrb[0].mxu0
  %v7738 = vpop.f32.mrb[0].mxu0
  %v7739 = vadd.f32 %v7674, %v7738
  %v7740 = vpop.f32.mrb[0].mxu0
  %7741 = vmatprep.mubr.bf16.mxu0 %v7087
  %7742 = vmatmul.mubr.bf16.gmra.mrb[0].mxu0 %v7086
  %v7743 = vpop.f32.mrb[0].mxu0
  %v7744 = vadd.f32 %v7679, %v7743
  %v7745 = vpop.f32.mrb[0].mxu0
  %v7746 = vpop.f32.mrb[0].mxu0
  %v7747 = vadd.f32 %v7682, %v7746
  %v7748 = vpop.f32.mrb[0].mxu0
  %7749 = vdwg.mxu0
  %v7750 = vpack.c.bf16 %v6971, %v6969
  %v7751 = vpack.c.bf16 %v6972, %v6970
  %v7752 = vpack.c.bf16 %v6975, %v6973
  %v7753 = vpack.c.bf16 %v6976, %v6974
  %v7754 = vpack.c.bf16 %v6979, %v6977
  %v7755 = vpack.c.bf16 %v6980, %v6978
  %v7756 = vpack.c.bf16 %v6983, %v6981
  %v7757 = vpack.c.bf16 %v6984, %v6982
  %7758 = vmatprep.subr.bf16.mxu0 0
  %7759 = vmatpush1.bf16.msra.mxu0 %v7515
  %7760 = vmatprep.subr.bf16.mxu0 0
  %7761 = vmatpush1.bf16.msra.mxu0 %v7516
  %7762 = vmatprep.subr.bf16.mxu0 0
  %7763 = vmatpush1.bf16.msra.mxu0 %v7517
  %7764 = vmatprep.subr.bf16.mxu0 0
  %7765 = vmatpush1.bf16.msra.mxu0 %v7518
  %7766 = vmatprep.subr.bf16.mxu0 0
  %7767 = vmatpush1.bf16.msra.mxu0 %v7519
  %7768 = vmatprep.subr.bf16.mxu0 0
  %7769 = vmatpush1.bf16.msra.mxu0 %v7520
  %7770 = vmatprep.subr.bf16.mxu0 0
  %7771 = vmatpush1.bf16.msra.mxu0 %v7521
  %7772 = vmatprep.subr.bf16.mxu0 0
  %7773 = vmatpush1.bf16.msra.mxu0 %v7522
  %7774 = vmatprep.subr.bf16.mxu0 0
  %7775 = vmatpush1.bf16.msra.mxu0 %v7523
  %7776 = vmatprep.subr.bf16.mxu0 0
  %7777 = vmatpush1.bf16.msra.mxu0 %v7524
  %7778 = vmatprep.subr.bf16.mxu0 0
  %7779 = vmatpush1.bf16.msra.mxu0 %v7525
  %7780 = vmatprep.subr.bf16.mxu0 0
  %7781 = vmatpush1.bf16.msra.mxu0 %v7526
  %7782 = vmatprep.subr.bf16.mxu0 0
  %7783 = vmatpush1.bf16.msra.mxu0 %v7527
  %7784 = vmatprep.subr.bf16.mxu0 0
  %7785 = vmatpush1.bf16.msra.mxu0 %v7528
  %7786 = vmatprep.subr.bf16.mxu0 0
  %7787 = vmatpush1.bf16.msra.mxu0 %v7529
  %7788 = vmatprep.subr.bf16.mxu0 0
  %7789 = vmatpush1.bf16.msra.mxu0 %v7530
  %7790 = vmatprep.mubr.bf16.mxu0 %v7751
  %7791 = vmatmul.mubr.bf16.gmra.mrb[0].mxu0 %v7750
  %v7792 = vpop.f32.mrb[0].mxu0
  %v7793 = vadd.f32 0.0, %v7792
  %v7794 = vpop.f32.mrb[0].mxu0
  %v7795 = vpop.f32.mrb[0].mxu0
  %v7796 = vadd.f32 0.0, %v7795
  %v7797 = vpop.f32.mrb[0].mxu0
  %7798 = vmatprep.mubr.bf16.mxu0 %v7753
  %7799 = vmatmul.mubr.bf16.gmra.mrb[0].mxu0 %v7752
  %v7800 = vpop.f32.mrb[0].mxu0
  %v7801 = vadd.f32 0.0, %v7800
  %v7802 = vpop.f32.mrb[0].mxu0
  %v7803 = vpop.f32.mrb[0].mxu0
  %v7804 = vadd.f32 0.0, %v7803
  %v7805 = vpop.f32.mrb[0].mxu0
  %7806 = vmatprep.mubr.bf16.mxu0 %v7755
  %7807 = vmatmul.mubr.bf16.gmra.mrb[0].mxu0 %v7754
  %v7808 = vpop.f32.mrb[0].mxu0
  %v7809 = vadd.f32 0.0, %v7808
  %v7810 = vpop.f32.mrb[0].mxu0
  %v7811 = vpop.f32.mrb[0].mxu0
  %v7812 = vadd.f32 0.0, %v7811
  %v7813 = vpop.f32.mrb[0].mxu0
  %7814 = vmatprep.mubr.bf16.mxu0 %v7757
  %7815 = vmatmul.mubr.bf16.gmra.mrb[0].mxu0 %v7756
  %v7816 = vpop.f32.mrb[0].mxu0
  %v7817 = vadd.f32 0.0, %v7816
  %v7818 = vpop.f32.mrb[0].mxu0
  %v7819 = vpop.f32.mrb[0].mxu0
  %v7820 = vadd.f32 0.0, %v7819
  %v7821 = vpop.f32.mrb[0].mxu0
  %7822 = vdwg.mxu0
  %v7823 = vadd.f32 %v7720, %v7793
  %v7824 = vadd.f32 %v7723, %v7796
  %v7825 = vadd.f32 %v7728, %v7801
  %v7826 = vadd.f32 %v7731, %v7804
  %v7827 = vadd.f32 %v7736, %v7809
  %v7828 = vadd.f32 %v7739, %v7812
  %v7829 = vadd.f32 %v7744, %v7817
  %v7830 = vadd.f32 %v7747, %v7820
  %7831 = vmatprep.subr.bf16.mxu0 0
  %7832 = vmatpush1.bf16.msra.mxu0 %v7152
  %7833 = vmatprep.subr.bf16.mxu0 0
  %7834 = vmatpush1.bf16.msra.mxu0 %v7153
  %7835 = vmatprep.subr.bf16.mxu0 0
  %7836 = vmatpush1.bf16.msra.mxu0 %v7154
  %7837 = vmatprep.subr.bf16.mxu0 0
  %7838 = vmatpush1.bf16.msra.mxu0 %v7155
  %7839 = vmatprep.subr.bf16.mxu0 0
  %7840 = vmatpush1.bf16.msra.mxu0 %v7156
  %7841 = vmatprep.subr.bf16.mxu0 0
  %7842 = vmatpush1.bf16.msra.mxu0 %v7157
  %7843 = vmatprep.subr.bf16.mxu0 0
  %7844 = vmatpush1.bf16.msra.mxu0 %v7158
  %7845 = vmatprep.subr.bf16.mxu0 0
  %7846 = vmatpush1.bf16.msra.mxu0 %v7159
  %7847 = vmatprep.subr.bf16.mxu0 0
  %7848 = vmatpush1.bf16.msra.mxu0 %v7160
  %7849 = vmatprep.subr.bf16.mxu0 0
  %7850 = vmatpush1.bf16.msra.mxu0 %v7161
  %7851 = vmatprep.subr.bf16.mxu0 0
  %7852 = vmatpush1.bf16.msra.mxu0 %v7162
  %7853 = vmatprep.subr.bf16.mxu0 0
  %7854 = vmatpush1.bf16.msra.mxu0 %v7163
  %7855 = vmatprep.subr.bf16.mxu0 0
  %7856 = vmatpush1.bf16.msra.mxu0 %v7164
  %7857 = vmatprep.subr.bf16.mxu0 0
  %7858 = vmatpush1.bf16.msra.mxu0 %v7165
  %7859 = vmatprep.subr.bf16.mxu0 0
  %7860 = vmatpush1.bf16.msra.mxu0 %v7166
  %7861 = vmatprep.subr.bf16.mxu0 0
  %7862 = vmatpush1.bf16.msra.mxu0 %v7167
  %7863 = vmatprep.mubr.bf16.mxu0 %v7751
  %7864 = vmatmul.mubr.bf16.gmra.mrb[0].mxu0 %v7750
  %v7865 = vpop.f32.mrb[0].mxu0
  %v7866 = vadd.f32 0.0, %v7865
  %v7867 = vpop.f32.mrb[0].mxu0
  %v7868 = vpop.f32.mrb[0].mxu0
  %v7869 = vadd.f32 0.0, %v7868
  %v7870 = vpop.f32.mrb[0].mxu0
  %7871 = vmatprep.mubr.bf16.mxu0 %v7753
  %7872 = vmatmul.mubr.bf16.gmra.mrb[0].mxu0 %v7752
  %v7873 = vpop.f32.mrb[0].mxu0
  %v7874 = vadd.f32 0.0, %v7873
  %v7875 = vpop.f32.mrb[0].mxu0
  %v7876 = vpop.f32.mrb[0].mxu0
  %v7877 = vadd.f32 0.0, %v7876
  %v7878 = vpop.f32.mrb[0].mxu0
  %7879 = vmatprep.mubr.bf16.mxu0 %v7755
  %7880 = vmatmul.mubr.bf16.gmra.mrb[0].mxu0 %v7754
  %v7881 = vpop.f32.mrb[0].mxu0
  %v7882 = vadd.f32 0.0, %v7881
  %v7883 = vpop.f32.mrb[0].mxu0
  %v7884 = vpop.f32.mrb[0].mxu0
  %v7885 = vadd.f32 0.0, %v7884
  %v7886 = vpop.f32.mrb[0].mxu0
  %7887 = vmatprep.mubr.bf16.mxu0 %v7757
  %7888 = vmatmul.mubr.bf16.gmra.mrb[0].mxu0 %v7756
  %v7889 = vpop.f32.mrb[0].mxu0
  %v7890 = vadd.f32 0.0, %v7889
  %v7891 = vpop.f32.mrb[0].mxu0
  %v7892 = vpop.f32.mrb[0].mxu0
  %v7893 = vadd.f32 0.0, %v7892
  %v7894 = vpop.f32.mrb[0].mxu0
  %7895 = vdwg.mxu0
  %7896 = vmatprep.subr.bf16.mxu0 0
  %7897 = vmatpush1.bf16.msra.mxu0 %v7313
  %7898 = vmatprep.subr.bf16.mxu0 0
  %7899 = vmatpush1.bf16.msra.mxu0 %v7314
  %7900 = vmatprep.subr.bf16.mxu0 0
  %7901 = vmatpush1.bf16.msra.mxu0 %v7315
  %7902 = vmatprep.subr.bf16.mxu0 0
  %7903 = vmatpush1.bf16.msra.mxu0 %v7316
  %7904 = vmatprep.subr.bf16.mxu0 0
  %7905 = vmatpush1.bf16.msra.mxu0 %v7317
  %7906 = vmatprep.subr.bf16.mxu0 0
  %7907 = vmatpush1.bf16.msra.mxu0 %v7318
  %7908 = vmatprep.subr.bf16.mxu0 0
  %7909 = vmatpush1.bf16.msra.mxu0 %v7319
  %7910 = vmatprep.subr.bf16.mxu0 0
  %7911 = vmatpush1.bf16.msra.mxu0 %v7320
  %7912 = vmatprep.subr.bf16.mxu0 0
  %7913 = vmatpush1.bf16.msra.mxu0 %v7321
  %7914 = vmatprep.subr.bf16.mxu0 0
  %7915 = vmatpush1.bf16.msra.mxu0 %v7322
  %7916 = vmatprep.subr.bf16.mxu0 0
  %7917 = vmatpush1.bf16.msra.mxu0 %v7323
  %7918 = vmatprep.subr.bf16.mxu0 0
  %7919 = vmatpush1.bf16.msra.mxu0 %v7324
  %7920 = vmatprep.subr.bf16.mxu0 0
  %7921 = vmatpush1.bf16.msra.mxu0 %v7325
  %7922 = vmatprep.subr.bf16.mxu0 0
  %7923 = vmatpush1.bf16.msra.mxu0 %v7326
  %7924 = vmatprep.subr.bf16.mxu0 0
  %7925 = vmatpush1.bf16.msra.mxu0 %v7327
  %7926 = vmatprep.subr.bf16.mxu0 0
  %7927 = vmatpush1.bf16.msra.mxu0 %v7328
  %7928 = vmatprep.mubr.bf16.mxu0 %v7444
  %7929 = vmatmul.mubr.bf16.gmra.mrb[0].mxu0 %v7443
  %v7930 = vpop.f32.mrb[0].mxu0
  %v7931 = vadd.f32 %v7866, %v7930
  %v7932 = vpop.f32.mrb[0].mxu0
  %v7933 = vpop.f32.mrb[0].mxu0
  %v7934 = vadd.f32 %v7869, %v7933
  %v7935 = vpop.f32.mrb[0].mxu0
  %7936 = vmatprep.mubr.bf16.mxu0 %v7446
  %7937 = vmatmul.mubr.bf16.gmra.mrb[0].mxu0 %v7445
  %v7938 = vpop.f32.mrb[0].mxu0
  %v7939 = vadd.f32 %v7874, %v7938
  %v7940 = vpop.f32.mrb[0].mxu0
  %v7941 = vpop.f32.mrb[0].mxu0
  %v7942 = vadd.f32 %v7877, %v7941
  %v7943 = vpop.f32.mrb[0].mxu0
  %7944 = vmatprep.mubr.bf16.mxu0 %v7448
  %7945 = vmatmul.mubr.bf16.gmra.mrb[0].mxu0 %v7447
  %v7946 = vpop.f32.mrb[0].mxu0
  %v7947 = vadd.f32 %v7882, %v7946
  %v7948 = vpop.f32.mrb[0].mxu0
  %v7949 = vpop.f32.mrb[0].mxu0
  %v7950 = vadd.f32 %v7885, %v7949
  %v7951 = vpop.f32.mrb[0].mxu0
  %7952 = vmatprep.mubr.bf16.mxu0 %v7450
  %7953 = vmatmul.mubr.bf16.gmra.mrb[0].mxu0 %v7449
  %v7954 = vpop.f32.mrb[0].mxu0
  %v7955 = vadd.f32 %v7890, %v7954
  %v7956 = vpop.f32.mrb[0].mxu0
  %v7957 = vpop.f32.mrb[0].mxu0
  %v7958 = vadd.f32 %v7893, %v7957
  %v7959 = vpop.f32.mrb[0].mxu0
  %7960 = vdwg.mxu0
  %v7961 = vpack.c.bf16 %v6923, %v6985
  %v7962 = vpack.c.bf16 %v6924, %v6986
  %v7963 = vpack.c.bf16 %v6987, %v6987
  %v7964 = vpack.c.bf16 %v6988, %v6988
  %vm7965 = vsmask.f32 7424
  %v7967 = vshrl.u32 %v7961, 16
  %v7969 = vshll.u32 %v7961, 16
  %v7971 = vrot.slane %v7969, 1
  %v7972 = vor.u32 %v7967, %v7971
  %v7974 = vshll.u32 %v7041, 16
  %v7976 = vrot.slane %v7974, 1
  %v7977 = vsel %vm7965, %v7972, %v7976
  %v7979 = vshrl.u32 %v7962, 16
  %v7981 = vshll.u32 %v7962, 16
  %v7983 = vrot.slane %v7981, 1
  %v7984 = vor.u32 %v7979, %v7983
  %v7986 = vshll.u32 %v7042, 16
  %v7988 = vrot.slane %v7986, 1
  %v7989 = vsel %vm7965, %v7984, %v7988
  %v7990 = vshrl.u32 %v7041, 16
  %v7992 = vor.u32 %v7990, %v7976
  %v7994 = vshll.u32 %v7043, 16
  %v7996 = vrot.slane %v7994, 1
  %v7997 = vsel %vm7965, %v7992, %v7996
  %v7998 = vshrl.u32 %v7042, 16
  %v8000 = vor.u32 %v7998, %v7988
  %v8002 = vshll.u32 %v7044, 16
  %v8004 = vrot.slane %v8002, 1
  %v8005 = vsel %vm7965, %v8000, %v8004
  %v8006 = vshrl.u32 %v7043, 16
  %v8008 = vor.u32 %v8006, %v7996
  %v8010 = vshll.u32 %v7045, 16
  %v8012 = vrot.slane %v8010, 1
  %v8013 = vsel %vm7965, %v8008, %v8012
  %v8014 = vshrl.u32 %v7044, 16
  %v8016 = vor.u32 %v8014, %v8004
  %v8018 = vshll.u32 %v7046, 16
  %v8020 = vrot.slane %v8018, 1
  %v8021 = vsel %vm7965, %v8016, %v8020
  %v8022 = vshrl.u32 %v7045, 16
  %v8024 = vor.u32 %v8022, %v8012
  %v8026 = vshll.u32 %v7963, 16
  %v8028 = vrot.slane %v8026, 1
  %v8029 = vsel %vm7965, %v8024, %v8028
  %v8030 = vshrl.u32 %v7046, 16
  %v8032 = vor.u32 %v8030, %v8020
  %v8034 = vshll.u32 %v7964, 16
  %v8036 = vrot.slane %v8034, 1
  %v8037 = vsel %vm7965, %v8032, %v8036
  %8046 = vmatprep.subr.bf16.mxu0 0
  %8047 = vmatpush1.bf16.msra.mxu0 %v7515
  %8048 = vmatprep.subr.bf16.mxu0 0
  %8049 = vmatpush1.bf16.msra.mxu0 %v7516
  %8050 = vmatprep.subr.bf16.mxu0 0
  %8051 = vmatpush1.bf16.msra.mxu0 %v7517
  %8052 = vmatprep.subr.bf16.mxu0 0
  %8053 = vmatpush1.bf16.msra.mxu0 %v7518
  %8054 = vmatprep.subr.bf16.mxu0 0
  %8055 = vmatpush1.bf16.msra.mxu0 %v7519
  %8056 = vmatprep.subr.bf16.mxu0 0
  %8057 = vmatpush1.bf16.msra.mxu0 %v7520
  %8058 = vmatprep.subr.bf16.mxu0 0
  %8059 = vmatpush1.bf16.msra.mxu0 %v7521
  %8060 = vmatprep.subr.bf16.mxu0 0
  %8061 = vmatpush1.bf16.msra.mxu0 %v7522
  %8062 = vmatprep.subr.bf16.mxu0 0
  %8063 = vmatpush1.bf16.msra.mxu0 %v7523
  %8064 = vmatprep.subr.bf16.mxu0 0
  %8065 = vmatpush1.bf16.msra.mxu0 %v7524
  %8066 = vmatprep.subr.bf16.mxu0 0
  %8067 = vmatpush1.bf16.msra.mxu0 %v7525
  %8068 = vmatprep.subr.bf16.mxu0 0
  %8069 = vmatpush1.bf16.msra.mxu0 %v7526
  %8070 = vmatprep.subr.bf16.mxu0 0
  %8071 = vmatpush1.bf16.msra.mxu0 %v7527
  %8072 = vmatprep.subr.bf16.mxu0 0
  %8073 = vmatpush1.bf16.msra.mxu0 %v7528
  %8074 = vmatprep.subr.bf16.mxu0 0
  %8075 = vmatpush1.bf16.msra.mxu0 %v7529
  %8076 = vmatprep.subr.bf16.mxu0 0
  %8077 = vmatpush1.bf16.msra.mxu0 %v7530
  %8078 = vmatprep.mubr.bf16.mxu0 %v7989
  %8079 = vmatmul.mubr.bf16.gmra.mrb[0].mxu0 %v7977
  %v8080 = vpop.f32.mrb[0].mxu0
  %v8081 = vadd.f32 0.0, %v8080
  %v8082 = vpop.f32.mrb[0].mxu0
  %v8083 = vpop.f32.mrb[0].mxu0
  %v8084 = vadd.f32 0.0, %v8083
  %v8085 = vpop.f32.mrb[0].mxu0
  %8086 = vmatprep.mubr.bf16.mxu0 %v8005
  %8087 = vmatmul.mubr.bf16.gmra.mrb[0].mxu0 %v7997
  %v8088 = vpop.f32.mrb[0].mxu0
  %v8089 = vadd.f32 0.0, %v8088
  %v8090 = vpop.f32.mrb[0].mxu0
  %v8091 = vpop.f32.mrb[0].mxu0
  %v8092 = vadd.f32 0.0, %v8091
  %v8093 = vpop.f32.mrb[0].mxu0
  %8094 = vmatprep.mubr.bf16.mxu0 %v8021
  %8095 = vmatmul.mubr.bf16.gmra.mrb[0].mxu0 %v8013
  %v8096 = vpop.f32.mrb[0].mxu0
  %v8097 = vadd.f32 0.0, %v8096
  %v8098 = vpop.f32.mrb[0].mxu0
  %v8099 = vpop.f32.mrb[0].mxu0
  %v8100 = vadd.f32 0.0, %v8099
  %v8101 = vpop.f32.mrb[0].mxu0
  %8102 = vmatprep.mubr.bf16.mxu0 %v8037
  %8103 = vmatmul.mubr.bf16.gmra.mrb[0].mxu0 %v8029
  %v8104 = vpop.f32.mrb[0].mxu0
  %v8105 = vadd.f32 0.0, %v8104
  %v8106 = vpop.f32.mrb[0].mxu0
  %v8107 = vpop.f32.mrb[0].mxu0
  %v8108 = vadd.f32 0.0, %v8107
  %v8109 = vpop.f32.mrb[0].mxu0
  %8110 = vdwg.mxu0
  %v8111 = vadd.f32 %v7931, %v8081
  %v8112 = vadd.f32 %v7934, %v8084
  %v8113 = vadd.f32 %v7939, %v8089
  %v8114 = vadd.f32 %v7942, %v8092
  %v8115 = vadd.f32 %v7947, %v8097
  %v8116 = vadd.f32 %v7950, %v8100
  %v8117 = vadd.f32 %v7955, %v8105
  %v8118 = vadd.f32 %v7958, %v8108
  %8119 = vmatprep.subr.bf16.mxu0 0
  %8120 = vmatpush1.bf16.msra.mxu0 %v7152
  %8121 = vmatprep.subr.bf16.mxu0 0
  %8122 = vmatpush1.bf16.msra.mxu0 %v7153
  %8123 = vmatprep.subr.bf16.mxu0 0
  %8124 = vmatpush1.bf16.msra.mxu0 %v7154
  %8125 = vmatprep.subr.bf16.mxu0 0
  %8126 = vmatpush1.bf16.msra.mxu0 %v7155
  %8127 = vmatprep.subr.bf16.mxu0 0
  %8128 = vmatpush1.bf16.msra.mxu0 %v7156
  %8129 = vmatprep.subr.bf16.mxu0 0
  %8130 = vmatpush1.bf16.msra.mxu0 %v7157
  %8131 = vmatprep.subr.bf16.mxu0 0
  %8132 = vmatpush1.bf16.msra.mxu0 %v7158
  %8133 = vmatprep.subr.bf16.mxu0 0
  %8134 = vmatpush1.bf16.msra.mxu0 %v7159
  %8135 = vmatprep.subr.bf16.mxu0 0
  %8136 = vmatpush1.bf16.msra.mxu0 %v7160
  %8137 = vmatprep.subr.bf16.mxu0 0
  %8138 = vmatpush1.bf16.msra.mxu0 %v7161
  %8139 = vmatprep.subr.bf16.mxu0 0
  %8140 = vmatpush1.bf16.msra.mxu0 %v7162
  %8141 = vmatprep.subr.bf16.mxu0 0
  %8142 = vmatpush1.bf16.msra.mxu0 %v7163
  %8143 = vmatprep.subr.bf16.mxu0 0
  %8144 = vmatpush1.bf16.msra.mxu0 %v7164
  %8145 = vmatprep.subr.bf16.mxu0 0
  %8146 = vmatpush1.bf16.msra.mxu0 %v7165
  %8147 = vmatprep.subr.bf16.mxu0 0
  %8148 = vmatpush1.bf16.msra.mxu0 %v7166
  %8149 = vmatprep.subr.bf16.mxu0 0
  %8150 = vmatpush1.bf16.msra.mxu0 %v7167
  %8151 = vmatprep.mubr.bf16.mxu0 %v7989
  %8152 = vmatmul.mubr.bf16.gmra.mrb[0].mxu0 %v7977
  %v8153 = vpop.f32.mrb[0].mxu0
  %v8154 = vadd.f32 0.0, %v8153
  %v8155 = vpop.f32.mrb[0].mxu0
  %v8156 = vpop.f32.mrb[0].mxu0
  %v8157 = vadd.f32 0.0, %v8156
  %v8158 = vpop.f32.mrb[0].mxu0
  %8159 = vmatprep.mubr.bf16.mxu0 %v8005
  %8160 = vmatmul.mubr.bf16.gmra.mrb[0].mxu0 %v7997
  %v8161 = vpop.f32.mrb[0].mxu0
  %v8162 = vadd.f32 0.0, %v8161
  %v8163 = vpop.f32.mrb[0].mxu0
  %v8164 = vpop.f32.mrb[0].mxu0
  %v8165 = vadd.f32 0.0, %v8164
  %v8166 = vpop.f32.mrb[0].mxu0
  %8167 = vmatprep.mubr.bf16.mxu0 %v8021
  %8168 = vmatmul.mubr.bf16.gmra.mrb[0].mxu0 %v8013
  %v8169 = vpop.f32.mrb[0].mxu0
  %v8170 = vadd.f32 0.0, %v8169
  %v8171 = vpop.f32.mrb[0].mxu0
  %v8172 = vpop.f32.mrb[0].mxu0
  %v8173 = vadd.f32 0.0, %v8172
  %v8174 = vpop.f32.mrb[0].mxu0
  %8175 = vmatprep.mubr.bf16.mxu0 %v8037
  %8176 = vmatmul.mubr.bf16.gmra.mrb[0].mxu0 %v8029
  %v8177 = vpop.f32.mrb[0].mxu0
  %v8178 = vadd.f32 0.0, %v8177
  %v8179 = vpop.f32.mrb[0].mxu0
  %v8180 = vpop.f32.mrb[0].mxu0
  %v8181 = vadd.f32 0.0, %v8180
  %v8182 = vpop.f32.mrb[0].mxu0
  %8183 = vdwg.mxu0
  %8184 = vmatprep.subr.bf16.mxu0 0
  %8185 = vmatpush1.bf16.msra.mxu0 %v7313
  %8186 = vmatprep.subr.bf16.mxu0 0
  %8187 = vmatpush1.bf16.msra.mxu0 %v7314
  %8188 = vmatprep.subr.bf16.mxu0 0
  %8189 = vmatpush1.bf16.msra.mxu0 %v7315
  %8190 = vmatprep.subr.bf16.mxu0 0
  %8191 = vmatpush1.bf16.msra.mxu0 %v7316
  %8192 = vmatprep.subr.bf16.mxu0 0
  %8193 = vmatpush1.bf16.msra.mxu0 %v7317
  %8194 = vmatprep.subr.bf16.mxu0 0
  %8195 = vmatpush1.bf16.msra.mxu0 %v7318
  %8196 = vmatprep.subr.bf16.mxu0 0
  %8197 = vmatpush1.bf16.msra.mxu0 %v7319
  %8198 = vmatprep.subr.bf16.mxu0 0
  %8199 = vmatpush1.bf16.msra.mxu0 %v7320
  %8200 = vmatprep.subr.bf16.mxu0 0
  %8201 = vmatpush1.bf16.msra.mxu0 %v7321
  %8202 = vmatprep.subr.bf16.mxu0 0
  %8203 = vmatpush1.bf16.msra.mxu0 %v7322
  %8204 = vmatprep.subr.bf16.mxu0 0
  %8205 = vmatpush1.bf16.msra.mxu0 %v7323
  %8206 = vmatprep.subr.bf16.mxu0 0
  %8207 = vmatpush1.bf16.msra.mxu0 %v7324
  %8208 = vmatprep.subr.bf16.mxu0 0
  %8209 = vmatpush1.bf16.msra.mxu0 %v7325
  %8210 = vmatprep.subr.bf16.mxu0 0
  %8211 = vmatpush1.bf16.msra.mxu0 %v7326
  %8212 = vmatprep.subr.bf16.mxu0 0
  %8213 = vmatpush1.bf16.msra.mxu0 %v7327
  %8214 = vmatprep.subr.bf16.mxu0 0
  %8215 = vmatpush1.bf16.msra.mxu0 %v7328
  %8216 = vmatprep.mubr.bf16.mxu0 %v7751
  %8217 = vmatmul.mubr.bf16.gmra.mrb[0].mxu0 %v7750
  %v8218 = vpop.f32.mrb[0].mxu0
  %v8219 = vadd.f32 %v8154, %v8218
  %v8220 = vpop.f32.mrb[0].mxu0
  %v8221 = vpop.f32.mrb[0].mxu0
  %v8222 = vadd.f32 %v8157, %v8221
  %v8223 = vpop.f32.mrb[0].mxu0
  %8224 = vmatprep.mubr.bf16.mxu0 %v7753
  %8225 = vmatmul.mubr.bf16.gmra.mrb[0].mxu0 %v7752
  %v8226 = vpop.f32.mrb[0].mxu0
  %v8227 = vadd.f32 %v8162, %v8226
  %v8228 = vpop.f32.mrb[0].mxu0
  %v8229 = vpop.f32.mrb[0].mxu0
  %v8230 = vadd.f32 %v8165, %v8229
  %v8231 = vpop.f32.mrb[0].mxu0
  %8232 = vmatprep.mubr.bf16.mxu0 %v7755
  %8233 = vmatmul.mubr.bf16.gmra.mrb[0].mxu0 %v7754
  %v8234 = vpop.f32.mrb[0].mxu0
  %v8235 = vadd.f32 %v8170, %v8234
  %v8236 = vpop.f32.mrb[0].mxu0
  %v8237 = vpop.f32.mrb[0].mxu0
  %v8238 = vadd.f32 %v8173, %v8237
  %v8239 = vpop.f32.mrb[0].mxu0
  %8240 = vmatprep.mubr.bf16.mxu0 %v7757
  %8241 = vmatmul.mubr.bf16.gmra.mrb[0].mxu0 %v7756
  %v8242 = vpop.f32.mrb[0].mxu0
  %v8243 = vadd.f32 %v8178, %v8242
  %v8244 = vpop.f32.mrb[0].mxu0
  %v8245 = vpop.f32.mrb[0].mxu0
  %v8246 = vadd.f32 %v8181, %v8245
  %v8247 = vpop.f32.mrb[0].mxu0
  %8248 = vdwg.mxu0
  %v8249 = vpack.c.bf16 %v6991, %v6989
  %v8250 = vpack.c.bf16 %v6992, %v6990
  %v8251 = vpack.c.bf16 %v6995, %v6993
  %v8252 = vpack.c.bf16 %v6996, %v6994
  %v8253 = vpack.c.bf16 %v6999, %v6997
  %v8254 = vpack.c.bf16 %v7000, %v6998
  %v8255 = vpack.c.bf16 %v7003, %v7001
  %v8256 = vpack.c.bf16 %v7004, %v7002
  %v8257 = vpack.c.bf16 %v7005, %v7005
  %v8258 = vpack.c.bf16 %v7006, %v7006
  %v8260 = vshrl.u32 %v8249, 16
  %v8262 = vshll.u32 %v8249, 16
  %v8264 = vrot.slane %v8262, 1
  %v8265 = vor.u32 %v8260, %v8264
  %v8267 = vshll.u32 %v8251, 16
  %v8269 = vrot.slane %v8267, 1
  %v8270 = vsel %vm7965, %v8265, %v8269
  %v8272 = vshrl.u32 %v8250, 16
  %v8274 = vshll.u32 %v8250, 16
  %v8276 = vrot.slane %v8274, 1
  %v8277 = vor.u32 %v8272, %v8276
  %v8279 = vshll.u32 %v8252, 16
  %v8281 = vrot.slane %v8279, 1
  %v8282 = vsel %vm7965, %v8277, %v8281
  %v8283 = vshrl.u32 %v8251, 16
  %v8285 = vor.u32 %v8283, %v8269
  %v8287 = vshll.u32 %v8253, 16
  %v8289 = vrot.slane %v8287, 1
  %v8290 = vsel %vm7965, %v8285, %v8289
  %v8291 = vshrl.u32 %v8252, 16
  %v8293 = vor.u32 %v8291, %v8281
  %v8295 = vshll.u32 %v8254, 16
  %v8297 = vrot.slane %v8295, 1
  %v8298 = vsel %vm7965, %v8293, %v8297
  %v8299 = vshrl.u32 %v8253, 16
  %v8301 = vor.u32 %v8299, %v8289
  %v8303 = vshll.u32 %v8255, 16
  %v8305 = vrot.slane %v8303, 1
  %v8306 = vsel %vm7965, %v8301, %v8305
  %v8307 = vshrl.u32 %v8254, 16
  %v8309 = vor.u32 %v8307, %v8297
  %v8311 = vshll.u32 %v8256, 16
  %v8313 = vrot.slane %v8311, 1
  %v8314 = vsel %vm7965, %v8309, %v8313
  %v8315 = vshrl.u32 %v8255, 16
  %v8317 = vor.u32 %v8315, %v8305
  %v8319 = vshll.u32 %v8257, 16
  %v8321 = vrot.slane %v8319, 1
  %v8322 = vsel %vm7965, %v8317, %v8321
  %v8323 = vshrl.u32 %v8256, 16
  %v8325 = vor.u32 %v8323, %v8313
  %v8327 = vshll.u32 %v8258, 16
  %v8329 = vrot.slane %v8327, 1
  %v8330 = vsel %vm7965, %v8325, %v8329
  %8339 = vmatprep.subr.bf16.mxu0 0
  %8340 = vmatpush1.bf16.msra.mxu0 %v7515
  %8341 = vmatprep.subr.bf16.mxu0 0
  %8342 = vmatpush1.bf16.msra.mxu0 %v7516
  %8343 = vmatprep.subr.bf16.mxu0 0
  %8344 = vmatpush1.bf16.msra.mxu0 %v7517
  %8345 = vmatprep.subr.bf16.mxu0 0
  %8346 = vmatpush1.bf16.msra.mxu0 %v7518
  %8347 = vmatprep.subr.bf16.mxu0 0
  %8348 = vmatpush1.bf16.msra.mxu0 %v7519
  %8349 = vmatprep.subr.bf16.mxu0 0
  %8350 = vmatpush1.bf16.msra.mxu0 %v7520
  %8351 = vmatprep.subr.bf16.mxu0 0
  %8352 = vmatpush1.bf16.msra.mxu0 %v7521
  %8353 = vmatprep.subr.bf16.mxu0 0
  %8354 = vmatpush1.bf16.msra.mxu0 %v7522
  %8355 = vmatprep.subr.bf16.mxu0 0
  %8356 = vmatpush1.bf16.msra.mxu0 %v7523
  %8357 = vmatprep.subr.bf16.mxu0 0
  %8358 = vmatpush1.bf16.msra.mxu0 %v7524
  %8359 = vmatprep.subr.bf16.mxu0 0
  %8360 = vmatpush1.bf16.msra.mxu0 %v7525
  %8361 = vmatprep.subr.bf16.mxu0 0
  %8362 = vmatpush1.bf16.msra.mxu0 %v7526
  %8363 = vmatprep.subr.bf16.mxu0 0
  %8364 = vmatpush1.bf16.msra.mxu0 %v7527
  %8365 = vmatprep.subr.bf16.mxu0 0
  %8366 = vmatpush1.bf16.msra.mxu0 %v7528
  %8367 = vmatprep.subr.bf16.mxu0 0
  %8368 = vmatpush1.bf16.msra.mxu0 %v7529
  %8369 = vmatprep.subr.bf16.mxu0 0
  %8370 = vmatpush1.bf16.msra.mxu0 %v7530
  %8371 = vmatprep.mubr.bf16.mxu0 %v8282
  %8372 = vmatmul.mubr.bf16.gmra.mrb[0].mxu0 %v8270
  %v8373 = vpop.f32.mrb[0].mxu0
  %v8374 = vadd.f32 0.0, %v8373
  %v8375 = vpop.f32.mrb[0].mxu0
  %v8376 = vpop.f32.mrb[0].mxu0
  %v8377 = vadd.f32 0.0, %v8376
  %v8378 = vpop.f32.mrb[0].mxu0
  %8379 = vmatprep.mubr.bf16.mxu0 %v8298
  %8380 = vmatmul.mubr.bf16.gmra.mrb[0].mxu0 %v8290
  %v8381 = vpop.f32.mrb[0].mxu0
  %v8382 = vadd.f32 0.0, %v8381
  %v8383 = vpop.f32.mrb[0].mxu0
  %v8384 = vpop.f32.mrb[0].mxu0
  %v8385 = vadd.f32 0.0, %v8384
  %v8386 = vpop.f32.mrb[0].mxu0
  %8387 = vmatprep.mubr.bf16.mxu0 %v8314
  %8388 = vmatmul.mubr.bf16.gmra.mrb[0].mxu0 %v8306
  %v8389 = vpop.f32.mrb[0].mxu0
  %v8390 = vadd.f32 0.0, %v8389
  %v8391 = vpop.f32.mrb[0].mxu0
  %v8392 = vpop.f32.mrb[0].mxu0
  %v8393 = vadd.f32 0.0, %v8392
  %v8394 = vpop.f32.mrb[0].mxu0
  %8395 = vmatprep.mubr.bf16.mxu0 %v8330
  %8396 = vmatmul.mubr.bf16.gmra.mrb[0].mxu0 %v8322
  %v8397 = vpop.f32.mrb[0].mxu0
  %v8398 = vadd.f32 0.0, %v8397
  %v8399 = vpop.f32.mrb[0].mxu0
  %v8400 = vpop.f32.mrb[0].mxu0
  %v8401 = vadd.f32 0.0, %v8400
  %v8402 = vpop.f32.mrb[0].mxu0
  %8403 = vdwg.mxu0
  %v8404 = vadd.f32 %v8219, %v8374
  %v8405 = vadd.f32 %v8222, %v8377
  %v8406 = vadd.f32 %v8227, %v8382
  %v8407 = vadd.f32 %v8230, %v8385
  %v8408 = vadd.f32 %v8235, %v8390
  %v8409 = vadd.f32 %v8238, %v8393
  %v8410 = vadd.f32 %v8243, %v8398
  %v8411 = vadd.f32 %v8246, %v8401
  %v8412 = vtanh.pop %v7612
  %v8413 = vtanh.pop %v7613
  %v8414 = vtanh.pop %v7614
  %v8415 = vtanh.pop %v7615
  %v8416 = vtanh.pop %v7616
  %v8417 = vtanh.pop %v7617
  %v8418 = vtanh.pop %v7618
  %v8419 = vtanh.pop %v7619
  %8420 = vst [vmem:[%s12] sm:$0xff] %v8412
  %8421 = vst [vmem:[%s12 + $0x8] sm:$0xff] %v8413
  %8422 = vst [vmem:[%s12 + $0x10] sm:$0xff] %v8414
  %8423 = vst [vmem:[%s12 + $0x18] sm:$0xff] %v8415
  %8424 = vst [vmem:[%s12 + $0x20] sm:$0xff] %v8416
  %8425 = vst [vmem:[%s12 + $0x28] sm:$0xff] %v8417
  %8426 = vst [vmem:[%s12 + $0x30] sm:$0xff] %v8418
  %8427 = vst [vmem:[%s12 + $0x38] sm:$0xff] %v8419
  %v8428 = vtanh.pop %v7823
  %v8429 = vtanh.pop %v7824
  %v8430 = vtanh.pop %v7825
  %v8431 = vtanh.pop %v7826
  %v8432 = vtanh.pop %v7827
  %v8433 = vtanh.pop %v7828
  %v8434 = vtanh.pop %v7829
  %v8435 = vtanh.pop %v7830
  %8436 = vst [vmem:[%s12 + $0x40] sm:$0xff] %v8428
  %8437 = vst [vmem:[%s12 + $0x48] sm:$0xff] %v8429
  %8438 = vst [vmem:[%s12 + $0x50] sm:$0xff] %v8430
  %8439 = vst [vmem:[%s12 + $0x58] sm:$0xff] %v8431
  %8440 = vst [vmem:[%s12 + $0x60] sm:$0xff] %v8432
  %8441 = vst [vmem:[%s12 + $0x68] sm:$0xff] %v8433
  %8442 = vst [vmem:[%s12 + $0x70] sm:$0xff] %v8434
  %8443 = vst [vmem:[%s12 + $0x78] sm:$0xff] %v8435
  %v8444 = vtanh.pop %v8111
  %v8445 = vtanh.pop %v8112
  %v8446 = vtanh.pop %v8113
  %v8447 = vtanh.pop %v8114
  %v8448 = vtanh.pop %v8115
  %v8449 = vtanh.pop %v8116
  %v8450 = vtanh.pop %v8117
  %v8451 = vtanh.pop %v8118
  %8452 = vst [vmem:[%s12 + $0x80] sm:$0xff] %v8444
  %8453 = vst [vmem:[%s12 + $0x88] sm:$0xff] %v8445
  %8454 = vst [vmem:[%s12 + $0x90] sm:$0xff] %v8446
  %8455 = vst [vmem:[%s12 + $0x98] sm:$0xff] %v8447
  %8456 = vst [vmem:[%s12 + $0xa0] sm:$0xff] %v8448
  %8457 = vst [vmem:[%s12 + $0xa8] sm:$0xff] %v8449
  %8458 = vst [vmem:[%s12 + $0xb0] sm:$0xff] %v8450
  %8459 = vst [vmem:[%s12 + $0xb8] sm:$0xff] %v8451
  %v8460 = vtanh.pop %v8404
  %v8461 = vtanh.pop %v8405
  %v8462 = vtanh.pop %v8406
  %v8463 = vtanh.pop %v8407
  %v8464 = vtanh.pop %v8408
  %v8465 = vtanh.pop %v8409
  %v8466 = vtanh.pop %v8410
  %v8467 = vtanh.pop %v8411
  %8468 = vst [vmem:[%s12 + $0xc0] sm:$0xff] %v8460
  %8469 = vst [vmem:[%s12 + $0xc8] sm:$0xff] %v8461
  %8470 = vst [vmem:[%s12 + $0xd0] sm:$0xff] %v8462
  %8471 = vst [vmem:[%s12 + $0xd8] sm:$0xff] %v8463
  %8472 = vst [vmem:[%s12 + $0xe0] sm:$0xff] %v8464
  %8473 = vst [vmem:[%s12 + $0xe8] sm:$0xff] %v8465
  %8474 = vst [vmem:[%s12 + $0xf0] sm:$0xff] %v8466
  %8475 = vst [vmem:[%s12 + $0xf8] sm:$0xff] %v8467
  // Predicated region
  $region50: #{dc_generator_forward.1} parent=0 // pred_check
    _
  $region51: #{dc_generator_forward.1} parent=0 // pred_check_branch
    %8477 = sbr.rel (0) target = $region53
  $region52: #{dc_generator_forward.1} parent=0 // pred_region
    _
  $region53: #{dc_generator_forward.1} parent=0 // pred_fallthru
    _
  // Predicated region
  $region54: #{dc_generator_forward.1} parent=0 // pred_check
    _
  $region55: #{dc_generator_forward.1} parent=0 // pred_check_branch
    %8479 = sbr.rel (0) target = $region57
  $region56: #{dc_generator_forward.1} parent=0 // pred_region
    _
  $region57: #{dc_generator_forward.1} parent=0 // pred_fallthru
    _

</llo_original>
